<compile_context>
chip_gen: v6e
topology: v6e:2x2x1
jax: 0.10.0
libtpu: 0.0.40
codegen_flags: <defaults>
</compile_context>

<pallas_src>
import functools

import jax
import jax.numpy as jnp
from jax import lax
from jax.experimental import pallas as pl
from jax.experimental.pallas import tpu as pltpu


# ----------------------------------------------------------------------------
# The fused forward kernel
# ----------------------------------------------------------------------------

def _fused_forward_kernel(
    # per-token data (padded time-major rows, row = t*8 + b, R = S*8 rows)
    win_ref, other_ref, hard_ref, bert_ref, mask_ref, labels_ref, h0c0_ref,
    # packed weight slabs
    wslab_ref,   # bf16 (Rw, 128): matmul weights
    fslab_ref,   # f32  (Rf, 128): biases / BN / LN / recurrent weight
    # output
    loss_ref,
    # scratch
    xp_ref, hsf_ref, hsb_ref,
    *, B, S, P, hh, H, Dh, L, Co, label_pad, ln_eps, wl, fl):
  f32 = jnp.float32
  bf16 = jnp.bfloat16
  hid = 2 * hh

  def wslice(name):                 # bf16 matmul weight
    off, r, c = wl[name]
    return wslab_ref[pl.ds(off, r), pl.ds(0, c)]

  def fslice(name):                 # f32 bias / scale / recurrent weight
    off, r, c = fl[name]
    return fslab_ref[pl.ds(off, r), pl.ds(0, c)]

  def mmb(a, b):                    # bf16 MXU matmul, f32 accumulation
    return jnp.dot(a.astype(bf16), b.astype(bf16), preferred_element_type=f32)

  def mmf(a, b):                    # f32 matmul (LSTM recurrence only)
    return jnp.dot(a, b, preferred_element_type=f32)

  # ---- char CNN: one block-diagonal matmul over the P window positions ----
  y = jnp.maximum(mmb(win_ref[...], wslice('cnn_w_bd')) + fslice('cnn_b'), 0.0)
  char_feat = y[:, 0:Co]
  for p in range(1, P):
    char_feat = jnp.maximum(char_feat, y[:, p * Co:(p + 1) * Co])

  # ---- BatchNorm1d (eval, folded scale/shift) + input2mod (split matmul) ----
  o_bn = other_ref[...] * fslice('bno_s') + fslice('bno_b')
  c_bn = char_feat * fslice('bnc_s') + fslice('bnc_b')
  mod = (mmb(o_bn, wslice('i2m_wo')) + mmb(c_bn, wslice('i2m_wc'))
         + fslice('i2m_b'))

  # ---- BiLSTM: one fused lane-dense input projection (·,32)@(32,128), ------
  # then an unrolled recurrence with ONE block-diag matmul per timestep -------
  xp_ref[...] = mmb(mod, wslice('wih')) + fslice('bih')     # (R, 8*hh)

  # padding rows of the hidden-state scratch must stay finite (they are
  # masked in attention but still multiplied by ~0 probabilities)
  hsf_ref[...] = jnp.zeros_like(hsf_ref)
  hsb_ref[...] = jnp.zeros_like(hsb_ref)

  whh_bd = fslice('whh_bd')                 # (2*hh, 8*hh) block-diag, f32
  h = h0c0_ref[pl.ds(0, B), :]              # (B, 2*hh)  [hf | hb]
  c0 = h0c0_ref[pl.ds(8, B), :]             # (B, 2*hh)  [cf | cb]
  cf = c0[:, 0:hh]
  cb = c0[:, hh:hid]

  for t in range(S):
    rec = mmf(h, whh_bd)                                  # (B, 8*hh)
    xf = xp_ref[pl.ds(t * 8, B), :]                       # aligned row block
    xb = xp_ref[pl.ds((S - 1 - t) * 8, B), :]
    pf = rec[:, 0:4 * hh] + xf[:, 0:4 * hh]               # fwd gate preacts
    pb = rec[:, 4 * hh:8 * hh] + xb[:, 4 * hh:8 * hh]     # bwd gate preacts
    i_f = jax.nn.sigmoid(pf[:, 0:hh])
    f_f = jax.nn.sigmoid(pf[:, hh:2 * hh])
    g_f = jnp.tanh(pf[:, 2 * hh:3 * hh])
    o_f = jax.nn.sigmoid(pf[:, 3 * hh:4 * hh])
    i_b = jax.nn.sigmoid(pb[:, 0:hh])
    f_b = jax.nn.sigmoid(pb[:, hh:2 * hh])
    g_b = jnp.tanh(pb[:, 2 * hh:3 * hh])
    o_b = jax.nn.sigmoid(pb[:, 3 * hh:4 * hh])
    cf = f_f * cf + i_f * g_f
    cb = f_b * cb + i_b * g_b
    hf = o_f * jnp.tanh(cf)
    hb = o_b * jnp.tanh(cb)
    hsf_ref[pl.ds(t * 8, B), :] = hf
    hsb_ref[pl.ds((S - 1 - t) * 8, B), :] = hb
    h = jnp.concatenate([hf, hb], axis=-1)

  lstm_out = jnp.tanh(
      jnp.concatenate([hsf_ref[...], hsb_ref[...]], axis=-1))   # (R, hid)
  # dropout -> identity (eval)

  # ---- hard internal augmentation gate + inaug emission ---------------------
  hard = hard_ref[...]
  g_in = jax.nn.sigmoid(mmb(lstm_out, wslice('wgate_l'))
                        + mmb(hard, wslice('wgate_h')) + fslice('bgate'))
  new_mode = g_in * lstm_out + (1.0 - g_in) * hard
  inaug_em = mmb(new_mode, wslice('h2e_w')) + fslice('h2e_b')      # (R, L)

  # ---- multi-head self-attention (fused QKV, fused WO) ----------------------
  qkv = mmb(lstm_out, wslice('wqkv')) + fslice('bqkv')             # (R, 3*hid)
  mask = mask_ref[...]
  scale = 1.0 / (Dh ** 0.5)
  ctxs = []
  for hd in range(H):
    q = qkv[:, hd * Dh:(hd + 1) * Dh]
    k = qkv[:, hid + hd * Dh:hid + (hd + 1) * Dh]
    v = qkv[:, 2 * hid + hd * Dh:2 * hid + (hd + 1) * Dh]
    s = lax.dot_general(q.astype(bf16), k.astype(bf16),
                        (((1,), (1,)), ((), ())),
                        preferred_element_type=f32) * scale + mask  # (R, R)
    s = s - jnp.max(s, axis=-1, keepdims=True)
    pr = jnp.exp(s)
    pr = pr * pl.reciprocal(jnp.sum(pr, axis=-1, keepdims=True), approx=True)
    ctxs.append(mmb(pr, v))
  attn = mmb(jnp.concatenate(ctxs, axis=-1), wslice('wo')) + fslice('bo')

  # ---- residual + LayerNorm (post-LN), FeedForward, LayerNorm ---------------
  def layernorm(x, gname, bname):
    mu = jnp.mean(x, axis=-1, keepdims=True)
    var = jnp.mean((x - mu) * (x - mu), axis=-1, keepdims=True)
    return (x - mu) * lax.rsqrt(var + ln_eps) * fslice(gname) + fslice(bname)

  a1 = layernorm(attn + lstm_out, 'ln1_g', 'ln1_b')
  ff = jnp.maximum(mmb(a1, wslice('ff_w1')) + fslice('ff_b1'), 0.0)
  ff = mmb(ff, wslice('ff_w2')) + fslice('ff_b2')
  a2 = layernorm(ff + a1, 'ln2_g', 'ln2_b')

  emission = jnp.maximum(mmb(a2, wslice('h2e_w')) + fslice('h2e_b'), 0.0)

  # ---- output augmentation gate with BERT emission + bert fusion ------------
  bert = bert_ref[...]
  g_out = jax.nn.sigmoid(mmb(emission, wslice('og_e'))
                         + mmb(bert, wslice('og_b')))
  fused = g_out * emission + (1.0 - g_out) * bert
  final = mmb(fused, wslice('bfus_w')) + fslice('bfus_b') + inaug_em  # (R, L)

  # ---- cross-entropy with ignore_index = label_pad (in-kernel reduction) ----
  labels = labels_ref[...]                                            # (R,1)
  mrow = jnp.max(final, axis=-1, keepdims=True)
  lse = jnp.log(jnp.sum(jnp.exp(final - mrow), axis=-1, keepdims=True)) + mrow
  lab_iota = lax.broadcasted_iota(jnp.int32, final.shape, 1)
  onehot = (lab_iota == labels).astype(f32)
  logp_true = jnp.sum(final * onehot, axis=-1, keepdims=True) - lse
  valid = (labels != label_pad).astype(f32)
  loss = -jnp.sum(logp_true * valid) / jnp.maximum(jnp.sum(valid), 1.0)
  loss_ref[0, 0] = loss


def _zero_index_map(nd):
  return lambda i: (0,) * nd


# ----------------------------------------------------------------------------
# Model config / parameters (unchanged shapes)
# ----------------------------------------------------------------------------

CFG = dict(
    batch=2, sent_maxlen=8, word_maxlen=6,
    char_vocab=20, char_dim=8, char_out=8, cnn_k=3,
    word_vocab=30, word_dim=16,
    pos_vocab=12, pos_dim=8,
    case_vocab=6, case_dim=4,
    model_dim=32, hid_dim=32, num_heads=4,
    num_labels=9, word_pad_idx=0, label_pad_idx=0,
    bilstm_layers=1,
)
CFG["input_dim"] = (CFG["word_dim"] + CFG["char_out"]
                    + CFG["pos_dim"] + CFG["case_dim"])


def _xavier(key, shape):
  fan_in, fan_out = shape[0], shape[-1]
  std = (2.0 / (fan_in + fan_out)) ** 0.5
  return std * jax.random.normal(key, shape, jnp.float32)


def make_params(key):
  c = CFG
  ks = iter(jax.random.split(key, 64))
  hh = c["hid_dim"] // 2
  p = {}
  p["char_embed"] = _xavier(next(ks), (c["char_vocab"], c["char_dim"]))
  p["word_embed"] = _xavier(next(ks), (c["word_vocab"], c["word_dim"]))
  p["pos_embed"] = _xavier(next(ks), (c["pos_vocab"], c["pos_dim"]))
  p["case_embed"] = _xavier(next(ks), (c["case_vocab"], c["case_dim"]))
  p["cnn_w"] = _xavier(next(ks), (c["cnn_k"] * c["char_dim"], c["char_out"]))
  p["cnn_b"] = jnp.zeros((c["char_out"],), jnp.float32)
  p["bn_gamma"] = jnp.ones((c["input_dim"],), jnp.float32)
  p["bn_beta"] = jnp.zeros((c["input_dim"],), jnp.float32)
  p["bn_mean"] = jnp.zeros((c["input_dim"],), jnp.float32)
  p["bn_var"] = jnp.ones((c["input_dim"],), jnp.float32)
  p["input2mod_w"] = _xavier(next(ks), (c["input_dim"], c["model_dim"]))
  p["input2mod_b"] = jnp.zeros((c["model_dim"],), jnp.float32)
  for d in ("f", "b"):
    p[f"lstm_wih_{d}"] = _xavier(next(ks), (c["model_dim"], 4 * hh))
    p[f"lstm_whh_{d}"] = _xavier(next(ks), (hh, 4 * hh))
    p[f"lstm_b_{d}"] = jnp.zeros((4 * hh,), jnp.float32)
  # TODO(synk): HardInternalAugmentation table definition unavailable; using
  # a deterministic random (word_vocab, hid_dim) table.
  p["hard_aug_table"] = _xavier(next(ks), (c["word_vocab"], c["hid_dim"]))
  p["hid2hid_w"] = _xavier(next(ks), (2 * c["hid_dim"], c["hid_dim"]))
  p["hid2hid_b"] = jnp.zeros((c["hid_dim"],), jnp.float32)
  p["hid2em_w"] = _xavier(next(ks), (c["hid_dim"], c["num_labels"]))
  p["hid2em_b"] = jnp.zeros((c["num_labels"],), jnp.float32)
  for name in ("wq", "wk", "wv", "wo"):
    p[f"mha_{name}"] = _xavier(next(ks), (c["hid_dim"], c["hid_dim"]))
    p[f"mha_{name}_b"] = jnp.zeros((c["hid_dim"],), jnp.float32)
  p["ln1_g"] = jnp.ones((c["hid_dim"],), jnp.float32)
  p["ln1_b"] = jnp.zeros((c["hid_dim"],), jnp.float32)
  p["ff_w1"] = _xavier(next(ks), (c["hid_dim"], c["hid_dim"]))
  p["ff_b1"] = jnp.zeros((c["hid_dim"],), jnp.float32)
  p["ff_w2"] = _xavier(next(ks), (c["hid_dim"], c["hid_dim"]))
  p["ff_b2"] = jnp.zeros((c["hid_dim"],), jnp.float32)
  p["ln2_g"] = jnp.ones((c["hid_dim"],), jnp.float32)
  p["ln2_b"] = jnp.zeros((c["hid_dim"],), jnp.float32)
  p["outaug_gate"] = _xavier(next(ks), (2 * c["num_labels"], c["num_labels"]))
  p["bert_fus_w"] = _xavier(next(ks), (c["num_labels"], c["num_labels"]))
  p["bert_fus_b"] = jnp.zeros((c["num_labels"],), jnp.float32)
  return p


# ----------------------------------------------------------------------------
# Weight packing: folded / fused weights -> two lane-dense (R, 128) slabs.
# Done ONCE outside the per-step jit.
# ----------------------------------------------------------------------------

def _pack_slab(entries, dtype, align):
  layout = {}
  parts = []
  off = 0
  for name, arr in entries:
    a = jnp.asarray(arr, dtype)
    if a.ndim == 1:
      a = a.reshape(1, -1)
    r, c = a.shape
    rp = ((r + align - 1) // align) * align
    buf = jnp.zeros((rp, 128), dtype).at[:r, :c].set(a)
    parts.append(buf)
    layout[name] = (off, r, c)
    off += rp
  return jnp.concatenate(parts, axis=0), layout


def pack_weights(params):
  c = CFG
  hh = c["hid_dim"] // 2
  hid = c["hid_dim"]
  k = c["cnn_k"]
  W = c["word_maxlen"]
  P = W - k + 1
  Co = c["char_out"]
  L = c["num_labels"]
  wd, cd_, pd, csd = c["word_dim"], Co, c["pos_dim"], c["case_dim"]

  # char-CNN block-diagonal weight over P window positions
  cnn_bd = jnp.zeros((P * k * c["char_dim"], P * Co), jnp.float32)
  for p in range(P):
    cnn_bd = cnn_bd.at[p * k * c["char_dim"]:(p + 1) * k * c["char_dim"],
                       p * Co:(p + 1) * Co].set(params["cnn_w"])
  cnn_b_tiled = jnp.tile(params["cnn_b"], P)

  # BatchNorm (eval) folded, split into [word|pos|case] vs char parts
  i_word = slice(0, wd)
  i_char = slice(wd, wd + cd_)
  i_pos = slice(wd + cd_, wd + cd_ + pd)
  i_case = slice(wd + cd_ + pd, wd + cd_ + pd + csd)
  bn_scale = params["bn_gamma"] / jnp.sqrt(params["bn_var"] + 1e-5)
  bn_shift = params["bn_beta"] - params["bn_mean"] * bn_scale

  def split_oc(v):
    return jnp.concatenate([v[i_word], v[i_pos], v[i_case]]), v[i_char]

  bno_s, bnc_s = split_oc(bn_scale)
  bno_b, bnc_b = split_oc(bn_shift)
  i2m_w = params["input2mod_w"]
  i2m_wo = jnp.concatenate([i2m_w[i_word], i2m_w[i_pos], i2m_w[i_case]], 0)
  i2m_wc = i2m_w[i_char]

  # fused LSTM input projection & block-diagonal recurrent weight
  wih = jnp.concatenate([params["lstm_wih_f"], params["lstm_wih_b"]], axis=1)
  bih = jnp.concatenate([params["lstm_b_f"], params["lstm_b_b"]])
  whh_bd = jnp.zeros((hid, 8 * hh), jnp.float32)
  whh_bd = whh_bd.at[:hh, :4 * hh].set(params["lstm_whh_f"])
  whh_bd = whh_bd.at[hh:, 4 * hh:].set(params["lstm_whh_b"])

  wqkv = jnp.concatenate([params["mha_wq"], params["mha_wk"],
                          params["mha_wv"]], axis=1)
  bqkv = jnp.concatenate([params["mha_wq_b"], params["mha_wk_b"],
                          params["mha_wv_b"]])

  og = params["outaug_gate"]

  w_entries = [
      ("cnn_w_bd", cnn_bd),
      ("i2m_wo", i2m_wo), ("i2m_wc", i2m_wc),
      ("wih", wih),
      ("wgate_l", params["hid2hid_w"][:hid]),
      ("wgate_h", params["hid2hid_w"][hid:]),
      ("h2e_w", params["hid2em_w"]),
      ("wqkv", wqkv), ("wo", params["mha_wo"]),
      ("ff_w1", params["ff_w1"]), ("ff_w2", params["ff_w2"]),
      ("og_e", og[:L]), ("og_b", og[L:]),
      ("bfus_w", params["bert_fus_w"]),
  ]
  f_entries = [
      ("cnn_b", cnn_b_tiled),
      ("bno_s", bno_s), ("bno_b", bno_b), ("bnc_s", bnc_s), ("bnc_b", bnc_b),
      ("i2m_b", params["input2mod_b"]),
      ("bih", bih), ("whh_bd", whh_bd),
      ("bgate", params["hid2hid_b"]),
      ("h2e_b", params["hid2em_b"]),
      ("bqkv", bqkv), ("bo", params["mha_wo_b"]),
      ("ln1_g", params["ln1_g"]), ("ln1_b", params["ln1_b"]),
      ("ff_b1", params["ff_b1"]), ("ff_b2", params["ff_b2"]),
      ("ln2_g", params["ln2_g"]), ("ln2_b", params["ln2_b"]),
      ("bfus_b", params["bert_fus_b"]),
  ]
  wslab, wl = _pack_slab(w_entries, jnp.bfloat16, 16)
  fslab, fl = _pack_slab(f_entries, jnp.float32, 8)
  return wslab, fslab, wl, fl


# ----------------------------------------------------------------------------
# Forward pass wrapper: embedding gathers + padded time-major layout (plain
# JAX glue), then ONE fused pallas_call returning the scalar training loss.
# ----------------------------------------------------------------------------

def forward_train(params, wslab, fslab, char_data, word_data, pos_data,
                  case_data, truth_label, bert_emission, lstm_h0, lstm_c0,
                  *, wl, fl):
  c = CFG
  B, S, W = char_data.shape
  assert B <= 8, "padded time-major layout assumes batch <= 8"
  k = c["cnn_k"]
  P = W - k + 1
  hh = c["hid_dim"] // 2
  hid = c["hid_dim"]
  H = c["num_heads"]
  Dh = hid // H
  L = c["num_labels"]
  Cd = c["char_dim"]
  Co = c["char_out"]
  R = S * 8
  f32 = jnp.float32

  def to_padded(x):  # (B,S,D) -> (S*8, D); row = t*8 + b, padding rows zero
    xt = jnp.transpose(x, (1, 0, 2))
    xt = jnp.pad(xt, ((0, 0), (0, 8 - B), (0, 0)))
    return xt.reshape(R, x.shape[-1])

  # char windows flattened along lanes: position p occupies lanes [p*k*Cd, ...)
  char_emb = params["char_embed"][char_data].reshape(B, S, W * Cd)
  win_idx = (jnp.arange(P)[:, None] * Cd
             + jnp.arange(k * Cd)[None, :]).reshape(-1)
  win = to_padded(jnp.take(char_emb, win_idx, axis=-1)).astype(f32)   # (R, 96)

  word_feat = params["word_embed"][word_data]
  pos_feat = params["pos_embed"][pos_data]
  case_feat = params["case_embed"][case_data]
  other = to_padded(
      jnp.concatenate([word_feat, pos_feat, case_feat], -1)).astype(f32)
  hard = to_padded(params["hard_aug_table"][word_data]).astype(f32)
  bert = to_padded(bert_emission[:, :S, :]).astype(f32)

  labels = jnp.pad(truth_label.T.astype(jnp.int32), ((0, 0), (0, 8 - B)),
                   constant_values=c["label_pad_idx"]).reshape(R, 1)

  # additive attention mask (R,R): block-diagonal over batch + key padding
  key_valid = jnp.pad((word_data != c["word_pad_idx"]).T,
                      ((0, 0), (0, 8 - B))).reshape(R)
  bid = jnp.tile(jnp.where(jnp.arange(8) < B, jnp.arange(8), -1), S)
  same = bid[:, None] == bid[None, :]
  mask_add = jnp.where(same & key_valid[None, :], 0.0, -1e9).astype(f32)

  # packed initial LSTM state: rows 0..B-1 = [h0_f|h0_b], rows 8..8+B-1 = [c0_f|c0_b]
  h0c0 = jnp.zeros((16, hid), f32)
  h0c0 = h0c0.at[:B, :].set(jnp.concatenate([lstm_h0[0], lstm_h0[1]], -1))
  h0c0 = h0c0.at[8:8 + B, :].set(jnp.concatenate([lstm_c0[0], lstm_c0[1]], -1))

  inputs = [win, other, hard, bert, mask_add, labels, h0c0, wslab, fslab]

  kernel = functools.partial(
      _fused_forward_kernel,
      B=B, S=S, P=P, hh=hh, H=H, Dh=Dh, L=L, Co=Co,
      label_pad=c["label_pad_idx"], ln_eps=1e-5, wl=wl, fl=fl)

  in_specs = [pl.BlockSpec(a.shape, _zero_index_map(a.ndim)) for a in inputs]

  # Total VMEM footprint is well under 1 MiB on all generations; a single-TC
  # grid of 1 step is appropriate at this batch size (second v7x core unused).
  loss = pl.pallas_call(
      kernel,
      grid=(1,),
      in_specs=in_specs,
      out_specs=pl.BlockSpec(memory_space=pltpu.MemorySpace.SMEM),
      out_shape=jax.ShapeDtypeStruct((1, 1), jnp.float32),
      scratch_shapes=[
          pltpu.VMEM((R, 8 * hh), jnp.float32),   # fused LSTM input projection
          pltpu.VMEM((R, hh), jnp.float32),       # forward hidden states
          pltpu.VMEM((R, hh), jnp.float32),       # backward hidden states
      ],
      compiler_params=pltpu.CompilerParams(
          dimension_semantics=("arbitrary",)),
  )(*inputs)
  return loss[0, 0]


# ----------------------------------------------------------------------------
# main
# ----------------------------------------------------------------------------

if __name__ == "__main__":
  c = CFG
  key = jax.random.PRNGKey(0)
  kp, kd = jax.random.split(key)
  params = make_params(kp)

  kc, kw, kpos, kcase, klab, kbert, kh, kcell = jax.random.split(kd, 8)
  B, S, W = c["batch"], c["sent_maxlen"], c["word_maxlen"]

  char_data = jax.random.randint(kc, (B, S, W), 1, c["char_vocab"])
  word_data = jax.random.randint(kw, (B, S), 1, c["word_vocab"])
  word_data = word_data.at[1, 6:].set(c["word_pad_idx"])           # some padding
  pos_data = jax.random.randint(kpos, (B, S), 0, c["pos_vocab"])
  case_data = jax.random.randint(kcase, (B, S), 0, c["case_vocab"])
  truth_label = jax.random.randint(klab, (B, S), 1, c["num_labels"])
  truth_label = jnp.where(word_data == c["word_pad_idx"],
                          c["label_pad_idx"], truth_label)
  bert_emission = jax.random.normal(kbert, (B, S + 2, c["num_labels"]),
                                    jnp.float32)

  hh = c["hid_dim"] // 2
  lstm_h0 = jax.random.normal(kh, (2, B, hh), jnp.float32)
  lstm_c0 = jax.random.normal(kcell, (2, B, hh), jnp.float32)

  # pack the weight slabs ONCE, outside the jitted per-step function
  wslab, fslab, wl, fl = pack_weights(params)

  fwd = jax.jit(functools.partial(forward_train, wl=wl, fl=fl))
  loss = fwd(params, wslab, fslab, char_data, word_data, pos_data, case_data,
             truth_label, bert_emission, lstm_h0, lstm_c0)
  jax.block_until_ready(loss)
  assert jnp.isfinite(loss)
  print("KERNEL_OK")
</pallas_src>

<mosaic_0001>
module attributes {stable_mosaic.version = 11 : i64} {
  func.func @_fused_forward_kernel(%arg0: i32, %arg1: memref<64x96xf32, #tpu.memory_space<vmem>>, %arg2: memref<64x28xf32, #tpu.memory_space<vmem>>, %arg3: memref<64x32xf32, #tpu.memory_space<vmem>>, %arg4: memref<64x9xf32, #tpu.memory_space<vmem>>, %arg5: memref<64x64xf32, #tpu.memory_space<vmem>>, %arg6: memref<64x1xi32, #tpu.memory_space<vmem>>, %arg7: memref<16x32xf32, #tpu.memory_space<vmem>>, %arg8: memref<448x128xbf16, #tpu.memory_space<vmem>>, %arg9: memref<176x128xf32, #tpu.memory_space<vmem>>, %arg10: memref<1x1xf32, #tpu.memory_space<smem>>, %arg11: memref<64x128xf32, #tpu.memory_space<vmem>>, %arg12: memref<64x16xf32, #tpu.memory_space<vmem>>, %arg13: memref<64x16xf32, #tpu.memory_space<vmem>>) attributes {dimension_semantics = [#tpu.dimension_semantics<arbitrary>], iteration_bounds = array<i64: 1>, scalar_prefetch = 0 : i64, scratch_operands = 3 : i64, tpu.core_type = #tpu.core_type<tc>, window_params = [{pipeline_mode = #tpu.pipeline_mode<synchronous>, transform_indices = @transform_0, window_bounds = array<i64: 64, 96>}, {pipeline_mode = #tpu.pipeline_mode<synchronous>, transform_indices = @transform_1, window_bounds = array<i64: 64, 28>}, {pipeline_mode = #tpu.pipeline_mode<synchronous>, transform_indices = @transform_2, window_bounds = array<i64: 64, 32>}, {pipeline_mode = #tpu.pipeline_mode<synchronous>, transform_indices = @transform_3, window_bounds = array<i64: 64, 9>}, {pipeline_mode = #tpu.pipeline_mode<synchronous>, transform_indices = @transform_4, window_bounds = array<i64: 64, 64>}, {pipeline_mode = #tpu.pipeline_mode<synchronous>, transform_indices = @transform_5, window_bounds = array<i64: 64, 1>}, {pipeline_mode = #tpu.pipeline_mode<synchronous>, transform_indices = @transform_6, window_bounds = array<i64: 16, 32>}, {pipeline_mode = #tpu.pipeline_mode<synchronous>, transform_indices = @transform_7, window_bounds = array<i64: 448, 128>}, {pipeline_mode = #tpu.pipeline_mode<synchronous>, transform_indices = @transform_8, window_bounds = array<i64: 176, 128>}, {transform_indices = @transform_9, window_bounds = array<i64: 1, 1>}]} {
    %c0 = arith.constant 0 : index
    %c0_0 = arith.constant 0 : index
    %0 = vector.load %arg1[%c0, %c0_0] : memref<64x96xf32, #tpu.memory_space<vmem>>, vector<64x96xf32>
    %c0_1 = arith.constant 0 : index
    %c0_2 = arith.constant 0 : index
    %1 = vector.load %arg8[%c0_1, %c0_2] : memref<448x128xbf16, #tpu.memory_space<vmem>>, vector<96x32xbf16>
    %2 = arith.truncf %0 : vector<64x96xf32> to vector<64x96xbf16>
    %cst = arith.constant dense<0.000000e+00> : vector<64x32xf32>
    %3 = tpu.matmul %2, %1, %cst {dimension_numbers = #tpu.dot_dimension_numbers<[1], [0], [0], [1], [0, 0, 1, 1], [], []>} : vector<64x96xbf16>, vector<96x32xbf16>, vector<64x32xf32> -> vector<64x32xf32>
    %c0_3 = arith.constant 0 : index
    %c0_4 = arith.constant 0 : index
    %4 = vector.load %arg9[%c0_3, %c0_4] : memref<176x128xf32, #tpu.memory_space<vmem>>, vector<1x32xf32>
    %5 = vector.broadcast %4 : vector<1x32xf32> to vector<64x32xf32>
    %6 = arith.addf %3, %5 : vector<64x32xf32>
    %cst_5 = arith.constant 0.000000e+00 : f32
    %7 = vector.broadcast %cst_5 : f32 to vector<64x32xf32>
    %8 = arith.maximumf %6, %7 : vector<64x32xf32>
    %9 = vector.extract_strided_slice %8 {offsets = [0, 0], sizes = [64, 8], strides = [1, 1]} : vector<64x32xf32> to vector<64x8xf32>
    %10 = vector.extract_strided_slice %8 {offsets = [0, 8], sizes = [64, 8], strides = [1, 1]} : vector<64x32xf32> to vector<64x8xf32>
    %11 = arith.maximumf %9, %10 : vector<64x8xf32>
    %12 = vector.extract_strided_slice %8 {offsets = [0, 16], sizes = [64, 8], strides = [1, 1]} : vector<64x32xf32> to vector<64x8xf32>
    %13 = arith.maximumf %11, %12 : vector<64x8xf32>
    %14 = vector.extract_strided_slice %8 {offsets = [0, 24], sizes = [64, 8], strides = [1, 1]} : vector<64x32xf32> to vector<64x8xf32>
    %15 = arith.maximumf %13, %14 : vector<64x8xf32>
    %c0_6 = arith.constant 0 : index
    %c0_7 = arith.constant 0 : index
    %16 = vector.load %arg2[%c0_6, %c0_7] : memref<64x28xf32, #tpu.memory_space<vmem>>, vector<64x28xf32>
    %c8 = arith.constant 8 : index
    %c0_8 = arith.constant 0 : index
    %17 = vector.load %arg9[%c8, %c0_8] : memref<176x128xf32, #tpu.memory_space<vmem>>, vector<1x28xf32>
    %18 = vector.broadcast %17 : vector<1x28xf32> to vector<64x28xf32>
    %19 = arith.mulf %16, %18 : vector<64x28xf32>
    %c16 = arith.constant 16 : index
    %c0_9 = arith.constant 0 : index
    %20 = vector.load %arg9[%c16, %c0_9] : memref<176x128xf32, #tpu.memory_space<vmem>>, vector<1x28xf32>
    %21 = vector.broadcast %20 : vector<1x28xf32> to vector<64x28xf32>
    %22 = arith.addf %19, %21 : vector<64x28xf32>
    %c24 = arith.constant 24 : index
    %c0_10 = arith.constant 0 : index
    %23 = vector.load %arg9[%c24, %c0_10] : memref<176x128xf32, #tpu.memory_space<vmem>>, vector<1x8xf32>
    %24 = vector.broadcast %23 : vector<1x8xf32> to vector<64x8xf32>
    %25 = arith.mulf %15, %24 : vector<64x8xf32>
    %c32 = arith.constant 32 : index
    %c0_11 = arith.constant 0 : index
    %26 = vector.load %arg9[%c32, %c0_11] : memref<176x128xf32, #tpu.memory_space<vmem>>, vector<1x8xf32>
    %27 = vector.broadcast %26 : vector<1x8xf32> to vector<64x8xf32>
    %28 = arith.addf %25, %27 : vector<64x8xf32>
    %c96 = arith.constant 96 : index
    %c0_12 = arith.constant 0 : index
    %29 = vector.load %arg8[%c96, %c0_12] : memref<448x128xbf16, #tpu.memory_space<vmem>>, vector<28x32xbf16>
    %30 = arith.truncf %22 : vector<64x28xf32> to vector<64x28xbf16>
    %cst_13 = arith.constant dense<0.000000e+00> : vector<64x32xf32>
    %31 = tpu.matmul %30, %29, %cst_13 {dimension_numbers = #tpu.dot_dimension_numbers<[1], [0], [0], [1], [0, 0, 1, 1], [], []>} : vector<64x28xbf16>, vector<28x32xbf16>, vector<64x32xf32> -> vector<64x32xf32>
    %c128 = arith.constant 128 : index
    %c0_14 = arith.constant 0 : index
    %32 = vector.load %arg8[%c128, %c0_14] : memref<448x128xbf16, #tpu.memory_space<vmem>>, vector<8x32xbf16>
    %33 = arith.truncf %28 : vector<64x8xf32> to vector<64x8xbf16>
    %cst_15 = arith.constant dense<0.000000e+00> : vector<64x32xf32>
    %34 = tpu.matmul %33, %32, %cst_15 {dimension_numbers = #tpu.dot_dimension_numbers<[1], [0], [0], [1], [0, 0, 1, 1], [], []>} : vector<64x8xbf16>, vector<8x32xbf16>, vector<64x32xf32> -> vector<64x32xf32>
    %35 = arith.addf %31, %34 : vector<64x32xf32>
    %c40 = arith.constant 40 : index
    %c0_16 = arith.constant 0 : index
    %36 = vector.load %arg9[%c40, %c0_16] : memref<176x128xf32, #tpu.memory_space<vmem>>, vector<1x32xf32>
    %37 = vector.broadcast %36 : vector<1x32xf32> to vector<64x32xf32>
    %38 = arith.addf %35, %37 : vector<64x32xf32>
    %c144 = arith.constant 144 : index
    %c0_17 = arith.constant 0 : index
    %39 = vector.load %arg8[%c144, %c0_17] : memref<448x128xbf16, #tpu.memory_space<vmem>>, vector<32x128xbf16>
    %40 = arith.truncf %38 : vector<64x32xf32> to vector<64x32xbf16>
    %cst_18 = arith.constant dense<0.000000e+00> : vector<64x128xf32>
    %41 = tpu.matmul %40, %39, %cst_18 {dimension_numbers = #tpu.dot_dimension_numbers<[1], [0], [0], [1], [0, 0, 1, 1], [], []>} : vector<64x32xbf16>, vector<32x128xbf16>, vector<64x128xf32> -> vector<64x128xf32>
    %c48 = arith.constant 48 : index
    %c0_19 = arith.constant 0 : index
    %42 = vector.load %arg9[%c48, %c0_19] : memref<176x128xf32, #tpu.memory_space<vmem>>, vector<1x128xf32>
    %43 = vector.broadcast %42 : vector<1x128xf32> to vector<64x128xf32>
    %44 = arith.addf %41, %43 : vector<64x128xf32>
    %c0_20 = arith.constant 0 : index
    %c0_21 = arith.constant 0 : index
    %45 = vector.load %arg11[%c0_20, %c0_21] : memref<64x128xf32, #tpu.memory_space<vmem>>, vector<64x128xf32>
    tpu.vector_store %arg11[%c0_20, %c0_21], %44 {strides = array<i32>} : memref<64x128xf32, #tpu.memory_space<vmem>>, vector<64x128xf32>,
    %cst_22 = arith.constant 0.000000e+00 : f32
    %46 = vector.broadcast %cst_22 : f32 to vector<64x16xf32>
    %c0_23 = arith.constant 0 : index
    %c0_24 = arith.constant 0 : index
    %47 = vector.load %arg12[%c0_23, %c0_24] : memref<64x16xf32, #tpu.memory_space<vmem>>, vector<64x16xf32>
    tpu.vector_store %arg12[%c0_23, %c0_24], %46 {strides = array<i32>} : memref<64x16xf32, #tpu.memory_space<vmem>>, vector<64x16xf32>,
    %cst_25 = arith.constant 0.000000e+00 : f32
    %48 = vector.broadcast %cst_25 : f32 to vector<64x16xf32>
    %c0_26 = arith.constant 0 : index
    %c0_27 = arith.constant 0 : index
    %49 = vector.load %arg13[%c0_26, %c0_27] : memref<64x16xf32, #tpu.memory_space<vmem>>, vector<64x16xf32>
    tpu.vector_store %arg13[%c0_26, %c0_27], %48 {strides = array<i32>} : memref<64x16xf32, #tpu.memory_space<vmem>>, vector<64x16xf32>,
    %c56 = arith.constant 56 : index
    %c0_28 = arith.constant 0 : index
    %50 = vector.load %arg9[%c56, %c0_28] : memref<176x128xf32, #tpu.memory_space<vmem>>, vector<32x128xf32>
    %c0_29 = arith.constant 0 : index
    %c0_30 = arith.constant 0 : index
    %51 = vector.load %arg7[%c0_29, %c0_30] : memref<16x32xf32, #tpu.memory_space<vmem>>, vector<2x32xf32>
    %c8_31 = arith.constant 8 : index
    %c0_32 = arith.constant 0 : index
    %52 = vector.load %arg7[%c8_31, %c0_32] : memref<16x32xf32, #tpu.memory_space<vmem>>, vector<2x32xf32>
    %53 = vector.extract_strided_slice %52 {offsets = [0, 0], sizes = [2, 16], strides = [1, 1]} : vector<2x32xf32> to vector<2x16xf32>
    %54 = vector.extract_strided_slice %52 {offsets = [0, 16], sizes = [2, 16], strides = [1, 1]} : vector<2x32xf32> to vector<2x16xf32>
    %cst_33 = arith.constant dense<0.000000e+00> : vector<2x128xf32>
    %55 = tpu.matmul %51, %50, %cst_33 {dimension_numbers = #tpu.dot_dimension_numbers<[1], [0], [0], [1], [0, 0, 1, 1], [], []>} : vector<2x32xf32>, vector<32x128xf32>, vector<2x128xf32> -> vector<2x128xf32>
    %c0_34 = arith.constant 0 : index
    %c0_35 = arith.constant 0 : index
    %56 = vector.load %arg11[%c0_34, %c0_35] : memref<64x128xf32, #tpu.memory_space<vmem>>, vector<2x128xf32>
    %c56_36 = arith.constant 56 : index
    %c0_37 = arith.constant 0 : index
    %57 = vector.load %arg11[%c56_36, %c0_37] : memref<64x128xf32, #tpu.memory_space<vmem>>, vector<2x128xf32>
    %58 = vector.extract_strided_slice %55 {offsets = [0, 0], sizes = [2, 64], strides = [1, 1]} : vector<2x128xf32> to vector<2x64xf32>
    %59 = vector.extract_strided_slice %56 {offsets = [0, 0], sizes = [2, 64], strides = [1, 1]} : vector<2x128xf32> to vector<2x64xf32>
    %60 = arith.addf %58, %59 : vector<2x64xf32>
    %61 = vector.extract_strided_slice %55 {offsets = [0, 64], sizes = [2, 64], strides = [1, 1]} : vector<2x128xf32> to vector<2x64xf32>
    %62 = vector.extract_strided_slice %57 {offsets = [0, 64], sizes = [2, 64], strides = [1, 1]} : vector<2x128xf32> to vector<2x64xf32>
    %63 = arith.addf %61, %62 : vector<2x64xf32>
    %64 = vector.extract_strided_slice %60 {offsets = [0, 0], sizes = [2, 16], strides = [1, 1]} : vector<2x64xf32> to vector<2x16xf32>
    %65 = arith.negf %64 : vector<2x16xf32>
    %66 = math.exp %65 : vector<2x16xf32>
    %cst_38 = arith.constant 1.000000e+00 : f32
    %67 = vector.broadcast %cst_38 : f32 to vector<2x16xf32>
    %68 = arith.addf %67, %66 : vector<2x16xf32>
    %69 = arith.divf %67, %68 : vector<2x16xf32>
    %70 = vector.extract_strided_slice %60 {offsets = [0, 16], sizes = [2, 16], strides = [1, 1]} : vector<2x64xf32> to vector<2x16xf32>
    %71 = arith.negf %70 : vector<2x16xf32>
    %72 = math.exp %71 : vector<2x16xf32>
    %cst_39 = arith.constant 1.000000e+00 : f32
    %73 = vector.broadcast %cst_39 : f32 to vector<2x16xf32>
    %74 = arith.addf %73, %72 : vector<2x16xf32>
    %75 = arith.divf %73, %74 : vector<2x16xf32>
    %76 = vector.extract_strided_slice %60 {offsets = [0, 32], sizes = [2, 16], strides = [1, 1]} : vector<2x64xf32> to vector<2x16xf32>
    %77 = math.tanh %76 : vector<2x16xf32>
    %78 = vector.extract_strided_slice %60 {offsets = [0, 48], sizes = [2, 16], strides = [1, 1]} : vector<2x64xf32> to vector<2x16xf32>
    %79 = arith.negf %78 : vector<2x16xf32>
    %80 = math.exp %79 : vector<2x16xf32>
    %cst_40 = arith.constant 1.000000e+00 : f32
    %81 = vector.broadcast %cst_40 : f32 to vector<2x16xf32>
    %82 = arith.addf %81, %80 : vector<2x16xf32>
    %83 = arith.divf %81, %82 : vector<2x16xf32>
    %84 = vector.extract_strided_slice %63 {offsets = [0, 0], sizes = [2, 16], strides = [1, 1]} : vector<2x64xf32> to vector<2x16xf32>
    %85 = arith.negf %84 : vector<2x16xf32>
    %86 = math.exp %85 : vector<2x16xf32>
    %cst_41 = arith.constant 1.000000e+00 : f32
    %87 = vector.broadcast %cst_41 : f32 to vector<2x16xf32>
    %88 = arith.addf %87, %86 : vector<2x16xf32>
    %89 = arith.divf %87, %88 : vector<2x16xf32>
    %90 = vector.extract_strided_slice %63 {offsets = [0, 16], sizes = [2, 16], strides = [1, 1]} : vector<2x64xf32> to vector<2x16xf32>
    %91 = arith.negf %90 : vector<2x16xf32>
    %92 = math.exp %91 : vector<2x16xf32>
    %cst_42 = arith.constant 1.000000e+00 : f32
    %93 = vector.broadcast %cst_42 : f32 to vector<2x16xf32>
    %94 = arith.addf %93, %92 : vector<2x16xf32>
    %95 = arith.divf %93, %94 : vector<2x16xf32>
    %96 = vector.extract_strided_slice %63 {offsets = [0, 32], sizes = [2, 16], strides = [1, 1]} : vector<2x64xf32> to vector<2x16xf32>
    %97 = math.tanh %96 : vector<2x16xf32>
    %98 = vector.extract_strided_slice %63 {offsets = [0, 48], sizes = [2, 16], strides = [1, 1]} : vector<2x64xf32> to vector<2x16xf32>
    %99 = arith.negf %98 : vector<2x16xf32>
    %100 = math.exp %99 : vector<2x16xf32>
    %cst_43 = arith.constant 1.000000e+00 : f32
    %101 = vector.broadcast %cst_43 : f32 to vector<2x16xf32>
    %102 = arith.addf %101, %100 : vector<2x16xf32>
    %103 = arith.divf %101, %102 : vector<2x16xf32>
    %104 = arith.mulf %75, %53 : vector<2x16xf32>
    %105 = arith.mulf %69, %77 : vector<2x16xf32>
    %106 = arith.addf %104, %105 : vector<2x16xf32>
    %107 = arith.mulf %95, %54 : vector<2x16xf32>
    %108 = arith.mulf %89, %97 : vector<2x16xf32>
    %109 = arith.addf %107, %108 : vector<2x16xf32>
    %110 = math.tanh %106 : vector<2x16xf32>
    %111 = arith.mulf %83, %110 : vector<2x16xf32>
    %112 = math.tanh %109 : vector<2x16xf32>
    %113 = arith.mulf %103, %112 : vector<2x16xf32>
    %c0_44 = arith.constant 0 : index
    %c0_45 = arith.constant 0 : index
    %114 = vector.load %arg12[%c0_44, %c0_45] : memref<64x16xf32, #tpu.memory_space<vmem>>, vector<2x16xf32>
    tpu.vector_store %arg12[%c0_44, %c0_45], %111 {strides = array<i32>} : memref<64x16xf32, #tpu.memory_space<vmem>>, vector<2x16xf32>,
    %c56_46 = arith.constant 56 : index
    %c0_47 = arith.constant 0 : index
    %115 = vector.load %arg13[%c56_46, %c0_47] : memref<64x16xf32, #tpu.memory_space<vmem>>, vector<2x16xf32>
    tpu.vector_store %arg13[%c56_46, %c0_47], %113 {strides = array<i32>} : memref<64x16xf32, #tpu.memory_space<vmem>>, vector<2x16xf32>,
    %116 = tpu.concatenate %111, %113 in 1 : vector<2x16xf32>, vector<2x16xf32> -> vector<2x32xf32>
    %cst_48 = arith.constant dense<0.000000e+00> : vector<2x128xf32>
    %117 = tpu.matmul %116, %50, %cst_48 {dimension_numbers = #tpu.dot_dimension_numbers<[1], [0], [0], [1], [0, 0, 1, 1], [], []>} : vector<2x32xf32>, vector<32x128xf32>, vector<2x128xf32> -> vector<2x128xf32>
    %c8_49 = arith.constant 8 : index
    %c0_50 = arith.constant 0 : index
    %118 = vector.load %arg11[%c8_49, %c0_50] : memref<64x128xf32, #tpu.memory_space<vmem>>, vector<2x128xf32>
    %c48_51 = arith.constant 48 : index
    %c0_52 = arith.constant 0 : index
    %119 = vector.load %arg11[%c48_51, %c0_52] : memref<64x128xf32, #tpu.memory_space<vmem>>, vector<2x128xf32>
    %120 = vector.extract_strided_slice %117 {offsets = [0, 0], sizes = [2, 64], strides = [1, 1]} : vector<2x128xf32> to vector<2x64xf32>
    %121 = vector.extract_strided_slice %118 {offsets = [0, 0], sizes = [2, 64], strides = [1, 1]} : vector<2x128xf32> to vector<2x64xf32>
    %122 = arith.addf %120, %121 : vector<2x64xf32>
    %123 = vector.extract_strided_slice %117 {offsets = [0, 64], sizes = [2, 64], strides = [1, 1]} : vector<2x128xf32> to vector<2x64xf32>
    %124 = vector.extract_strided_slice %119 {offsets = [0, 64], sizes = [2, 64], strides = [1, 1]} : vector<2x128xf32> to vector<2x64xf32>
    %125 = arith.addf %123, %124 : vector<2x64xf32>
    %126 = vector.extract_strided_slice %122 {offsets = [0, 0], sizes = [2, 16], strides = [1, 1]} : vector<2x64xf32> to vector<2x16xf32>
    %127 = arith.negf %126 : vector<2x16xf32>
    %128 = math.exp %127 : vector<2x16xf32>
    %cst_53 = arith.constant 1.000000e+00 : f32
    %129 = vector.broadcast %cst_53 : f32 to vector<2x16xf32>
    %130 = arith.addf %129, %128 : vector<2x16xf32>
    %131 = arith.divf %129, %130 : vector<2x16xf32>
    %132 = vector.extract_strided_slice %122 {offsets = [0, 16], sizes = [2, 16], strides = [1, 1]} : vector<2x64xf32> to vector<2x16xf32>
    %133 = arith.negf %132 : vector<2x16xf32>
    %134 = math.exp %133 : vector<2x16xf32>
    %cst_54 = arith.constant 1.000000e+00 : f32
    %135 = vector.broadcast %cst_54 : f32 to vector<2x16xf32>
    %136 = arith.addf %135, %134 : vector<2x16xf32>
    %137 = arith.divf %135, %136 : vector<2x16xf32>
    %138 = vector.extract_strided_slice %122 {offsets = [0, 32], sizes = [2, 16], strides = [1, 1]} : vector<2x64xf32> to vector<2x16xf32>
    %139 = math.tanh %138 : vector<2x16xf32>
    %140 = vector.extract_strided_slice %122 {offsets = [0, 48], sizes = [2, 16], strides = [1, 1]} : vector<2x64xf32> to vector<2x16xf32>
    %141 = arith.negf %140 : vector<2x16xf32>
    %142 = math.exp %141 : vector<2x16xf32>
    %cst_55 = arith.constant 1.000000e+00 : f32
    %143 = vector.broadcast %cst_55 : f32 to vector<2x16xf32>
    %144 = arith.addf %143, %142 : vector<2x16xf32>
    %145 = arith.divf %143, %144 : vector<2x16xf32>
    %146 = vector.extract_strided_slice %125 {offsets = [0, 0], sizes = [2, 16], strides = [1, 1]} : vector<2x64xf32> to vector<2x16xf32>
    %147 = arith.negf %146 : vector<2x16xf32>
    %148 = math.exp %147 : vector<2x16xf32>
    %cst_56 = arith.constant 1.000000e+00 : f32
    %149 = vector.broadcast %cst_56 : f32 to vector<2x16xf32>
    %150 = arith.addf %149, %148 : vector<2x16xf32>
    %151 = arith.divf %149, %150 : vector<2x16xf32>
    %152 = vector.extract_strided_slice %125 {offsets = [0, 16], sizes = [2, 16], strides = [1, 1]} : vector<2x64xf32> to vector<2x16xf32>
    %153 = arith.negf %152 : vector<2x16xf32>
    %154 = math.exp %153 : vector<2x16xf32>
    %cst_57 = arith.constant 1.000000e+00 : f32
    %155 = vector.broadcast %cst_57 : f32 to vector<2x16xf32>
    %156 = arith.addf %155, %154 : vector<2x16xf32>
    %157 = arith.divf %155, %156 : vector<2x16xf32>
    %158 = vector.extract_strided_slice %125 {offsets = [0, 32], sizes = [2, 16], strides = [1, 1]} : vector<2x64xf32> to vector<2x16xf32>
    %159 = math.tanh %158 : vector<2x16xf32>
    %160 = vector.extract_strided_slice %125 {offsets = [0, 48], sizes = [2, 16], strides = [1, 1]} : vector<2x64xf32> to vector<2x16xf32>
    %161 = arith.negf %160 : vector<2x16xf32>
    %162 = math.exp %161 : vector<2x16xf32>
    %cst_58 = arith.constant 1.000000e+00 : f32
    %163 = vector.broadcast %cst_58 : f32 to vector<2x16xf32>
    %164 = arith.addf %163, %162 : vector<2x16xf32>
    %165 = arith.divf %163, %164 : vector<2x16xf32>
    %166 = arith.mulf %137, %106 : vector<2x16xf32>
    %167 = arith.mulf %131, %139 : vector<2x16xf32>
    %168 = arith.addf %166, %167 : vector<2x16xf32>
    %169 = arith.mulf %157, %109 : vector<2x16xf32>
    %170 = arith.mulf %151, %159 : vector<2x16xf32>
    %171 = arith.addf %169, %170 : vector<2x16xf32>
    %172 = math.tanh %168 : vector<2x16xf32>
    %173 = arith.mulf %145, %172 : vector<2x16xf32>
    %174 = math.tanh %171 : vector<2x16xf32>
    %175 = arith.mulf %165, %174 : vector<2x16xf32>
    %c8_59 = arith.constant 8 : index
    %c0_60 = arith.constant 0 : index
    %176 = vector.load %arg12[%c8_59, %c0_60] : memref<64x16xf32, #tpu.memory_space<vmem>>, vector<2x16xf32>
    tpu.vector_store %arg12[%c8_59, %c0_60], %173 {strides = array<i32>} : memref<64x16xf32, #tpu.memory_space<vmem>>, vector<2x16xf32>,
    %c48_61 = arith.constant 48 : index
    %c0_62 = arith.constant 0 : index
    %177 = vector.load %arg13[%c48_61, %c0_62] : memref<64x16xf32, #tpu.memory_space<vmem>>, vector<2x16xf32>
    tpu.vector_store %arg13[%c48_61, %c0_62], %175 {strides = array<i32>} : memref<64x16xf32, #tpu.memory_space<vmem>>, vector<2x16xf32>,
    %178 = tpu.concatenate %173, %175 in 1 : vector<2x16xf32>, vector<2x16xf32> -> vector<2x32xf32>
    %cst_63 = arith.constant dense<0.000000e+00> : vector<2x128xf32>
    %179 = tpu.matmul %178, %50, %cst_63 {dimension_numbers = #tpu.dot_dimension_numbers<[1], [0], [0], [1], [0, 0, 1, 1], [], []>} : vector<2x32xf32>, vector<32x128xf32>, vector<2x128xf32> -> vector<2x128xf32>
    %c16_64 = arith.constant 16 : index
    %c0_65 = arith.constant 0 : index
    %180 = vector.load %arg11[%c16_64, %c0_65] : memref<64x128xf32, #tpu.memory_space<vmem>>, vector<2x128xf32>
    %c40_66 = arith.constant 40 : index
    %c0_67 = arith.constant 0 : index
    %181 = vector.load %arg11[%c40_66, %c0_67] : memref<64x128xf32, #tpu.memory_space<vmem>>, vector<2x128xf32>
    %182 = vector.extract_strided_slice %179 {offsets = [0, 0], sizes = [2, 64], strides = [1, 1]} : vector<2x128xf32> to vector<2x64xf32>
    %183 = vector.extract_strided_slice %180 {offsets = [0, 0], sizes = [2, 64], strides = [1, 1]} : vector<2x128xf32> to vector<2x64xf32>
    %184 = arith.addf %182, %183 : vector<2x64xf32>
    %185 = vector.extract_strided_slice %179 {offsets = [0, 64], sizes = [2, 64], strides = [1, 1]} : vector<2x128xf32> to vector<2x64xf32>
    %186 = vector.extract_strided_slice %181 {offsets = [0, 64], sizes = [2, 64], strides = [1, 1]} : vector<2x128xf32> to vector<2x64xf32>
    %187 = arith.addf %185, %186 : vector<2x64xf32>
    %188 = vector.extract_strided_slice %184 {offsets = [0, 0], sizes = [2, 16], strides = [1, 1]} : vector<2x64xf32> to vector<2x16xf32>
    %189 = arith.negf %188 : vector<2x16xf32>
    %190 = math.exp %189 : vector<2x16xf32>
    %cst_68 = arith.constant 1.000000e+00 : f32
    %191 = vector.broadcast %cst_68 : f32 to vector<2x16xf32>
    %192 = arith.addf %191, %190 : vector<2x16xf32>
    %193 = arith.divf %191, %192 : vector<2x16xf32>
    %194 = vector.extract_strided_slice %184 {offsets = [0, 16], sizes = [2, 16], strides = [1, 1]} : vector<2x64xf32> to vector<2x16xf32>
    %195 = arith.negf %194 : vector<2x16xf32>
    %196 = math.exp %195 : vector<2x16xf32>
    %cst_69 = arith.constant 1.000000e+00 : f32
    %197 = vector.broadcast %cst_69 : f32 to vector<2x16xf32>
    %198 = arith.addf %197, %196 : vector<2x16xf32>
    %199 = arith.divf %197, %198 : vector<2x16xf32>
    %200 = vector.extract_strided_slice %184 {offsets = [0, 32], sizes = [2, 16], strides = [1, 1]} : vector<2x64xf32> to vector<2x16xf32>
    %201 = math.tanh %200 : vector<2x16xf32>
    %202 = vector.extract_strided_slice %184 {offsets = [0, 48], sizes = [2, 16], strides = [1, 1]} : vector<2x64xf32> to vector<2x16xf32>
    %203 = arith.negf %202 : vector<2x16xf32>
    %204 = math.exp %203 : vector<2x16xf32>
    %cst_70 = arith.constant 1.000000e+00 : f32
    %205 = vector.broadcast %cst_70 : f32 to vector<2x16xf32>
    %206 = arith.addf %205, %204 : vector<2x16xf32>
    %207 = arith.divf %205, %206 : vector<2x16xf32>
    %208 = vector.extract_strided_slice %187 {offsets = [0, 0], sizes = [2, 16], strides = [1, 1]} : vector<2x64xf32> to vector<2x16xf32>
    %209 = arith.negf %208 : vector<2x16xf32>
    %210 = math.exp %209 : vector<2x16xf32>
    %cst_71 = arith.constant 1.000000e+00 : f32
    %211 = vector.broadcast %cst_71 : f32 to vector<2x16xf32>
    %212 = arith.addf %211, %210 : vector<2x16xf32>
    %213 = arith.divf %211, %212 : vector<2x16xf32>
    %214 = vector.extract_strided_slice %187 {offsets = [0, 16], sizes = [2, 16], strides = [1, 1]} : vector<2x64xf32> to vector<2x16xf32>
    %215 = arith.negf %214 : vector<2x16xf32>
    %216 = math.exp %215 : vector<2x16xf32>
    %cst_72 = arith.constant 1.000000e+00 : f32
    %217 = vector.broadcast %cst_72 : f32 to vector<2x16xf32>
    %218 = arith.addf %217, %216 : vector<2x16xf32>
    %219 = arith.divf %217, %218 : vector<2x16xf32>
    %220 = vector.extract_strided_slice %187 {offsets = [0, 32], sizes = [2, 16], strides = [1, 1]} : vector<2x64xf32> to vector<2x16xf32>
    %221 = math.tanh %220 : vector<2x16xf32>
    %222 = vector.extract_strided_slice %187 {offsets = [0, 48], sizes = [2, 16], strides = [1, 1]} : vector<2x64xf32> to vector<2x16xf32>
    %223 = arith.negf %222 : vector<2x16xf32>
    %224 = math.exp %223 : vector<2x16xf32>
    %cst_73 = arith.constant 1.000000e+00 : f32
    %225 = vector.broadcast %cst_73 : f32 to vector<2x16xf32>
    %226 = arith.addf %225, %224 : vector<2x16xf32>
    %227 = arith.divf %225, %226 : vector<2x16xf32>
    %228 = arith.mulf %199, %168 : vector<2x16xf32>
    %229 = arith.mulf %193, %201 : vector<2x16xf32>
    %230 = arith.addf %228, %229 : vector<2x16xf32>
    %231 = arith.mulf %219, %171 : vector<2x16xf32>
    %232 = arith.mulf %213, %221 : vector<2x16xf32>
    %233 = arith.addf %231, %232 : vector<2x16xf32>
    %234 = math.tanh %230 : vector<2x16xf32>
    %235 = arith.mulf %207, %234 : vector<2x16xf32>
    %236 = math.tanh %233 : vector<2x16xf32>
    %237 = arith.mulf %227, %236 : vector<2x16xf32>
    %c16_74 = arith.constant 16 : index
    %c0_75 = arith.constant 0 : index
    %238 = vector.load %arg12[%c16_74, %c0_75] : memref<64x16xf32, #tpu.memory_space<vmem>>, vector<2x16xf32>
    tpu.vector_store %arg12[%c16_74, %c0_75], %235 {strides = array<i32>} : memref<64x16xf32, #tpu.memory_space<vmem>>, vector<2x16xf32>,
    %c40_76 = arith.constant 40 : index
    %c0_77 = arith.constant 0 : index
    %239 = vector.load %arg13[%c40_76, %c0_77] : memref<64x16xf32, #tpu.memory_space<vmem>>, vector<2x16xf32>
    tpu.vector_store %arg13[%c40_76, %c0_77], %237 {strides = array<i32>} : memref<64x16xf32, #tpu.memory_space<vmem>>, vector<2x16xf32>,
    %240 = tpu.concatenate %235, %237 in 1 : vector<2x16xf32>, vector<2x16xf32> -> vector<2x32xf32>
    %cst_78 = arith.constant dense<0.000000e+00> : vector<2x128xf32>
    %241 = tpu.matmul %240, %50, %cst_78 {dimension_numbers = #tpu.dot_dimension_numbers<[1], [0], [0], [1], [0, 0, 1, 1], [], []>} : vector<2x32xf32>, vector<32x128xf32>, vector<2x128xf32> -> vector<2x128xf32>
    %c24_79 = arith.constant 24 : index
    %c0_80 = arith.constant 0 : index
    %242 = vector.load %arg11[%c24_79, %c0_80] : memref<64x128xf32, #tpu.memory_space<vmem>>, vector<2x128xf32>
    %c32_81 = arith.constant 32 : index
    %c0_82 = arith.constant 0 : index
    %243 = vector.load %arg11[%c32_81, %c0_82] : memref<64x128xf32, #tpu.memory_space<vmem>>, vector<2x128xf32>
    %244 = vector.extract_strided_slice %241 {offsets = [0, 0], sizes = [2, 64], strides = [1, 1]} : vector<2x128xf32> to vector<2x64xf32>
    %245 = vector.extract_strided_slice %242 {offsets = [0, 0], sizes = [2, 64], strides = [1, 1]} : vector<2x128xf32> to vector<2x64xf32>
    %246 = arith.addf %244, %245 : vector<2x64xf32>
    %247 = vector.extract_strided_slice %241 {offsets = [0, 64], sizes = [2, 64], strides = [1, 1]} : vector<2x128xf32> to vector<2x64xf32>
    %248 = vector.extract_strided_slice %243 {offsets = [0, 64], sizes = [2, 64], strides = [1, 1]} : vector<2x128xf32> to vector<2x64xf32>
    %249 = arith.addf %247, %248 : vector<2x64xf32>
    %250 = vector.extract_strided_slice %246 {offsets = [0, 0], sizes = [2, 16], strides = [1, 1]} : vector<2x64xf32> to vector<2x16xf32>
    %251 = arith.negf %250 : vector<2x16xf32>
    %252 = math.exp %251 : vector<2x16xf32>
    %cst_83 = arith.constant 1.000000e+00 : f32
    %253 = vector.broadcast %cst_83 : f32 to vector<2x16xf32>
    %254 = arith.addf %253, %252 : vector<2x16xf32>
    %255 = arith.divf %253, %254 : vector<2x16xf32>
    %256 = vector.extract_strided_slice %246 {offsets = [0, 16], sizes = [2, 16], strides = [1, 1]} : vector<2x64xf32> to vector<2x16xf32>
    %257 = arith.negf %256 : vector<2x16xf32>
    %258 = math.exp %257 : vector<2x16xf32>
    %cst_84 = arith.constant 1.000000e+00 : f32
    %259 = vector.broadcast %cst_84 : f32 to vector<2x16xf32>
    %260 = arith.addf %259, %258 : vector<2x16xf32>
    %261 = arith.divf %259, %260 : vector<2x16xf32>
    %262 = vector.extract_strided_slice %246 {offsets = [0, 32], sizes = [2, 16], strides = [1, 1]} : vector<2x64xf32> to vector<2x16xf32>
    %263 = math.tanh %262 : vector<2x16xf32>
    %264 = vector.extract_strided_slice %246 {offsets = [0, 48], sizes = [2, 16], strides = [1, 1]} : vector<2x64xf32> to vector<2x16xf32>
    %265 = arith.negf %264 : vector<2x16xf32>
    %266 = math.exp %265 : vector<2x16xf32>
    %cst_85 = arith.constant 1.000000e+00 : f32
    %267 = vector.broadcast %cst_85 : f32 to vector<2x16xf32>
    %268 = arith.addf %267, %266 : vector<2x16xf32>
    %269 = arith.divf %267, %268 : vector<2x16xf32>
    %270 = vector.extract_strided_slice %249 {offsets = [0, 0], sizes = [2, 16], strides = [1, 1]} : vector<2x64xf32> to vector<2x16xf32>
    %271 = arith.negf %270 : vector<2x16xf32>
    %272 = math.exp %271 : vector<2x16xf32>
    %cst_86 = arith.constant 1.000000e+00 : f32
    %273 = vector.broadcast %cst_86 : f32 to vector<2x16xf32>
    %274 = arith.addf %273, %272 : vector<2x16xf32>
    %275 = arith.divf %273, %274 : vector<2x16xf32>
    %276 = vector.extract_strided_slice %249 {offsets = [0, 16], sizes = [2, 16], strides = [1, 1]} : vector<2x64xf32> to vector<2x16xf32>
    %277 = arith.negf %276 : vector<2x16xf32>
    %278 = math.exp %277 : vector<2x16xf32>
    %cst_87 = arith.constant 1.000000e+00 : f32
    %279 = vector.broadcast %cst_87 : f32 to vector<2x16xf32>
    %280 = arith.addf %279, %278 : vector<2x16xf32>
    %281 = arith.divf %279, %280 : vector<2x16xf32>
    %282 = vector.extract_strided_slice %249 {offsets = [0, 32], sizes = [2, 16], strides = [1, 1]} : vector<2x64xf32> to vector<2x16xf32>
    %283 = math.tanh %282 : vector<2x16xf32>
    %284 = vector.extract_strided_slice %249 {offsets = [0, 48], sizes = [2, 16], strides = [1, 1]} : vector<2x64xf32> to vector<2x16xf32>
    %285 = arith.negf %284 : vector<2x16xf32>
    %286 = math.exp %285 : vector<2x16xf32>
    %cst_88 = arith.constant 1.000000e+00 : f32
    %287 = vector.broadcast %cst_88 : f32 to vector<2x16xf32>
    %288 = arith.addf %287, %286 : vector<2x16xf32>
    %289 = arith.divf %287, %288 : vector<2x16xf32>
    %290 = arith.mulf %261, %230 : vector<2x16xf32>
    %291 = arith.mulf %255, %263 : vector<2x16xf32>
    %292 = arith.addf %290, %291 : vector<2x16xf32>
    %293 = arith.mulf %281, %233 : vector<2x16xf32>
    %294 = arith.mulf %275, %283 : vector<2x16xf32>
    %295 = arith.addf %293, %294 : vector<2x16xf32>
    %296 = math.tanh %292 : vector<2x16xf32>
    %297 = arith.mulf %269, %296 : vector<2x16xf32>
    %298 = math.tanh %295 : vector<2x16xf32>
    %299 = arith.mulf %289, %298 : vector<2x16xf32>
    %c24_89 = arith.constant 24 : index
    %c0_90 = arith.constant 0 : index
    %300 = vector.load %arg12[%c24_89, %c0_90] : memref<64x16xf32, #tpu.memory_space<vmem>>, vector<2x16xf32>
    tpu.vector_store %arg12[%c24_89, %c0_90], %297 {strides = array<i32>} : memref<64x16xf32, #tpu.memory_space<vmem>>, vector<2x16xf32>,
    %c32_91 = arith.constant 32 : index
    %c0_92 = arith.constant 0 : index
    %301 = vector.load %arg13[%c32_91, %c0_92] : memref<64x16xf32, #tpu.memory_space<vmem>>, vector<2x16xf32>
    tpu.vector_store %arg13[%c32_91, %c0_92], %299 {strides = array<i32>} : memref<64x16xf32, #tpu.memory_space<vmem>>, vector<2x16xf32>,
    %302 = tpu.concatenate %297, %299 in 1 : vector<2x16xf32>, vector<2x16xf32> -> vector<2x32xf32>
    %cst_93 = arith.constant dense<0.000000e+00> : vector<2x128xf32>
    %303 = tpu.matmul %302, %50, %cst_93 {dimension_numbers = #tpu.dot_dimension_numbers<[1], [0], [0], [1], [0, 0, 1, 1], [], []>} : vector<2x32xf32>, vector<32x128xf32>, vector<2x128xf32> -> vector<2x128xf32>
    %c32_94 = arith.constant 32 : index
    %c0_95 = arith.constant 0 : index
    %304 = vector.load %arg11[%c32_94, %c0_95] : memref<64x128xf32, #tpu.memory_space<vmem>>, vector<2x128xf32>
    %c24_96 = arith.constant 24 : index
    %c0_97 = arith.constant 0 : index
    %305 = vector.load %arg11[%c24_96, %c0_97] : memref<64x128xf32, #tpu.memory_space<vmem>>, vector<2x128xf32>
    %306 = vector.extract_strided_slice %303 {offsets = [0, 0], sizes = [2, 64], strides = [1, 1]} : vector<2x128xf32> to vector<2x64xf32>
    %307 = vector.extract_strided_slice %304 {offsets = [0, 0], sizes = [2, 64], strides = [1, 1]} : vector<2x128xf32> to vector<2x64xf32>
    %308 = arith.addf %306, %307 : vector<2x64xf32>
    %309 = vector.extract_strided_slice %303 {offsets = [0, 64], sizes = [2, 64], strides = [1, 1]} : vector<2x128xf32> to vector<2x64xf32>
    %310 = vector.extract_strided_slice %305 {offsets = [0, 64], sizes = [2, 64], strides = [1, 1]} : vector<2x128xf32> to vector<2x64xf32>
    %311 = arith.addf %309, %310 : vector<2x64xf32>
    %312 = vector.extract_strided_slice %308 {offsets = [0, 0], sizes = [2, 16], strides = [1, 1]} : vector<2x64xf32> to vector<2x16xf32>
    %313 = arith.negf %312 : vector<2x16xf32>
    %314 = math.exp %313 : vector<2x16xf32>
    %cst_98 = arith.constant 1.000000e+00 : f32
    %315 = vector.broadcast %cst_98 : f32 to vector<2x16xf32>
    %316 = arith.addf %315, %314 : vector<2x16xf32>
    %317 = arith.divf %315, %316 : vector<2x16xf32>
    %318 = vector.extract_strided_slice %308 {offsets = [0, 16], sizes = [2, 16], strides = [1, 1]} : vector<2x64xf32> to vector<2x16xf32>
    %319 = arith.negf %318 : vector<2x16xf32>
    %320 = math.exp %319 : vector<2x16xf32>
    %cst_99 = arith.constant 1.000000e+00 : f32
    %321 = vector.broadcast %cst_99 : f32 to vector<2x16xf32>
    %322 = arith.addf %321, %320 : vector<2x16xf32>
    %323 = arith.divf %321, %322 : vector<2x16xf32>
    %324 = vector.extract_strided_slice %308 {offsets = [0, 32], sizes = [2, 16], strides = [1, 1]} : vector<2x64xf32> to vector<2x16xf32>
    %325 = math.tanh %324 : vector<2x16xf32>
    %326 = vector.extract_strided_slice %308 {offsets = [0, 48], sizes = [2, 16], strides = [1, 1]} : vector<2x64xf32> to vector<2x16xf32>
    %327 = arith.negf %326 : vector<2x16xf32>
    %328 = math.exp %327 : vector<2x16xf32>
    %cst_100 = arith.constant 1.000000e+00 : f32
    %329 = vector.broadcast %cst_100 : f32 to vector<2x16xf32>
    %330 = arith.addf %329, %328 : vector<2x16xf32>
    %331 = arith.divf %329, %330 : vector<2x16xf32>
    %332 = vector.extract_strided_slice %311 {offsets = [0, 0], sizes = [2, 16], strides = [1, 1]} : vector<2x64xf32> to vector<2x16xf32>
    %333 = arith.negf %332 : vector<2x16xf32>
    %334 = math.exp %333 : vector<2x16xf32>
    %cst_101 = arith.constant 1.000000e+00 : f32
    %335 = vector.broadcast %cst_101 : f32 to vector<2x16xf32>
    %336 = arith.addf %335, %334 : vector<2x16xf32>
    %337 = arith.divf %335, %336 : vector<2x16xf32>
    %338 = vector.extract_strided_slice %311 {offsets = [0, 16], sizes = [2, 16], strides = [1, 1]} : vector<2x64xf32> to vector<2x16xf32>
    %339 = arith.negf %338 : vector<2x16xf32>
    %340 = math.exp %339 : vector<2x16xf32>
    %cst_102 = arith.constant 1.000000e+00 : f32
    %341 = vector.broadcast %cst_102 : f32 to vector<2x16xf32>
    %342 = arith.addf %341, %340 : vector<2x16xf32>
    %343 = arith.divf %341, %342 : vector<2x16xf32>
    %344 = vector.extract_strided_slice %311 {offsets = [0, 32], sizes = [2, 16], strides = [1, 1]} : vector<2x64xf32> to vector<2x16xf32>
    %345 = math.tanh %344 : vector<2x16xf32>
    %346 = vector.extract_strided_slice %311 {offsets = [0, 48], sizes = [2, 16], strides = [1, 1]} : vector<2x64xf32> to vector<2x16xf32>
    %347 = arith.negf %346 : vector<2x16xf32>
    %348 = math.exp %347 : vector<2x16xf32>
    %cst_103 = arith.constant 1.000000e+00 : f32
    %349 = vector.broadcast %cst_103 : f32 to vector<2x16xf32>
    %350 = arith.addf %349, %348 : vector<2x16xf32>
    %351 = arith.divf %349, %350 : vector<2x16xf32>
    %352 = arith.mulf %323, %292 : vector<2x16xf32>
    %353 = arith.mulf %317, %325 : vector<2x16xf32>
    %354 = arith.addf %352, %353 : vector<2x16xf32>
    %355 = arith.mulf %343, %295 : vector<2x16xf32>
    %356 = arith.mulf %337, %345 : vector<2x16xf32>
    %357 = arith.addf %355, %356 : vector<2x16xf32>
    %358 = math.tanh %354 : vector<2x16xf32>
    %359 = arith.mulf %331, %358 : vector<2x16xf32>
    %360 = math.tanh %357 : vector<2x16xf32>
    %361 = arith.mulf %351, %360 : vector<2x16xf32>
    %c32_104 = arith.constant 32 : index
    %c0_105 = arith.constant 0 : index
    %362 = vector.load %arg12[%c32_104, %c0_105] : memref<64x16xf32, #tpu.memory_space<vmem>>, vector<2x16xf32>
    tpu.vector_store %arg12[%c32_104, %c0_105], %359 {strides = array<i32>} : memref<64x16xf32, #tpu.memory_space<vmem>>, vector<2x16xf32>,
    %c24_106 = arith.constant 24 : index
    %c0_107 = arith.constant 0 : index
    %363 = vector.load %arg13[%c24_106, %c0_107] : memref<64x16xf32, #tpu.memory_space<vmem>>, vector<2x16xf32>
    tpu.vector_store %arg13[%c24_106, %c0_107], %361 {strides = array<i32>} : memref<64x16xf32, #tpu.memory_space<vmem>>, vector<2x16xf32>,
    %364 = tpu.concatenate %359, %361 in 1 : vector<2x16xf32>, vector<2x16xf32> -> vector<2x32xf32>
    %cst_108 = arith.constant dense<0.000000e+00> : vector<2x128xf32>
    %365 = tpu.matmul %364, %50, %cst_108 {dimension_numbers = #tpu.dot_dimension_numbers<[1], [0], [0], [1], [0, 0, 1, 1], [], []>} : vector<2x32xf32>, vector<32x128xf32>, vector<2x128xf32> -> vector<2x128xf32>
    %c40_109 = arith.constant 40 : index
    %c0_110 = arith.constant 0 : index
    %366 = vector.load %arg11[%c40_109, %c0_110] : memref<64x128xf32, #tpu.memory_space<vmem>>, vector<2x128xf32>
    %c16_111 = arith.constant 16 : index
    %c0_112 = arith.constant 0 : index
    %367 = vector.load %arg11[%c16_111, %c0_112] : memref<64x128xf32, #tpu.memory_space<vmem>>, vector<2x128xf32>
    %368 = vector.extract_strided_slice %365 {offsets = [0, 0], sizes = [2, 64], strides = [1, 1]} : vector<2x128xf32> to vector<2x64xf32>
    %369 = vector.extract_strided_slice %366 {offsets = [0, 0], sizes = [2, 64], strides = [1, 1]} : vector<2x128xf32> to vector<2x64xf32>
    %370 = arith.addf %368, %369 : vector<2x64xf32>
    %371 = vector.extract_strided_slice %365 {offsets = [0, 64], sizes = [2, 64], strides = [1, 1]} : vector<2x128xf32> to vector<2x64xf32>
    %372 = vector.extract_strided_slice %367 {offsets = [0, 64], sizes = [2, 64], strides = [1, 1]} : vector<2x128xf32> to vector<2x64xf32>
    %373 = arith.addf %371, %372 : vector<2x64xf32>
    %374 = vector.extract_strided_slice %370 {offsets = [0, 0], sizes = [2, 16], strides = [1, 1]} : vector<2x64xf32> to vector<2x16xf32>
    %375 = arith.negf %374 : vector<2x16xf32>
    %376 = math.exp %375 : vector<2x16xf32>
    %cst_113 = arith.constant 1.000000e+00 : f32
    %377 = vector.broadcast %cst_113 : f32 to vector<2x16xf32>
    %378 = arith.addf %377, %376 : vector<2x16xf32>
    %379 = arith.divf %377, %378 : vector<2x16xf32>
    %380 = vector.extract_strided_slice %370 {offsets = [0, 16], sizes = [2, 16], strides = [1, 1]} : vector<2x64xf32> to vector<2x16xf32>
    %381 = arith.negf %380 : vector<2x16xf32>
    %382 = math.exp %381 : vector<2x16xf32>
    %cst_114 = arith.constant 1.000000e+00 : f32
    %383 = vector.broadcast %cst_114 : f32 to vector<2x16xf32>
    %384 = arith.addf %383, %382 : vector<2x16xf32>
    %385 = arith.divf %383, %384 : vector<2x16xf32>
    %386 = vector.extract_strided_slice %370 {offsets = [0, 32], sizes = [2, 16], strides = [1, 1]} : vector<2x64xf32> to vector<2x16xf32>
    %387 = math.tanh %386 : vector<2x16xf32>
    %388 = vector.extract_strided_slice %370 {offsets = [0, 48], sizes = [2, 16], strides = [1, 1]} : vector<2x64xf32> to vector<2x16xf32>
    %389 = arith.negf %388 : vector<2x16xf32>
    %390 = math.exp %389 : vector<2x16xf32>
    %cst_115 = arith.constant 1.000000e+00 : f32
    %391 = vector.broadcast %cst_115 : f32 to vector<2x16xf32>
    %392 = arith.addf %391, %390 : vector<2x16xf32>
    %393 = arith.divf %391, %392 : vector<2x16xf32>
    %394 = vector.extract_strided_slice %373 {offsets = [0, 0], sizes = [2, 16], strides = [1, 1]} : vector<2x64xf32> to vector<2x16xf32>
    %395 = arith.negf %394 : vector<2x16xf32>
    %396 = math.exp %395 : vector<2x16xf32>
    %cst_116 = arith.constant 1.000000e+00 : f32
    %397 = vector.broadcast %cst_116 : f32 to vector<2x16xf32>
    %398 = arith.addf %397, %396 : vector<2x16xf32>
    %399 = arith.divf %397, %398 : vector<2x16xf32>
    %400 = vector.extract_strided_slice %373 {offsets = [0, 16], sizes = [2, 16], strides = [1, 1]} : vector<2x64xf32> to vector<2x16xf32>
    %401 = arith.negf %400 : vector<2x16xf32>
    %402 = math.exp %401 : vector<2x16xf32>
    %cst_117 = arith.constant 1.000000e+00 : f32
    %403 = vector.broadcast %cst_117 : f32 to vector<2x16xf32>
    %404 = arith.addf %403, %402 : vector<2x16xf32>
    %405 = arith.divf %403, %404 : vector<2x16xf32>
    %406 = vector.extract_strided_slice %373 {offsets = [0, 32], sizes = [2, 16], strides = [1, 1]} : vector<2x64xf32> to vector<2x16xf32>
    %407 = math.tanh %406 : vector<2x16xf32>
    %408 = vector.extract_strided_slice %373 {offsets = [0, 48], sizes = [2, 16], strides = [1, 1]} : vector<2x64xf32> to vector<2x16xf32>
    %409 = arith.negf %408 : vector<2x16xf32>
    %410 = math.exp %409 : vector<2x16xf32>
    %cst_118 = arith.constant 1.000000e+00 : f32
    %411 = vector.broadcast %cst_118 : f32 to vector<2x16xf32>
    %412 = arith.addf %411, %410 : vector<2x16xf32>
    %413 = arith.divf %411, %412 : vector<2x16xf32>
    %414 = arith.mulf %385, %354 : vector<2x16xf32>
    %415 = arith.mulf %379, %387 : vector<2x16xf32>
    %416 = arith.addf %414, %415 : vector<2x16xf32>
    %417 = arith.mulf %405, %357 : vector<2x16xf32>
    %418 = arith.mulf %399, %407 : vector<2x16xf32>
    %419 = arith.addf %417, %418 : vector<2x16xf32>
    %420 = math.tanh %416 : vector<2x16xf32>
    %421 = arith.mulf %393, %420 : vector<2x16xf32>
    %422 = math.tanh %419 : vector<2x16xf32>
    %423 = arith.mulf %413, %422 : vector<2x16xf32>
    %c40_119 = arith.constant 40 : index
    %c0_120 = arith.constant 0 : index
    %424 = vector.load %arg12[%c40_119, %c0_120] : memref<64x16xf32, #tpu.memory_space<vmem>>, vector<2x16xf32>
    tpu.vector_store %arg12[%c40_119, %c0_120], %421 {strides = array<i32>} : memref<64x16xf32, #tpu.memory_space<vmem>>, vector<2x16xf32>,
    %c16_121 = arith.constant 16 : index
    %c0_122 = arith.constant 0 : index
    %425 = vector.load %arg13[%c16_121, %c0_122] : memref<64x16xf32, #tpu.memory_space<vmem>>, vector<2x16xf32>
    tpu.vector_store %arg13[%c16_121, %c0_122], %423 {strides = array<i32>} : memref<64x16xf32, #tpu.memory_space<vmem>>, vector<2x16xf32>,
    %426 = tpu.concatenate %421, %423 in 1 : vector<2x16xf32>, vector<2x16xf32> -> vector<2x32xf32>
    %cst_123 = arith.constant dense<0.000000e+00> : vector<2x128xf32>
    %427 = tpu.matmul %426, %50, %cst_123 {dimension_numbers = #tpu.dot_dimension_numbers<[1], [0], [0], [1], [0, 0, 1, 1], [], []>} : vector<2x32xf32>, vector<32x128xf32>, vector<2x128xf32> -> vector<2x128xf32>
    %c48_124 = arith.constant 48 : index
    %c0_125 = arith.constant 0 : index
    %428 = vector.load %arg11[%c48_124, %c0_125] : memref<64x128xf32, #tpu.memory_space<vmem>>, vector<2x128xf32>
    %c8_126 = arith.constant 8 : index
    %c0_127 = arith.constant 0 : index
    %429 = vector.load %arg11[%c8_126, %c0_127] : memref<64x128xf32, #tpu.memory_space<vmem>>, vector<2x128xf32>
    %430 = vector.extract_strided_slice %427 {offsets = [0, 0], sizes = [2, 64], strides = [1, 1]} : vector<2x128xf32> to vector<2x64xf32>
    %431 = vector.extract_strided_slice %428 {offsets = [0, 0], sizes = [2, 64], strides = [1, 1]} : vector<2x128xf32> to vector<2x64xf32>
    %432 = arith.addf %430, %431 : vector<2x64xf32>
    %433 = vector.extract_strided_slice %427 {offsets = [0, 64], sizes = [2, 64], strides = [1, 1]} : vector<2x128xf32> to vector<2x64xf32>
    %434 = vector.extract_strided_slice %429 {offsets = [0, 64], sizes = [2, 64], strides = [1, 1]} : vector<2x128xf32> to vector<2x64xf32>
    %435 = arith.addf %433, %434 : vector<2x64xf32>
    %436 = vector.extract_strided_slice %432 {offsets = [0, 0], sizes = [2, 16], strides = [1, 1]} : vector<2x64xf32> to vector<2x16xf32>
    %437 = arith.negf %436 : vector<2x16xf32>
    %438 = math.exp %437 : vector<2x16xf32>
    %cst_128 = arith.constant 1.000000e+00 : f32
    %439 = vector.broadcast %cst_128 : f32 to vector<2x16xf32>
    %440 = arith.addf %439, %438 : vector<2x16xf32>
    %441 = arith.divf %439, %440 : vector<2x16xf32>
    %442 = vector.extract_strided_slice %432 {offsets = [0, 16], sizes = [2, 16], strides = [1, 1]} : vector<2x64xf32> to vector<2x16xf32>
    %443 = arith.negf %442 : vector<2x16xf32>
    %444 = math.exp %443 : vector<2x16xf32>
    %cst_129 = arith.constant 1.000000e+00 : f32
    %445 = vector.broadcast %cst_129 : f32 to vector<2x16xf32>
    %446 = arith.addf %445, %444 : vector<2x16xf32>
    %447 = arith.divf %445, %446 : vector<2x16xf32>
    %448 = vector.extract_strided_slice %432 {offsets = [0, 32], sizes = [2, 16], strides = [1, 1]} : vector<2x64xf32> to vector<2x16xf32>
    %449 = math.tanh %448 : vector<2x16xf32>
    %450 = vector.extract_strided_slice %432 {offsets = [0, 48], sizes = [2, 16], strides = [1, 1]} : vector<2x64xf32> to vector<2x16xf32>
    %451 = arith.negf %450 : vector<2x16xf32>
    %452 = math.exp %451 : vector<2x16xf32>
    %cst_130 = arith.constant 1.000000e+00 : f32
    %453 = vector.broadcast %cst_130 : f32 to vector<2x16xf32>
    %454 = arith.addf %453, %452 : vector<2x16xf32>
    %455 = arith.divf %453, %454 : vector<2x16xf32>
    %456 = vector.extract_strided_slice %435 {offsets = [0, 0], sizes = [2, 16], strides = [1, 1]} : vector<2x64xf32> to vector<2x16xf32>
    %457 = arith.negf %456 : vector<2x16xf32>
    %458 = math.exp %457 : vector<2x16xf32>
    %cst_131 = arith.constant 1.000000e+00 : f32
    %459 = vector.broadcast %cst_131 : f32 to vector<2x16xf32>
    %460 = arith.addf %459, %458 : vector<2x16xf32>
    %461 = arith.divf %459, %460 : vector<2x16xf32>
    %462 = vector.extract_strided_slice %435 {offsets = [0, 16], sizes = [2, 16], strides = [1, 1]} : vector<2x64xf32> to vector<2x16xf32>
    %463 = arith.negf %462 : vector<2x16xf32>
    %464 = math.exp %463 : vector<2x16xf32>
    %cst_132 = arith.constant 1.000000e+00 : f32
    %465 = vector.broadcast %cst_132 : f32 to vector<2x16xf32>
    %466 = arith.addf %465, %464 : vector<2x16xf32>
    %467 = arith.divf %465, %466 : vector<2x16xf32>
    %468 = vector.extract_strided_slice %435 {offsets = [0, 32], sizes = [2, 16], strides = [1, 1]} : vector<2x64xf32> to vector<2x16xf32>
    %469 = math.tanh %468 : vector<2x16xf32>
    %470 = vector.extract_strided_slice %435 {offsets = [0, 48], sizes = [2, 16], strides = [1, 1]} : vector<2x64xf32> to vector<2x16xf32>
    %471 = arith.negf %470 : vector<2x16xf32>
    %472 = math.exp %471 : vector<2x16xf32>
    %cst_133 = arith.constant 1.000000e+00 : f32
    %473 = vector.broadcast %cst_133 : f32 to vector<2x16xf32>
    %474 = arith.addf %473, %472 : vector<2x16xf32>
    %475 = arith.divf %473, %474 : vector<2x16xf32>
    %476 = arith.mulf %447, %416 : vector<2x16xf32>
    %477 = arith.mulf %441, %449 : vector<2x16xf32>
    %478 = arith.addf %476, %477 : vector<2x16xf32>
    %479 = arith.mulf %467, %419 : vector<2x16xf32>
    %480 = arith.mulf %461, %469 : vector<2x16xf32>
    %481 = arith.addf %479, %480 : vector<2x16xf32>
    %482 = math.tanh %478 : vector<2x16xf32>
    %483 = arith.mulf %455, %482 : vector<2x16xf32>
    %484 = math.tanh %481 : vector<2x16xf32>
    %485 = arith.mulf %475, %484 : vector<2x16xf32>
    %c48_134 = arith.constant 48 : index
    %c0_135 = arith.constant 0 : index
    %486 = vector.load %arg12[%c48_134, %c0_135] : memref<64x16xf32, #tpu.memory_space<vmem>>, vector<2x16xf32>
    tpu.vector_store %arg12[%c48_134, %c0_135], %483 {strides = array<i32>} : memref<64x16xf32, #tpu.memory_space<vmem>>, vector<2x16xf32>,
    %c8_136 = arith.constant 8 : index
    %c0_137 = arith.constant 0 : index
    %487 = vector.load %arg13[%c8_136, %c0_137] : memref<64x16xf32, #tpu.memory_space<vmem>>, vector<2x16xf32>
    tpu.vector_store %arg13[%c8_136, %c0_137], %485 {strides = array<i32>} : memref<64x16xf32, #tpu.memory_space<vmem>>, vector<2x16xf32>,
    %488 = tpu.concatenate %483, %485 in 1 : vector<2x16xf32>, vector<2x16xf32> -> vector<2x32xf32>
    %cst_138 = arith.constant dense<0.000000e+00> : vector<2x128xf32>
    %489 = tpu.matmul %488, %50, %cst_138 {dimension_numbers = #tpu.dot_dimension_numbers<[1], [0], [0], [1], [0, 0, 1, 1], [], []>} : vector<2x32xf32>, vector<32x128xf32>, vector<2x128xf32> -> vector<2x128xf32>
    %c56_139 = arith.constant 56 : index
    %c0_140 = arith.constant 0 : index
    %490 = vector.load %arg11[%c56_139, %c0_140] : memref<64x128xf32, #tpu.memory_space<vmem>>, vector<2x128xf32>
    %c0_141 = arith.constant 0 : index
    %c0_142 = arith.constant 0 : index
    %491 = vector.load %arg11[%c0_141, %c0_142] : memref<64x128xf32, #tpu.memory_space<vmem>>, vector<2x128xf32>
    %492 = vector.extract_strided_slice %489 {offsets = [0, 0], sizes = [2, 64], strides = [1, 1]} : vector<2x128xf32> to vector<2x64xf32>
    %493 = vector.extract_strided_slice %490 {offsets = [0, 0], sizes = [2, 64], strides = [1, 1]} : vector<2x128xf32> to vector<2x64xf32>
    %494 = arith.addf %492, %493 : vector<2x64xf32>
    %495 = vector.extract_strided_slice %489 {offsets = [0, 64], sizes = [2, 64], strides = [1, 1]} : vector<2x128xf32> to vector<2x64xf32>
    %496 = vector.extract_strided_slice %491 {offsets = [0, 64], sizes = [2, 64], strides = [1, 1]} : vector<2x128xf32> to vector<2x64xf32>
    %497 = arith.addf %495, %496 : vector<2x64xf32>
    %498 = vector.extract_strided_slice %494 {offsets = [0, 0], sizes = [2, 16], strides = [1, 1]} : vector<2x64xf32> to vector<2x16xf32>
    %499 = arith.negf %498 : vector<2x16xf32>
    %500 = math.exp %499 : vector<2x16xf32>
    %cst_143 = arith.constant 1.000000e+00 : f32
    %501 = vector.broadcast %cst_143 : f32 to vector<2x16xf32>
    %502 = arith.addf %501, %500 : vector<2x16xf32>
    %503 = arith.divf %501, %502 : vector<2x16xf32>
    %504 = vector.extract_strided_slice %494 {offsets = [0, 16], sizes = [2, 16], strides = [1, 1]} : vector<2x64xf32> to vector<2x16xf32>
    %505 = arith.negf %504 : vector<2x16xf32>
    %506 = math.exp %505 : vector<2x16xf32>
    %cst_144 = arith.constant 1.000000e+00 : f32
    %507 = vector.broadcast %cst_144 : f32 to vector<2x16xf32>
    %508 = arith.addf %507, %506 : vector<2x16xf32>
    %509 = arith.divf %507, %508 : vector<2x16xf32>
    %510 = vector.extract_strided_slice %494 {offsets = [0, 32], sizes = [2, 16], strides = [1, 1]} : vector<2x64xf32> to vector<2x16xf32>
    %511 = math.tanh %510 : vector<2x16xf32>
    %512 = vector.extract_strided_slice %494 {offsets = [0, 48], sizes = [2, 16], strides = [1, 1]} : vector<2x64xf32> to vector<2x16xf32>
    %513 = arith.negf %512 : vector<2x16xf32>
    %514 = math.exp %513 : vector<2x16xf32>
    %cst_145 = arith.constant 1.000000e+00 : f32
    %515 = vector.broadcast %cst_145 : f32 to vector<2x16xf32>
    %516 = arith.addf %515, %514 : vector<2x16xf32>
    %517 = arith.divf %515, %516 : vector<2x16xf32>
    %518 = vector.extract_strided_slice %497 {offsets = [0, 0], sizes = [2, 16], strides = [1, 1]} : vector<2x64xf32> to vector<2x16xf32>
    %519 = arith.negf %518 : vector<2x16xf32>
    %520 = math.exp %519 : vector<2x16xf32>
    %cst_146 = arith.constant 1.000000e+00 : f32
    %521 = vector.broadcast %cst_146 : f32 to vector<2x16xf32>
    %522 = arith.addf %521, %520 : vector<2x16xf32>
    %523 = arith.divf %521, %522 : vector<2x16xf32>
    %524 = vector.extract_strided_slice %497 {offsets = [0, 16], sizes = [2, 16], strides = [1, 1]} : vector<2x64xf32> to vector<2x16xf32>
    %525 = arith.negf %524 : vector<2x16xf32>
    %526 = math.exp %525 : vector<2x16xf32>
    %cst_147 = arith.constant 1.000000e+00 : f32
    %527 = vector.broadcast %cst_147 : f32 to vector<2x16xf32>
    %528 = arith.addf %527, %526 : vector<2x16xf32>
    %529 = arith.divf %527, %528 : vector<2x16xf32>
    %530 = vector.extract_strided_slice %497 {offsets = [0, 32], sizes = [2, 16], strides = [1, 1]} : vector<2x64xf32> to vector<2x16xf32>
    %531 = math.tanh %530 : vector<2x16xf32>
    %532 = vector.extract_strided_slice %497 {offsets = [0, 48], sizes = [2, 16], strides = [1, 1]} : vector<2x64xf32> to vector<2x16xf32>
    %533 = arith.negf %532 : vector<2x16xf32>
    %534 = math.exp %533 : vector<2x16xf32>
    %cst_148 = arith.constant 1.000000e+00 : f32
    %535 = vector.broadcast %cst_148 : f32 to vector<2x16xf32>
    %536 = arith.addf %535, %534 : vector<2x16xf32>
    %537 = arith.divf %535, %536 : vector<2x16xf32>
    %538 = arith.mulf %509, %478 : vector<2x16xf32>
    %539 = arith.mulf %503, %511 : vector<2x16xf32>
    %540 = arith.addf %538, %539 : vector<2x16xf32>
    %541 = arith.mulf %529, %481 : vector<2x16xf32>
    %542 = arith.mulf %523, %531 : vector<2x16xf32>
    %543 = arith.addf %541, %542 : vector<2x16xf32>
    %544 = math.tanh %540 : vector<2x16xf32>
    %545 = arith.mulf %517, %544 : vector<2x16xf32>
    %546 = math.tanh %543 : vector<2x16xf32>
    %547 = arith.mulf %537, %546 : vector<2x16xf32>
    %c56_149 = arith.constant 56 : index
    %c0_150 = arith.constant 0 : index
    %548 = vector.load %arg12[%c56_149, %c0_150] : memref<64x16xf32, #tpu.memory_space<vmem>>, vector<2x16xf32>
    tpu.vector_store %arg12[%c56_149, %c0_150], %545 {strides = array<i32>} : memref<64x16xf32, #tpu.memory_space<vmem>>, vector<2x16xf32>,
    %c0_151 = arith.constant 0 : index
    %c0_152 = arith.constant 0 : index
    %549 = vector.load %arg13[%c0_151, %c0_152] : memref<64x16xf32, #tpu.memory_space<vmem>>, vector<2x16xf32>
    tpu.vector_store %arg13[%c0_151, %c0_152], %547 {strides = array<i32>} : memref<64x16xf32, #tpu.memory_space<vmem>>, vector<2x16xf32>,
    %c0_153 = arith.constant 0 : index
    %c0_154 = arith.constant 0 : index
    %550 = vector.load %arg12[%c0_153, %c0_154] : memref<64x16xf32, #tpu.memory_space<vmem>>, vector<64x16xf32>
    %c0_155 = arith.constant 0 : index
    %c0_156 = arith.constant 0 : index
    %551 = vector.load %arg13[%c0_155, %c0_156] : memref<64x16xf32, #tpu.memory_space<vmem>>, vector<64x16xf32>
    %552 = tpu.concatenate %550, %551 in 1 : vector<64x16xf32>, vector<64x16xf32> -> vector<64x32xf32>
    %553 = math.tanh %552 : vector<64x32xf32>
    %c0_157 = arith.constant 0 : index
    %c0_158 = arith.constant 0 : index
    %554 = vector.load %arg3[%c0_157, %c0_158] : memref<64x32xf32, #tpu.memory_space<vmem>>, vector<64x32xf32>
    %c176 = arith.constant 176 : index
    %c0_159 = arith.constant 0 : index
    %555 = vector.load %arg8[%c176, %c0_159] : memref<448x128xbf16, #tpu.memory_space<vmem>>, vector<32x32xbf16>
    %556 = arith.truncf %553 : vector<64x32xf32> to vector<64x32xbf16>
    %cst_160 = arith.constant dense<0.000000e+00> : vector<64x32xf32>
    %557 = tpu.matmul %556, %555, %cst_160 {dimension_numbers = #tpu.dot_dimension_numbers<[1], [0], [0], [1], [0, 0, 1, 1], [], []>} : vector<64x32xbf16>, vector<32x32xbf16>, vector<64x32xf32> -> vector<64x32xf32>
    %c208 = arith.constant 208 : index
    %c0_161 = arith.constant 0 : index
    %558 = vector.load %arg8[%c208, %c0_161] : memref<448x128xbf16, #tpu.memory_space<vmem>>, vector<32x32xbf16>
    %559 = arith.truncf %554 : vector<64x32xf32> to vector<64x32xbf16>
    %cst_162 = arith.constant dense<0.000000e+00> : vector<64x32xf32>
    %560 = tpu.matmul %559, %558, %cst_162 {dimension_numbers = #tpu.dot_dimension_numbers<[1], [0], [0], [1], [0, 0, 1, 1], [], []>} : vector<64x32xbf16>, vector<32x32xbf16>, vector<64x32xf32> -> vector<64x32xf32>
    %561 = arith.addf %557, %560 : vector<64x32xf32>
    %c88 = arith.constant 88 : index
    %c0_163 = arith.constant 0 : index
    %562 = vector.load %arg9[%c88, %c0_163] : memref<176x128xf32, #tpu.memory_space<vmem>>, vector<1x32xf32>
    %563 = vector.broadcast %562 : vector<1x32xf32> to vector<64x32xf32>
    %564 = arith.addf %561, %563 : vector<64x32xf32>
    %565 = arith.negf %564 : vector<64x32xf32>
    %566 = math.exp %565 : vector<64x32xf32>
    %cst_164 = arith.constant 1.000000e+00 : f32
    %567 = vector.broadcast %cst_164 : f32 to vector<64x32xf32>
    %568 = arith.addf %567, %566 : vector<64x32xf32>
    %569 = arith.divf %567, %568 : vector<64x32xf32>
    %570 = arith.mulf %569, %553 : vector<64x32xf32>
    %cst_165 = arith.constant 1.000000e+00 : f32
    %571 = vector.broadcast %cst_165 : f32 to vector<64x32xf32>
    %572 = arith.subf %571, %569 : vector<64x32xf32>
    %573 = arith.mulf %572, %554 : vector<64x32xf32>
    %574 = arith.addf %570, %573 : vector<64x32xf32>
    %c240 = arith.constant 240 : index
    %c0_166 = arith.constant 0 : index
    %575 = vector.load %arg8[%c240, %c0_166] : memref<448x128xbf16, #tpu.memory_space<vmem>>, vector<32x9xbf16>
    %576 = arith.truncf %574 : vector<64x32xf32> to vector<64x32xbf16>
    %cst_167 = arith.constant dense<0.000000e+00> : vector<64x9xf32>
    %577 = tpu.matmul %576, %575, %cst_167 {dimension_numbers = #tpu.dot_dimension_numbers<[1], [0], [0], [1], [0, 0, 1, 1], [], []>} : vector<64x32xbf16>, vector<32x9xbf16>, vector<64x9xf32> -> vector<64x9xf32>
    %c96_168 = arith.constant 96 : index
    %c0_169 = arith.constant 0 : index
    %578 = vector.load %arg9[%c96_168, %c0_169] : memref<176x128xf32, #tpu.memory_space<vmem>>, vector<1x9xf32>
    %579 = vector.broadcast %578 : vector<1x9xf32> to vector<64x9xf32>
    %580 = arith.addf %577, %579 : vector<64x9xf32>
    %c272 = arith.constant 272 : index
    %c0_170 = arith.constant 0 : index
    %581 = vector.load %arg8[%c272, %c0_170] : memref<448x128xbf16, #tpu.memory_space<vmem>>, vector<32x96xbf16>
    %582 = arith.truncf %553 : vector<64x32xf32> to vector<64x32xbf16>
    %cst_171 = arith.constant dense<0.000000e+00> : vector<64x96xf32>
    %583 = tpu.matmul %582, %581, %cst_171 {dimension_numbers = #tpu.dot_dimension_numbers<[1], [0], [0], [1], [0, 0, 1, 1], [], []>} : vector<64x32xbf16>, vector<32x96xbf16>, vector<64x96xf32> -> vector<64x96xf32>
    %c104 = arith.constant 104 : index
    %c0_172 = arith.constant 0 : index
    %584 = vector.load %arg9[%c104, %c0_172] : memref<176x128xf32, #tpu.memory_space<vmem>>, vector<1x96xf32>
    %585 = vector.broadcast %584 : vector<1x96xf32> to vector<64x96xf32>
    %586 = arith.addf %583, %585 : vector<64x96xf32>
    %c0_173 = arith.constant 0 : index
    %c0_174 = arith.constant 0 : index
    %587 = vector.load %arg5[%c0_173, %c0_174] : memref<64x64xf32, #tpu.memory_space<vmem>>, vector<64x64xf32>
    %588 = vector.extract_strided_slice %586 {offsets = [0, 0], sizes = [64, 8], strides = [1, 1]} : vector<64x96xf32> to vector<64x8xf32>
    %589 = vector.extract_strided_slice %586 {offsets = [0, 32], sizes = [64, 8], strides = [1, 1]} : vector<64x96xf32> to vector<64x8xf32>
    %590 = vector.extract_strided_slice %586 {offsets = [0, 64], sizes = [64, 8], strides = [1, 1]} : vector<64x96xf32> to vector<64x8xf32>
    %591 = arith.truncf %588 : vector<64x8xf32> to vector<64x8xbf16>
    %592 = arith.truncf %589 : vector<64x8xf32> to vector<64x8xbf16>
    %cst_175 = arith.constant dense<0.000000e+00> : vector<64x64xf32>
    %593 = tpu.matmul %591, %592, %cst_175 {dimension_numbers = #tpu.dot_dimension_numbers<[1], [1], [0], [0], [0, 0, 1, 0], [], []>} : vector<64x8xbf16>, vector<64x8xbf16>, vector<64x64xf32> -> vector<64x64xf32>
    %cst_176 = arith.constant 0.353553385 : f32
    %594 = vector.broadcast %cst_176 : f32 to vector<64x64xf32>
    %595 = arith.mulf %593, %594 : vector<64x64xf32>
    %596 = arith.addf %595, %587 : vector<64x64xf32>
    %cst_177 = arith.constant dense<0xFF800000> : vector<64xf32>
    %597 = vector.multi_reduction <maximumf>, %596, %cst_177 [1] : vector<64x64xf32> to vector<64xf32>
    %598 = vector.shape_cast %597 : vector<64xf32> to vector<64x1xf32>
    %599 = vector.broadcast %598 : vector<64x1xf32> to vector<64x64xf32>
    %600 = arith.subf %596, %599 : vector<64x64xf32>
    %601 = math.exp %600 : vector<64x64xf32>
    %cst_178 = arith.constant dense<0.000000e+00> : vector<64xf32>
    %602 = vector.multi_reduction <add>, %601, %cst_178 [1] : vector<64x64xf32> to vector<64xf32>
    %603 = vector.shape_cast %602 : vector<64xf32> to vector<64x1xf32>
    %604 = tpu.reciprocal %603 {approx = true} : vector<64x1xf32> -> vector<64x1xf32>
    %605 = vector.broadcast %604 : vector<64x1xf32> to vector<64x64xf32>
    %606 = arith.mulf %601, %605 : vector<64x64xf32>
    %607 = arith.truncf %606 : vector<64x64xf32> to vector<64x64xbf16>
    %608 = arith.truncf %590 : vector<64x8xf32> to vector<64x8xbf16>
    %cst_179 = arith.constant dense<0.000000e+00> : vector<64x8xf32>
    %609 = tpu.matmul %607, %608, %cst_179 {dimension_numbers = #tpu.dot_dimension_numbers<[1], [0], [0], [1], [0, 0, 1, 1], [], []>} : vector<64x64xbf16>, vector<64x8xbf16>, vector<64x8xf32> -> vector<64x8xf32>
    %610 = vector.extract_strided_slice %586 {offsets = [0, 8], sizes = [64, 8], strides = [1, 1]} : vector<64x96xf32> to vector<64x8xf32>
    %611 = vector.extract_strided_slice %586 {offsets = [0, 40], sizes = [64, 8], strides = [1, 1]} : vector<64x96xf32> to vector<64x8xf32>
    %612 = vector.extract_strided_slice %586 {offsets = [0, 72], sizes = [64, 8], strides = [1, 1]} : vector<64x96xf32> to vector<64x8xf32>
    %613 = arith.truncf %610 : vector<64x8xf32> to vector<64x8xbf16>
    %614 = arith.truncf %611 : vector<64x8xf32> to vector<64x8xbf16>
    %cst_180 = arith.constant dense<0.000000e+00> : vector<64x64xf32>
    %615 = tpu.matmul %613, %614, %cst_180 {dimension_numbers = #tpu.dot_dimension_numbers<[1], [1], [0], [0], [0, 0, 1, 0], [], []>} : vector<64x8xbf16>, vector<64x8xbf16>, vector<64x64xf32> -> vector<64x64xf32>
    %cst_181 = arith.constant 0.353553385 : f32
    %616 = vector.broadcast %cst_181 : f32 to vector<64x64xf32>
    %617 = arith.mulf %615, %616 : vector<64x64xf32>
    %618 = arith.addf %617, %587 : vector<64x64xf32>
    %cst_182 = arith.constant dense<0xFF800000> : vector<64xf32>
    %619 = vector.multi_reduction <maximumf>, %618, %cst_182 [1] : vector<64x64xf32> to vector<64xf32>
    %620 = vector.shape_cast %619 : vector<64xf32> to vector<64x1xf32>
    %621 = vector.broadcast %620 : vector<64x1xf32> to vector<64x64xf32>
    %622 = arith.subf %618, %621 : vector<64x64xf32>
    %623 = math.exp %622 : vector<64x64xf32>
    %cst_183 = arith.constant dense<0.000000e+00> : vector<64xf32>
    %624 = vector.multi_reduction <add>, %623, %cst_183 [1] : vector<64x64xf32> to vector<64xf32>
    %625 = vector.shape_cast %624 : vector<64xf32> to vector<64x1xf32>
    %626 = tpu.reciprocal %625 {approx = true} : vector<64x1xf32> -> vector<64x1xf32>
    %627 = vector.broadcast %626 : vector<64x1xf32> to vector<64x64xf32>
    %628 = arith.mulf %623, %627 : vector<64x64xf32>
    %629 = arith.truncf %628 : vector<64x64xf32> to vector<64x64xbf16>
    %630 = arith.truncf %612 : vector<64x8xf32> to vector<64x8xbf16>
    %cst_184 = arith.constant dense<0.000000e+00> : vector<64x8xf32>
    %631 = tpu.matmul %629, %630, %cst_184 {dimension_numbers = #tpu.dot_dimension_numbers<[1], [0], [0], [1], [0, 0, 1, 1], [], []>} : vector<64x64xbf16>, vector<64x8xbf16>, vector<64x8xf32> -> vector<64x8xf32>
    %632 = vector.extract_strided_slice %586 {offsets = [0, 16], sizes = [64, 8], strides = [1, 1]} : vector<64x96xf32> to vector<64x8xf32>
    %633 = vector.extract_strided_slice %586 {offsets = [0, 48], sizes = [64, 8], strides = [1, 1]} : vector<64x96xf32> to vector<64x8xf32>
    %634 = vector.extract_strided_slice %586 {offsets = [0, 80], sizes = [64, 8], strides = [1, 1]} : vector<64x96xf32> to vector<64x8xf32>
    %635 = arith.truncf %632 : vector<64x8xf32> to vector<64x8xbf16>
    %636 = arith.truncf %633 : vector<64x8xf32> to vector<64x8xbf16>
    %cst_185 = arith.constant dense<0.000000e+00> : vector<64x64xf32>
    %637 = tpu.matmul %635, %636, %cst_185 {dimension_numbers = #tpu.dot_dimension_numbers<[1], [1], [0], [0], [0, 0, 1, 0], [], []>} : vector<64x8xbf16>, vector<64x8xbf16>, vector<64x64xf32> -> vector<64x64xf32>
    %cst_186 = arith.constant 0.353553385 : f32
    %638 = vector.broadcast %cst_186 : f32 to vector<64x64xf32>
    %639 = arith.mulf %637, %638 : vector<64x64xf32>
    %640 = arith.addf %639, %587 : vector<64x64xf32>
    %cst_187 = arith.constant dense<0xFF800000> : vector<64xf32>
    %641 = vector.multi_reduction <maximumf>, %640, %cst_187 [1] : vector<64x64xf32> to vector<64xf32>
    %642 = vector.shape_cast %641 : vector<64xf32> to vector<64x1xf32>
    %643 = vector.broadcast %642 : vector<64x1xf32> to vector<64x64xf32>
    %644 = arith.subf %640, %643 : vector<64x64xf32>
    %645 = math.exp %644 : vector<64x64xf32>
    %cst_188 = arith.constant dense<0.000000e+00> : vector<64xf32>
    %646 = vector.multi_reduction <add>, %645, %cst_188 [1] : vector<64x64xf32> to vector<64xf32>
    %647 = vector.shape_cast %646 : vector<64xf32> to vector<64x1xf32>
    %648 = tpu.reciprocal %647 {approx = true} : vector<64x1xf32> -> vector<64x1xf32>
    %649 = vector.broadcast %648 : vector<64x1xf32> to vector<64x64xf32>
    %650 = arith.mulf %645, %649 : vector<64x64xf32>
    %651 = arith.truncf %650 : vector<64x64xf32> to vector<64x64xbf16>
    %652 = arith.truncf %634 : vector<64x8xf32> to vector<64x8xbf16>
    %cst_189 = arith.constant dense<0.000000e+00> : vector<64x8xf32>
    %653 = tpu.matmul %651, %652, %cst_189 {dimension_numbers = #tpu.dot_dimension_numbers<[1], [0], [0], [1], [0, 0, 1, 1], [], []>} : vector<64x64xbf16>, vector<64x8xbf16>, vector<64x8xf32> -> vector<64x8xf32>
    %654 = vector.extract_strided_slice %586 {offsets = [0, 24], sizes = [64, 8], strides = [1, 1]} : vector<64x96xf32> to vector<64x8xf32>
    %655 = vector.extract_strided_slice %586 {offsets = [0, 56], sizes = [64, 8], strides = [1, 1]} : vector<64x96xf32> to vector<64x8xf32>
    %656 = vector.extract_strided_slice %586 {offsets = [0, 88], sizes = [64, 8], strides = [1, 1]} : vector<64x96xf32> to vector<64x8xf32>
    %657 = arith.truncf %654 : vector<64x8xf32> to vector<64x8xbf16>
    %658 = arith.truncf %655 : vector<64x8xf32> to vector<64x8xbf16>
    %cst_190 = arith.constant dense<0.000000e+00> : vector<64x64xf32>
    %659 = tpu.matmul %657, %658, %cst_190 {dimension_numbers = #tpu.dot_dimension_numbers<[1], [1], [0], [0], [0, 0, 1, 0], [], []>} : vector<64x8xbf16>, vector<64x8xbf16>, vector<64x64xf32> -> vector<64x64xf32>
    %cst_191 = arith.constant 0.353553385 : f32
    %660 = vector.broadcast %cst_191 : f32 to vector<64x64xf32>
    %661 = arith.mulf %659, %660 : vector<64x64xf32>
    %662 = arith.addf %661, %587 : vector<64x64xf32>
    %cst_192 = arith.constant dense<0xFF800000> : vector<64xf32>
    %663 = vector.multi_reduction <maximumf>, %662, %cst_192 [1] : vector<64x64xf32> to vector<64xf32>
    %664 = vector.shape_cast %663 : vector<64xf32> to vector<64x1xf32>
    %665 = vector.broadcast %664 : vector<64x1xf32> to vector<64x64xf32>
    %666 = arith.subf %662, %665 : vector<64x64xf32>
    %667 = math.exp %666 : vector<64x64xf32>
    %cst_193 = arith.constant dense<0.000000e+00> : vector<64xf32>
    %668 = vector.multi_reduction <add>, %667, %cst_193 [1] : vector<64x64xf32> to vector<64xf32>
    %669 = vector.shape_cast %668 : vector<64xf32> to vector<64x1xf32>
    %670 = tpu.reciprocal %669 {approx = true} : vector<64x1xf32> -> vector<64x1xf32>
    %671 = vector.broadcast %670 : vector<64x1xf32> to vector<64x64xf32>
    %672 = arith.mulf %667, %671 : vector<64x64xf32>
    %673 = arith.truncf %672 : vector<64x64xf32> to vector<64x64xbf16>
    %674 = arith.truncf %656 : vector<64x8xf32> to vector<64x8xbf16>
    %cst_194 = arith.constant dense<0.000000e+00> : vector<64x8xf32>
    %675 = tpu.matmul %673, %674, %cst_194 {dimension_numbers = #tpu.dot_dimension_numbers<[1], [0], [0], [1], [0, 0, 1, 1], [], []>} : vector<64x64xbf16>, vector<64x8xbf16>, vector<64x8xf32> -> vector<64x8xf32>
    %676 = tpu.concatenate %609, %631, %653, %675 in 1 : vector<64x8xf32>, vector<64x8xf32>, vector<64x8xf32>, vector<64x8xf32> -> vector<64x32xf32>
    %c304 = arith.constant 304 : index
    %c0_195 = arith.constant 0 : index
    %677 = vector.load %arg8[%c304, %c0_195] : memref<448x128xbf16, #tpu.memory_space<vmem>>, vector<32x32xbf16>
    %678 = arith.truncf %676 : vector<64x32xf32> to vector<64x32xbf16>
    %cst_196 = arith.constant dense<0.000000e+00> : vector<64x32xf32>
    %679 = tpu.matmul %678, %677, %cst_196 {dimension_numbers = #tpu.dot_dimension_numbers<[1], [0], [0], [1], [0, 0, 1, 1], [], []>} : vector<64x32xbf16>, vector<32x32xbf16>, vector<64x32xf32> -> vector<64x32xf32>
    %c112 = arith.constant 112 : index
    %c0_197 = arith.constant 0 : index
    %680 = vector.load %arg9[%c112, %c0_197] : memref<176x128xf32, #tpu.memory_space<vmem>>, vector<1x32xf32>
    %681 = vector.broadcast %680 : vector<1x32xf32> to vector<64x32xf32>
    %682 = arith.addf %679, %681 : vector<64x32xf32>
    %683 = arith.addf %682, %553 : vector<64x32xf32>
    %cst_198 = arith.constant dense<0.000000e+00> : vector<64xf32>
    %684 = vector.multi_reduction <add>, %683, %cst_198 [1] : vector<64x32xf32> to vector<64xf32>
    %685 = vector.shape_cast %684 : vector<64xf32> to vector<64x1xf32>
    %cst_199 = arith.constant 3.200000e+01 : f32
    %686 = vector.broadcast %cst_199 : f32 to vector<64x1xf32>
    %687 = arith.divf %685, %686 : vector<64x1xf32>
    %688 = vector.broadcast %687 : vector<64x1xf32> to vector<64x32xf32>
    %689 = arith.subf %683, %688 : vector<64x32xf32>
    %690 = vector.broadcast %687 : vector<64x1xf32> to vector<64x32xf32>
    %691 = arith.subf %683, %690 : vector<64x32xf32>
    %692 = arith.mulf %689, %691 : vector<64x32xf32>
    %cst_200 = arith.constant dense<0.000000e+00> : vector<64xf32>
    %693 = vector.multi_reduction <add>, %692, %cst_200 [1] : vector<64x32xf32> to vector<64xf32>
    %694 = vector.shape_cast %693 : vector<64xf32> to vector<64x1xf32>
    %cst_201 = arith.constant 3.200000e+01 : f32
    %695 = vector.broadcast %cst_201 : f32 to vector<64x1xf32>
    %696 = arith.divf %694, %695 : vector<64x1xf32>
    %697 = vector.broadcast %687 : vector<64x1xf32> to vector<64x32xf32>
    %698 = arith.subf %683, %697 : vector<64x32xf32>
    %cst_202 = arith.constant 9.99999974E-6 : f32
    %699 = vector.broadcast %cst_202 : f32 to vector<64x1xf32>
    %700 = arith.addf %696, %699 : vector<64x1xf32>
    %701 = math.rsqrt %700 : vector<64x1xf32>
    %702 = vector.broadcast %701 : vector<64x1xf32> to vector<64x32xf32>
    %703 = arith.mulf %698, %702 : vector<64x32xf32>
    %c120 = arith.constant 120 : index
    %c0_203 = arith.constant 0 : index
    %704 = vector.load %arg9[%c120, %c0_203] : memref<176x128xf32, #tpu.memory_space<vmem>>, vector<1x32xf32>
    %705 = vector.broadcast %704 : vector<1x32xf32> to vector<64x32xf32>
    %706 = arith.mulf %703, %705 : vector<64x32xf32>
    %c128_204 = arith.constant 128 : index
    %c0_205 = arith.constant 0 : index
    %707 = vector.load %arg9[%c128_204, %c0_205] : memref<176x128xf32, #tpu.memory_space<vmem>>, vector<1x32xf32>
    %708 = vector.broadcast %707 : vector<1x32xf32> to vector<64x32xf32>
    %709 = arith.addf %706, %708 : vector<64x32xf32>
    %c336 = arith.constant 336 : index
    %c0_206 = arith.constant 0 : index
    %710 = vector.load %arg8[%c336, %c0_206] : memref<448x128xbf16, #tpu.memory_space<vmem>>, vector<32x32xbf16>
    %711 = arith.truncf %709 : vector<64x32xf32> to vector<64x32xbf16>
    %cst_207 = arith.constant dense<0.000000e+00> : vector<64x32xf32>
    %712 = tpu.matmul %711, %710, %cst_207 {dimension_numbers = #tpu.dot_dimension_numbers<[1], [0], [0], [1], [0, 0, 1, 1], [], []>} : vector<64x32xbf16>, vector<32x32xbf16>, vector<64x32xf32> -> vector<64x32xf32>
    %c136 = arith.constant 136 : index
    %c0_208 = arith.constant 0 : index
    %713 = vector.load %arg9[%c136, %c0_208] : memref<176x128xf32, #tpu.memory_space<vmem>>, vector<1x32xf32>
    %714 = vector.broadcast %713 : vector<1x32xf32> to vector<64x32xf32>
    %715 = arith.addf %712, %714 : vector<64x32xf32>
    %cst_209 = arith.constant 0.000000e+00 : f32
    %716 = vector.broadcast %cst_209 : f32 to vector<64x32xf32>
    %717 = arith.maximumf %715, %716 : vector<64x32xf32>
    %c368 = arith.constant 368 : index
    %c0_210 = arith.constant 0 : index
    %718 = vector.load %arg8[%c368, %c0_210] : memref<448x128xbf16, #tpu.memory_space<vmem>>, vector<32x32xbf16>
    %719 = arith.truncf %717 : vector<64x32xf32> to vector<64x32xbf16>
    %cst_211 = arith.constant dense<0.000000e+00> : vector<64x32xf32>
    %720 = tpu.matmul %719, %718, %cst_211 {dimension_numbers = #tpu.dot_dimension_numbers<[1], [0], [0], [1], [0, 0, 1, 1], [], []>} : vector<64x32xbf16>, vector<32x32xbf16>, vector<64x32xf32> -> vector<64x32xf32>
    %c144_212 = arith.constant 144 : index
    %c0_213 = arith.constant 0 : index
    %721 = vector.load %arg9[%c144_212, %c0_213] : memref<176x128xf32, #tpu.memory_space<vmem>>, vector<1x32xf32>
    %722 = vector.broadcast %721 : vector<1x32xf32> to vector<64x32xf32>
    %723 = arith.addf %720, %722 : vector<64x32xf32>
    %724 = arith.addf %723, %709 : vector<64x32xf32>
    %cst_214 = arith.constant dense<0.000000e+00> : vector<64xf32>
    %725 = vector.multi_reduction <add>, %724, %cst_214 [1] : vector<64x32xf32> to vector<64xf32>
    %726 = vector.shape_cast %725 : vector<64xf32> to vector<64x1xf32>
    %cst_215 = arith.constant 3.200000e+01 : f32
    %727 = vector.broadcast %cst_215 : f32 to vector<64x1xf32>
    %728 = arith.divf %726, %727 : vector<64x1xf32>
    %729 = vector.broadcast %728 : vector<64x1xf32> to vector<64x32xf32>
    %730 = arith.subf %724, %729 : vector<64x32xf32>
    %731 = vector.broadcast %728 : vector<64x1xf32> to vector<64x32xf32>
    %732 = arith.subf %724, %731 : vector<64x32xf32>
    %733 = arith.mulf %730, %732 : vector<64x32xf32>
    %cst_216 = arith.constant dense<0.000000e+00> : vector<64xf32>
    %734 = vector.multi_reduction <add>, %733, %cst_216 [1] : vector<64x32xf32> to vector<64xf32>
    %735 = vector.shape_cast %734 : vector<64xf32> to vector<64x1xf32>
    %cst_217 = arith.constant 3.200000e+01 : f32
    %736 = vector.broadcast %cst_217 : f32 to vector<64x1xf32>
    %737 = arith.divf %735, %736 : vector<64x1xf32>
    %738 = vector.broadcast %728 : vector<64x1xf32> to vector<64x32xf32>
    %739 = arith.subf %724, %738 : vector<64x32xf32>
    %cst_218 = arith.constant 9.99999974E-6 : f32
    %740 = vector.broadcast %cst_218 : f32 to vector<64x1xf32>
    %741 = arith.addf %737, %740 : vector<64x1xf32>
    %742 = math.rsqrt %741 : vector<64x1xf32>
    %743 = vector.broadcast %742 : vector<64x1xf32> to vector<64x32xf32>
    %744 = arith.mulf %739, %743 : vector<64x32xf32>
    %c152 = arith.constant 152 : index
    %c0_219 = arith.constant 0 : index
    %745 = vector.load %arg9[%c152, %c0_219] : memref<176x128xf32, #tpu.memory_space<vmem>>, vector<1x32xf32>
    %746 = vector.broadcast %745 : vector<1x32xf32> to vector<64x32xf32>
    %747 = arith.mulf %744, %746 : vector<64x32xf32>
    %c160 = arith.constant 160 : index
    %c0_220 = arith.constant 0 : index
    %748 = vector.load %arg9[%c160, %c0_220] : memref<176x128xf32, #tpu.memory_space<vmem>>, vector<1x32xf32>
    %749 = vector.broadcast %748 : vector<1x32xf32> to vector<64x32xf32>
    %750 = arith.addf %747, %749 : vector<64x32xf32>
    %c240_221 = arith.constant 240 : index
    %c0_222 = arith.constant 0 : index
    %751 = vector.load %arg8[%c240_221, %c0_222] : memref<448x128xbf16, #tpu.memory_space<vmem>>, vector<32x9xbf16>
    %752 = arith.truncf %750 : vector<64x32xf32> to vector<64x32xbf16>
    %cst_223 = arith.constant dense<0.000000e+00> : vector<64x9xf32>
    %753 = tpu.matmul %752, %751, %cst_223 {dimension_numbers = #tpu.dot_dimension_numbers<[1], [0], [0], [1], [0, 0, 1, 1], [], []>} : vector<64x32xbf16>, vector<32x9xbf16>, vector<64x9xf32> -> vector<64x9xf32>
    %c96_224 = arith.constant 96 : index
    %c0_225 = arith.constant 0 : index
    %754 = vector.load %arg9[%c96_224, %c0_225] : memref<176x128xf32, #tpu.memory_space<vmem>>, vector<1x9xf32>
    %755 = vector.broadcast %754 : vector<1x9xf32> to vector<64x9xf32>
    %756 = arith.addf %753, %755 : vector<64x9xf32>
    %cst_226 = arith.constant 0.000000e+00 : f32
    %757 = vector.broadcast %cst_226 : f32 to vector<64x9xf32>
    %758 = arith.maximumf %756, %757 : vector<64x9xf32>
    %c0_227 = arith.constant 0 : index
    %c0_228 = arith.constant 0 : index
    %759 = vector.load %arg4[%c0_227, %c0_228] : memref<64x9xf32, #tpu.memory_space<vmem>>, vector<64x9xf32>
    %c400 = arith.constant 400 : index
    %c0_229 = arith.constant 0 : index
    %760 = vector.load %arg8[%c400, %c0_229] : memref<448x128xbf16, #tpu.memory_space<vmem>>, vector<9x9xbf16>
    %761 = arith.truncf %758 : vector<64x9xf32> to vector<64x9xbf16>
    %cst_230 = arith.constant dense<0.000000e+00> : vector<64x9xf32>
    %762 = tpu.matmul %761, %760, %cst_230 {dimension_numbers = #tpu.dot_dimension_numbers<[1], [0], [0], [1], [0, 0, 1, 1], [], []>} : vector<64x9xbf16>, vector<9x9xbf16>, vector<64x9xf32> -> vector<64x9xf32>
    %c416 = arith.constant 416 : index
    %c0_231 = arith.constant 0 : index
    %763 = vector.load %arg8[%c416, %c0_231] : memref<448x128xbf16, #tpu.memory_space<vmem>>, vector<9x9xbf16>
    %764 = arith.truncf %759 : vector<64x9xf32> to vector<64x9xbf16>
    %cst_232 = arith.constant dense<0.000000e+00> : vector<64x9xf32>
    %765 = tpu.matmul %764, %763, %cst_232 {dimension_numbers = #tpu.dot_dimension_numbers<[1], [0], [0], [1], [0, 0, 1, 1], [], []>} : vector<64x9xbf16>, vector<9x9xbf16>, vector<64x9xf32> -> vector<64x9xf32>
    %766 = arith.addf %762, %765 : vector<64x9xf32>
    %767 = arith.negf %766 : vector<64x9xf32>
    %768 = math.exp %767 : vector<64x9xf32>
    %cst_233 = arith.constant 1.000000e+00 : f32
    %769 = vector.broadcast %cst_233 : f32 to vector<64x9xf32>
    %770 = arith.addf %769, %768 : vector<64x9xf32>
    %771 = arith.divf %769, %770 : vector<64x9xf32>
    %772 = arith.mulf %771, %758 : vector<64x9xf32>
    %cst_234 = arith.constant 1.000000e+00 : f32
    %773 = vector.broadcast %cst_234 : f32 to vector<64x9xf32>
    %774 = arith.subf %773, %771 : vector<64x9xf32>
    %775 = arith.mulf %774, %759 : vector<64x9xf32>
    %776 = arith.addf %772, %775 : vector<64x9xf32>
    %c432 = arith.constant 432 : index
    %c0_235 = arith.constant 0 : index
    %777 = vector.load %arg8[%c432, %c0_235] : memref<448x128xbf16, #tpu.memory_space<vmem>>, vector<9x9xbf16>
    %778 = arith.truncf %776 : vector<64x9xf32> to vector<64x9xbf16>
    %cst_236 = arith.constant dense<0.000000e+00> : vector<64x9xf32>
    %779 = tpu.matmul %778, %777, %cst_236 {dimension_numbers = #tpu.dot_dimension_numbers<[1], [0], [0], [1], [0, 0, 1, 1], [], []>} : vector<64x9xbf16>, vector<9x9xbf16>, vector<64x9xf32> -> vector<64x9xf32>
    %c168 = arith.constant 168 : index
    %c0_237 = arith.constant 0 : index
    %780 = vector.load %arg9[%c168, %c0_237] : memref<176x128xf32, #tpu.memory_space<vmem>>, vector<1x9xf32>
    %781 = vector.broadcast %780 : vector<1x9xf32> to vector<64x9xf32>
    %782 = arith.addf %779, %781 : vector<64x9xf32>
    %783 = arith.addf %782, %580 : vector<64x9xf32>
    %c0_238 = arith.constant 0 : index
    %c0_239 = arith.constant 0 : index
    %784 = vector.load %arg6[%c0_238, %c0_239] : memref<64x1xi32, #tpu.memory_space<vmem>>, vector<64x1xi32>
    %cst_240 = arith.constant dense<0xFF800000> : vector<64xf32>
    %785 = vector.multi_reduction <maximumf>, %783, %cst_240 [1] : vector<64x9xf32> to vector<64xf32>
    %786 = vector.shape_cast %785 : vector<64xf32> to vector<64x1xf32>
    %787 = vector.broadcast %786 : vector<64x1xf32> to vector<64x9xf32>
    %788 = arith.subf %783, %787 : vector<64x9xf32>
    %789 = math.exp %788 : vector<64x9xf32>
    %cst_241 = arith.constant dense<0.000000e+00> : vector<64xf32>
    %790 = vector.multi_reduction <add>, %789, %cst_241 [1] : vector<64x9xf32> to vector<64xf32>
    %791 = vector.shape_cast %790 : vector<64xf32> to vector<64x1xf32>
    %792 = math.log %791 : vector<64x1xf32>
    %793 = arith.addf %792, %786 : vector<64x1xf32>
    %794 = tpu.iota {dimensions = array<i32: 1>} : vector<64x9xi32>
    %795 = vector.broadcast %784 : vector<64x1xi32> to vector<64x9xi32>
    %796 = arith.cmpi eq, %794, %795 : vector<64x9xi32>
    %797 = arith.extui %796 : vector<64x9xi1> to vector<64x9xi32>
    %798 = arith.sitofp %797 : vector<64x9xi32> to vector<64x9xf32>
    %799 = arith.mulf %783, %798 : vector<64x9xf32>
    %cst_242 = arith.constant dense<0.000000e+00> : vector<64xf32>
    %800 = vector.multi_reduction <add>, %799, %cst_242 [1] : vector<64x9xf32> to vector<64xf32>
    %801 = vector.shape_cast %800 : vector<64xf32> to vector<64x1xf32>
    %802 = arith.subf %801, %793 : vector<64x1xf32>
    %c0_i32 = arith.constant 0 : i32
    %803 = vector.broadcast %c0_i32 : i32 to vector<64x1xi32>
    %804 = arith.cmpi ne, %784, %803 : vector<64x1xi32>
    %805 = arith.extui %804 : vector<64x1xi1> to vector<64x1xi32>
    %806 = arith.sitofp %805 : vector<64x1xi32> to vector<64x1xf32>
    %807 = arith.mulf %802, %806 : vector<64x1xf32>
    %808 = vector.shape_cast %807 : vector<64x1xf32> to vector<1x64x1xf32>
    %cst_243 = arith.constant dense<0.000000e+00> : vector<1xf32>
    %809 = vector.multi_reduction <add>, %808, %cst_243 [1, 2] : vector<1x64x1xf32> to vector<1xf32>
    %810 = vector.shape_cast %809 : vector<1xf32> to vector<1x1x1xf32>
    %811 = vector.extract %810[0, 0, 0] : f32 from vector<1x1x1xf32>
    %cst_244 = arith.constant 0.000000e+00 : f32
    %812 = arith.subf %cst_244, %811 : f32
    %813 = vector.shape_cast %806 : vector<64x1xf32> to vector<1x64x1xf32>
    %cst_245 = arith.constant dense<0.000000e+00> : vector<1xf32>
    %814 = vector.multi_reduction <add>, %813, %cst_245 [1, 2] : vector<1x64x1xf32> to vector<1xf32>
    %815 = vector.shape_cast %814 : vector<1xf32> to vector<1x1x1xf32>
    %816 = vector.extract %815[0, 0, 0] : f32 from vector<1x1x1xf32>
    %cst_246 = arith.constant 1.000000e+00 : f32
    %817 = arith.maximumf %816, %cst_246 : f32
    %818 = arith.divf %812, %817 : f32
    %c0_247 = arith.constant 0 : index
    %c0_248 = arith.constant 0 : index
    %819 = memref.load %arg10[%c0_247, %c0_248] : memref<1x1xf32, #tpu.memory_space<smem>>
    memref.store %818, %arg10[%c0_247, %c0_248] : memref<1x1xf32, #tpu.memory_space<smem>>
    return
  }
  func.func @transform_0(%arg0: i32) -> (i32, i32) {
    %c0_i32 = arith.constant 0 : i32
    %c0_i32_0 = arith.constant 0 : i32
    %c0_i32_1 = arith.constant 0 : i32
    return %c0_i32, %c0_i32_0 : i32, i32
  }
  func.func @transform_1(%arg0: i32) -> (i32, i32) {
    %c0_i32 = arith.constant 0 : i32
    %c0_i32_0 = arith.constant 0 : i32
    %c0_i32_1 = arith.constant 0 : i32
    return %c0_i32, %c0_i32_0 : i32, i32
  }
  func.func @transform_2(%arg0: i32) -> (i32, i32) {
    %c0_i32 = arith.constant 0 : i32
    %c0_i32_0 = arith.constant 0 : i32
    %c0_i32_1 = arith.constant 0 : i32
    return %c0_i32, %c0_i32_0 : i32, i32
  }
  func.func @transform_3(%arg0: i32) -> (i32, i32) {
    %c0_i32 = arith.constant 0 : i32
    %c0_i32_0 = arith.constant 0 : i32
    %c0_i32_1 = arith.constant 0 : i32
    return %c0_i32, %c0_i32_0 : i32, i32
  }
  func.func @transform_4(%arg0: i32) -> (i32, i32) {
    %c0_i32 = arith.constant 0 : i32
    %c0_i32_0 = arith.constant 0 : i32
    %c0_i32_1 = arith.constant 0 : i32
    return %c0_i32, %c0_i32_0 : i32, i32
  }
  func.func @transform_5(%arg0: i32) -> (i32, i32) {
    %c0_i32 = arith.constant 0 : i32
    %c0_i32_0 = arith.constant 0 : i32
    %c0_i32_1 = arith.constant 0 : i32
    return %c0_i32, %c0_i32_0 : i32, i32
  }
  func.func @transform_6(%arg0: i32) -> (i32, i32) {
    %c0_i32 = arith.constant 0 : i32
    %c0_i32_0 = arith.constant 0 : i32
    %c0_i32_1 = arith.constant 0 : i32
    return %c0_i32, %c0_i32_0 : i32, i32
  }
  func.func @transform_7(%arg0: i32) -> (i32, i32) {
    %c0_i32 = arith.constant 0 : i32
    %c0_i32_0 = arith.constant 0 : i32
    %c0_i32_1 = arith.constant 0 : i32
    return %c0_i32, %c0_i32_0 : i32, i32
  }
  func.func @transform_8(%arg0: i32) -> (i32, i32) {
    %c0_i32 = arith.constant 0 : i32
    %c0_i32_0 = arith.constant 0 : i32
    %c0_i32_1 = arith.constant 0 : i32
    return %c0_i32, %c0_i32_0 : i32, i32
  }
  func.func @transform_9(%arg0: i32) -> (i32, i32) {
    %c0_i32 = arith.constant 0 : i32
    %c0_i32_0 = arith.constant 0 : i32
    %c0_i32_1 = arith.constant 0 : i32
    return %c0_i32, %c0_i32_0 : i32, i32
  }
}

</mosaic_0001>

<llo_original>
// kernel: tile.9
$region0: #{tile.9}
  #allocation0 [shape = 's32[1]{0}', space=sflag, size = 0x4, scoped, tag = 'scoped memory for tile.9']
  %s0 = inlined_call_operand.vmem [shape: s32[8], index: 0, kind: input, shape index: {}]
  %s1 = inlined_call_operand.vmem [shape: s32[8,8], index: 1, kind: output, shape index: {}]
  // Predicated region
  $region2: #{tile.9} parent=0 // pred_check
    _
  $region3: #{tile.9} parent=0 // pred_check_branch
    %3 = sbr.rel (0) target = $region5
  $region4: #{tile.9} parent=0 // pred_region
    _
  $region5: #{tile.9} parent=0 // pred_fallthru
    _
  %v4 = vld [vmem:[%s0] ss:$0 sm:$0xff]
  %5 = vst [vmem:[%s1] sm:$0xff] %v4

// kernel: eq.8
$region0: #{eq.8}
  %s0 = inlined_call_operand.vmem [shape: s32[8,8], index: 0, kind: input, shape index: {}]
  %s1 = inlined_call_operand.vmem [shape: s32[64], index: 1, kind: output, shape index: {}]
  $region1: #{eq.8} parent=0
    #allocation0 [shape = 'u8[4096]{0}', space=vmem, size = 0x1000, scoped, tag = 'scoped mem for output reshape']
    %v2 = vld [vmem:[%s0] sm:$0x1]
    %vm3 = vcmask 64512
    %4 = vst.msk [vmem:[#allocation0] sm:$0x1] %vm3, %v2
    %s5 = scalar_lea.vmem %s0, 7
    %v6 = vld [vmem:[%s5] sm:$0x1]
    %7 = vrot.lane.b32.xlu0 %v6, 56
    %v8 = vpop.permute.xlu0 %7
    %vm9 = vcmask 523712
    %10 = vst.msk [vmem:[#allocation0] sm:$0x1] %vm9, %v8
    %s11 = scalar_lea.vmem %s0, 6
    %v12 = vld [vmem:[%s11] sm:$0x1]
    %13 = vrot.lane.b32.xlu0 %v12, 48
    %v14 = vpop.permute.xlu0 %13
    %vm15 = vcmask 458112
    %16 = vst.msk [vmem:[#allocation0] sm:$0x1] %vm15, %v14
    %s17 = scalar_lea.vmem %s0, 5
    %v18 = vld [vmem:[%s17] sm:$0x1]
    %19 = vrot.lane.b32.xlu0 %v18, 40
    %v20 = vpop.permute.xlu0 %19
    %vm21 = vcmask 392512
    %22 = vst.msk [vmem:[#allocation0] sm:$0x1] %vm21, %v20
    %s23 = scalar_lea.vmem %s0, 4
    %v24 = vld [vmem:[%s23] sm:$0x1]
    %25 = vrot.lane.b32.xlu0 %v24, 32
    %v26 = vpop.permute.xlu0 %25
    %vm27 = vcmask 326912
    %28 = vst.msk [vmem:[#allocation0] sm:$0x1] %vm27, %v26
    %s29 = scalar_lea.vmem %s0, 3
    %v30 = vld [vmem:[%s29] sm:$0x1]
    %31 = vrot.lane.b32.xlu0 %v30, 24
    %v32 = vpop.permute.xlu0 %31
    %vm33 = vcmask 261312
    %34 = vst.msk [vmem:[#allocation0] sm:$0x1] %vm33, %v32
    %s35 = scalar_lea.vmem %s0, 2
    %v36 = vld [vmem:[%s35] sm:$0x1]
    %37 = vrot.lane.b32.xlu0 %v36, 16
    %v38 = vpop.permute.xlu0 %37
    %vm39 = vcmask 195712
    %40 = vst.msk [vmem:[#allocation0] sm:$0x1] %vm39, %v38
    %s41 = scalar_lea.vmem %s0, 1
    %v42 = vld [vmem:[%s41] sm:$0x1]
    %43 = vrot.lane.b32.xlu0 %v42, 8
    %v44 = vpop.permute.xlu0 %43
    %vm45 = vcmask 130112
    %46 = vst.msk [vmem:[#allocation0] sm:$0x1] %vm45, %v44
    %s48 = sshll.u32 1, 1
    %s49 = ssub.s32 %s48, 1
    %v51 = vld [vmem:[#allocation0] sm:%s49]
    %s52 = sshll.u32 1, 1
    %s53 = ssub.s32 %s52, 1
    %54 = vst [vmem:[%s1] sm:%s53] %v51

// kernel: forward_train.1
$region0: #{forward_train.1}
  #allocation0 [shape = 'u32[]', space=smem, size = 0x4, offset = 0x4, fixed_abs, tag = 'smem constant byte address 0x4 - core index']
  #allocation1 [shape = 'u32[144,128]{1,0:T(1,128)}', space=vmem, size = 0x12000, scoped, tag = 'internal scratch']
  #allocation2 [shape = 'f32[64,128]{1,0:T(8,128)}', space=vmem, size = 0x8000, scoped, tag = 'scratch operand']
  #allocation3 [shape = 'f32[64,16]{1,0:T(8,128)}', space=vmem, size = 0x8000, scoped, tag = 'scratch operand']
  #allocation4 [shape = 'f32[64,16]{1,0:T(8,128)}', space=vmem, size = 0x8000, scoped, tag = 'scratch operand']
  %s0 = inlined_call_operand.vmem [shape: f32[64,96], index: 0, kind: input, shape index: {}]
  %s1 = inlined_call_operand.vmem [shape: f32[64,28], index: 1, kind: input, shape index: {}]
  %s2 = inlined_call_operand.vmem [shape: f32[64,32], index: 2, kind: input, shape index: {}]
  %s3 = inlined_call_operand.vmem [shape: f32[64,9], index: 3, kind: input, shape index: {}]
  %s4 = inlined_call_operand.vmem [shape: f32[64,64], index: 4, kind: input, shape index: {}]
  %s5 = inlined_call_operand.vmem [shape: s32[64,1], index: 5, kind: input, shape index: {}]
  %s6 = inlined_call_operand.vmem [shape: f32[16,32], index: 6, kind: input, shape index: {}]
  %s7 = inlined_call_operand.vmem [shape: bf16[448,128], index: 7, kind: input, shape index: {}]
  %s8 = inlined_call_operand.vmem [shape: f32[176,128], index: 8, kind: input, shape index: {}]
  %s9 = inlined_call_operand.hbm [shape: f32[1,1], index: 9, kind: output, shape index: {}]
  %s10 = sld [smem:[#allocation0]]
  $region46: #{forward_train.1} parent=0
    _
  %s12 = ssub.s32 1, %s10
  %s13 = scalar_select 0, %s12, %s10
  $region1: #{forward_train.1} parent=0
    #allocation5 [shape = 'u8[512]{0}', space=smem, size = 0x200, scoped, tag = 'output window, operand 0, single buffered']
    #allocation6 [shape = 's32[1]{0}', space=sflag, size = 0x4, scoped, tag = 'scoped memory for forward_train.1']
    %14 = vsyncpa [#allocation6], 0
    // Predicated region
    $region2: #{forward_train.1} parent=1 // pred_check
      _
    $region3: #{forward_train.1} parent=1 // pred_check_branch
      %16 = sbr.rel (0) target = $region5
    $region4: #{forward_train.1} parent=1 // pred_region
      _
    $region5: #{forward_train.1} parent=1 // pred_fallthru
      _
    // Predicated region
    $region6: #{forward_train.1} parent=1 // pred_check
      _
    $region7: #{forward_train.1} parent=1 // pred_check_branch
      %18 = sbr.rel (0) target = $region9
    $region8: #{forward_train.1} parent=1 // pred_region
      _
    $region9: #{forward_train.1} parent=1 // pred_fallthru
      _
    // Predicated region
    $region10: #{forward_train.1} parent=1 // pred_check
      _
    $region11: #{forward_train.1} parent=1 // pred_check_branch
      %20 = sbr.rel (0) target = $region13
    $region12: #{forward_train.1} parent=1 // pred_region
      _
    $region13: #{forward_train.1} parent=1 // pred_fallthru
      _
    // Predicated region
    $region14: #{forward_train.1} parent=1 // pred_check
      _
    $region15: #{forward_train.1} parent=1 // pred_check_branch
      %22 = sbr.rel (0) target = $region17
    $region16: #{forward_train.1} parent=1 // pred_region
      _
    $region17: #{forward_train.1} parent=1 // pred_fallthru
      _
    // Predicated region
    $region18: #{forward_train.1} parent=1 // pred_check
      _
    $region19: #{forward_train.1} parent=1 // pred_check_branch
      %24 = sbr.rel (0) target = $region21
    $region20: #{forward_train.1} parent=1 // pred_region
      _
    $region21: #{forward_train.1} parent=1 // pred_fallthru
      _
    // Predicated region
    $region22: #{forward_train.1} parent=1 // pred_check
      _
    $region23: #{forward_train.1} parent=1 // pred_check_branch
      %26 = sbr.rel (0) target = $region25
    $region24: #{forward_train.1} parent=1 // pred_region
      _
    $region25: #{forward_train.1} parent=1 // pred_fallthru
      _
    // Predicated region
    $region26: #{forward_train.1} parent=1 // pred_check
      _
    $region27: #{forward_train.1} parent=1 // pred_check_branch
      %28 = sbr.rel (0) target = $region29
    $region28: #{forward_train.1} parent=1 // pred_region
      _
    $region29: #{forward_train.1} parent=1 // pred_fallthru
      _
    // Predicated region
    $region30: #{forward_train.1} parent=1 // pred_check
      _
    $region31: #{forward_train.1} parent=1 // pred_check_branch
      %30 = sbr.rel (0) target = $region33
    $region32: #{forward_train.1} parent=1 // pred_region
      _
    $region33: #{forward_train.1} parent=1 // pred_fallthru
      _
    // Predicated region
    $region34: #{forward_train.1} parent=1 // pred_check
      _
    $region35: #{forward_train.1} parent=1 // pred_check_branch
      %32 = sbr.rel (0) target = $region37
    $region36: #{forward_train.1} parent=1 // pred_region
      _
    $region37: #{forward_train.1} parent=1 // pred_fallthru
      _
    %v34 = vld [vmem:[%s0] sm:$0xff]
    %v35 = vld [vmem:[%s0 + $0x8] sm:$0xff]
    %v36 = vld [vmem:[%s0 + $0x10] sm:$0xff]
    %v37 = vld [vmem:[%s0 + $0x18] sm:$0xff]
    %v38 = vld [vmem:[%s0 + $0x20] sm:$0xff]
    %v39 = vld [vmem:[%s0 + $0x28] sm:$0xff]
    %v40 = vld [vmem:[%s0 + $0x30] sm:$0xff]
    %v41 = vld [vmem:[%s0 + $0x38] sm:$0xff]
    %v42 = vld [vmem:[%s7] sm:$0xf]
    %v43 = vld [vmem:[%s7 + $0x4] sm:$0xf]
    %v44 = vld [vmem:[%s7 + $0x8] sm:$0xf]
    %v45 = vld [vmem:[%s7 + $0xc] sm:$0xf]
    %v46 = vld [vmem:[%s7 + $0x10] sm:$0xf]
    %v47 = vld [vmem:[%s7 + $0x14] sm:$0xf]
    %v48 = vld [vmem:[%s7 + $0x18] sm:$0xf]
    %v49 = vld [vmem:[%s7 + $0x1c] sm:$0xf]
    %v50 = vld [vmem:[%s7 + $0x20] sm:$0xf]
    %v51 = vld [vmem:[%s7 + $0x24] sm:$0xf]
    %v52 = vld [vmem:[%s7 + $0x28] sm:$0xf]
    %v53 = vld [vmem:[%s7 + $0x2c] sm:$0xf]
    %v54 = vpack.c.bf16 %v35, %v34
    %v55 = vpack.c.bf16 %v37, %v36
    %v56 = vpack.c.bf16 %v39, %v38
    %v57 = vpack.c.bf16 %v41, %v40
    %v58 = vld [vmem:[%s8] sm:$0x1]
    %v59 = vlaneseq
    %v60 = vshrl.u32 %v59, 7
    %v61 = vsub.s32 0, %v60
    %v62 = vrot.slane %v58, %v61
    %v75 = vunpack.c.l.b16 %v42
    %v76 = vunpack.c.l.b16 %v43
    %v77 = vunpack.c.l.b16 %v44
    %v78 = vunpack.c.l.b16 %v45
    %v79 = vunpack.c.l.b16 %v46
    %v80 = vunpack.c.l.b16 %v47
    %v81 = vunpack.c.l.b16 %v48
    %v82 = vunpack.c.l.b16 %v49
    %v83 = vunpack.c.l.b16 %v50
    %v84 = vunpack.c.l.b16 %v51
    %v85 = vunpack.c.l.b16 %v52
    %v86 = vunpack.c.l.b16 %v53
    %v87 = vpack.c.b16 %v76, %v75
    %v88 = vpack.c.b16 %v78, %v77
    %v89 = vpack.c.b16 %v80, %v79
    %v90 = vpack.c.b16 %v82, %v81
    %v91 = vpack.c.b16 %v84, %v83
    %v92 = vpack.c.b16 %v86, %v85
    %vm99 = vcmask 785408
    %v101 = vsel %vm99, %v54, 0
    %v104 = vsel %vm99, %v55, 0
    %v107 = vsel %vm99, %v56, 0
    %v110 = vsel %vm99, %v57, 0
    %112 = vmatprep.subr.bf16.mxu0 0
    %113 = vmatpush1.bf16.msra.mxu0 0
    %114 = vmatprep.subr.bf16.mxu0 0
    %115 = vmatpush1.bf16.msra.mxu0 0
    %116 = vmatprep.subr.bf16.mxu0 0
    %117 = vmatpush1.bf16.msra.mxu0 %v92
    %118 = vmatprep.subr.bf16.mxu0 0
    %119 = vmatpush1.bf16.msra.mxu0 %v91
    %120 = vmatprep.subr.bf16.mxu0 0
    %121 = vmatpush1.bf16.msra.mxu0 %v90
    %122 = vmatprep.subr.bf16.mxu0 0
    %123 = vmatpush1.bf16.msra.mxu0 %v89
    %124 = vmatprep.subr.bf16.mxu0 0
    %125 = vmatpush1.bf16.msra.mxu0 %v88
    %126 = vmatprep.subr.bf16.mxu0 0
    %127 = vmatpush1.bf16.msra.mxu0 %v87
    %128 = vmatprep.subr.bf16.mxu0 0
    %129 = vmatpush2.bf16.msra.mxu0 0
    %130 = vmatprep.subr.bf16.mxu0 0
    %131 = vmatpush2.bf16.msra.mxu0 0
    %132 = vmatprep.subr.bf16.mxu0 0
    %133 = vmatpush2.bf16.msra.mxu0 0
    %134 = vmatprep.subr.bf16.mxu0 0
    %135 = vmatpush2.bf16.msra.mxu0 0
    %136 = vmatprep.subr.bf16.mxu0 0
    %137 = vmatpush2.bf16.msra.mxu0 0
    %138 = vmatprep.subr.bf16.mxu0 0
    %139 = vmatpush2.bf16.msra.mxu0 0
    %140 = vmatprep.subr.bf16.mxu0 0
    %141 = vmatpush2.bf16.msra.mxu0 0
    %142 = vmatprep.subr.bf16.mxu0 0
    %143 = vmatpush2.bf16.msra.mxu0 0
    %144 = vmatprep.mubr.bf16.mxu0 0
    %145 = vmatmul.mubr.bf16.gmra.mxu0 %v101
    %v146 = vpop.f32.mrf.mxu0
    %v147 = vadd.f32 %v62, %v146
    %v148 = vpop.f32.mrf.mxu0
    %v149 = vpop.f32.mrf.mxu0
    %v150 = vadd.f32 %v62, %v149
    %v151 = vpop.f32.mrf.mxu0
    %152 = vmatprep.mubr.bf16.mxu0 0
    %153 = vmatmul.mubr.bf16.gmra.mxu0 %v104
    %v154 = vpop.f32.mrf.mxu0
    %v155 = vadd.f32 %v62, %v154
    %v156 = vpop.f32.mrf.mxu0
    %v157 = vpop.f32.mrf.mxu0
    %v158 = vadd.f32 %v62, %v157
    %v159 = vpop.f32.mrf.mxu0
    %160 = vmatprep.mubr.bf16.mxu0 0
    %161 = vmatmul.mubr.bf16.gmra.mxu0 %v107
    %v162 = vpop.f32.mrf.mxu0
    %v163 = vadd.f32 %v62, %v162
    %v164 = vpop.f32.mrf.mxu0
    %v165 = vpop.f32.mrf.mxu0
    %v166 = vadd.f32 %v62, %v165
    %v167 = vpop.f32.mrf.mxu0
    %168 = vmatprep.mubr.bf16.mxu0 0
    %169 = vmatmul.mubr.bf16.gmra.mxu0 %v110
    %v170 = vpop.f32.mrf.mxu0
    %v171 = vadd.f32 %v62, %v170
    %v172 = vpop.f32.mrf.mxu0
    %v173 = vpop.f32.mrf.mxu0
    %v174 = vadd.f32 %v62, %v173
    %v175 = vpop.f32.mrf.mxu0
    %176 = vdwg.mxu0
    %v177 = vmax.f32 %v147, 0.0
    %v178 = vmax.f32 %v150, 0.0
    %v179 = vmax.f32 %v155, 0.0
    %v180 = vmax.f32 %v158, 0.0
    %v181 = vmax.f32 %v163, 0.0
    %v182 = vmax.f32 %v166, 0.0
    %v183 = vmax.f32 %v171, 0.0
    %v184 = vmax.f32 %v174, 0.0
    %193 = vrot.lane.b32.xlu0 %v177, 120
    %v194 = vpop.permute.xlu0 %193
    %195 = vrot.lane.b32.xlu0 %v178, 120
    %v196 = vpop.permute.xlu0 %195
    %197 = vrot.lane.b32.xlu0 %v179, 120
    %v198 = vpop.permute.xlu0 %197
    %199 = vrot.lane.b32.xlu0 %v180, 120
    %v200 = vpop.permute.xlu0 %199
    %201 = vrot.lane.b32.xlu0 %v181, 120
    %v202 = vpop.permute.xlu0 %201
    %203 = vrot.lane.b32.xlu0 %v182, 120
    %v204 = vpop.permute.xlu0 %203
    %205 = vrot.lane.b32.xlu0 %v183, 120
    %v206 = vpop.permute.xlu0 %205
    %207 = vrot.lane.b32.xlu0 %v184, 120
    %v208 = vpop.permute.xlu0 %207
    %v217 = vmax.f32 %v177, %v194
    %v218 = vmax.f32 %v178, %v196
    %v219 = vmax.f32 %v179, %v198
    %v220 = vmax.f32 %v180, %v200
    %v221 = vmax.f32 %v181, %v202
    %v222 = vmax.f32 %v182, %v204
    %v223 = vmax.f32 %v183, %v206
    %v224 = vmax.f32 %v184, %v208
    %225 = vrot.lane.b32.xlu0 %v177, 112
    %v226 = vpop.permute.xlu0 %225
    %227 = vrot.lane.b32.xlu0 %v178, 112
    %v228 = vpop.permute.xlu0 %227
    %229 = vrot.lane.b32.xlu0 %v179, 112
    %v230 = vpop.permute.xlu0 %229
    %231 = vrot.lane.b32.xlu0 %v180, 112
    %v232 = vpop.permute.xlu0 %231
    %233 = vrot.lane.b32.xlu0 %v181, 112
    %v234 = vpop.permute.xlu0 %233
    %235 = vrot.lane.b32.xlu0 %v182, 112
    %v236 = vpop.permute.xlu0 %235
    %237 = vrot.lane.b32.xlu0 %v183, 112
    %v238 = vpop.permute.xlu0 %237
    %239 = vrot.lane.b32.xlu0 %v184, 112
    %v240 = vpop.permute.xlu0 %239
    %v249 = vmax.f32 %v217, %v226
    %v250 = vmax.f32 %v218, %v228
    %v251 = vmax.f32 %v219, %v230
    %v252 = vmax.f32 %v220, %v232
    %v253 = vmax.f32 %v221, %v234
    %v254 = vmax.f32 %v222, %v236
    %v255 = vmax.f32 %v223, %v238
    %v256 = vmax.f32 %v224, %v240
    %257 = vrot.lane.b32.xlu0 %v177, 104
    %v258 = vpop.permute.xlu0 %257
    %259 = vrot.lane.b32.xlu0 %v178, 104
    %v260 = vpop.permute.xlu0 %259
    %261 = vrot.lane.b32.xlu0 %v179, 104
    %v262 = vpop.permute.xlu0 %261
    %263 = vrot.lane.b32.xlu0 %v180, 104
    %v264 = vpop.permute.xlu0 %263
    %265 = vrot.lane.b32.xlu0 %v181, 104
    %v266 = vpop.permute.xlu0 %265
    %267 = vrot.lane.b32.xlu0 %v182, 104
    %v268 = vpop.permute.xlu0 %267
    %269 = vrot.lane.b32.xlu0 %v183, 104
    %v270 = vpop.permute.xlu0 %269
    %271 = vrot.lane.b32.xlu0 %v184, 104
    %v272 = vpop.permute.xlu0 %271
    %v281 = vmax.f32 %v249, %v258
    %v282 = vmax.f32 %v250, %v260
    %v283 = vmax.f32 %v251, %v262
    %v284 = vmax.f32 %v252, %v264
    %v285 = vmax.f32 %v253, %v266
    %v286 = vmax.f32 %v254, %v268
    %v287 = vmax.f32 %v255, %v270
    %v288 = vmax.f32 %v256, %v272
    %v289 = vld [vmem:[%s1] sm:$0xff]
    %v290 = vld [vmem:[%s1 + $0x8] sm:$0xff]
    %v291 = vld [vmem:[%s1 + $0x10] sm:$0xff]
    %v292 = vld [vmem:[%s1 + $0x18] sm:$0xff]
    %v293 = vld [vmem:[%s1 + $0x20] sm:$0xff]
    %v294 = vld [vmem:[%s1 + $0x28] sm:$0xff]
    %v295 = vld [vmem:[%s1 + $0x30] sm:$0xff]
    %v296 = vld [vmem:[%s1 + $0x38] sm:$0xff]
    %v297 = vld [vmem:[%s8 + $0x8] sm:$0x1]
    %v298 = vlaneseq
    %v299 = vshrl.u32 %v298, 7
    %v300 = vsub.s32 0, %v299
    %v301 = vrot.slane %v297, %v300
    %v302 = vmul.f32 %v289, %v301
    %v303 = vmul.f32 %v290, %v301
    %v304 = vmul.f32 %v291, %v301
    %v305 = vmul.f32 %v292, %v301
    %v306 = vmul.f32 %v293, %v301
    %v307 = vmul.f32 %v294, %v301
    %v308 = vmul.f32 %v295, %v301
    %v309 = vmul.f32 %v296, %v301
    %v310 = vld [vmem:[%s8 + $0x10] sm:$0x1]
    %v311 = vlaneseq
    %v312 = vshrl.u32 %v311, 7
    %v313 = vsub.s32 0, %v312
    %v314 = vrot.slane %v310, %v313
    %v315 = vadd.f32 %v302, %v314
    %v316 = vadd.f32 %v303, %v314
    %v317 = vadd.f32 %v304, %v314
    %v318 = vadd.f32 %v305, %v314
    %v319 = vadd.f32 %v306, %v314
    %v320 = vadd.f32 %v307, %v314
    %v321 = vadd.f32 %v308, %v314
    %v322 = vadd.f32 %v309, %v314
    %v323 = vld [vmem:[%s8 + $0x18] sm:$0x1]
    %v324 = vlaneseq
    %v325 = vshrl.u32 %v324, 7
    %v326 = vsub.s32 0, %v325
    %v327 = vrot.slane %v323, %v326
    %v328 = vmul.f32 %v281, %v327
    %v329 = vmul.f32 %v282, %v327
    %v330 = vmul.f32 %v283, %v327
    %v331 = vmul.f32 %v284, %v327
    %v332 = vmul.f32 %v285, %v327
    %v333 = vmul.f32 %v286, %v327
    %v334 = vmul.f32 %v287, %v327
    %v335 = vmul.f32 %v288, %v327
    %v336 = vld [vmem:[%s8 + $0x20] sm:$0x1]
    %v337 = vlaneseq
    %v338 = vshrl.u32 %v337, 7
    %v339 = vsub.s32 0, %v338
    %v340 = vrot.slane %v336, %v339
    %v341 = vadd.f32 %v328, %v340
    %v342 = vadd.f32 %v329, %v340
    %v343 = vadd.f32 %v330, %v340
    %v344 = vadd.f32 %v331, %v340
    %v345 = vadd.f32 %v332, %v340
    %v346 = vadd.f32 %v333, %v340
    %v347 = vadd.f32 %v334, %v340
    %v348 = vadd.f32 %v335, %v340
    %v349 = vld [vmem:[%s7 + $0x30] sm:$0xf]
    %v350 = vld [vmem:[%s7 + $0x34] sm:$0xf]
    %v351 = vld [vmem:[%s7 + $0x38] sm:$0xf]
    %v352 = vld [vmem:[%s7 + $0x3c] sm:$0x3]
    %v353 = vpack.c.bf16 %v316, %v315
    %v354 = vpack.c.bf16 %v318, %v317
    %v355 = vpack.c.bf16 %v320, %v319
    %v356 = vpack.c.bf16 %v322, %v321
    %v357 = vld [vmem:[%s7 + $0x40] sm:$0xf]
    %v358 = vpack.c.bf16 %v342, %v341
    %v359 = vpack.c.bf16 %v344, %v343
    %v360 = vpack.c.bf16 %v346, %v345
    %v361 = vpack.c.bf16 %v348, %v347
    %vm362 = vcmask 64512
    %v364 = vsel %vm362, %v358, 0
    %v367 = vsel %vm362, %v359, 0
    %v370 = vsel %vm362, %v360, 0
    %v373 = vsel %vm362, %v361, 0
    %vm375 = vcmask 1043456
    %v377 = vsel %vm375, %v357, 0
    %379 = vmatprep.subr.bf16.mxu0 0
    %380 = vmatpush1.bf16.msra.mxu0 0
    %381 = vmatprep.subr.bf16.mxu0 0
    %382 = vmatpush1.bf16.msra.mxu0 0
    %383 = vmatprep.subr.bf16.mxu0 0
    %384 = vmatpush1.bf16.msra.mxu0 0
    %385 = vmatprep.subr.bf16.mxu0 0
    %386 = vmatpush1.bf16.msra.mxu0 0
    %387 = vmatprep.subr.bf16.mxu0 0
    %388 = vmatpush1.bf16.msra.mxu0 0
    %389 = vmatprep.subr.bf16.mxu0 0
    %390 = vmatpush1.bf16.msra.mxu0 0
    %391 = vmatprep.subr.bf16.mxu0 0
    %392 = vmatpush1.bf16.msra.mxu0 0
    %393 = vmatprep.subr.bf16.mxu0 0
    %394 = vmatpush1.bf16.msra.mxu0 %v377
    %395 = vmatprep.subr.bf16.mxu0 0
    %396 = vmatpush2.bf16.msra.mxu0 0
    %397 = vmatprep.subr.bf16.mxu0 0
    %398 = vmatpush2.bf16.msra.mxu0 0
    %399 = vmatprep.subr.bf16.mxu0 0
    %400 = vmatpush2.bf16.msra.mxu0 0
    %401 = vmatprep.subr.bf16.mxu0 0
    %402 = vmatpush2.bf16.msra.mxu0 0
    %403 = vmatprep.subr.bf16.mxu0 0
    %404 = vmatpush2.bf16.msra.mxu0 0
    %405 = vmatprep.subr.bf16.mxu0 0
    %406 = vmatpush2.bf16.msra.mxu0 0
    %407 = vmatprep.subr.bf16.mxu0 0
    %408 = vmatpush2.bf16.msra.mxu0 0
    %409 = vmatprep.subr.bf16.mxu0 0
    %410 = vmatpush2.bf16.msra.mxu0 0
    %411 = vmatprep.mubr.bf16.mxu0 0
    %412 = vmatmul.mubr.bf16.gmra.mxu0 %v364
    %v413 = vpop.f32.mrf.mxu0
    %v414 = vadd.f32 0.0, %v413
    %v415 = vpop.f32.mrf.mxu0
    %v416 = vpop.f32.mrf.mxu0
    %v417 = vadd.f32 0.0, %v416
    %v418 = vpop.f32.mrf.mxu0
    %419 = vmatprep.mubr.bf16.mxu0 0
    %420 = vmatmul.mubr.bf16.gmra.mxu0 %v367
    %v421 = vpop.f32.mrf.mxu0
    %v422 = vadd.f32 0.0, %v421
    %v423 = vpop.f32.mrf.mxu0
    %v424 = vpop.f32.mrf.mxu0
    %v425 = vadd.f32 0.0, %v424
    %v426 = vpop.f32.mrf.mxu0
    %427 = vmatprep.mubr.bf16.mxu0 0
    %428 = vmatmul.mubr.bf16.gmra.mxu0 %v370
    %v429 = vpop.f32.mrf.mxu0
    %v430 = vadd.f32 0.0, %v429
    %v431 = vpop.f32.mrf.mxu0
    %v432 = vpop.f32.mrf.mxu0
    %v433 = vadd.f32 0.0, %v432
    %v434 = vpop.f32.mrf.mxu0
    %435 = vmatprep.mubr.bf16.mxu0 0
    %436 = vmatmul.mubr.bf16.gmra.mxu0 %v373
    %v437 = vpop.f32.mrf.mxu0
    %v438 = vadd.f32 0.0, %v437
    %v439 = vpop.f32.mrf.mxu0
    %v440 = vpop.f32.mrf.mxu0
    %v441 = vadd.f32 0.0, %v440
    %v442 = vpop.f32.mrf.mxu0
    %443 = vdwg.mxu0
    %v448 = vunpack.c.l.b16 %v349
    %v449 = vunpack.c.l.b16 %v350
    %v450 = vunpack.c.l.b16 %v351
    %v451 = vunpack.c.l.b16 %v352
    %v452 = vpack.c.b16 %v449, %v448
    %v453 = vpack.c.b16 %v451, %v450
    %vm455 = vcmask 228352
    %v457 = vsel %vm455, %v353, 0
    %v460 = vsel %vm455, %v354, 0
    %v463 = vsel %vm455, %v355, 0
    %v466 = vsel %vm455, %v356, 0
    %vm468 = vcmask 1045504
    %v470 = vsel %vm468, %v453, 0
    %472 = vmatprep.subr.bf16.mxu0 0
    %473 = vmatpush1.bf16.msra.mxu0 0
    %474 = vmatprep.subr.bf16.mxu0 0
    %475 = vmatpush1.bf16.msra.mxu0 0
    %476 = vmatprep.subr.bf16.mxu0 0
    %477 = vmatpush1.bf16.msra.mxu0 0
    %478 = vmatprep.subr.bf16.mxu0 0
    %479 = vmatpush1.bf16.msra.mxu0 0
    %480 = vmatprep.subr.bf16.mxu0 0
    %481 = vmatpush1.bf16.msra.mxu0 0
    %482 = vmatprep.subr.bf16.mxu0 0
    %483 = vmatpush1.bf16.msra.mxu0 0
    %484 = vmatprep.subr.bf16.mxu0 0
    %485 = vmatpush1.bf16.msra.mxu0 %v470
    %486 = vmatprep.subr.bf16.mxu0 0
    %487 = vmatpush1.bf16.msra.mxu0 %v452
    %488 = vmatprep.subr.bf16.mxu0 0
    %489 = vmatpush2.bf16.msra.mxu0 0
    %490 = vmatprep.subr.bf16.mxu0 0
    %491 = vmatpush2.bf16.msra.mxu0 0
    %492 = vmatprep.subr.bf16.mxu0 0
    %493 = vmatpush2.bf16.msra.mxu0 0
    %494 = vmatprep.subr.bf16.mxu0 0
    %495 = vmatpush2.bf16.msra.mxu0 0
    %496 = vmatprep.subr.bf16.mxu0 0
    %497 = vmatpush2.bf16.msra.mxu0 0
    %498 = vmatprep.subr.bf16.mxu0 0
    %499 = vmatpush2.bf16.msra.mxu0 0
    %500 = vmatprep.subr.bf16.mxu0 0
    %501 = vmatpush2.bf16.msra.mxu0 0
    %502 = vmatprep.subr.bf16.mxu0 0
    %503 = vmatpush2.bf16.msra.mxu0 0
    %504 = vmatprep.mubr.bf16.mxu0 0
    %505 = vmatmul.mubr.bf16.gmra.mxu0 %v457
    %v506 = vpop.f32.mrf.mxu0
    %v507 = vadd.f32 %v414, %v506
    %v508 = vpop.f32.mrf.mxu0
    %v509 = vpop.f32.mrf.mxu0
    %v510 = vadd.f32 %v417, %v509
    %v511 = vpop.f32.mrf.mxu0
    %512 = vmatprep.mubr.bf16.mxu0 0
    %513 = vmatmul.mubr.bf16.gmra.mxu0 %v460
    %v514 = vpop.f32.mrf.mxu0
    %v515 = vadd.f32 %v422, %v514
    %v516 = vpop.f32.mrf.mxu0
    %v517 = vpop.f32.mrf.mxu0
    %v518 = vadd.f32 %v425, %v517
    %v519 = vpop.f32.mrf.mxu0
    %520 = vmatprep.mubr.bf16.mxu0 0
    %521 = vmatmul.mubr.bf16.gmra.mxu0 %v463
    %v522 = vpop.f32.mrf.mxu0
    %v523 = vadd.f32 %v430, %v522
    %v524 = vpop.f32.mrf.mxu0
    %v525 = vpop.f32.mrf.mxu0
    %v526 = vadd.f32 %v433, %v525
    %v527 = vpop.f32.mrf.mxu0
    %528 = vmatprep.mubr.bf16.mxu0 0
    %529 = vmatmul.mubr.bf16.gmra.mxu0 %v466
    %v530 = vpop.f32.mrf.mxu0
    %v531 = vadd.f32 %v438, %v530
    %v532 = vpop.f32.mrf.mxu0
    %v533 = vpop.f32.mrf.mxu0
    %v534 = vadd.f32 %v441, %v533
    %v535 = vpop.f32.mrf.mxu0
    %536 = vdwg.mxu0
    %v537 = vld [vmem:[%s8 + $0x28] sm:$0x1]
    %v538 = vlaneseq
    %v539 = vshrl.u32 %v538, 7
    %v540 = vsub.s32 0, %v539
    %v541 = vrot.slane %v537, %v540
    %v542 = vadd.f32 %v507, %v541
    %v543 = vadd.f32 %v510, %v541
    %v544 = vadd.f32 %v515, %v541
    %v545 = vadd.f32 %v518, %v541
    %v546 = vadd.f32 %v523, %v541
    %v547 = vadd.f32 %v526, %v541
    %v548 = vadd.f32 %v531, %v541
    %v549 = vadd.f32 %v534, %v541
    %v550 = vld [vmem:[%s7 + $0x48] sm:$0xf]
    %v551 = vld [vmem:[%s7 + $0x4c] sm:$0xf]
    %v552 = vld [vmem:[%s7 + $0x50] sm:$0xf]
    %v553 = vld [vmem:[%s7 + $0x54] sm:$0xf]
    %v554 = vpack.c.bf16 %v543, %v542
    %v555 = vpack.c.bf16 %v545, %v544
    %v556 = vpack.c.bf16 %v547, %v546
    %v557 = vpack.c.bf16 %v549, %v548
    %v558 = vld [vmem:[%s8 + $0x30] sm:$0x1]
    %v559 = vlaneseq
    %v560 = vshrl.u32 %v559, 7
    %v561 = vsub.s32 0, %v560
    %v562 = vrot.slane %v558, %v561
    %v567 = vunpack.c.l.b16 %v550
    %v568 = vunpack.c.l.b16 %v551
    %v569 = vunpack.c.l.b16 %v552
    %v570 = vunpack.c.l.b16 %v553
    %v571 = vpack.c.b16 %v568, %v567
    %v572 = vpack.c.b16 %v570, %v569
    %vm575 = vcmask 261120
    %v577 = vsel %vm575, %v554, 0
    %v580 = vsel %vm575, %v555, 0
    %v583 = vsel %vm575, %v556, 0
    %v586 = vsel %vm575, %v557, 0
    %588 = vmatprep.subr.bf16.mxu0 0
    %589 = vmatpush1.bf16.msra.mxu0 0
    %590 = vmatprep.subr.bf16.mxu0 0
    %591 = vmatpush1.bf16.msra.mxu0 0
    %592 = vmatprep.subr.bf16.mxu0 0
    %593 = vmatpush1.bf16.msra.mxu0 0
    %594 = vmatprep.subr.bf16.mxu0 0
    %595 = vmatpush1.bf16.msra.mxu0 0
    %596 = vmatprep.subr.bf16.mxu0 0
    %597 = vmatpush1.bf16.msra.mxu0 0
    %598 = vmatprep.subr.bf16.mxu0 0
    %599 = vmatpush1.bf16.msra.mxu0 0
    %600 = vmatprep.subr.bf16.mxu0 0
    %601 = vmatpush1.bf16.msra.mxu0 %v572
    %602 = vmatprep.subr.bf16.mxu0 0
    %603 = vmatpush1.bf16.msra.mxu0 %v571
    %604 = vmatprep.subr.bf16.mxu0 0
    %605 = vmatpush2.bf16.msra.mxu0 0
    %606 = vmatprep.subr.bf16.mxu0 0
    %607 = vmatpush2.bf16.msra.mxu0 0
    %608 = vmatprep.subr.bf16.mxu0 0
    %609 = vmatpush2.bf16.msra.mxu0 0
    %610 = vmatprep.subr.bf16.mxu0 0
    %611 = vmatpush2.bf16.msra.mxu0 0
    %612 = vmatprep.subr.bf16.mxu0 0
    %613 = vmatpush2.bf16.msra.mxu0 0
    %614 = vmatprep.subr.bf16.mxu0 0
    %615 = vmatpush2.bf16.msra.mxu0 0
    %616 = vmatprep.subr.bf16.mxu0 0
    %617 = vmatpush2.bf16.msra.mxu0 0
    %618 = vmatprep.subr.bf16.mxu0 0
    %619 = vmatpush2.bf16.msra.mxu0 0
    %620 = vmatprep.mubr.bf16.mxu0 0
    %621 = vmatmul.mubr.bf16.gmra.mxu0 %v577
    %v622 = vpop.f32.mrf.mxu0
    %v623 = vadd.f32 %v562, %v622
    %v624 = vpop.f32.mrf.mxu0
    %v625 = vpop.f32.mrf.mxu0
    %v626 = vadd.f32 %v562, %v625
    %v627 = vpop.f32.mrf.mxu0
    %628 = vmatprep.mubr.bf16.mxu0 0
    %629 = vmatmul.mubr.bf16.gmra.mxu0 %v580
    %v630 = vpop.f32.mrf.mxu0
    %v631 = vadd.f32 %v562, %v630
    %v632 = vpop.f32.mrf.mxu0
    %v633 = vpop.f32.mrf.mxu0
    %v634 = vadd.f32 %v562, %v633
    %v635 = vpop.f32.mrf.mxu0
    %636 = vmatprep.mubr.bf16.mxu0 0
    %637 = vmatmul.mubr.bf16.gmra.mxu0 %v583
    %v638 = vpop.f32.mrf.mxu0
    %v639 = vadd.f32 %v562, %v638
    %v640 = vpop.f32.mrf.mxu0
    %v641 = vpop.f32.mrf.mxu0
    %v642 = vadd.f32 %v562, %v641
    %v643 = vpop.f32.mrf.mxu0
    %644 = vmatprep.mubr.bf16.mxu0 0
    %645 = vmatmul.mubr.bf16.gmra.mxu0 %v586
    %v646 = vpop.f32.mrf.mxu0
    %v647 = vadd.f32 %v562, %v646
    %v648 = vpop.f32.mrf.mxu0
    %v649 = vpop.f32.mrf.mxu0
    %v650 = vadd.f32 %v562, %v649
    %v651 = vpop.f32.mrf.mxu0
    %652 = vdwg.mxu0
    %653 = vst [vmem:[#allocation2] sm:$0xff] %v623
    %654 = vst [vmem:[#allocation2 + $0x8] sm:$0xff] %v626
    %655 = vst [vmem:[#allocation2 + $0x10] sm:$0xff] %v631
    %656 = vst [vmem:[#allocation2 + $0x18] sm:$0xff] %v634
    %657 = vst [vmem:[#allocation2 + $0x20] sm:$0xff] %v639
    %658 = vst [vmem:[#allocation2 + $0x28] sm:$0xff] %v642
    %659 = vst [vmem:[#allocation2 + $0x30] sm:$0xff] %v647
    %660 = vst [vmem:[#allocation2 + $0x38] sm:$0xff] %v650
    %vm661 = vcmask 130048
    %662 = vst.msk [vmem:[#allocation3] sm:$0xff] %vm661, 0.0
    %663 = vst.msk [vmem:[#allocation3 + $0x8] sm:$0xff] %vm661, 0.0
    %664 = vst.msk [vmem:[#allocation3 + $0x10] sm:$0xff] %vm661, 0.0
    %665 = vst.msk [vmem:[#allocation3 + $0x18] sm:$0xff] %vm661, 0.0
    %666 = vst.msk [vmem:[#allocation3 + $0x20] sm:$0xff] %vm661, 0.0
    %667 = vst.msk [vmem:[#allocation3 + $0x28] sm:$0xff] %vm661, 0.0
    %668 = vst.msk [vmem:[#allocation3 + $0x30] sm:$0xff] %vm661, 0.0
    %669 = vst.msk [vmem:[#allocation3 + $0x38] sm:$0xff] %vm661, 0.0
    %670 = vst.msk [vmem:[#allocation4] sm:$0xff] %vm661, 0.0
    %671 = vst.msk [vmem:[#allocation4 + $0x8] sm:$0xff] %vm661, 0.0
    %672 = vst.msk [vmem:[#allocation4 + $0x10] sm:$0xff] %vm661, 0.0
    %673 = vst.msk [vmem:[#allocation4 + $0x18] sm:$0xff] %vm661, 0.0
    %674 = vst.msk [vmem:[#allocation4 + $0x20] sm:$0xff] %vm661, 0.0
    %675 = vst.msk [vmem:[#allocation4 + $0x28] sm:$0xff] %vm661, 0.0
    %676 = vst.msk [vmem:[#allocation4 + $0x30] sm:$0xff] %vm661, 0.0
    %677 = vst.msk [vmem:[#allocation4 + $0x38] sm:$0xff] %vm661, 0.0
    %v678 = vld [vmem:[%s8 + $0x38] sm:$0xff]
    %v679 = vld [vmem:[%s8 + $0x40] sm:$0xff]
    %v680 = vld [vmem:[%s8 + $0x48] sm:$0xff]
    %v681 = vld [vmem:[%s8 + $0x50] sm:$0xff]
    %v682 = vld [vmem:[%s6] sm:$0x3]
    %v683 = vld [vmem:[%s6 + $0x8] sm:$0x3]
    %v685 = vsel %vm575, %v682, 0
    %687 = vmatprep.subr.mxu0 0.0
    %688 = vmatpush1.msra.mxu0 0.0
    %689 = vmatprep.subr.mxu0 0.0
    %690 = vmatpush1.msra.mxu0 0.0
    %691 = vmatprep.subr.mxu0 0.0
    %692 = vmatpush1.msra.mxu0 0.0
    %693 = vmatprep.subr.mxu0 0.0
    %694 = vmatpush1.msra.mxu0 0.0
    %695 = vmatprep.subr.mxu0 0.0
    %696 = vmatpush1.msra.mxu0 0.0
    %697 = vmatprep.subr.mxu0 0.0
    %698 = vmatpush1.msra.mxu0 0.0
    %699 = vmatprep.subr.mxu0 0.0
    %700 = vmatpush1.msra.mxu0 0.0
    %701 = vmatprep.subr.mxu0 0.0
    %702 = vmatpush1.msra.mxu0 0.0
    %703 = vmatprep.subr.mxu0 0.0
    %704 = vmatpush1.msra.mxu0 0.0
    %705 = vmatprep.subr.mxu0 0.0
    %706 = vmatpush1.msra.mxu0 0.0
    %707 = vmatprep.subr.mxu0 0.0
    %708 = vmatpush1.msra.mxu0 0.0
    %709 = vmatprep.subr.mxu0 0.0
    %710 = vmatpush1.msra.mxu0 0.0
    %711 = vmatprep.subr.mxu0 0.0
    %712 = vmatpush1.msra.mxu0 %v681
    %713 = vmatprep.subr.mxu0 0.0
    %714 = vmatpush1.msra.mxu0 %v680
    %715 = vmatprep.subr.mxu0 0.0
    %716 = vmatpush1.msra.mxu0 %v679
    %717 = vmatprep.subr.mxu0 0.0
    %718 = vmatpush1.msra.mxu0 %v678
    %719 = vmatprep.subr.mxu0 0.0
    %720 = vmatpush2.msra.mxu0 0.0
    %721 = vmatprep.subr.mxu0 0.0
    %722 = vmatpush2.msra.mxu0 0.0
    %723 = vmatprep.subr.mxu0 0.0
    %724 = vmatpush2.msra.mxu0 0.0
    %725 = vmatprep.subr.mxu0 0.0
    %726 = vmatpush2.msra.mxu0 0.0
    %727 = vmatprep.subr.mxu0 0.0
    %728 = vmatpush2.msra.mxu0 0.0
    %729 = vmatprep.subr.mxu0 0.0
    %730 = vmatpush2.msra.mxu0 0.0
    %731 = vmatprep.subr.mxu0 0.0
    %732 = vmatpush2.msra.mxu0 0.0
    %733 = vmatprep.subr.mxu0 0.0
    %734 = vmatpush2.msra.mxu0 0.0
    %735 = vmatprep.subr.mxu0 0.0
    %736 = vmatpush2.msra.mxu0 0.0
    %737 = vmatprep.subr.mxu0 0.0
    %738 = vmatpush2.msra.mxu0 0.0
    %739 = vmatprep.subr.mxu0 0.0
    %740 = vmatpush2.msra.mxu0 0.0
    %741 = vmatprep.subr.mxu0 0.0
    %742 = vmatpush2.msra.mxu0 0.0
    %743 = vmatprep.subr.mxu0 0.0
    %744 = vmatpush2.msra.mxu0 0.0
    %745 = vmatprep.subr.mxu0 0.0
    %746 = vmatpush2.msra.mxu0 0.0
    %747 = vmatprep.subr.mxu0 0.0
    %748 = vmatpush2.msra.mxu0 0.0
    %749 = vmatprep.subr.mxu0 0.0
    %750 = vmatpush2.msra.mxu0 0.0
    %751 = vmatprep.mubr.f32.mxu0 0.0
    %752 = vmatmul.mubr.f32.gmra.mxu0 %v685
    %v753 = vpop.f32.mrf.mxu0
    %v754 = vadd.f32 0.0, %v753
    %v755 = vpop.f32.mrf.mxu0
    %756 = vdwg.mxu0
    %v757 = vld [vmem:[#allocation2] sm:$0x3]
    %v758 = vld [vmem:[#allocation2 + $0x38] sm:$0x3]
    %v759 = vadd.f32 %v754, %v757
    %v760 = vadd.f32 %v754, %v758
    %v761 = vxor.u32 %v759, 2147483648
    %v762 = vmul.f32 %v761, 1.442695
    %v763 = vpow.pop %v762
    %v764 = vadd.f32 %v763, 1.0
    %v765 = vrcp.pop %v764
    %v766 = vmul.f32 1.0, %v765
    %v767 = vtanh.pop %v759
    %v768 = vxor.u32 %v760, 2147483648
    %v769 = vmul.f32 %v768, 1.442695
    %v770 = vpow.pop %v769
    %v771 = vadd.f32 %v770, 1.0
    %v772 = vrcp.pop %v771
    %v773 = vmul.f32 1.0, %v772
    %v774 = vtanh.pop %v760
    %776 = vrot.lane.b32.xlu0 %v683, 16
    %v777 = vpop.permute.xlu0 %776
    %v779 = vmul.f32 %v766, %v777
    %781 = vrot.lane.b32.xlu0 %v767, 96
    %v782 = vpop.permute.xlu0 %781
    %v784 = vmul.f32 %v766, %v782
    %786 = vrot.lane.b32.xlu0 %v784, 16
    %v787 = vpop.permute.xlu0 %786
    %v789 = vadd.f32 %v779, %v787
    %790 = vrot.lane.b32.xlu0 %v683, 64
    %v791 = vpop.permute.xlu0 %790
    %v793 = vmul.f32 %v773, %v791
    %795 = vrot.lane.b32.xlu0 %v774, 96
    %v796 = vpop.permute.xlu0 %795
    %v798 = vmul.f32 %v773, %v796
    %800 = vrot.lane.b32.xlu0 %v798, 16
    %v801 = vpop.permute.xlu0 %800
    %v803 = vadd.f32 %v793, %v801
    %v804 = vtanh.pop %v789
    %806 = vrot.lane.b32.xlu0 %v804, 32
    %v807 = vpop.permute.xlu0 %806
    %v809 = vmul.f32 %v766, %v807
    %v810 = vtanh.pop %v803
    %812 = vrot.lane.b32.xlu0 %v810, 32
    %v813 = vpop.permute.xlu0 %812
    %v815 = vmul.f32 %v773, %v813
    %817 = vrot.lane.b32.xlu0 %v809, 80
    %v818 = vpop.permute.xlu0 %817
    %vm820 = vcmask 123904
    %821 = vst.msk [vmem:[#allocation3] sm:$0x3] %vm820, %v818
    %823 = vrot.lane.b32.xlu0 %v815, 16
    %v824 = vpop.permute.xlu0 %823
    %826 = vst.msk [vmem:[#allocation4 + $0x38] sm:$0x3] %vm820, %v824
    %827 = vrot.lane.b32.xlu0 %v815, 32
    %v828 = vpop.permute.xlu0 %827
    %v830 = vsel %vm661, %v818, %v828
    %v832 = vsel %vm575, %v830, 0
    %834 = vmatprep.subr.mxu0 0.0
    %835 = vmatpush1.msra.mxu0 0.0
    %836 = vmatprep.subr.mxu0 0.0
    %837 = vmatpush1.msra.mxu0 0.0
    %838 = vmatprep.subr.mxu0 0.0
    %839 = vmatpush1.msra.mxu0 0.0
    %840 = vmatprep.subr.mxu0 0.0
    %841 = vmatpush1.msra.mxu0 0.0
    %842 = vmatprep.subr.mxu0 0.0
    %843 = vmatpush1.msra.mxu0 0.0
    %844 = vmatprep.subr.mxu0 0.0
    %845 = vmatpush1.msra.mxu0 0.0
    %846 = vmatprep.subr.mxu0 0.0
    %847 = vmatpush1.msra.mxu0 0.0
    %848 = vmatprep.subr.mxu0 0.0
    %849 = vmatpush1.msra.mxu0 0.0
    %850 = vmatprep.subr.mxu0 0.0
    %851 = vmatpush1.msra.mxu0 0.0
    %852 = vmatprep.subr.mxu0 0.0
    %853 = vmatpush1.msra.mxu0 0.0
    %854 = vmatprep.subr.mxu0 0.0
    %855 = vmatpush1.msra.mxu0 0.0
    %856 = vmatprep.subr.mxu0 0.0
    %857 = vmatpush1.msra.mxu0 0.0
    %858 = vmatprep.subr.mxu0 0.0
    %859 = vmatpush1.msra.mxu0 %v681
    %860 = vmatprep.subr.mxu0 0.0
    %861 = vmatpush1.msra.mxu0 %v680
    %862 = vmatprep.subr.mxu0 0.0
    %863 = vmatpush1.msra.mxu0 %v679
    %864 = vmatprep.subr.mxu0 0.0
    %865 = vmatpush1.msra.mxu0 %v678
    %866 = vmatprep.subr.mxu0 0.0
    %867 = vmatpush2.msra.mxu0 0.0
    %868 = vmatprep.subr.mxu0 0.0
    %869 = vmatpush2.msra.mxu0 0.0
    %870 = vmatprep.subr.mxu0 0.0
    %871 = vmatpush2.msra.mxu0 0.0
    %872 = vmatprep.subr.mxu0 0.0
    %873 = vmatpush2.msra.mxu0 0.0
    %874 = vmatprep.subr.mxu0 0.0
    %875 = vmatpush2.msra.mxu0 0.0
    %876 = vmatprep.subr.mxu0 0.0
    %877 = vmatpush2.msra.mxu0 0.0
    %878 = vmatprep.subr.mxu0 0.0
    %879 = vmatpush2.msra.mxu0 0.0
    %880 = vmatprep.subr.mxu0 0.0
    %881 = vmatpush2.msra.mxu0 0.0
    %882 = vmatprep.subr.mxu0 0.0
    %883 = vmatpush2.msra.mxu0 0.0
    %884 = vmatprep.subr.mxu0 0.0
    %885 = vmatpush2.msra.mxu0 0.0
    %886 = vmatprep.subr.mxu0 0.0
    %887 = vmatpush2.msra.mxu0 0.0
    %888 = vmatprep.subr.mxu0 0.0
    %889 = vmatpush2.msra.mxu0 0.0
    %890 = vmatprep.subr.mxu0 0.0
    %891 = vmatpush2.msra.mxu0 0.0
    %892 = vmatprep.subr.mxu0 0.0
    %893 = vmatpush2.msra.mxu0 0.0
    %894 = vmatprep.subr.mxu0 0.0
    %895 = vmatpush2.msra.mxu0 0.0
    %896 = vmatprep.subr.mxu0 0.0
    %897 = vmatpush2.msra.mxu0 0.0
    %898 = vmatprep.mubr.f32.mxu0 0.0
    %899 = vmatmul.mubr.f32.gmra.mxu0 %v832
    %v900 = vpop.f32.mrf.mxu0
    %v901 = vadd.f32 0.0, %v900
    %v902 = vpop.f32.mrf.mxu0
    %903 = vdwg.mxu0
    %v904 = vld [vmem:[#allocation2 + $0x8] sm:$0x3]
    %v905 = vld [vmem:[#allocation2 + $0x30] sm:$0x3]
    %v906 = vadd.f32 %v901, %v904
    %v907 = vadd.f32 %v901, %v905
    %v908 = vxor.u32 %v906, 2147483648
    %v909 = vmul.f32 %v908, 1.442695
    %v910 = vpow.pop %v909
    %v911 = vadd.f32 %v910, 1.0
    %v912 = vrcp.pop %v911
    %v913 = vmul.f32 1.0, %v912
    %v914 = vtanh.pop %v906
    %v915 = vxor.u32 %v907, 2147483648
    %v916 = vmul.f32 %v915, 1.442695
    %v917 = vpow.pop %v916
    %v918 = vadd.f32 %v917, 1.0
    %v919 = vrcp.pop %v918
    %v920 = vmul.f32 1.0, %v919
    %v921 = vtanh.pop %v907
    %v922 = vmul.f32 %v913, %v789
    %924 = vrot.lane.b32.xlu0 %v914, 96
    %v925 = vpop.permute.xlu0 %924
    %v927 = vmul.f32 %v913, %v925
    %929 = vrot.lane.b32.xlu0 %v927, 16
    %v930 = vpop.permute.xlu0 %929
    %v932 = vadd.f32 %v922, %v930
    %v933 = vmul.f32 %v920, %v803
    %935 = vrot.lane.b32.xlu0 %v921, 96
    %v936 = vpop.permute.xlu0 %935
    %v938 = vmul.f32 %v920, %v936
    %940 = vrot.lane.b32.xlu0 %v938, 16
    %v941 = vpop.permute.xlu0 %940
    %v943 = vadd.f32 %v933, %v941
    %v944 = vtanh.pop %v932
    %946 = vrot.lane.b32.xlu0 %v944, 32
    %v947 = vpop.permute.xlu0 %946
    %v949 = vmul.f32 %v913, %v947
    %v950 = vtanh.pop %v943
    %952 = vrot.lane.b32.xlu0 %v950, 32
    %v953 = vpop.permute.xlu0 %952
    %v955 = vmul.f32 %v920, %v953
    %957 = vrot.lane.b32.xlu0 %v949, 80
    %v958 = vpop.permute.xlu0 %957
    %960 = vst.msk [vmem:[#allocation3 + $0x8] sm:$0x3] %vm820, %v958
    %962 = vrot.lane.b32.xlu0 %v955, 16
    %v963 = vpop.permute.xlu0 %962
    %965 = vst.msk [vmem:[#allocation4 + $0x30] sm:$0x3] %vm820, %v963
    %966 = vrot.lane.b32.xlu0 %v955, 32
    %v967 = vpop.permute.xlu0 %966
    %v969 = vsel %vm661, %v958, %v967
    %v971 = vsel %vm575, %v969, 0
    %973 = vmatprep.subr.mxu0 0.0
    %974 = vmatpush1.msra.mxu0 0.0
    %975 = vmatprep.subr.mxu0 0.0
    %976 = vmatpush1.msra.mxu0 0.0
    %977 = vmatprep.subr.mxu0 0.0
    %978 = vmatpush1.msra.mxu0 0.0
    %979 = vmatprep.subr.mxu0 0.0
    %980 = vmatpush1.msra.mxu0 0.0
    %981 = vmatprep.subr.mxu0 0.0
    %982 = vmatpush1.msra.mxu0 0.0
    %983 = vmatprep.subr.mxu0 0.0
    %984 = vmatpush1.msra.mxu0 0.0
    %985 = vmatprep.subr.mxu0 0.0
    %986 = vmatpush1.msra.mxu0 0.0
    %987 = vmatprep.subr.mxu0 0.0
    %988 = vmatpush1.msra.mxu0 0.0
    %989 = vmatprep.subr.mxu0 0.0
    %990 = vmatpush1.msra.mxu0 0.0
    %991 = vmatprep.subr.mxu0 0.0
    %992 = vmatpush1.msra.mxu0 0.0
    %993 = vmatprep.subr.mxu0 0.0
    %994 = vmatpush1.msra.mxu0 0.0
    %995 = vmatprep.subr.mxu0 0.0
    %996 = vmatpush1.msra.mxu0 0.0
    %997 = vmatprep.subr.mxu0 0.0
    %998 = vmatpush1.msra.mxu0 %v681
    %999 = vmatprep.subr.mxu0 0.0
    %1000 = vmatpush1.msra.mxu0 %v680
    %1001 = vmatprep.subr.mxu0 0.0
    %1002 = vmatpush1.msra.mxu0 %v679
    %1003 = vmatprep.subr.mxu0 0.0
    %1004 = vmatpush1.msra.mxu0 %v678
    %1005 = vmatprep.subr.mxu0 0.0
    %1006 = vmatpush2.msra.mxu0 0.0
    %1007 = vmatprep.subr.mxu0 0.0
    %1008 = vmatpush2.msra.mxu0 0.0
    %1009 = vmatprep.subr.mxu0 0.0
    %1010 = vmatpush2.msra.mxu0 0.0
    %1011 = vmatprep.subr.mxu0 0.0
    %1012 = vmatpush2.msra.mxu0 0.0
    %1013 = vmatprep.subr.mxu0 0.0
    %1014 = vmatpush2.msra.mxu0 0.0
    %1015 = vmatprep.subr.mxu0 0.0
    %1016 = vmatpush2.msra.mxu0 0.0
    %1017 = vmatprep.subr.mxu0 0.0
    %1018 = vmatpush2.msra.mxu0 0.0
    %1019 = vmatprep.subr.mxu0 0.0
    %1020 = vmatpush2.msra.mxu0 0.0
    %1021 = vmatprep.subr.mxu0 0.0
    %1022 = vmatpush2.msra.mxu0 0.0
    %1023 = vmatprep.subr.mxu0 0.0
    %1024 = vmatpush2.msra.mxu0 0.0
    %1025 = vmatprep.subr.mxu0 0.0
    %1026 = vmatpush2.msra.mxu0 0.0
    %1027 = vmatprep.subr.mxu0 0.0
    %1028 = vmatpush2.msra.mxu0 0.0
    %1029 = vmatprep.subr.mxu0 0.0
    %1030 = vmatpush2.msra.mxu0 0.0
    %1031 = vmatprep.subr.mxu0 0.0
    %1032 = vmatpush2.msra.mxu0 0.0
    %1033 = vmatprep.subr.mxu0 0.0
    %1034 = vmatpush2.msra.mxu0 0.0
    %1035 = vmatprep.subr.mxu0 0.0
    %1036 = vmatpush2.msra.mxu0 0.0
    %1037 = vmatprep.mubr.f32.mxu0 0.0
    %1038 = vmatmul.mubr.f32.gmra.mxu0 %v971
    %v1039 = vpop.f32.mrf.mxu0
    %v1040 = vadd.f32 0.0, %v1039
    %v1041 = vpop.f32.mrf.mxu0
    %1042 = vdwg.mxu0
    %v1043 = vld [vmem:[#allocation2 + $0x10] sm:$0x3]
    %v1044 = vld [vmem:[#allocation2 + $0x28] sm:$0x3]
    %v1045 = vadd.f32 %v1040, %v1043
    %v1046 = vadd.f32 %v1040, %v1044
    %v1047 = vxor.u32 %v1045, 2147483648
    %v1048 = vmul.f32 %v1047, 1.442695
    %v1049 = vpow.pop %v1048
    %v1050 = vadd.f32 %v1049, 1.0
    %v1051 = vrcp.pop %v1050
    %v1052 = vmul.f32 1.0, %v1051
    %v1053 = vtanh.pop %v1045
    %v1054 = vxor.u32 %v1046, 2147483648
    %v1055 = vmul.f32 %v1054, 1.442695
    %v1056 = vpow.pop %v1055
    %v1057 = vadd.f32 %v1056, 1.0
    %v1058 = vrcp.pop %v1057
    %v1059 = vmul.f32 1.0, %v1058
    %v1060 = vtanh.pop %v1046
    %v1061 = vmul.f32 %v1052, %v932
    %1063 = vrot.lane.b32.xlu0 %v1053, 96
    %v1064 = vpop.permute.xlu0 %1063
    %v1066 = vmul.f32 %v1052, %v1064
    %1068 = vrot.lane.b32.xlu0 %v1066, 16
    %v1069 = vpop.permute.xlu0 %1068
    %v1071 = vadd.f32 %v1061, %v1069
    %v1072 = vmul.f32 %v1059, %v943
    %1074 = vrot.lane.b32.xlu0 %v1060, 96
    %v1075 = vpop.permute.xlu0 %1074
    %v1077 = vmul.f32 %v1059, %v1075
    %1079 = vrot.lane.b32.xlu0 %v1077, 16
    %v1080 = vpop.permute.xlu0 %1079
    %v1082 = vadd.f32 %v1072, %v1080
    %v1083 = vtanh.pop %v1071
    %1085 = vrot.lane.b32.xlu0 %v1083, 32
    %v1086 = vpop.permute.xlu0 %1085
    %v1088 = vmul.f32 %v1052, %v1086
    %v1089 = vtanh.pop %v1082
    %1091 = vrot.lane.b32.xlu0 %v1089, 32
    %v1092 = vpop.permute.xlu0 %1091
    %v1094 = vmul.f32 %v1059, %v1092
    %1096 = vrot.lane.b32.xlu0 %v1088, 80
    %v1097 = vpop.permute.xlu0 %1096
    %1099 = vst.msk [vmem:[#allocation3 + $0x10] sm:$0x3] %vm820, %v1097
    %1101 = vrot.lane.b32.xlu0 %v1094, 16
    %v1102 = vpop.permute.xlu0 %1101
    %1104 = vst.msk [vmem:[#allocation4 + $0x28] sm:$0x3] %vm820, %v1102
    %1105 = vrot.lane.b32.xlu0 %v1094, 32
    %v1106 = vpop.permute.xlu0 %1105
    %v1108 = vsel %vm661, %v1097, %v1106
    %v1110 = vsel %vm575, %v1108, 0
    %1112 = vmatprep.subr.mxu0 0.0
    %1113 = vmatpush1.msra.mxu0 0.0
    %1114 = vmatprep.subr.mxu0 0.0
    %1115 = vmatpush1.msra.mxu0 0.0
    %1116 = vmatprep.subr.mxu0 0.0
    %1117 = vmatpush1.msra.mxu0 0.0
    %1118 = vmatprep.subr.mxu0 0.0
    %1119 = vmatpush1.msra.mxu0 0.0
    %1120 = vmatprep.subr.mxu0 0.0
    %1121 = vmatpush1.msra.mxu0 0.0
    %1122 = vmatprep.subr.mxu0 0.0
    %1123 = vmatpush1.msra.mxu0 0.0
    %1124 = vmatprep.subr.mxu0 0.0
    %1125 = vmatpush1.msra.mxu0 0.0
    %1126 = vmatprep.subr.mxu0 0.0
    %1127 = vmatpush1.msra.mxu0 0.0
    %1128 = vmatprep.subr.mxu0 0.0
    %1129 = vmatpush1.msra.mxu0 0.0
    %1130 = vmatprep.subr.mxu0 0.0
    %1131 = vmatpush1.msra.mxu0 0.0
    %1132 = vmatprep.subr.mxu0 0.0
    %1133 = vmatpush1.msra.mxu0 0.0
    %1134 = vmatprep.subr.mxu0 0.0
    %1135 = vmatpush1.msra.mxu0 0.0
    %1136 = vmatprep.subr.mxu0 0.0
    %1137 = vmatpush1.msra.mxu0 %v681
    %1138 = vmatprep.subr.mxu0 0.0
    %1139 = vmatpush1.msra.mxu0 %v680
    %1140 = vmatprep.subr.mxu0 0.0
    %1141 = vmatpush1.msra.mxu0 %v679
    %1142 = vmatprep.subr.mxu0 0.0
    %1143 = vmatpush1.msra.mxu0 %v678
    %1144 = vmatprep.subr.mxu0 0.0
    %1145 = vmatpush2.msra.mxu0 0.0
    %1146 = vmatprep.subr.mxu0 0.0
    %1147 = vmatpush2.msra.mxu0 0.0
    %1148 = vmatprep.subr.mxu0 0.0
    %1149 = vmatpush2.msra.mxu0 0.0
    %1150 = vmatprep.subr.mxu0 0.0
    %1151 = vmatpush2.msra.mxu0 0.0
    %1152 = vmatprep.subr.mxu0 0.0
    %1153 = vmatpush2.msra.mxu0 0.0
    %1154 = vmatprep.subr.mxu0 0.0
    %1155 = vmatpush2.msra.mxu0 0.0
    %1156 = vmatprep.subr.mxu0 0.0
    %1157 = vmatpush2.msra.mxu0 0.0
    %1158 = vmatprep.subr.mxu0 0.0
    %1159 = vmatpush2.msra.mxu0 0.0
    %1160 = vmatprep.subr.mxu0 0.0
    %1161 = vmatpush2.msra.mxu0 0.0
    %1162 = vmatprep.subr.mxu0 0.0
    %1163 = vmatpush2.msra.mxu0 0.0
    %1164 = vmatprep.subr.mxu0 0.0
    %1165 = vmatpush2.msra.mxu0 0.0
    %1166 = vmatprep.subr.mxu0 0.0
    %1167 = vmatpush2.msra.mxu0 0.0
    %1168 = vmatprep.subr.mxu0 0.0
    %1169 = vmatpush2.msra.mxu0 0.0
    %1170 = vmatprep.subr.mxu0 0.0
    %1171 = vmatpush2.msra.mxu0 0.0
    %1172 = vmatprep.subr.mxu0 0.0
    %1173 = vmatpush2.msra.mxu0 0.0
    %1174 = vmatprep.subr.mxu0 0.0
    %1175 = vmatpush2.msra.mxu0 0.0
    %1176 = vmatprep.mubr.f32.mxu0 0.0
    %1177 = vmatmul.mubr.f32.gmra.mxu0 %v1110
    %v1178 = vpop.f32.mrf.mxu0
    %v1179 = vadd.f32 0.0, %v1178
    %v1180 = vpop.f32.mrf.mxu0
    %1181 = vdwg.mxu0
    %v1182 = vld [vmem:[#allocation2 + $0x18] sm:$0x3]
    %v1183 = vld [vmem:[#allocation2 + $0x20] sm:$0x3]
    %v1184 = vadd.f32 %v1179, %v1182
    %v1185 = vadd.f32 %v1179, %v1183
    %v1186 = vxor.u32 %v1184, 2147483648
    %v1187 = vmul.f32 %v1186, 1.442695
    %v1188 = vpow.pop %v1187
    %v1189 = vadd.f32 %v1188, 1.0
    %v1190 = vrcp.pop %v1189
    %v1191 = vmul.f32 1.0, %v1190
    %v1192 = vtanh.pop %v1184
    %v1193 = vxor.u32 %v1185, 2147483648
    %v1194 = vmul.f32 %v1193, 1.442695
    %v1195 = vpow.pop %v1194
    %v1196 = vadd.f32 %v1195, 1.0
    %v1197 = vrcp.pop %v1196
    %v1198 = vmul.f32 1.0, %v1197
    %v1199 = vtanh.pop %v1185
    %v1200 = vmul.f32 %v1191, %v1071
    %1202 = vrot.lane.b32.xlu0 %v1192, 96
    %v1203 = vpop.permute.xlu0 %1202
    %v1205 = vmul.f32 %v1191, %v1203
    %1207 = vrot.lane.b32.xlu0 %v1205, 16
    %v1208 = vpop.permute.xlu0 %1207
    %v1210 = vadd.f32 %v1200, %v1208
    %v1211 = vmul.f32 %v1198, %v1082
    %1213 = vrot.lane.b32.xlu0 %v1199, 96
    %v1214 = vpop.permute.xlu0 %1213
    %v1216 = vmul.f32 %v1198, %v1214
    %1218 = vrot.lane.b32.xlu0 %v1216, 16
    %v1219 = vpop.permute.xlu0 %1218
    %v1221 = vadd.f32 %v1211, %v1219
    %v1222 = vtanh.pop %v1210
    %1224 = vrot.lane.b32.xlu0 %v1222, 32
    %v1225 = vpop.permute.xlu0 %1224
    %v1227 = vmul.f32 %v1191, %v1225
    %v1228 = vtanh.pop %v1221
    %1230 = vrot.lane.b32.xlu0 %v1228, 32
    %v1231 = vpop.permute.xlu0 %1230
    %v1233 = vmul.f32 %v1198, %v1231
    %1235 = vrot.lane.b32.xlu0 %v1227, 80
    %v1236 = vpop.permute.xlu0 %1235
    %1238 = vst.msk [vmem:[#allocation3 + $0x18] sm:$0x3] %vm820, %v1236
    %1240 = vrot.lane.b32.xlu0 %v1233, 16
    %v1241 = vpop.permute.xlu0 %1240
    %1243 = vst.msk [vmem:[#allocation4 + $0x20] sm:$0x3] %vm820, %v1241
    %1244 = vrot.lane.b32.xlu0 %v1233, 32
    %v1245 = vpop.permute.xlu0 %1244
    %v1247 = vsel %vm661, %v1236, %v1245
    %v1249 = vsel %vm575, %v1247, 0
    %1251 = vmatprep.subr.mxu0 0.0
    %1252 = vmatpush1.msra.mxu0 0.0
    %1253 = vmatprep.subr.mxu0 0.0
    %1254 = vmatpush1.msra.mxu0 0.0
    %1255 = vmatprep.subr.mxu0 0.0
    %1256 = vmatpush1.msra.mxu0 0.0
    %1257 = vmatprep.subr.mxu0 0.0
    %1258 = vmatpush1.msra.mxu0 0.0
    %1259 = vmatprep.subr.mxu0 0.0
    %1260 = vmatpush1.msra.mxu0 0.0
    %1261 = vmatprep.subr.mxu0 0.0
    %1262 = vmatpush1.msra.mxu0 0.0
    %1263 = vmatprep.subr.mxu0 0.0
    %1264 = vmatpush1.msra.mxu0 0.0
    %1265 = vmatprep.subr.mxu0 0.0
    %1266 = vmatpush1.msra.mxu0 0.0
    %1267 = vmatprep.subr.mxu0 0.0
    %1268 = vmatpush1.msra.mxu0 0.0
    %1269 = vmatprep.subr.mxu0 0.0
    %1270 = vmatpush1.msra.mxu0 0.0
    %1271 = vmatprep.subr.mxu0 0.0
    %1272 = vmatpush1.msra.mxu0 0.0
    %1273 = vmatprep.subr.mxu0 0.0
    %1274 = vmatpush1.msra.mxu0 0.0
    %1275 = vmatprep.subr.mxu0 0.0
    %1276 = vmatpush1.msra.mxu0 %v681
    %1277 = vmatprep.subr.mxu0 0.0
    %1278 = vmatpush1.msra.mxu0 %v680
    %1279 = vmatprep.subr.mxu0 0.0
    %1280 = vmatpush1.msra.mxu0 %v679
    %1281 = vmatprep.subr.mxu0 0.0
    %1282 = vmatpush1.msra.mxu0 %v678
    %1283 = vmatprep.subr.mxu0 0.0
    %1284 = vmatpush2.msra.mxu0 0.0
    %1285 = vmatprep.subr.mxu0 0.0
    %1286 = vmatpush2.msra.mxu0 0.0
    %1287 = vmatprep.subr.mxu0 0.0
    %1288 = vmatpush2.msra.mxu0 0.0
    %1289 = vmatprep.subr.mxu0 0.0
    %1290 = vmatpush2.msra.mxu0 0.0
    %1291 = vmatprep.subr.mxu0 0.0
    %1292 = vmatpush2.msra.mxu0 0.0
    %1293 = vmatprep.subr.mxu0 0.0
    %1294 = vmatpush2.msra.mxu0 0.0
    %1295 = vmatprep.subr.mxu0 0.0
    %1296 = vmatpush2.msra.mxu0 0.0
    %1297 = vmatprep.subr.mxu0 0.0
    %1298 = vmatpush2.msra.mxu0 0.0
    %1299 = vmatprep.subr.mxu0 0.0
    %1300 = vmatpush2.msra.mxu0 0.0
    %1301 = vmatprep.subr.mxu0 0.0
    %1302 = vmatpush2.msra.mxu0 0.0
    %1303 = vmatprep.subr.mxu0 0.0
    %1304 = vmatpush2.msra.mxu0 0.0
    %1305 = vmatprep.subr.mxu0 0.0
    %1306 = vmatpush2.msra.mxu0 0.0
    %1307 = vmatprep.subr.mxu0 0.0
    %1308 = vmatpush2.msra.mxu0 0.0
    %1309 = vmatprep.subr.mxu0 0.0
    %1310 = vmatpush2.msra.mxu0 0.0
    %1311 = vmatprep.subr.mxu0 0.0
    %1312 = vmatpush2.msra.mxu0 0.0
    %1313 = vmatprep.subr.mxu0 0.0
    %1314 = vmatpush2.msra.mxu0 0.0
    %1315 = vmatprep.mubr.f32.mxu0 0.0
    %1316 = vmatmul.mubr.f32.gmra.mxu0 %v1249
    %v1317 = vpop.f32.mrf.mxu0
    %v1318 = vadd.f32 0.0, %v1317
    %v1319 = vpop.f32.mrf.mxu0
    %1320 = vdwg.mxu0
    %v1321 = vld [vmem:[#allocation2 + $0x20] sm:$0x3]
    %v1322 = vld [vmem:[#allocation2 + $0x18] sm:$0x3]
    %v1323 = vadd.f32 %v1318, %v1321
    %v1324 = vadd.f32 %v1318, %v1322
    %v1325 = vxor.u32 %v1323, 2147483648
    %v1326 = vmul.f32 %v1325, 1.442695
    %v1327 = vpow.pop %v1326
    %v1328 = vadd.f32 %v1327, 1.0
    %v1329 = vrcp.pop %v1328
    %v1330 = vmul.f32 1.0, %v1329
    %v1331 = vtanh.pop %v1323
    %v1332 = vxor.u32 %v1324, 2147483648
    %v1333 = vmul.f32 %v1332, 1.442695
    %v1334 = vpow.pop %v1333
    %v1335 = vadd.f32 %v1334, 1.0
    %v1336 = vrcp.pop %v1335
    %v1337 = vmul.f32 1.0, %v1336
    %v1338 = vtanh.pop %v1324
    %v1339 = vmul.f32 %v1330, %v1210
    %1341 = vrot.lane.b32.xlu0 %v1331, 96
    %v1342 = vpop.permute.xlu0 %1341
    %v1344 = vmul.f32 %v1330, %v1342
    %1346 = vrot.lane.b32.xlu0 %v1344, 16
    %v1347 = vpop.permute.xlu0 %1346
    %v1349 = vadd.f32 %v1339, %v1347
    %v1350 = vmul.f32 %v1337, %v1221
    %1352 = vrot.lane.b32.xlu0 %v1338, 96
    %v1353 = vpop.permute.xlu0 %1352
    %v1355 = vmul.f32 %v1337, %v1353
    %1357 = vrot.lane.b32.xlu0 %v1355, 16
    %v1358 = vpop.permute.xlu0 %1357
    %v1360 = vadd.f32 %v1350, %v1358
    %v1361 = vtanh.pop %v1349
    %1363 = vrot.lane.b32.xlu0 %v1361, 32
    %v1364 = vpop.permute.xlu0 %1363
    %v1366 = vmul.f32 %v1330, %v1364
    %v1367 = vtanh.pop %v1360
    %1369 = vrot.lane.b32.xlu0 %v1367, 32
    %v1370 = vpop.permute.xlu0 %1369
    %v1372 = vmul.f32 %v1337, %v1370
    %1374 = vrot.lane.b32.xlu0 %v1366, 80
    %v1375 = vpop.permute.xlu0 %1374
    %1377 = vst.msk [vmem:[#allocation3 + $0x20] sm:$0x3] %vm820, %v1375
    %1379 = vrot.lane.b32.xlu0 %v1372, 16
    %v1380 = vpop.permute.xlu0 %1379
    %1382 = vst.msk [vmem:[#allocation4 + $0x18] sm:$0x3] %vm820, %v1380
    %1383 = vrot.lane.b32.xlu0 %v1372, 32
    %v1384 = vpop.permute.xlu0 %1383
    %v1386 = vsel %vm661, %v1375, %v1384
    %v1388 = vsel %vm575, %v1386, 0
    %1390 = vmatprep.subr.mxu0 0.0
    %1391 = vmatpush1.msra.mxu0 0.0
    %1392 = vmatprep.subr.mxu0 0.0
    %1393 = vmatpush1.msra.mxu0 0.0
    %1394 = vmatprep.subr.mxu0 0.0
    %1395 = vmatpush1.msra.mxu0 0.0
    %1396 = vmatprep.subr.mxu0 0.0
    %1397 = vmatpush1.msra.mxu0 0.0
    %1398 = vmatprep.subr.mxu0 0.0
    %1399 = vmatpush1.msra.mxu0 0.0
    %1400 = vmatprep.subr.mxu0 0.0
    %1401 = vmatpush1.msra.mxu0 0.0
    %1402 = vmatprep.subr.mxu0 0.0
    %1403 = vmatpush1.msra.mxu0 0.0
    %1404 = vmatprep.subr.mxu0 0.0
    %1405 = vmatpush1.msra.mxu0 0.0
    %1406 = vmatprep.subr.mxu0 0.0
    %1407 = vmatpush1.msra.mxu0 0.0
    %1408 = vmatprep.subr.mxu0 0.0
    %1409 = vmatpush1.msra.mxu0 0.0
    %1410 = vmatprep.subr.mxu0 0.0
    %1411 = vmatpush1.msra.mxu0 0.0
    %1412 = vmatprep.subr.mxu0 0.0
    %1413 = vmatpush1.msra.mxu0 0.0
    %1414 = vmatprep.subr.mxu0 0.0
    %1415 = vmatpush1.msra.mxu0 %v681
    %1416 = vmatprep.subr.mxu0 0.0
    %1417 = vmatpush1.msra.mxu0 %v680
    %1418 = vmatprep.subr.mxu0 0.0
    %1419 = vmatpush1.msra.mxu0 %v679
    %1420 = vmatprep.subr.mxu0 0.0
    %1421 = vmatpush1.msra.mxu0 %v678
    %1422 = vmatprep.subr.mxu0 0.0
    %1423 = vmatpush2.msra.mxu0 0.0
    %1424 = vmatprep.subr.mxu0 0.0
    %1425 = vmatpush2.msra.mxu0 0.0
    %1426 = vmatprep.subr.mxu0 0.0
    %1427 = vmatpush2.msra.mxu0 0.0
    %1428 = vmatprep.subr.mxu0 0.0
    %1429 = vmatpush2.msra.mxu0 0.0
    %1430 = vmatprep.subr.mxu0 0.0
    %1431 = vmatpush2.msra.mxu0 0.0
    %1432 = vmatprep.subr.mxu0 0.0
    %1433 = vmatpush2.msra.mxu0 0.0
    %1434 = vmatprep.subr.mxu0 0.0
    %1435 = vmatpush2.msra.mxu0 0.0
    %1436 = vmatprep.subr.mxu0 0.0
    %1437 = vmatpush2.msra.mxu0 0.0
    %1438 = vmatprep.subr.mxu0 0.0
    %1439 = vmatpush2.msra.mxu0 0.0
    %1440 = vmatprep.subr.mxu0 0.0
    %1441 = vmatpush2.msra.mxu0 0.0
    %1442 = vmatprep.subr.mxu0 0.0
    %1443 = vmatpush2.msra.mxu0 0.0
    %1444 = vmatprep.subr.mxu0 0.0
    %1445 = vmatpush2.msra.mxu0 0.0
    %1446 = vmatprep.subr.mxu0 0.0
    %1447 = vmatpush2.msra.mxu0 0.0
    %1448 = vmatprep.subr.mxu0 0.0
    %1449 = vmatpush2.msra.mxu0 0.0
    %1450 = vmatprep.subr.mxu0 0.0
    %1451 = vmatpush2.msra.mxu0 0.0
    %1452 = vmatprep.subr.mxu0 0.0
    %1453 = vmatpush2.msra.mxu0 0.0
    %1454 = vmatprep.mubr.f32.mxu0 0.0
    %1455 = vmatmul.mubr.f32.gmra.mxu0 %v1388
    %v1456 = vpop.f32.mrf.mxu0
    %v1457 = vadd.f32 0.0, %v1456
    %v1458 = vpop.f32.mrf.mxu0
    %1459 = vdwg.mxu0
    %v1460 = vld [vmem:[#allocation2 + $0x28] sm:$0x3]
    %v1461 = vld [vmem:[#allocation2 + $0x10] sm:$0x3]
    %v1462 = vadd.f32 %v1457, %v1460
    %v1463 = vadd.f32 %v1457, %v1461
    %v1464 = vxor.u32 %v1462, 2147483648
    %v1465 = vmul.f32 %v1464, 1.442695
    %v1466 = vpow.pop %v1465
    %v1467 = vadd.f32 %v1466, 1.0
    %v1468 = vrcp.pop %v1467
    %v1469 = vmul.f32 1.0, %v1468
    %v1470 = vtanh.pop %v1462
    %v1471 = vxor.u32 %v1463, 2147483648
    %v1472 = vmul.f32 %v1471, 1.442695
    %v1473 = vpow.pop %v1472
    %v1474 = vadd.f32 %v1473, 1.0
    %v1475 = vrcp.pop %v1474
    %v1476 = vmul.f32 1.0, %v1475
    %v1477 = vtanh.pop %v1463
    %v1478 = vmul.f32 %v1469, %v1349
    %1480 = vrot.lane.b32.xlu0 %v1470, 96
    %v1481 = vpop.permute.xlu0 %1480
    %v1483 = vmul.f32 %v1469, %v1481
    %1485 = vrot.lane.b32.xlu0 %v1483, 16
    %v1486 = vpop.permute.xlu0 %1485
    %v1488 = vadd.f32 %v1478, %v1486
    %v1489 = vmul.f32 %v1476, %v1360
    %1491 = vrot.lane.b32.xlu0 %v1477, 96
    %v1492 = vpop.permute.xlu0 %1491
    %v1494 = vmul.f32 %v1476, %v1492
    %1496 = vrot.lane.b32.xlu0 %v1494, 16
    %v1497 = vpop.permute.xlu0 %1496
    %v1499 = vadd.f32 %v1489, %v1497
    %v1500 = vtanh.pop %v1488
    %1502 = vrot.lane.b32.xlu0 %v1500, 32
    %v1503 = vpop.permute.xlu0 %1502
    %v1505 = vmul.f32 %v1469, %v1503
    %v1506 = vtanh.pop %v1499
    %1508 = vrot.lane.b32.xlu0 %v1506, 32
    %v1509 = vpop.permute.xlu0 %1508
    %v1511 = vmul.f32 %v1476, %v1509
    %1513 = vrot.lane.b32.xlu0 %v1505, 80
    %v1514 = vpop.permute.xlu0 %1513
    %1516 = vst.msk [vmem:[#allocation3 + $0x28] sm:$0x3] %vm820, %v1514
    %1518 = vrot.lane.b32.xlu0 %v1511, 16
    %v1519 = vpop.permute.xlu0 %1518
    %1521 = vst.msk [vmem:[#allocation4 + $0x10] sm:$0x3] %vm820, %v1519
    %1522 = vrot.lane.b32.xlu0 %v1511, 32
    %v1523 = vpop.permute.xlu0 %1522
    %v1525 = vsel %vm661, %v1514, %v1523
    %v1527 = vsel %vm575, %v1525, 0
    %1529 = vmatprep.subr.mxu0 0.0
    %1530 = vmatpush1.msra.mxu0 0.0
    %1531 = vmatprep.subr.mxu0 0.0
    %1532 = vmatpush1.msra.mxu0 0.0
    %1533 = vmatprep.subr.mxu0 0.0
    %1534 = vmatpush1.msra.mxu0 0.0
    %1535 = vmatprep.subr.mxu0 0.0
    %1536 = vmatpush1.msra.mxu0 0.0
    %1537 = vmatprep.subr.mxu0 0.0
    %1538 = vmatpush1.msra.mxu0 0.0
    %1539 = vmatprep.subr.mxu0 0.0
    %1540 = vmatpush1.msra.mxu0 0.0
    %1541 = vmatprep.subr.mxu0 0.0
    %1542 = vmatpush1.msra.mxu0 0.0
    %1543 = vmatprep.subr.mxu0 0.0
    %1544 = vmatpush1.msra.mxu0 0.0
    %1545 = vmatprep.subr.mxu0 0.0
    %1546 = vmatpush1.msra.mxu0 0.0
    %1547 = vmatprep.subr.mxu0 0.0
    %1548 = vmatpush1.msra.mxu0 0.0
    %1549 = vmatprep.subr.mxu0 0.0
    %1550 = vmatpush1.msra.mxu0 0.0
    %1551 = vmatprep.subr.mxu0 0.0
    %1552 = vmatpush1.msra.mxu0 0.0
    %1553 = vmatprep.subr.mxu0 0.0
    %1554 = vmatpush1.msra.mxu0 %v681
    %1555 = vmatprep.subr.mxu0 0.0
    %1556 = vmatpush1.msra.mxu0 %v680
    %1557 = vmatprep.subr.mxu0 0.0
    %1558 = vmatpush1.msra.mxu0 %v679
    %1559 = vmatprep.subr.mxu0 0.0
    %1560 = vmatpush1.msra.mxu0 %v678
    %1561 = vmatprep.subr.mxu0 0.0
    %1562 = vmatpush2.msra.mxu0 0.0
    %1563 = vmatprep.subr.mxu0 0.0
    %1564 = vmatpush2.msra.mxu0 0.0
    %1565 = vmatprep.subr.mxu0 0.0
    %1566 = vmatpush2.msra.mxu0 0.0
    %1567 = vmatprep.subr.mxu0 0.0
    %1568 = vmatpush2.msra.mxu0 0.0
    %1569 = vmatprep.subr.mxu0 0.0
    %1570 = vmatpush2.msra.mxu0 0.0
    %1571 = vmatprep.subr.mxu0 0.0
    %1572 = vmatpush2.msra.mxu0 0.0
    %1573 = vmatprep.subr.mxu0 0.0
    %1574 = vmatpush2.msra.mxu0 0.0
    %1575 = vmatprep.subr.mxu0 0.0
    %1576 = vmatpush2.msra.mxu0 0.0
    %1577 = vmatprep.subr.mxu0 0.0
    %1578 = vmatpush2.msra.mxu0 0.0
    %1579 = vmatprep.subr.mxu0 0.0
    %1580 = vmatpush2.msra.mxu0 0.0
    %1581 = vmatprep.subr.mxu0 0.0
    %1582 = vmatpush2.msra.mxu0 0.0
    %1583 = vmatprep.subr.mxu0 0.0
    %1584 = vmatpush2.msra.mxu0 0.0
    %1585 = vmatprep.subr.mxu0 0.0
    %1586 = vmatpush2.msra.mxu0 0.0
    %1587 = vmatprep.subr.mxu0 0.0
    %1588 = vmatpush2.msra.mxu0 0.0
    %1589 = vmatprep.subr.mxu0 0.0
    %1590 = vmatpush2.msra.mxu0 0.0
    %1591 = vmatprep.subr.mxu0 0.0
    %1592 = vmatpush2.msra.mxu0 0.0
    %1593 = vmatprep.mubr.f32.mxu0 0.0
    %1594 = vmatmul.mubr.f32.gmra.mxu0 %v1527
    %v1595 = vpop.f32.mrf.mxu0
    %v1596 = vadd.f32 0.0, %v1595
    %v1597 = vpop.f32.mrf.mxu0
    %1598 = vdwg.mxu0
    %v1599 = vld [vmem:[#allocation2 + $0x30] sm:$0x3]
    %v1600 = vld [vmem:[#allocation2 + $0x8] sm:$0x3]
    %v1601 = vadd.f32 %v1596, %v1599
    %v1602 = vadd.f32 %v1596, %v1600
    %v1603 = vxor.u32 %v1601, 2147483648
    %v1604 = vmul.f32 %v1603, 1.442695
    %v1605 = vpow.pop %v1604
    %v1606 = vadd.f32 %v1605, 1.0
    %v1607 = vrcp.pop %v1606
    %v1608 = vmul.f32 1.0, %v1607
    %v1609 = vtanh.pop %v1601
    %v1610 = vxor.u32 %v1602, 2147483648
    %v1611 = vmul.f32 %v1610, 1.442695
    %v1612 = vpow.pop %v1611
    %v1613 = vadd.f32 %v1612, 1.0
    %v1614 = vrcp.pop %v1613
    %v1615 = vmul.f32 1.0, %v1614
    %v1616 = vtanh.pop %v1602
    %v1617 = vmul.f32 %v1608, %v1488
    %1619 = vrot.lane.b32.xlu0 %v1609, 96
    %v1620 = vpop.permute.xlu0 %1619
    %v1622 = vmul.f32 %v1608, %v1620
    %1624 = vrot.lane.b32.xlu0 %v1622, 16
    %v1625 = vpop.permute.xlu0 %1624
    %v1627 = vadd.f32 %v1617, %v1625
    %v1628 = vmul.f32 %v1615, %v1499
    %1630 = vrot.lane.b32.xlu0 %v1616, 96
    %v1631 = vpop.permute.xlu0 %1630
    %v1633 = vmul.f32 %v1615, %v1631
    %1635 = vrot.lane.b32.xlu0 %v1633, 16
    %v1636 = vpop.permute.xlu0 %1635
    %v1638 = vadd.f32 %v1628, %v1636
    %v1639 = vtanh.pop %v1627
    %1641 = vrot.lane.b32.xlu0 %v1639, 32
    %v1642 = vpop.permute.xlu0 %1641
    %v1644 = vmul.f32 %v1608, %v1642
    %v1645 = vtanh.pop %v1638
    %1647 = vrot.lane.b32.xlu0 %v1645, 32
    %v1648 = vpop.permute.xlu0 %1647
    %v1650 = vmul.f32 %v1615, %v1648
    %1652 = vrot.lane.b32.xlu0 %v1644, 80
    %v1653 = vpop.permute.xlu0 %1652
    %1655 = vst.msk [vmem:[#allocation3 + $0x30] sm:$0x3] %vm820, %v1653
    %1657 = vrot.lane.b32.xlu0 %v1650, 16
    %v1658 = vpop.permute.xlu0 %1657
    %1660 = vst.msk [vmem:[#allocation4 + $0x8] sm:$0x3] %vm820, %v1658
    %1661 = vrot.lane.b32.xlu0 %v1650, 32
    %v1662 = vpop.permute.xlu0 %1661
    %v1664 = vsel %vm661, %v1653, %v1662
    %v1666 = vsel %vm575, %v1664, 0
    %1668 = vmatprep.subr.mxu0 0.0
    %1669 = vmatpush1.msra.mxu0 0.0
    %1670 = vmatprep.subr.mxu0 0.0
    %1671 = vmatpush1.msra.mxu0 0.0
    %1672 = vmatprep.subr.mxu0 0.0
    %1673 = vmatpush1.msra.mxu0 0.0
    %1674 = vmatprep.subr.mxu0 0.0
    %1675 = vmatpush1.msra.mxu0 0.0
    %1676 = vmatprep.subr.mxu0 0.0
    %1677 = vmatpush1.msra.mxu0 0.0
    %1678 = vmatprep.subr.mxu0 0.0
    %1679 = vmatpush1.msra.mxu0 0.0
    %1680 = vmatprep.subr.mxu0 0.0
    %1681 = vmatpush1.msra.mxu0 0.0
    %1682 = vmatprep.subr.mxu0 0.0
    %1683 = vmatpush1.msra.mxu0 0.0
    %1684 = vmatprep.subr.mxu0 0.0
    %1685 = vmatpush1.msra.mxu0 0.0
    %1686 = vmatprep.subr.mxu0 0.0
    %1687 = vmatpush1.msra.mxu0 0.0
    %1688 = vmatprep.subr.mxu0 0.0
    %1689 = vmatpush1.msra.mxu0 0.0
    %1690 = vmatprep.subr.mxu0 0.0
    %1691 = vmatpush1.msra.mxu0 0.0
    %1692 = vmatprep.subr.mxu0 0.0
    %1693 = vmatpush1.msra.mxu0 %v681
    %1694 = vmatprep.subr.mxu0 0.0
    %1695 = vmatpush1.msra.mxu0 %v680
    %1696 = vmatprep.subr.mxu0 0.0
    %1697 = vmatpush1.msra.mxu0 %v679
    %1698 = vmatprep.subr.mxu0 0.0
    %1699 = vmatpush1.msra.mxu0 %v678
    %1700 = vmatprep.subr.mxu0 0.0
    %1701 = vmatpush2.msra.mxu0 0.0
    %1702 = vmatprep.subr.mxu0 0.0
    %1703 = vmatpush2.msra.mxu0 0.0
    %1704 = vmatprep.subr.mxu0 0.0
    %1705 = vmatpush2.msra.mxu0 0.0
    %1706 = vmatprep.subr.mxu0 0.0
    %1707 = vmatpush2.msra.mxu0 0.0
    %1708 = vmatprep.subr.mxu0 0.0
    %1709 = vmatpush2.msra.mxu0 0.0
    %1710 = vmatprep.subr.mxu0 0.0
    %1711 = vmatpush2.msra.mxu0 0.0
    %1712 = vmatprep.subr.mxu0 0.0
    %1713 = vmatpush2.msra.mxu0 0.0
    %1714 = vmatprep.subr.mxu0 0.0
    %1715 = vmatpush2.msra.mxu0 0.0
    %1716 = vmatprep.subr.mxu0 0.0
    %1717 = vmatpush2.msra.mxu0 0.0
    %1718 = vmatprep.subr.mxu0 0.0
    %1719 = vmatpush2.msra.mxu0 0.0
    %1720 = vmatprep.subr.mxu0 0.0
    %1721 = vmatpush2.msra.mxu0 0.0
    %1722 = vmatprep.subr.mxu0 0.0
    %1723 = vmatpush2.msra.mxu0 0.0
    %1724 = vmatprep.subr.mxu0 0.0
    %1725 = vmatpush2.msra.mxu0 0.0
    %1726 = vmatprep.subr.mxu0 0.0
    %1727 = vmatpush2.msra.mxu0 0.0
    %1728 = vmatprep.subr.mxu0 0.0
    %1729 = vmatpush2.msra.mxu0 0.0
    %1730 = vmatprep.subr.mxu0 0.0
    %1731 = vmatpush2.msra.mxu0 0.0
    %1732 = vmatprep.mubr.f32.mxu0 0.0
    %1733 = vmatmul.mubr.f32.gmra.mxu0 %v1666
    %v1734 = vpop.f32.mrf.mxu0
    %v1735 = vadd.f32 0.0, %v1734
    %v1736 = vpop.f32.mrf.mxu0
    %1737 = vdwg.mxu0
    %v1738 = vld [vmem:[#allocation2 + $0x38] sm:$0x3]
    %v1739 = vld [vmem:[#allocation2] sm:$0x3]
    %v1740 = vadd.f32 %v1735, %v1738
    %v1741 = vadd.f32 %v1735, %v1739
    %v1742 = vxor.u32 %v1740, 2147483648
    %v1743 = vmul.f32 %v1742, 1.442695
    %v1744 = vpow.pop %v1743
    %v1745 = vadd.f32 %v1744, 1.0
    %v1746 = vrcp.pop %v1745
    %v1747 = vmul.f32 1.0, %v1746
    %v1748 = vtanh.pop %v1740
    %v1749 = vxor.u32 %v1741, 2147483648
    %v1750 = vmul.f32 %v1749, 1.442695
    %v1751 = vpow.pop %v1750
    %v1752 = vadd.f32 %v1751, 1.0
    %v1753 = vrcp.pop %v1752
    %v1754 = vmul.f32 1.0, %v1753
    %v1755 = vtanh.pop %v1741
    %v1756 = vmul.f32 %v1747, %v1627
    %1758 = vrot.lane.b32.xlu0 %v1748, 96
    %v1759 = vpop.permute.xlu0 %1758
    %v1761 = vmul.f32 %v1747, %v1759
    %1763 = vrot.lane.b32.xlu0 %v1761, 16
    %v1764 = vpop.permute.xlu0 %1763
    %v1766 = vadd.f32 %v1756, %v1764
    %v1767 = vmul.f32 %v1754, %v1638
    %1769 = vrot.lane.b32.xlu0 %v1755, 96
    %v1770 = vpop.permute.xlu0 %1769
    %v1772 = vmul.f32 %v1754, %v1770
    %1774 = vrot.lane.b32.xlu0 %v1772, 16
    %v1775 = vpop.permute.xlu0 %1774
    %v1777 = vadd.f32 %v1767, %v1775
    %v1778 = vtanh.pop %v1766
    %1780 = vrot.lane.b32.xlu0 %v1778, 32
    %v1781 = vpop.permute.xlu0 %1780
    %v1783 = vmul.f32 %v1747, %v1781
    %v1784 = vtanh.pop %v1777
    %1786 = vrot.lane.b32.xlu0 %v1784, 32
    %v1787 = vpop.permute.xlu0 %1786
    %v1789 = vmul.f32 %v1754, %v1787
    %1791 = vrot.lane.b32.xlu0 %v1783, 80
    %v1792 = vpop.permute.xlu0 %1791
    %1794 = vst.msk [vmem:[#allocation3 + $0x38] sm:$0x3] %vm820, %v1792
    %1796 = vrot.lane.b32.xlu0 %v1789, 16
    %v1797 = vpop.permute.xlu0 %1796
    %1799 = vst.msk [vmem:[#allocation4] sm:$0x3] %vm820, %v1797
    %v1800 = vld [vmem:[#allocation3] sm:$0xff]
    %v1801 = vld [vmem:[#allocation3 + $0x8] sm:$0xff]
    %v1802 = vld [vmem:[#allocation3 + $0x10] sm:$0xff]
    %v1803 = vld [vmem:[#allocation3 + $0x18] sm:$0xff]
    %v1804 = vld [vmem:[#allocation3 + $0x20] sm:$0xff]
    %v1805 = vld [vmem:[#allocation3 + $0x28] sm:$0xff]
    %v1806 = vld [vmem:[#allocation3 + $0x30] sm:$0xff]
    %v1807 = vld [vmem:[#allocation3 + $0x38] sm:$0xff]
    %v1808 = vld [vmem:[#allocation4] sm:$0xff]
    %v1809 = vld [vmem:[#allocation4 + $0x8] sm:$0xff]
    %v1810 = vld [vmem:[#allocation4 + $0x10] sm:$0xff]
    %v1811 = vld [vmem:[#allocation4 + $0x18] sm:$0xff]
    %v1812 = vld [vmem:[#allocation4 + $0x20] sm:$0xff]
    %v1813 = vld [vmem:[#allocation4 + $0x28] sm:$0xff]
    %v1814 = vld [vmem:[#allocation4 + $0x30] sm:$0xff]
    %v1815 = vld [vmem:[#allocation4 + $0x38] sm:$0xff]
    %1824 = vrot.lane.b32.xlu0 %v1808, 16
    %v1825 = vpop.permute.xlu0 %1824
    %1826 = vrot.lane.b32.xlu0 %v1809, 16
    %v1827 = vpop.permute.xlu0 %1826
    %1828 = vrot.lane.b32.xlu0 %v1810, 16
    %v1829 = vpop.permute.xlu0 %1828
    %1830 = vrot.lane.b32.xlu0 %v1811, 16
    %v1831 = vpop.permute.xlu0 %1830
    %1832 = vrot.lane.b32.xlu0 %v1812, 16
    %v1833 = vpop.permute.xlu0 %1832
    %1834 = vrot.lane.b32.xlu0 %v1813, 16
    %v1835 = vpop.permute.xlu0 %1834
    %1836 = vrot.lane.b32.xlu0 %v1814, 16
    %v1837 = vpop.permute.xlu0 %1836
    %1838 = vrot.lane.b32.xlu0 %v1815, 16
    %v1839 = vpop.permute.xlu0 %1838
    %v1848 = vsel %vm661, %v1800, %v1825
    %v1849 = vsel %vm661, %v1801, %v1827
    %v1850 = vsel %vm661, %v1802, %v1829
    %v1851 = vsel %vm661, %v1803, %v1831
    %v1852 = vsel %vm661, %v1804, %v1833
    %v1853 = vsel %vm661, %v1805, %v1835
    %v1854 = vsel %vm661, %v1806, %v1837
    %v1855 = vsel %vm661, %v1807, %v1839
    %v1856 = vtanh.pop %v1848
    %v1857 = vtanh.pop %v1849
    %v1858 = vtanh.pop %v1850
    %v1859 = vtanh.pop %v1851
    %v1860 = vtanh.pop %v1852
    %v1861 = vtanh.pop %v1853
    %v1862 = vtanh.pop %v1854
    %v1863 = vtanh.pop %v1855
    %v1864 = vld [vmem:[%s2] sm:$0xff]
    %v1865 = vld [vmem:[%s2 + $0x8] sm:$0xff]
    %v1866 = vld [vmem:[%s2 + $0x10] sm:$0xff]
    %v1867 = vld [vmem:[%s2 + $0x18] sm:$0xff]
    %v1868 = vld [vmem:[%s2 + $0x20] sm:$0xff]
    %v1869 = vld [vmem:[%s2 + $0x28] sm:$0xff]
    %v1870 = vld [vmem:[%s2 + $0x30] sm:$0xff]
    %v1871 = vld [vmem:[%s2 + $0x38] sm:$0xff]
    %v1872 = vld [vmem:[%s7 + $0x58] sm:$0xf]
    %v1873 = vld [vmem:[%s7 + $0x5c] sm:$0xf]
    %v1874 = vld [vmem:[%s7 + $0x60] sm:$0xf]
    %v1875 = vld [vmem:[%s7 + $0x64] sm:$0xf]
    %v1876 = vpack.c.bf16 %v1857, %v1856
    %v1877 = vpack.c.bf16 %v1859, %v1858
    %v1878 = vpack.c.bf16 %v1861, %v1860
    %v1879 = vpack.c.bf16 %v1863, %v1862
    %v1880 = vld [vmem:[%s7 + $0x68] sm:$0xf]
    %v1881 = vld [vmem:[%s7 + $0x6c] sm:$0xf]
    %v1882 = vld [vmem:[%s7 + $0x70] sm:$0xf]
    %v1883 = vld [vmem:[%s7 + $0x74] sm:$0xf]
    %v1884 = vpack.c.bf16 %v1865, %v1864
    %v1885 = vpack.c.bf16 %v1867, %v1866
    %v1886 = vpack.c.bf16 %v1869, %v1868
    %v1887 = vpack.c.bf16 %v1871, %v1870
    %v1892 = vunpack.c.l.b16 %v1880
    %v1893 = vunpack.c.l.b16 %v1881
    %v1894 = vunpack.c.l.b16 %v1882
    %v1895 = vunpack.c.l.b16 %v1883
    %v1896 = vpack.c.b16 %v1893, %v1892
    %v1897 = vpack.c.b16 %v1895, %v1894
    %v1901 = vsel %vm575, %v1884, 0
    %v1904 = vsel %vm575, %v1885, 0
    %v1907 = vsel %vm575, %v1886, 0
    %v1910 = vsel %vm575, %v1887, 0
    %1912 = vmatprep.subr.bf16.mxu0 0
    %1913 = vmatpush1.bf16.msra.mxu0 0
    %1914 = vmatprep.subr.bf16.mxu0 0
    %1915 = vmatpush1.bf16.msra.mxu0 0
    %1916 = vmatprep.subr.bf16.mxu0 0
    %1917 = vmatpush1.bf16.msra.mxu0 0
    %1918 = vmatprep.subr.bf16.mxu0 0
    %1919 = vmatpush1.bf16.msra.mxu0 0
    %1920 = vmatprep.subr.bf16.mxu0 0
    %1921 = vmatpush1.bf16.msra.mxu0 0
    %1922 = vmatprep.subr.bf16.mxu0 0
    %1923 = vmatpush1.bf16.msra.mxu0 0
    %1924 = vmatprep.subr.bf16.mxu0 0
    %1925 = vmatpush1.bf16.msra.mxu0 %v1897
    %1926 = vmatprep.subr.bf16.mxu0 0
    %1927 = vmatpush1.bf16.msra.mxu0 %v1896
    %1928 = vmatprep.subr.bf16.mxu0 0
    %1929 = vmatpush2.bf16.msra.mxu0 0
    %1930 = vmatprep.subr.bf16.mxu0 0
    %1931 = vmatpush2.bf16.msra.mxu0 0
    %1932 = vmatprep.subr.bf16.mxu0 0
    %1933 = vmatpush2.bf16.msra.mxu0 0
    %1934 = vmatprep.subr.bf16.mxu0 0
    %1935 = vmatpush2.bf16.msra.mxu0 0
    %1936 = vmatprep.subr.bf16.mxu0 0
    %1937 = vmatpush2.bf16.msra.mxu0 0
    %1938 = vmatprep.subr.bf16.mxu0 0
    %1939 = vmatpush2.bf16.msra.mxu0 0
    %1940 = vmatprep.subr.bf16.mxu0 0
    %1941 = vmatpush2.bf16.msra.mxu0 0
    %1942 = vmatprep.subr.bf16.mxu0 0
    %1943 = vmatpush2.bf16.msra.mxu0 0
    %1944 = vmatprep.mubr.bf16.mxu0 0
    %1945 = vmatmul.mubr.bf16.gmra.mxu0 %v1901
    %v1946 = vpop.f32.mrf.mxu0
    %v1947 = vadd.f32 0.0, %v1946
    %v1948 = vpop.f32.mrf.mxu0
    %v1949 = vpop.f32.mrf.mxu0
    %v1950 = vadd.f32 0.0, %v1949
    %v1951 = vpop.f32.mrf.mxu0
    %1952 = vmatprep.mubr.bf16.mxu0 0
    %1953 = vmatmul.mubr.bf16.gmra.mxu0 %v1904
    %v1954 = vpop.f32.mrf.mxu0
    %v1955 = vadd.f32 0.0, %v1954
    %v1956 = vpop.f32.mrf.mxu0
    %v1957 = vpop.f32.mrf.mxu0
    %v1958 = vadd.f32 0.0, %v1957
    %v1959 = vpop.f32.mrf.mxu0
    %1960 = vmatprep.mubr.bf16.mxu0 0
    %1961 = vmatmul.mubr.bf16.gmra.mxu0 %v1907
    %v1962 = vpop.f32.mrf.mxu0
    %v1963 = vadd.f32 0.0, %v1962
    %v1964 = vpop.f32.mrf.mxu0
    %v1965 = vpop.f32.mrf.mxu0
    %v1966 = vadd.f32 0.0, %v1965
    %v1967 = vpop.f32.mrf.mxu0
    %1968 = vmatprep.mubr.bf16.mxu0 0
    %1969 = vmatmul.mubr.bf16.gmra.mxu0 %v1910
    %v1970 = vpop.f32.mrf.mxu0
    %v1971 = vadd.f32 0.0, %v1970
    %v1972 = vpop.f32.mrf.mxu0
    %v1973 = vpop.f32.mrf.mxu0
    %v1974 = vadd.f32 0.0, %v1973
    %v1975 = vpop.f32.mrf.mxu0
    %1976 = vdwg.mxu0
    %v1981 = vunpack.c.l.b16 %v1872
    %v1982 = vunpack.c.l.b16 %v1873
    %v1983 = vunpack.c.l.b16 %v1874
    %v1984 = vunpack.c.l.b16 %v1875
    %v1985 = vpack.c.b16 %v1982, %v1981
    %v1986 = vpack.c.b16 %v1984, %v1983
    %v1990 = vsel %vm575, %v1876, 0
    %v1993 = vsel %vm575, %v1877, 0
    %v1996 = vsel %vm575, %v1878, 0
    %v1999 = vsel %vm575, %v1879, 0
    %2001 = vmatprep.subr.bf16.mxu0 0
    %2002 = vmatpush1.bf16.msra.mxu0 0
    %2003 = vmatprep.subr.bf16.mxu0 0
    %2004 = vmatpush1.bf16.msra.mxu0 0
    %2005 = vmatprep.subr.bf16.mxu0 0
    %2006 = vmatpush1.bf16.msra.mxu0 0
    %2007 = vmatprep.subr.bf16.mxu0 0
    %2008 = vmatpush1.bf16.msra.mxu0 0
    %2009 = vmatprep.subr.bf16.mxu0 0
    %2010 = vmatpush1.bf16.msra.mxu0 0
    %2011 = vmatprep.subr.bf16.mxu0 0
    %2012 = vmatpush1.bf16.msra.mxu0 0
    %2013 = vmatprep.subr.bf16.mxu0 0
    %2014 = vmatpush1.bf16.msra.mxu0 %v1986
    %2015 = vmatprep.subr.bf16.mxu0 0
    %2016 = vmatpush1.bf16.msra.mxu0 %v1985
    %2017 = vmatprep.subr.bf16.mxu0 0
    %2018 = vmatpush2.bf16.msra.mxu0 0
    %2019 = vmatprep.subr.bf16.mxu0 0
    %2020 = vmatpush2.bf16.msra.mxu0 0
    %2021 = vmatprep.subr.bf16.mxu0 0
    %2022 = vmatpush2.bf16.msra.mxu0 0
    %2023 = vmatprep.subr.bf16.mxu0 0
    %2024 = vmatpush2.bf16.msra.mxu0 0
    %2025 = vmatprep.subr.bf16.mxu0 0
    %2026 = vmatpush2.bf16.msra.mxu0 0
    %2027 = vmatprep.subr.bf16.mxu0 0
    %2028 = vmatpush2.bf16.msra.mxu0 0
    %2029 = vmatprep.subr.bf16.mxu0 0
    %2030 = vmatpush2.bf16.msra.mxu0 0
    %2031 = vmatprep.subr.bf16.mxu0 0
    %2032 = vmatpush2.bf16.msra.mxu0 0
    %2033 = vmatprep.mubr.bf16.mxu0 0
    %2034 = vmatmul.mubr.bf16.gmra.mxu0 %v1990
    %v2035 = vpop.f32.mrf.mxu0
    %v2036 = vadd.f32 %v1947, %v2035
    %v2037 = vpop.f32.mrf.mxu0
    %v2038 = vpop.f32.mrf.mxu0
    %v2039 = vadd.f32 %v1950, %v2038
    %v2040 = vpop.f32.mrf.mxu0
    %2041 = vmatprep.mubr.bf16.mxu0 0
    %2042 = vmatmul.mubr.bf16.gmra.mxu0 %v1993
    %v2043 = vpop.f32.mrf.mxu0
    %v2044 = vadd.f32 %v1955, %v2043
    %v2045 = vpop.f32.mrf.mxu0
    %v2046 = vpop.f32.mrf.mxu0
    %v2047 = vadd.f32 %v1958, %v2046
    %v2048 = vpop.f32.mrf.mxu0
    %2049 = vmatprep.mubr.bf16.mxu0 0
    %2050 = vmatmul.mubr.bf16.gmra.mxu0 %v1996
    %v2051 = vpop.f32.mrf.mxu0
    %v2052 = vadd.f32 %v1963, %v2051
    %v2053 = vpop.f32.mrf.mxu0
    %v2054 = vpop.f32.mrf.mxu0
    %v2055 = vadd.f32 %v1966, %v2054
    %v2056 = vpop.f32.mrf.mxu0
    %2057 = vmatprep.mubr.bf16.mxu0 0
    %2058 = vmatmul.mubr.bf16.gmra.mxu0 %v1999
    %v2059 = vpop.f32.mrf.mxu0
    %v2060 = vadd.f32 %v1971, %v2059
    %v2061 = vpop.f32.mrf.mxu0
    %v2062 = vpop.f32.mrf.mxu0
    %v2063 = vadd.f32 %v1974, %v2062
    %v2064 = vpop.f32.mrf.mxu0
    %2065 = vdwg.mxu0
    %v2066 = vld [vmem:[%s8 + $0x58] sm:$0x1]
    %v2067 = vlaneseq
    %v2068 = vshrl.u32 %v2067, 7
    %v2069 = vsub.s32 0, %v2068
    %v2070 = vrot.slane %v2066, %v2069
    %v2071 = vadd.f32 %v2036, %v2070
    %v2072 = vadd.f32 %v2039, %v2070
    %v2073 = vadd.f32 %v2044, %v2070
    %v2074 = vadd.f32 %v2047, %v2070
    %v2075 = vadd.f32 %v2052, %v2070
    %v2076 = vadd.f32 %v2055, %v2070
    %v2077 = vadd.f32 %v2060, %v2070
    %v2078 = vadd.f32 %v2063, %v2070
    %v2079 = vxor.u32 %v2071, 2147483648
    %v2080 = vxor.u32 %v2072, 2147483648
    %v2081 = vxor.u32 %v2073, 2147483648
    %v2082 = vxor.u32 %v2074, 2147483648
    %v2083 = vxor.u32 %v2075, 2147483648
    %v2084 = vxor.u32 %v2076, 2147483648
    %v2085 = vxor.u32 %v2077, 2147483648
    %v2086 = vxor.u32 %v2078, 2147483648
    %v2087 = vmul.f32 %v2079, 1.442695
    %v2088 = vpow.pop %v2087
    %v2089 = vmul.f32 %v2080, 1.442695
    %v2090 = vpow.pop %v2089
    %v2091 = vmul.f32 %v2081, 1.442695
    %v2092 = vpow.pop %v2091
    %v2093 = vmul.f32 %v2082, 1.442695
    %v2094 = vpow.pop %v2093
    %v2095 = vmul.f32 %v2083, 1.442695
    %v2096 = vpow.pop %v2095
    %v2097 = vmul.f32 %v2084, 1.442695
    %v2098 = vpow.pop %v2097
    %v2099 = vmul.f32 %v2085, 1.442695
    %v2100 = vpow.pop %v2099
    %v2101 = vmul.f32 %v2086, 1.442695
    %v2102 = vpow.pop %v2101
    %v2103 = vadd.f32 %v2088, 1.0
    %v2104 = vadd.f32 %v2090, 1.0
    %v2105 = vadd.f32 %v2092, 1.0
    %v2106 = vadd.f32 %v2094, 1.0
    %v2107 = vadd.f32 %v2096, 1.0
    %v2108 = vadd.f32 %v2098, 1.0
    %v2109 = vadd.f32 %v2100, 1.0
    %v2110 = vadd.f32 %v2102, 1.0
    %v2111 = vrcp.pop %v2103
    %v2112 = vmul.f32 1.0, %v2111
    %v2113 = vrcp.pop %v2104
    %v2114 = vmul.f32 1.0, %v2113
    %v2115 = vrcp.pop %v2105
    %v2116 = vmul.f32 1.0, %v2115
    %v2117 = vrcp.pop %v2106
    %v2118 = vmul.f32 1.0, %v2117
    %v2119 = vrcp.pop %v2107
    %v2120 = vmul.f32 1.0, %v2119
    %v2121 = vrcp.pop %v2108
    %v2122 = vmul.f32 1.0, %v2121
    %v2123 = vrcp.pop %v2109
    %v2124 = vmul.f32 1.0, %v2123
    %v2125 = vrcp.pop %v2110
    %v2126 = vmul.f32 1.0, %v2125
    %v2127 = vmul.f32 %v2112, %v1856
    %v2128 = vmul.f32 %v2114, %v1857
    %v2129 = vmul.f32 %v2116, %v1858
    %v2130 = vmul.f32 %v2118, %v1859
    %v2131 = vmul.f32 %v2120, %v1860
    %v2132 = vmul.f32 %v2122, %v1861
    %v2133 = vmul.f32 %v2124, %v1862
    %v2134 = vmul.f32 %v2126, %v1863
    %v2135 = vsub.f32 1.0, %v2112
    %v2136 = vsub.f32 1.0, %v2114
    %v2137 = vsub.f32 1.0, %v2116
    %v2138 = vsub.f32 1.0, %v2118
    %v2139 = vsub.f32 1.0, %v2120
    %v2140 = vsub.f32 1.0, %v2122
    %v2141 = vsub.f32 1.0, %v2124
    %v2142 = vsub.f32 1.0, %v2126
    %v2143 = vmul.f32 %v2135, %v1864
    %v2144 = vmul.f32 %v2136, %v1865
    %v2145 = vmul.f32 %v2137, %v1866
    %v2146 = vmul.f32 %v2138, %v1867
    %v2147 = vmul.f32 %v2139, %v1868
    %v2148 = vmul.f32 %v2140, %v1869
    %v2149 = vmul.f32 %v2141, %v1870
    %v2150 = vmul.f32 %v2142, %v1871
    %v2151 = vadd.f32 %v2127, %v2143
    %v2152 = vadd.f32 %v2128, %v2144
    %v2153 = vadd.f32 %v2129, %v2145
    %v2154 = vadd.f32 %v2130, %v2146
    %v2155 = vadd.f32 %v2131, %v2147
    %v2156 = vadd.f32 %v2132, %v2148
    %v2157 = vadd.f32 %v2133, %v2149
    %v2158 = vadd.f32 %v2134, %v2150
    %v2159 = vld [vmem:[%s7 + $0x78] sm:$0xf]
    %v2160 = vld [vmem:[%s7 + $0x7c] sm:$0xf]
    %v2161 = vld [vmem:[%s7 + $0x80] sm:$0xf]
    %v2162 = vld [vmem:[%s7 + $0x84] sm:$0xf]
    %v2163 = vpack.c.bf16 %v2152, %v2151
    %v2164 = vpack.c.bf16 %v2154, %v2153
    %v2165 = vpack.c.bf16 %v2156, %v2155
    %v2166 = vpack.c.bf16 %v2158, %v2157
    %v2167 = vld [vmem:[%s8 + $0x60] sm:$0x1]
    %v2168 = vlaneseq
    %v2169 = vshrl.u32 %v2168, 7
    %v2170 = vsub.s32 0, %v2169
    %v2171 = vrot.slane %v2167, %v2170
    %v2176 = vunpack.c.l.b16 %v2159
    %v2177 = vunpack.c.l.b16 %v2160
    %v2178 = vunpack.c.l.b16 %v2161
    %v2179 = vunpack.c.l.b16 %v2162
    %v2180 = vpack.c.b16 %v2177, %v2176
    %v2181 = vpack.c.b16 %v2179, %v2178
    %v2185 = vsel %vm575, %v2163, 0
    %v2188 = vsel %vm575, %v2164, 0
    %v2191 = vsel %vm575, %v2165, 0
    %v2194 = vsel %vm575, %v2166, 0
    %2196 = vmatprep.subr.bf16.mxu0 0
    %2197 = vmatpush1.bf16.msra.mxu0 0
    %2198 = vmatprep.subr.bf16.mxu0 0
    %2199 = vmatpush1.bf16.msra.mxu0 0
    %2200 = vmatprep.subr.bf16.mxu0 0
    %2201 = vmatpush1.bf16.msra.mxu0 0
    %2202 = vmatprep.subr.bf16.mxu0 0
    %2203 = vmatpush1.bf16.msra.mxu0 0
    %2204 = vmatprep.subr.bf16.mxu0 0
    %2205 = vmatpush1.bf16.msra.mxu0 0
    %2206 = vmatprep.subr.bf16.mxu0 0
    %2207 = vmatpush1.bf16.msra.mxu0 0
    %2208 = vmatprep.subr.bf16.mxu0 0
    %2209 = vmatpush1.bf16.msra.mxu0 %v2181
    %2210 = vmatprep.subr.bf16.mxu0 0
    %2211 = vmatpush1.bf16.msra.mxu0 %v2180
    %2212 = vmatprep.subr.bf16.mxu0 0
    %2213 = vmatpush2.bf16.msra.mxu0 0
    %2214 = vmatprep.subr.bf16.mxu0 0
    %2215 = vmatpush2.bf16.msra.mxu0 0
    %2216 = vmatprep.subr.bf16.mxu0 0
    %2217 = vmatpush2.bf16.msra.mxu0 0
    %2218 = vmatprep.subr.bf16.mxu0 0
    %2219 = vmatpush2.bf16.msra.mxu0 0
    %2220 = vmatprep.subr.bf16.mxu0 0
    %2221 = vmatpush2.bf16.msra.mxu0 0
    %2222 = vmatprep.subr.bf16.mxu0 0
    %2223 = vmatpush2.bf16.msra.mxu0 0
    %2224 = vmatprep.subr.bf16.mxu0 0
    %2225 = vmatpush2.bf16.msra.mxu0 0
    %2226 = vmatprep.subr.bf16.mxu0 0
    %2227 = vmatpush2.bf16.msra.mxu0 0
    %2228 = vmatprep.mubr.bf16.mxu0 0
    %2229 = vmatmul.mubr.bf16.gmra.mxu0 %v2185
    %v2230 = vpop.f32.mrf.mxu0
    %v2231 = vadd.f32 %v2171, %v2230
    %v2232 = vpop.f32.mrf.mxu0
    %v2233 = vpop.f32.mrf.mxu0
    %v2234 = vadd.f32 %v2171, %v2233
    %v2235 = vpop.f32.mrf.mxu0
    %2236 = vmatprep.mubr.bf16.mxu0 0
    %2237 = vmatmul.mubr.bf16.gmra.mxu0 %v2188
    %v2238 = vpop.f32.mrf.mxu0
    %v2239 = vadd.f32 %v2171, %v2238
    %v2240 = vpop.f32.mrf.mxu0
    %v2241 = vpop.f32.mrf.mxu0
    %v2242 = vadd.f32 %v2171, %v2241
    %v2243 = vpop.f32.mrf.mxu0
    %2244 = vmatprep.mubr.bf16.mxu0 0
    %2245 = vmatmul.mubr.bf16.gmra.mxu0 %v2191
    %v2246 = vpop.f32.mrf.mxu0
    %v2247 = vadd.f32 %v2171, %v2246
    %v2248 = vpop.f32.mrf.mxu0
    %v2249 = vpop.f32.mrf.mxu0
    %v2250 = vadd.f32 %v2171, %v2249
    %v2251 = vpop.f32.mrf.mxu0
    %2252 = vmatprep.mubr.bf16.mxu0 0
    %2253 = vmatmul.mubr.bf16.gmra.mxu0 %v2194
    %v2254 = vpop.f32.mrf.mxu0
    %v2255 = vadd.f32 %v2171, %v2254
    %v2256 = vpop.f32.mrf.mxu0
    %v2257 = vpop.f32.mrf.mxu0
    %v2258 = vadd.f32 %v2171, %v2257
    %v2259 = vpop.f32.mrf.mxu0
    %2260 = vdwg.mxu0
    %v2261 = vld [vmem:[%s7 + $0x88] sm:$0xf]
    %v2262 = vld [vmem:[%s7 + $0x8c] sm:$0xf]
    %v2263 = vld [vmem:[%s7 + $0x90] sm:$0xf]
    %v2264 = vld [vmem:[%s7 + $0x94] sm:$0xf]
    %v2265 = vld [vmem:[%s8 + $0x68] sm:$0x1]
    %v2266 = vlaneseq
    %v2267 = vshrl.u32 %v2266, 7
    %v2268 = vsub.s32 0, %v2267
    %v2269 = vrot.slane %v2265, %v2268
    %v2274 = vunpack.c.l.b16 %v2261
    %v2275 = vunpack.c.l.b16 %v2262
    %v2276 = vunpack.c.l.b16 %v2263
    %v2277 = vunpack.c.l.b16 %v2264
    %v2278 = vpack.c.b16 %v2275, %v2274
    %v2279 = vpack.c.b16 %v2277, %v2276
    %2282 = vmatprep.subr.bf16.mxu0 0
    %2283 = vmatpush1.bf16.msra.mxu0 0
    %2284 = vmatprep.subr.bf16.mxu0 0
    %2285 = vmatpush1.bf16.msra.mxu0 0
    %2286 = vmatprep.subr.bf16.mxu0 0
    %2287 = vmatpush1.bf16.msra.mxu0 0
    %2288 = vmatprep.subr.bf16.mxu0 0
    %2289 = vmatpush1.bf16.msra.mxu0 0
    %2290 = vmatprep.subr.bf16.mxu0 0
    %2291 = vmatpush1.bf16.msra.mxu0 0
    %2292 = vmatprep.subr.bf16.mxu0 0
    %2293 = vmatpush1.bf16.msra.mxu0 0
    %2294 = vmatprep.subr.bf16.mxu0 0
    %2295 = vmatpush1.bf16.msra.mxu0 %v2279
    %2296 = vmatprep.subr.bf16.mxu0 0
    %2297 = vmatpush1.bf16.msra.mxu0 %v2278
    %2298 = vmatprep.subr.bf16.mxu0 0
    %2299 = vmatpush2.bf16.msra.mxu0 0
    %2300 = vmatprep.subr.bf16.mxu0 0
    %2301 = vmatpush2.bf16.msra.mxu0 0
    %2302 = vmatprep.subr.bf16.mxu0 0
    %2303 = vmatpush2.bf16.msra.mxu0 0
    %2304 = vmatprep.subr.bf16.mxu0 0
    %2305 = vmatpush2.bf16.msra.mxu0 0
    %2306 = vmatprep.subr.bf16.mxu0 0
    %2307 = vmatpush2.bf16.msra.mxu0 0
    %2308 = vmatprep.subr.bf16.mxu0 0
    %2309 = vmatpush2.bf16.msra.mxu0 0
    %2310 = vmatprep.subr.bf16.mxu0 0
    %2311 = vmatpush2.bf16.msra.mxu0 0
    %2312 = vmatprep.subr.bf16.mxu0 0
    %2313 = vmatpush2.bf16.msra.mxu0 0
    %2314 = vmatprep.mubr.bf16.mxu0 0
    %2315 = vmatmul.mubr.bf16.gmra.mxu0 %v1990
    %v2316 = vpop.f32.mrf.mxu0
    %v2317 = vadd.f32 %v2269, %v2316
    %v2318 = vpop.f32.mrf.mxu0
    %v2319 = vpop.f32.mrf.mxu0
    %v2320 = vadd.f32 %v2269, %v2319
    %v2321 = vpop.f32.mrf.mxu0
    %2322 = vmatprep.mubr.bf16.mxu0 0
    %2323 = vmatmul.mubr.bf16.gmra.mxu0 %v1993
    %v2324 = vpop.f32.mrf.mxu0
    %v2325 = vadd.f32 %v2269, %v2324
    %v2326 = vpop.f32.mrf.mxu0
    %v2327 = vpop.f32.mrf.mxu0
    %v2328 = vadd.f32 %v2269, %v2327
    %v2329 = vpop.f32.mrf.mxu0
    %2330 = vmatprep.mubr.bf16.mxu0 0
    %2331 = vmatmul.mubr.bf16.gmra.mxu0 %v1996
    %v2332 = vpop.f32.mrf.mxu0
    %v2333 = vadd.f32 %v2269, %v2332
    %v2334 = vpop.f32.mrf.mxu0
    %v2335 = vpop.f32.mrf.mxu0
    %v2336 = vadd.f32 %v2269, %v2335
    %v2337 = vpop.f32.mrf.mxu0
    %2338 = vmatprep.mubr.bf16.mxu0 0
    %2339 = vmatmul.mubr.bf16.gmra.mxu0 %v1999
    %v2340 = vpop.f32.mrf.mxu0
    %v2341 = vadd.f32 %v2269, %v2340
    %v2342 = vpop.f32.mrf.mxu0
    %v2343 = vpop.f32.mrf.mxu0
    %v2344 = vadd.f32 %v2269, %v2343
    %v2345 = vpop.f32.mrf.mxu0
    %2346 = vdwg.mxu0
    %v2347 = vld [vmem:[%s4] sm:$0xff]
    %v2348 = vld [vmem:[%s4 + $0x8] sm:$0xff]
    %v2349 = vld [vmem:[%s4 + $0x10] sm:$0xff]
    %v2350 = vld [vmem:[%s4 + $0x18] sm:$0xff]
    %v2351 = vld [vmem:[%s4 + $0x20] sm:$0xff]
    %v2352 = vld [vmem:[%s4 + $0x28] sm:$0xff]
    %v2353 = vld [vmem:[%s4 + $0x30] sm:$0xff]
    %v2354 = vld [vmem:[%s4 + $0x38] sm:$0xff]
    %v2355 = vpack.c.bf16 %v2320, %v2317
    %v2356 = vpack.c.bf16 %v2328, %v2325
    %v2357 = vpack.c.bf16 %v2336, %v2333
    %v2358 = vpack.c.bf16 %v2344, %v2341
    %2363 = vrot.lane.b32.xlu0 %v2355, 96
    %v2364 = vpop.permute.xlu0 %2363
    %2365 = vrot.lane.b32.xlu0 %v2356, 96
    %v2366 = vpop.permute.xlu0 %2365
    %2367 = vrot.lane.b32.xlu0 %v2357, 96
    %v2368 = vpop.permute.xlu0 %2367
    %2369 = vrot.lane.b32.xlu0 %v2358, 96
    %v2370 = vpop.permute.xlu0 %2369
    %v2372 = vsel %vm362, %v2355, 0
    %v2375 = vsel %vm362, %v2356, 0
    %v2378 = vsel %vm362, %v2357, 0
    %v2381 = vsel %vm362, %v2358, 0
    %v2384 = vsel %vm362, %v2364, 0
    %v2387 = vsel %vm362, %v2366, 0
    %v2390 = vsel %vm362, %v2368, 0
    %v2393 = vsel %vm362, %v2370, 0
    %2395 = vmatprep.subr.bf16.mxu0 0
    %2396 = vmatpush1.bf16.xpose.msra.mxu0 0
    %2397 = vmatprep.subr.bf16.mxu0 0
    %2398 = vmatpush1.bf16.xpose.msra.mxu0 0
    %2399 = vmatprep.subr.bf16.mxu0 0
    %2400 = vmatpush1.bf16.xpose.msra.mxu0 0
    %2401 = vmatprep.subr.bf16.mxu0 0
    %2402 = vmatpush1.bf16.xpose.msra.mxu0 0
    %2403 = vmatprep.subr.bf16.mxu0 0
    %2404 = vmatpush1.bf16.xpose.msra.mxu0 %v2393
    %2405 = vmatprep.subr.bf16.mxu0 0
    %2406 = vmatpush1.bf16.xpose.msra.mxu0 %v2390
    %2407 = vmatprep.subr.bf16.mxu0 0
    %2408 = vmatpush1.bf16.xpose.msra.mxu0 %v2387
    %2409 = vmatprep.subr.bf16.mxu0 0
    %2410 = vmatpush1.bf16.xpose.msra.mxu0 %v2384
    %2411 = vmatprep.subr.bf16.mxu0 0
    %2412 = vmatpush2.bf16.xpose.msra.mxu0 0
    %2413 = vmatprep.subr.bf16.mxu0 0
    %2414 = vmatpush2.bf16.xpose.msra.mxu0 0
    %2415 = vmatprep.subr.bf16.mxu0 0
    %2416 = vmatpush2.bf16.xpose.msra.mxu0 0
    %2417 = vmatprep.subr.bf16.mxu0 0
    %2418 = vmatpush2.bf16.xpose.msra.mxu0 0
    %2419 = vmatprep.subr.bf16.mxu0 0
    %2420 = vmatpush2.bf16.xpose.msra.mxu0 0
    %2421 = vmatprep.subr.bf16.mxu0 0
    %2422 = vmatpush2.bf16.xpose.msra.mxu0 0
    %2423 = vmatprep.subr.bf16.mxu0 0
    %2424 = vmatpush2.bf16.xpose.msra.mxu0 0
    %2425 = vmatprep.subr.bf16.mxu0 0
    %2426 = vmatpush2.bf16.xpose.msra.mxu0 0
    %2427 = vmatprep.mubr.bf16.mxu0 0
    %2428 = vmatmul.mubr.bf16.gmra.mxu0 %v2372
    %v2429 = vpop.f32.mrf.mxu0
    %v2430 = vadd.f32 0.0, %v2429
    %v2431 = vpop.f32.mrf.mxu0
    %v2432 = vpop.f32.mrf.mxu0
    %v2433 = vadd.f32 0.0, %v2432
    %v2434 = vpop.f32.mrf.mxu0
    %2435 = vmatprep.mubr.bf16.mxu0 0
    %2436 = vmatmul.mubr.bf16.gmra.mxu0 %v2375
    %v2437 = vpop.f32.mrf.mxu0
    %v2438 = vadd.f32 0.0, %v2437
    %v2439 = vpop.f32.mrf.mxu0
    %v2440 = vpop.f32.mrf.mxu0
    %v2441 = vadd.f32 0.0, %v2440
    %v2442 = vpop.f32.mrf.mxu0
    %2443 = vmatprep.mubr.bf16.mxu0 0
    %2444 = vmatmul.mubr.bf16.gmra.mxu0 %v2378
    %v2445 = vpop.f32.mrf.mxu0
    %v2446 = vadd.f32 0.0, %v2445
    %v2447 = vpop.f32.mrf.mxu0
    %v2448 = vpop.f32.mrf.mxu0
    %v2449 = vadd.f32 0.0, %v2448
    %v2450 = vpop.f32.mrf.mxu0
    %2451 = vmatprep.mubr.bf16.mxu0 0
    %2452 = vmatmul.mubr.bf16.gmra.mxu0 %v2381
    %v2453 = vpop.f32.mrf.mxu0
    %v2454 = vadd.f32 0.0, %v2453
    %v2455 = vpop.f32.mrf.mxu0
    %v2456 = vpop.f32.mrf.mxu0
    %v2457 = vadd.f32 0.0, %v2456
    %v2458 = vpop.f32.mrf.mxu0
    %2459 = vdwg.mxu0
    %v2460 = vmul.f32 %v2430, 0.35355338
    %v2461 = vmul.f32 %v2433, 0.35355338
    %v2462 = vmul.f32 %v2438, 0.35355338
    %v2463 = vmul.f32 %v2441, 0.35355338
    %v2464 = vmul.f32 %v2446, 0.35355338
    %v2465 = vmul.f32 %v2449, 0.35355338
    %v2466 = vmul.f32 %v2454, 0.35355338
    %v2467 = vmul.f32 %v2457, 0.35355338
    %v2468 = vadd.f32 %v2460, %v2347
    %v2469 = vadd.f32 %v2461, %v2348
    %v2470 = vadd.f32 %v2462, %v2349
    %v2471 = vadd.f32 %v2463, %v2350
    %v2472 = vadd.f32 %v2464, %v2351
    %v2473 = vadd.f32 %v2465, %v2352
    %v2474 = vadd.f32 %v2466, %v2353
    %v2475 = vadd.f32 %v2467, %v2354
    %vm2476 = vcmask 523264
    %v2477 = vsel %vm2476, %v2468, -inf
    %2478 = vmax.xlane.f32.xlu0 %v2477
    %v2479 = vpop.xlane.xlu0 %2478
    %v2480 = vsel %vm2476, %v2469, -inf
    %2481 = vmax.xlane.f32.xlu0 %v2480
    %v2482 = vpop.xlane.xlu0 %2481
    %v2483 = vsel %vm2476, %v2470, -inf
    %2484 = vmax.xlane.f32.xlu0 %v2483
    %v2485 = vpop.xlane.xlu0 %2484
    %v2486 = vsel %vm2476, %v2471, -inf
    %2487 = vmax.xlane.f32.xlu0 %v2486
    %v2488 = vpop.xlane.xlu0 %2487
    %v2489 = vsel %vm2476, %v2472, -inf
    %2490 = vmax.xlane.f32.xlu0 %v2489
    %v2491 = vpop.xlane.xlu0 %2490
    %v2492 = vsel %vm2476, %v2473, -inf
    %2493 = vmax.xlane.f32.xlu0 %v2492
    %v2494 = vpop.xlane.xlu0 %2493
    %v2495 = vsel %vm2476, %v2474, -inf
    %2496 = vmax.xlane.f32.xlu0 %v2495
    %v2497 = vpop.xlane.xlu0 %2496
    %v2498 = vsel %vm2476, %v2475, -inf
    %2499 = vmax.xlane.f32.xlu0 %v2498
    %v2500 = vpop.xlane.xlu0 %2499
    %v2501 = vsub.f32 %v2468, %v2479
    %v2502 = vsub.f32 %v2469, %v2482
    %v2503 = vsub.f32 %v2470, %v2485
    %v2504 = vsub.f32 %v2471, %v2488
    %v2505 = vsub.f32 %v2472, %v2491
    %v2506 = vsub.f32 %v2473, %v2494
    %v2507 = vsub.f32 %v2474, %v2497
    %v2508 = vsub.f32 %v2475, %v2500
    %v2509 = vmul.f32 %v2501, 1.442695
    %v2510 = vpow.pop %v2509
    %v2511 = vmul.f32 %v2502, 1.442695
    %v2512 = vpow.pop %v2511
    %v2513 = vmul.f32 %v2503, 1.442695
    %v2514 = vpow.pop %v2513
    %v2515 = vmul.f32 %v2504, 1.442695
    %v2516 = vpow.pop %v2515
    %v2517 = vmul.f32 %v2505, 1.442695
    %v2518 = vpow.pop %v2517
    %v2519 = vmul.f32 %v2506, 1.442695
    %v2520 = vpow.pop %v2519
    %v2521 = vmul.f32 %v2507, 1.442695
    %v2522 = vpow.pop %v2521
    %v2523 = vmul.f32 %v2508, 1.442695
    %v2524 = vpow.pop %v2523
    %v2525 = vsel %vm2476, %v2510, 0.0
    %2526 = vadd.xlane.f32.xlu0 %v2525
    %v2527 = vpop.xlane.xlu0 %2526
    %v2528 = vsel %vm2476, %v2512, 0.0
    %2529 = vadd.xlane.f32.xlu0 %v2528
    %v2530 = vpop.xlane.xlu0 %2529
    %v2531 = vsel %vm2476, %v2514, 0.0
    %2532 = vadd.xlane.f32.xlu0 %v2531
    %v2533 = vpop.xlane.xlu0 %2532
    %v2534 = vsel %vm2476, %v2516, 0.0
    %2535 = vadd.xlane.f32.xlu0 %v2534
    %v2536 = vpop.xlane.xlu0 %2535
    %v2537 = vsel %vm2476, %v2518, 0.0
    %2538 = vadd.xlane.f32.xlu0 %v2537
    %v2539 = vpop.xlane.xlu0 %2538
    %v2540 = vsel %vm2476, %v2520, 0.0
    %2541 = vadd.xlane.f32.xlu0 %v2540
    %v2542 = vpop.xlane.xlu0 %2541
    %v2543 = vsel %vm2476, %v2522, 0.0
    %2544 = vadd.xlane.f32.xlu0 %v2543
    %v2545 = vpop.xlane.xlu0 %2544
    %v2546 = vsel %vm2476, %v2524, 0.0
    %2547 = vadd.xlane.f32.xlu0 %v2546
    %v2548 = vpop.xlane.xlu0 %2547
    %v2549 = vrcp.pop %v2527
    %v2550 = vrcp.pop %v2530
    %v2551 = vrcp.pop %v2533
    %v2552 = vrcp.pop %v2536
    %v2553 = vrcp.pop %v2539
    %v2554 = vrcp.pop %v2542
    %v2555 = vrcp.pop %v2545
    %v2556 = vrcp.pop %v2548
    %v2557 = vmul.f32 %v2510, %v2549
    %v2558 = vmul.f32 %v2512, %v2550
    %v2559 = vmul.f32 %v2514, %v2551
    %v2560 = vmul.f32 %v2516, %v2552
    %v2561 = vmul.f32 %v2518, %v2553
    %v2562 = vmul.f32 %v2520, %v2554
    %v2563 = vmul.f32 %v2522, %v2555
    %v2564 = vmul.f32 %v2524, %v2556
    %v2565 = vpack.c.bf16 %v2558, %v2557
    %v2566 = vpack.c.bf16 %v2560, %v2559
    %v2567 = vpack.c.bf16 %v2562, %v2561
    %v2568 = vpack.c.bf16 %v2564, %v2563
    %2569 = vrot.lane.b32.xlu0 %v2355, 64
    %v2570 = vpop.permute.xlu0 %2569
    %2571 = vrot.lane.b32.xlu0 %v2356, 64
    %v2572 = vpop.permute.xlu0 %2571
    %2573 = vrot.lane.b32.xlu0 %v2357, 64
    %v2574 = vpop.permute.xlu0 %2573
    %2575 = vrot.lane.b32.xlu0 %v2358, 64
    %v2576 = vpop.permute.xlu0 %2575
    %v2582 = vsel %vm2476, %v2565, 0
    %v2585 = vsel %vm2476, %v2566, 0
    %v2588 = vsel %vm2476, %v2567, 0
    %v2591 = vsel %vm2476, %v2568, 0
    %2593 = vmatprep.subr.bf16.mxu0 0
    %2594 = vmatpush1.bf16.msra.mxu0 0
    %2595 = vmatprep.subr.bf16.mxu0 0
    %2596 = vmatpush1.bf16.msra.mxu0 0
    %2597 = vmatprep.subr.bf16.mxu0 0
    %2598 = vmatpush1.bf16.msra.mxu0 0
    %2599 = vmatprep.subr.bf16.mxu0 0
    %2600 = vmatpush1.bf16.msra.mxu0 0
    %2601 = vmatprep.subr.bf16.mxu0 0
    %2602 = vmatpush1.bf16.msra.mxu0 %v2576
    %2603 = vmatprep.subr.bf16.mxu0 0
    %2604 = vmatpush1.bf16.msra.mxu0 %v2574
    %2605 = vmatprep.subr.bf16.mxu0 0
    %2606 = vmatpush1.bf16.msra.mxu0 %v2572
    %2607 = vmatprep.subr.bf16.mxu0 0
    %2608 = vmatpush1.bf16.msra.mxu0 %v2570
    %2609 = vmatprep.subr.bf16.mxu0 0
    %2610 = vmatpush2.bf16.msra.mxu0 0
    %2611 = vmatprep.subr.bf16.mxu0 0
    %2612 = vmatpush2.bf16.msra.mxu0 0
    %2613 = vmatprep.subr.bf16.mxu0 0
    %2614 = vmatpush2.bf16.msra.mxu0 0
    %2615 = vmatprep.subr.bf16.mxu0 0
    %2616 = vmatpush2.bf16.msra.mxu0 0
    %2617 = vmatprep.subr.bf16.mxu0 0
    %2618 = vmatpush2.bf16.msra.mxu0 0
    %2619 = vmatprep.subr.bf16.mxu0 0
    %2620 = vmatpush2.bf16.msra.mxu0 0
    %2621 = vmatprep.subr.bf16.mxu0 0
    %2622 = vmatpush2.bf16.msra.mxu0 0
    %2623 = vmatprep.subr.bf16.mxu0 0
    %2624 = vmatpush2.bf16.msra.mxu0 0
    %2625 = vmatprep.mubr.bf16.mxu0 0
    %2626 = vmatmul.mubr.bf16.gmra.mxu0 %v2582
    %v2627 = vpop.f32.mrf.mxu0
    %v2628 = vadd.f32 0.0, %v2627
    %v2629 = vpop.f32.mrf.mxu0
    %v2630 = vpop.f32.mrf.mxu0
    %v2631 = vadd.f32 0.0, %v2630
    %v2632 = vpop.f32.mrf.mxu0
    %2633 = vmatprep.mubr.bf16.mxu0 0
    %2634 = vmatmul.mubr.bf16.gmra.mxu0 %v2585
    %v2635 = vpop.f32.mrf.mxu0
    %v2636 = vadd.f32 0.0, %v2635
    %v2637 = vpop.f32.mrf.mxu0
    %v2638 = vpop.f32.mrf.mxu0
    %v2639 = vadd.f32 0.0, %v2638
    %v2640 = vpop.f32.mrf.mxu0
    %2641 = vmatprep.mubr.bf16.mxu0 0
    %2642 = vmatmul.mubr.bf16.gmra.mxu0 %v2588
    %v2643 = vpop.f32.mrf.mxu0
    %v2644 = vadd.f32 0.0, %v2643
    %v2645 = vpop.f32.mrf.mxu0
    %v2646 = vpop.f32.mrf.mxu0
    %v2647 = vadd.f32 0.0, %v2646
    %v2648 = vpop.f32.mrf.mxu0
    %2649 = vmatprep.mubr.bf16.mxu0 0
    %2650 = vmatmul.mubr.bf16.gmra.mxu0 %v2591
    %v2651 = vpop.f32.mrf.mxu0
    %v2652 = vadd.f32 0.0, %v2651
    %v2653 = vpop.f32.mrf.mxu0
    %v2654 = vpop.f32.mrf.mxu0
    %v2655 = vadd.f32 0.0, %v2654
    %v2656 = vpop.f32.mrf.mxu0
    %2657 = vdwg.mxu0
    %2658 = vrot.lane.b32.xlu0 %v2355, 120
    %v2659 = vpop.permute.xlu0 %2658
    %2660 = vrot.lane.b32.xlu0 %v2356, 120
    %v2661 = vpop.permute.xlu0 %2660
    %2662 = vrot.lane.b32.xlu0 %v2357, 120
    %v2663 = vpop.permute.xlu0 %2662
    %2664 = vrot.lane.b32.xlu0 %v2358, 120
    %v2665 = vpop.permute.xlu0 %2664
    %2666 = vrot.lane.b32.xlu0 %v2355, 88
    %v2667 = vpop.permute.xlu0 %2666
    %2668 = vrot.lane.b32.xlu0 %v2356, 88
    %v2669 = vpop.permute.xlu0 %2668
    %2670 = vrot.lane.b32.xlu0 %v2357, 88
    %v2671 = vpop.permute.xlu0 %2670
    %2672 = vrot.lane.b32.xlu0 %v2358, 88
    %v2673 = vpop.permute.xlu0 %2672
    %v2675 = vsel %vm362, %v2659, 0
    %v2678 = vsel %vm362, %v2661, 0
    %v2681 = vsel %vm362, %v2663, 0
    %v2684 = vsel %vm362, %v2665, 0
    %v2687 = vsel %vm362, %v2667, 0
    %v2690 = vsel %vm362, %v2669, 0
    %v2693 = vsel %vm362, %v2671, 0
    %v2696 = vsel %vm362, %v2673, 0
    %2698 = vmatprep.subr.bf16.mxu0 0
    %2699 = vmatpush1.bf16.xpose.msra.mxu0 0
    %2700 = vmatprep.subr.bf16.mxu0 0
    %2701 = vmatpush1.bf16.xpose.msra.mxu0 0
    %2702 = vmatprep.subr.bf16.mxu0 0
    %2703 = vmatpush1.bf16.xpose.msra.mxu0 0
    %2704 = vmatprep.subr.bf16.mxu0 0
    %2705 = vmatpush1.bf16.xpose.msra.mxu0 0
    %2706 = vmatprep.subr.bf16.mxu0 0
    %2707 = vmatpush1.bf16.xpose.msra.mxu0 %v2696
    %2708 = vmatprep.subr.bf16.mxu0 0
    %2709 = vmatpush1.bf16.xpose.msra.mxu0 %v2693
    %2710 = vmatprep.subr.bf16.mxu0 0
    %2711 = vmatpush1.bf16.xpose.msra.mxu0 %v2690
    %2712 = vmatprep.subr.bf16.mxu0 0
    %2713 = vmatpush1.bf16.xpose.msra.mxu0 %v2687
    %2714 = vmatprep.subr.bf16.mxu0 0
    %2715 = vmatpush2.bf16.xpose.msra.mxu0 0
    %2716 = vmatprep.subr.bf16.mxu0 0
    %2717 = vmatpush2.bf16.xpose.msra.mxu0 0
    %2718 = vmatprep.subr.bf16.mxu0 0
    %2719 = vmatpush2.bf16.xpose.msra.mxu0 0
    %2720 = vmatprep.subr.bf16.mxu0 0
    %2721 = vmatpush2.bf16.xpose.msra.mxu0 0
    %2722 = vmatprep.subr.bf16.mxu0 0
    %2723 = vmatpush2.bf16.xpose.msra.mxu0 0
    %2724 = vmatprep.subr.bf16.mxu0 0
    %2725 = vmatpush2.bf16.xpose.msra.mxu0 0
    %2726 = vmatprep.subr.bf16.mxu0 0
    %2727 = vmatpush2.bf16.xpose.msra.mxu0 0
    %2728 = vmatprep.subr.bf16.mxu0 0
    %2729 = vmatpush2.bf16.xpose.msra.mxu0 0
    %2730 = vmatprep.mubr.bf16.mxu0 0
    %2731 = vmatmul.mubr.bf16.gmra.mxu0 %v2675
    %v2732 = vpop.f32.mrf.mxu0
    %v2733 = vadd.f32 0.0, %v2732
    %v2734 = vpop.f32.mrf.mxu0
    %v2735 = vpop.f32.mrf.mxu0
    %v2736 = vadd.f32 0.0, %v2735
    %v2737 = vpop.f32.mrf.mxu0
    %2738 = vmatprep.mubr.bf16.mxu0 0
    %2739 = vmatmul.mubr.bf16.gmra.mxu0 %v2678
    %v2740 = vpop.f32.mrf.mxu0
    %v2741 = vadd.f32 0.0, %v2740
    %v2742 = vpop.f32.mrf.mxu0
    %v2743 = vpop.f32.mrf.mxu0
    %v2744 = vadd.f32 0.0, %v2743
    %v2745 = vpop.f32.mrf.mxu0
    %2746 = vmatprep.mubr.bf16.mxu0 0
    %2747 = vmatmul.mubr.bf16.gmra.mxu0 %v2681
    %v2748 = vpop.f32.mrf.mxu0
    %v2749 = vadd.f32 0.0, %v2748
    %v2750 = vpop.f32.mrf.mxu0
    %v2751 = vpop.f32.mrf.mxu0
    %v2752 = vadd.f32 0.0, %v2751
    %v2753 = vpop.f32.mrf.mxu0
    %2754 = vmatprep.mubr.bf16.mxu0 0
    %2755 = vmatmul.mubr.bf16.gmra.mxu0 %v2684
    %v2756 = vpop.f32.mrf.mxu0
    %v2757 = vadd.f32 0.0, %v2756
    %v2758 = vpop.f32.mrf.mxu0
    %v2759 = vpop.f32.mrf.mxu0
    %v2760 = vadd.f32 0.0, %v2759
    %v2761 = vpop.f32.mrf.mxu0
    %2762 = vdwg.mxu0
    %v2763 = vmul.f32 %v2733, 0.35355338
    %v2764 = vmul.f32 %v2736, 0.35355338
    %v2765 = vmul.f32 %v2741, 0.35355338
    %v2766 = vmul.f32 %v2744, 0.35355338
    %v2767 = vmul.f32 %v2749, 0.35355338
    %v2768 = vmul.f32 %v2752, 0.35355338
    %v2769 = vmul.f32 %v2757, 0.35355338
    %v2770 = vmul.f32 %v2760, 0.35355338
    %v2771 = vadd.f32 %v2763, %v2347
    %v2772 = vadd.f32 %v2764, %v2348
    %v2773 = vadd.f32 %v2765, %v2349
    %v2774 = vadd.f32 %v2766, %v2350
    %v2775 = vadd.f32 %v2767, %v2351
    %v2776 = vadd.f32 %v2768, %v2352
    %v2777 = vadd.f32 %v2769, %v2353
    %v2778 = vadd.f32 %v2770, %v2354
    %v2779 = vsel %vm2476, %v2771, -inf
    %2780 = vmax.xlane.f32.xlu0 %v2779
    %v2781 = vpop.xlane.xlu0 %2780
    %v2782 = vsel %vm2476, %v2772, -inf
    %2783 = vmax.xlane.f32.xlu0 %v2782
    %v2784 = vpop.xlane.xlu0 %2783
    %v2785 = vsel %vm2476, %v2773, -inf
    %2786 = vmax.xlane.f32.xlu0 %v2785
    %v2787 = vpop.xlane.xlu0 %2786
    %v2788 = vsel %vm2476, %v2774, -inf
    %2789 = vmax.xlane.f32.xlu0 %v2788
    %v2790 = vpop.xlane.xlu0 %2789
    %v2791 = vsel %vm2476, %v2775, -inf
    %2792 = vmax.xlane.f32.xlu0 %v2791
    %v2793 = vpop.xlane.xlu0 %2792
    %v2794 = vsel %vm2476, %v2776, -inf
    %2795 = vmax.xlane.f32.xlu0 %v2794
    %v2796 = vpop.xlane.xlu0 %2795
    %v2797 = vsel %vm2476, %v2777, -inf
    %2798 = vmax.xlane.f32.xlu0 %v2797
    %v2799 = vpop.xlane.xlu0 %2798
    %v2800 = vsel %vm2476, %v2778, -inf
    %2801 = vmax.xlane.f32.xlu0 %v2800
    %v2802 = vpop.xlane.xlu0 %2801
    %v2803 = vsub.f32 %v2771, %v2781
    %v2804 = vsub.f32 %v2772, %v2784
    %v2805 = vsub.f32 %v2773, %v2787
    %v2806 = vsub.f32 %v2774, %v2790
    %v2807 = vsub.f32 %v2775, %v2793
    %v2808 = vsub.f32 %v2776, %v2796
    %v2809 = vsub.f32 %v2777, %v2799
    %v2810 = vsub.f32 %v2778, %v2802
    %v2811 = vmul.f32 %v2803, 1.442695
    %v2812 = vpow.pop %v2811
    %v2813 = vmul.f32 %v2804, 1.442695
    %v2814 = vpow.pop %v2813
    %v2815 = vmul.f32 %v2805, 1.442695
    %v2816 = vpow.pop %v2815
    %v2817 = vmul.f32 %v2806, 1.442695
    %v2818 = vpow.pop %v2817
    %v2819 = vmul.f32 %v2807, 1.442695
    %v2820 = vpow.pop %v2819
    %v2821 = vmul.f32 %v2808, 1.442695
    %v2822 = vpow.pop %v2821
    %v2823 = vmul.f32 %v2809, 1.442695
    %v2824 = vpow.pop %v2823
    %v2825 = vmul.f32 %v2810, 1.442695
    %v2826 = vpow.pop %v2825
    %v2827 = vsel %vm2476, %v2812, 0.0
    %2828 = vadd.xlane.f32.xlu0 %v2827
    %v2829 = vpop.xlane.xlu0 %2828
    %v2830 = vsel %vm2476, %v2814, 0.0
    %2831 = vadd.xlane.f32.xlu0 %v2830
    %v2832 = vpop.xlane.xlu0 %2831
    %v2833 = vsel %vm2476, %v2816, 0.0
    %2834 = vadd.xlane.f32.xlu0 %v2833
    %v2835 = vpop.xlane.xlu0 %2834
    %v2836 = vsel %vm2476, %v2818, 0.0
    %2837 = vadd.xlane.f32.xlu0 %v2836
    %v2838 = vpop.xlane.xlu0 %2837
    %v2839 = vsel %vm2476, %v2820, 0.0
    %2840 = vadd.xlane.f32.xlu0 %v2839
    %v2841 = vpop.xlane.xlu0 %2840
    %v2842 = vsel %vm2476, %v2822, 0.0
    %2843 = vadd.xlane.f32.xlu0 %v2842
    %v2844 = vpop.xlane.xlu0 %2843
    %v2845 = vsel %vm2476, %v2824, 0.0
    %2846 = vadd.xlane.f32.xlu0 %v2845
    %v2847 = vpop.xlane.xlu0 %2846
    %v2848 = vsel %vm2476, %v2826, 0.0
    %2849 = vadd.xlane.f32.xlu0 %v2848
    %v2850 = vpop.xlane.xlu0 %2849
    %v2851 = vrcp.pop %v2829
    %v2852 = vrcp.pop %v2832
    %v2853 = vrcp.pop %v2835
    %v2854 = vrcp.pop %v2838
    %v2855 = vrcp.pop %v2841
    %v2856 = vrcp.pop %v2844
    %v2857 = vrcp.pop %v2847
    %v2858 = vrcp.pop %v2850
    %v2859 = vmul.f32 %v2812, %v2851
    %v2860 = vmul.f32 %v2814, %v2852
    %v2861 = vmul.f32 %v2816, %v2853
    %v2862 = vmul.f32 %v2818, %v2854
    %v2863 = vmul.f32 %v2820, %v2855
    %v2864 = vmul.f32 %v2822, %v2856
    %v2865 = vmul.f32 %v2824, %v2857
    %v2866 = vmul.f32 %v2826, %v2858
    %v2867 = vpack.c.bf16 %v2860, %v2859
    %v2868 = vpack.c.bf16 %v2862, %v2861
    %v2869 = vpack.c.bf16 %v2864, %v2863
    %v2870 = vpack.c.bf16 %v2866, %v2865
    %2871 = vrot.lane.b32.xlu0 %v2355, 56
    %v2872 = vpop.permute.xlu0 %2871
    %2873 = vrot.lane.b32.xlu0 %v2356, 56
    %v2874 = vpop.permute.xlu0 %2873
    %2875 = vrot.lane.b32.xlu0 %v2357, 56
    %v2876 = vpop.permute.xlu0 %2875
    %2877 = vrot.lane.b32.xlu0 %v2358, 56
    %v2878 = vpop.permute.xlu0 %2877
    %v2884 = vsel %vm2476, %v2867, 0
    %v2887 = vsel %vm2476, %v2868, 0
    %v2890 = vsel %vm2476, %v2869, 0
    %v2893 = vsel %vm2476, %v2870, 0
    %2895 = vmatprep.subr.bf16.mxu0 0
    %2896 = vmatpush1.bf16.msra.mxu0 0
    %2897 = vmatprep.subr.bf16.mxu0 0
    %2898 = vmatpush1.bf16.msra.mxu0 0
    %2899 = vmatprep.subr.bf16.mxu0 0
    %2900 = vmatpush1.bf16.msra.mxu0 0
    %2901 = vmatprep.subr.bf16.mxu0 0
    %2902 = vmatpush1.bf16.msra.mxu0 0
    %2903 = vmatprep.subr.bf16.mxu0 0
    %2904 = vmatpush1.bf16.msra.mxu0 %v2878
    %2905 = vmatprep.subr.bf16.mxu0 0
    %2906 = vmatpush1.bf16.msra.mxu0 %v2876
    %2907 = vmatprep.subr.bf16.mxu0 0
    %2908 = vmatpush1.bf16.msra.mxu0 %v2874
    %2909 = vmatprep.subr.bf16.mxu0 0
    %2910 = vmatpush1.bf16.msra.mxu0 %v2872
    %2911 = vmatprep.subr.bf16.mxu0 0
    %2912 = vmatpush2.bf16.msra.mxu0 0
    %2913 = vmatprep.subr.bf16.mxu0 0
    %2914 = vmatpush2.bf16.msra.mxu0 0
    %2915 = vmatprep.subr.bf16.mxu0 0
    %2916 = vmatpush2.bf16.msra.mxu0 0
    %2917 = vmatprep.subr.bf16.mxu0 0
    %2918 = vmatpush2.bf16.msra.mxu0 0
    %2919 = vmatprep.subr.bf16.mxu0 0
    %2920 = vmatpush2.bf16.msra.mxu0 0
    %2921 = vmatprep.subr.bf16.mxu0 0
    %2922 = vmatpush2.bf16.msra.mxu0 0
    %2923 = vmatprep.subr.bf16.mxu0 0
    %2924 = vmatpush2.bf16.msra.mxu0 0
    %2925 = vmatprep.subr.bf16.mxu0 0
    %2926 = vmatpush2.bf16.msra.mxu0 0
    %2927 = vmatprep.mubr.bf16.mxu0 0
    %2928 = vmatmul.mubr.bf16.gmra.mxu0 %v2884
    %v2929 = vpop.f32.mrf.mxu0
    %v2930 = vadd.f32 0.0, %v2929
    %v2931 = vpop.f32.mrf.mxu0
    %v2932 = vpop.f32.mrf.mxu0
    %v2933 = vadd.f32 0.0, %v2932
    %v2934 = vpop.f32.mrf.mxu0
    %2935 = vmatprep.mubr.bf16.mxu0 0
    %2936 = vmatmul.mubr.bf16.gmra.mxu0 %v2887
    %v2937 = vpop.f32.mrf.mxu0
    %v2938 = vadd.f32 0.0, %v2937
    %v2939 = vpop.f32.mrf.mxu0
    %v2940 = vpop.f32.mrf.mxu0
    %v2941 = vadd.f32 0.0, %v2940
    %v2942 = vpop.f32.mrf.mxu0
    %2943 = vmatprep.mubr.bf16.mxu0 0
    %2944 = vmatmul.mubr.bf16.gmra.mxu0 %v2890
    %v2945 = vpop.f32.mrf.mxu0
    %v2946 = vadd.f32 0.0, %v2945
    %v2947 = vpop.f32.mrf.mxu0
    %v2948 = vpop.f32.mrf.mxu0
    %v2949 = vadd.f32 0.0, %v2948
    %v2950 = vpop.f32.mrf.mxu0
    %2951 = vmatprep.mubr.bf16.mxu0 0
    %2952 = vmatmul.mubr.bf16.gmra.mxu0 %v2893
    %v2953 = vpop.f32.mrf.mxu0
    %v2954 = vadd.f32 0.0, %v2953
    %v2955 = vpop.f32.mrf.mxu0
    %v2956 = vpop.f32.mrf.mxu0
    %v2957 = vadd.f32 0.0, %v2956
    %v2958 = vpop.f32.mrf.mxu0
    %2959 = vdwg.mxu0
    %2960 = vrot.lane.b32.xlu0 %v2355, 112
    %v2961 = vpop.permute.xlu0 %2960
    %2962 = vrot.lane.b32.xlu0 %v2356, 112
    %v2963 = vpop.permute.xlu0 %2962
    %2964 = vrot.lane.b32.xlu0 %v2357, 112
    %v2965 = vpop.permute.xlu0 %2964
    %2966 = vrot.lane.b32.xlu0 %v2358, 112
    %v2967 = vpop.permute.xlu0 %2966
    %2968 = vrot.lane.b32.xlu0 %v2355, 80
    %v2969 = vpop.permute.xlu0 %2968
    %2970 = vrot.lane.b32.xlu0 %v2356, 80
    %v2971 = vpop.permute.xlu0 %2970
    %2972 = vrot.lane.b32.xlu0 %v2357, 80
    %v2973 = vpop.permute.xlu0 %2972
    %2974 = vrot.lane.b32.xlu0 %v2358, 80
    %v2975 = vpop.permute.xlu0 %2974
    %v2977 = vsel %vm362, %v2961, 0
    %v2980 = vsel %vm362, %v2963, 0
    %v2983 = vsel %vm362, %v2965, 0
    %v2986 = vsel %vm362, %v2967, 0
    %v2989 = vsel %vm362, %v2969, 0
    %v2992 = vsel %vm362, %v2971, 0
    %v2995 = vsel %vm362, %v2973, 0
    %v2998 = vsel %vm362, %v2975, 0
    %3000 = vmatprep.subr.bf16.mxu0 0
    %3001 = vmatpush1.bf16.xpose.msra.mxu0 0
    %3002 = vmatprep.subr.bf16.mxu0 0
    %3003 = vmatpush1.bf16.xpose.msra.mxu0 0
    %3004 = vmatprep.subr.bf16.mxu0 0
    %3005 = vmatpush1.bf16.xpose.msra.mxu0 0
    %3006 = vmatprep.subr.bf16.mxu0 0
    %3007 = vmatpush1.bf16.xpose.msra.mxu0 0
    %3008 = vmatprep.subr.bf16.mxu0 0
    %3009 = vmatpush1.bf16.xpose.msra.mxu0 %v2998
    %3010 = vmatprep.subr.bf16.mxu0 0
    %3011 = vmatpush1.bf16.xpose.msra.mxu0 %v2995
    %3012 = vmatprep.subr.bf16.mxu0 0
    %3013 = vmatpush1.bf16.xpose.msra.mxu0 %v2992
    %3014 = vmatprep.subr.bf16.mxu0 0
    %3015 = vmatpush1.bf16.xpose.msra.mxu0 %v2989
    %3016 = vmatprep.subr.bf16.mxu0 0
    %3017 = vmatpush2.bf16.xpose.msra.mxu0 0
    %3018 = vmatprep.subr.bf16.mxu0 0
    %3019 = vmatpush2.bf16.xpose.msra.mxu0 0
    %3020 = vmatprep.subr.bf16.mxu0 0
    %3021 = vmatpush2.bf16.xpose.msra.mxu0 0
    %3022 = vmatprep.subr.bf16.mxu0 0
    %3023 = vmatpush2.bf16.xpose.msra.mxu0 0
    %3024 = vmatprep.subr.bf16.mxu0 0
    %3025 = vmatpush2.bf16.xpose.msra.mxu0 0
    %3026 = vmatprep.subr.bf16.mxu0 0
    %3027 = vmatpush2.bf16.xpose.msra.mxu0 0
    %3028 = vmatprep.subr.bf16.mxu0 0
    %3029 = vmatpush2.bf16.xpose.msra.mxu0 0
    %3030 = vmatprep.subr.bf16.mxu0 0
    %3031 = vmatpush2.bf16.xpose.msra.mxu0 0
    %3032 = vmatprep.mubr.bf16.mxu0 0
    %3033 = vmatmul.mubr.bf16.gmra.mxu0 %v2977
    %v3034 = vpop.f32.mrf.mxu0
    %v3035 = vadd.f32 0.0, %v3034
    %v3036 = vpop.f32.mrf.mxu0
    %v3037 = vpop.f32.mrf.mxu0
    %v3038 = vadd.f32 0.0, %v3037
    %v3039 = vpop.f32.mrf.mxu0
    %3040 = vmatprep.mubr.bf16.mxu0 0
    %3041 = vmatmul.mubr.bf16.gmra.mxu0 %v2980
    %v3042 = vpop.f32.mrf.mxu0
    %v3043 = vadd.f32 0.0, %v3042
    %v3044 = vpop.f32.mrf.mxu0
    %v3045 = vpop.f32.mrf.mxu0
    %v3046 = vadd.f32 0.0, %v3045
    %v3047 = vpop.f32.mrf.mxu0
    %3048 = vmatprep.mubr.bf16.mxu0 0
    %3049 = vmatmul.mubr.bf16.gmra.mxu0 %v2983
    %v3050 = vpop.f32.mrf.mxu0
    %v3051 = vadd.f32 0.0, %v3050
    %v3052 = vpop.f32.mrf.mxu0
    %v3053 = vpop.f32.mrf.mxu0
    %v3054 = vadd.f32 0.0, %v3053
    %v3055 = vpop.f32.mrf.mxu0
    %3056 = vmatprep.mubr.bf16.mxu0 0
    %3057 = vmatmul.mubr.bf16.gmra.mxu0 %v2986
    %v3058 = vpop.f32.mrf.mxu0
    %v3059 = vadd.f32 0.0, %v3058
    %v3060 = vpop.f32.mrf.mxu0
    %v3061 = vpop.f32.mrf.mxu0
    %v3062 = vadd.f32 0.0, %v3061
    %v3063 = vpop.f32.mrf.mxu0
    %3064 = vdwg.mxu0
    %v3065 = vmul.f32 %v3035, 0.35355338
    %v3066 = vmul.f32 %v3038, 0.35355338
    %v3067 = vmul.f32 %v3043, 0.35355338
    %v3068 = vmul.f32 %v3046, 0.35355338
    %v3069 = vmul.f32 %v3051, 0.35355338
    %v3070 = vmul.f32 %v3054, 0.35355338
    %v3071 = vmul.f32 %v3059, 0.35355338
    %v3072 = vmul.f32 %v3062, 0.35355338
    %v3073 = vadd.f32 %v3065, %v2347
    %v3074 = vadd.f32 %v3066, %v2348
    %v3075 = vadd.f32 %v3067, %v2349
    %v3076 = vadd.f32 %v3068, %v2350
    %v3077 = vadd.f32 %v3069, %v2351
    %v3078 = vadd.f32 %v3070, %v2352
    %v3079 = vadd.f32 %v3071, %v2353
    %v3080 = vadd.f32 %v3072, %v2354
    %v3081 = vsel %vm2476, %v3073, -inf
    %3082 = vmax.xlane.f32.xlu0 %v3081
    %v3083 = vpop.xlane.xlu0 %3082
    %v3084 = vsel %vm2476, %v3074, -inf
    %3085 = vmax.xlane.f32.xlu0 %v3084
    %v3086 = vpop.xlane.xlu0 %3085
    %v3087 = vsel %vm2476, %v3075, -inf
    %3088 = vmax.xlane.f32.xlu0 %v3087
    %v3089 = vpop.xlane.xlu0 %3088
    %v3090 = vsel %vm2476, %v3076, -inf
    %3091 = vmax.xlane.f32.xlu0 %v3090
    %v3092 = vpop.xlane.xlu0 %3091
    %v3093 = vsel %vm2476, %v3077, -inf
    %3094 = vmax.xlane.f32.xlu0 %v3093
    %v3095 = vpop.xlane.xlu0 %3094
    %v3096 = vsel %vm2476, %v3078, -inf
    %3097 = vmax.xlane.f32.xlu0 %v3096
    %v3098 = vpop.xlane.xlu0 %3097
    %v3099 = vsel %vm2476, %v3079, -inf
    %3100 = vmax.xlane.f32.xlu0 %v3099
    %v3101 = vpop.xlane.xlu0 %3100
    %v3102 = vsel %vm2476, %v3080, -inf
    %3103 = vmax.xlane.f32.xlu0 %v3102
    %v3104 = vpop.xlane.xlu0 %3103
    %v3105 = vsub.f32 %v3073, %v3083
    %v3106 = vsub.f32 %v3074, %v3086
    %v3107 = vsub.f32 %v3075, %v3089
    %v3108 = vsub.f32 %v3076, %v3092
    %v3109 = vsub.f32 %v3077, %v3095
    %v3110 = vsub.f32 %v3078, %v3098
    %v3111 = vsub.f32 %v3079, %v3101
    %v3112 = vsub.f32 %v3080, %v3104
    %v3113 = vmul.f32 %v3105, 1.442695
    %v3114 = vpow.pop %v3113
    %v3115 = vmul.f32 %v3106, 1.442695
    %v3116 = vpow.pop %v3115
    %v3117 = vmul.f32 %v3107, 1.442695
    %v3118 = vpow.pop %v3117
    %v3119 = vmul.f32 %v3108, 1.442695
    %v3120 = vpow.pop %v3119
    %v3121 = vmul.f32 %v3109, 1.442695
    %v3122 = vpow.pop %v3121
    %v3123 = vmul.f32 %v3110, 1.442695
    %v3124 = vpow.pop %v3123
    %v3125 = vmul.f32 %v3111, 1.442695
    %v3126 = vpow.pop %v3125
    %v3127 = vmul.f32 %v3112, 1.442695
    %v3128 = vpow.pop %v3127
    %v3129 = vsel %vm2476, %v3114, 0.0
    %3130 = vadd.xlane.f32.xlu0 %v3129
    %v3131 = vpop.xlane.xlu0 %3130
    %v3132 = vsel %vm2476, %v3116, 0.0
    %3133 = vadd.xlane.f32.xlu0 %v3132
    %v3134 = vpop.xlane.xlu0 %3133
    %v3135 = vsel %vm2476, %v3118, 0.0
    %3136 = vadd.xlane.f32.xlu0 %v3135
    %v3137 = vpop.xlane.xlu0 %3136
    %v3138 = vsel %vm2476, %v3120, 0.0
    %3139 = vadd.xlane.f32.xlu0 %v3138
    %v3140 = vpop.xlane.xlu0 %3139
    %v3141 = vsel %vm2476, %v3122, 0.0
    %3142 = vadd.xlane.f32.xlu0 %v3141
    %v3143 = vpop.xlane.xlu0 %3142
    %v3144 = vsel %vm2476, %v3124, 0.0
    %3145 = vadd.xlane.f32.xlu0 %v3144
    %v3146 = vpop.xlane.xlu0 %3145
    %v3147 = vsel %vm2476, %v3126, 0.0
    %3148 = vadd.xlane.f32.xlu0 %v3147
    %v3149 = vpop.xlane.xlu0 %3148
    %v3150 = vsel %vm2476, %v3128, 0.0
    %3151 = vadd.xlane.f32.xlu0 %v3150
    %v3152 = vpop.xlane.xlu0 %3151
    %v3153 = vrcp.pop %v3131
    %v3154 = vrcp.pop %v3134
    %v3155 = vrcp.pop %v3137
    %v3156 = vrcp.pop %v3140
    %v3157 = vrcp.pop %v3143
    %v3158 = vrcp.pop %v3146
    %v3159 = vrcp.pop %v3149
    %v3160 = vrcp.pop %v3152
    %v3161 = vmul.f32 %v3114, %v3153
    %v3162 = vmul.f32 %v3116, %v3154
    %v3163 = vmul.f32 %v3118, %v3155
    %v3164 = vmul.f32 %v3120, %v3156
    %v3165 = vmul.f32 %v3122, %v3157
    %v3166 = vmul.f32 %v3124, %v3158
    %v3167 = vmul.f32 %v3126, %v3159
    %v3168 = vmul.f32 %v3128, %v3160
    %v3169 = vpack.c.bf16 %v3162, %v3161
    %v3170 = vpack.c.bf16 %v3164, %v3163
    %v3171 = vpack.c.bf16 %v3166, %v3165
    %v3172 = vpack.c.bf16 %v3168, %v3167
    %3173 = vrot.lane.b32.xlu0 %v2355, 48
    %v3174 = vpop.permute.xlu0 %3173
    %3175 = vrot.lane.b32.xlu0 %v2356, 48
    %v3176 = vpop.permute.xlu0 %3175
    %3177 = vrot.lane.b32.xlu0 %v2357, 48
    %v3178 = vpop.permute.xlu0 %3177
    %3179 = vrot.lane.b32.xlu0 %v2358, 48
    %v3180 = vpop.permute.xlu0 %3179
    %v3186 = vsel %vm2476, %v3169, 0
    %v3189 = vsel %vm2476, %v3170, 0
    %v3192 = vsel %vm2476, %v3171, 0
    %v3195 = vsel %vm2476, %v3172, 0
    %3197 = vmatprep.subr.bf16.mxu0 0
    %3198 = vmatpush1.bf16.msra.mxu0 0
    %3199 = vmatprep.subr.bf16.mxu0 0
    %3200 = vmatpush1.bf16.msra.mxu0 0
    %3201 = vmatprep.subr.bf16.mxu0 0
    %3202 = vmatpush1.bf16.msra.mxu0 0
    %3203 = vmatprep.subr.bf16.mxu0 0
    %3204 = vmatpush1.bf16.msra.mxu0 0
    %3205 = vmatprep.subr.bf16.mxu0 0
    %3206 = vmatpush1.bf16.msra.mxu0 %v3180
    %3207 = vmatprep.subr.bf16.mxu0 0
    %3208 = vmatpush1.bf16.msra.mxu0 %v3178
    %3209 = vmatprep.subr.bf16.mxu0 0
    %3210 = vmatpush1.bf16.msra.mxu0 %v3176
    %3211 = vmatprep.subr.bf16.mxu0 0
    %3212 = vmatpush1.bf16.msra.mxu0 %v3174
    %3213 = vmatprep.subr.bf16.mxu0 0
    %3214 = vmatpush2.bf16.msra.mxu0 0
    %3215 = vmatprep.subr.bf16.mxu0 0
    %3216 = vmatpush2.bf16.msra.mxu0 0
    %3217 = vmatprep.subr.bf16.mxu0 0
    %3218 = vmatpush2.bf16.msra.mxu0 0
    %3219 = vmatprep.subr.bf16.mxu0 0
    %3220 = vmatpush2.bf16.msra.mxu0 0
    %3221 = vmatprep.subr.bf16.mxu0 0
    %3222 = vmatpush2.bf16.msra.mxu0 0
    %3223 = vmatprep.subr.bf16.mxu0 0
    %3224 = vmatpush2.bf16.msra.mxu0 0
    %3225 = vmatprep.subr.bf16.mxu0 0
    %3226 = vmatpush2.bf16.msra.mxu0 0
    %3227 = vmatprep.subr.bf16.mxu0 0
    %3228 = vmatpush2.bf16.msra.mxu0 0
    %3229 = vmatprep.mubr.bf16.mxu0 0
    %3230 = vmatmul.mubr.bf16.gmra.mxu0 %v3186
    %v3231 = vpop.f32.mrf.mxu0
    %v3232 = vadd.f32 0.0, %v3231
    %v3233 = vpop.f32.mrf.mxu0
    %v3234 = vpop.f32.mrf.mxu0
    %v3235 = vadd.f32 0.0, %v3234
    %v3236 = vpop.f32.mrf.mxu0
    %3237 = vmatprep.mubr.bf16.mxu0 0
    %3238 = vmatmul.mubr.bf16.gmra.mxu0 %v3189
    %v3239 = vpop.f32.mrf.mxu0
    %v3240 = vadd.f32 0.0, %v3239
    %v3241 = vpop.f32.mrf.mxu0
    %v3242 = vpop.f32.mrf.mxu0
    %v3243 = vadd.f32 0.0, %v3242
    %v3244 = vpop.f32.mrf.mxu0
    %3245 = vmatprep.mubr.bf16.mxu0 0
    %3246 = vmatmul.mubr.bf16.gmra.mxu0 %v3192
    %v3247 = vpop.f32.mrf.mxu0
    %v3248 = vadd.f32 0.0, %v3247
    %v3249 = vpop.f32.mrf.mxu0
    %v3250 = vpop.f32.mrf.mxu0
    %v3251 = vadd.f32 0.0, %v3250
    %v3252 = vpop.f32.mrf.mxu0
    %3253 = vmatprep.mubr.bf16.mxu0 0
    %3254 = vmatmul.mubr.bf16.gmra.mxu0 %v3195
    %v3255 = vpop.f32.mrf.mxu0
    %v3256 = vadd.f32 0.0, %v3255
    %v3257 = vpop.f32.mrf.mxu0
    %v3258 = vpop.f32.mrf.mxu0
    %v3259 = vadd.f32 0.0, %v3258
    %v3260 = vpop.f32.mrf.mxu0
    %3261 = vdwg.mxu0
    %3262 = vrot.lane.b32.xlu0 %v2355, 104
    %v3263 = vpop.permute.xlu0 %3262
    %3264 = vrot.lane.b32.xlu0 %v2356, 104
    %v3265 = vpop.permute.xlu0 %3264
    %3266 = vrot.lane.b32.xlu0 %v2357, 104
    %v3267 = vpop.permute.xlu0 %3266
    %3268 = vrot.lane.b32.xlu0 %v2358, 104
    %v3269 = vpop.permute.xlu0 %3268
    %3270 = vrot.lane.b32.xlu0 %v2355, 72
    %v3271 = vpop.permute.xlu0 %3270
    %3272 = vrot.lane.b32.xlu0 %v2356, 72
    %v3273 = vpop.permute.xlu0 %3272
    %3274 = vrot.lane.b32.xlu0 %v2357, 72
    %v3275 = vpop.permute.xlu0 %3274
    %3276 = vrot.lane.b32.xlu0 %v2358, 72
    %v3277 = vpop.permute.xlu0 %3276
    %v3279 = vsel %vm362, %v3263, 0
    %v3282 = vsel %vm362, %v3265, 0
    %v3285 = vsel %vm362, %v3267, 0
    %v3288 = vsel %vm362, %v3269, 0
    %v3291 = vsel %vm362, %v3271, 0
    %v3294 = vsel %vm362, %v3273, 0
    %v3297 = vsel %vm362, %v3275, 0
    %v3300 = vsel %vm362, %v3277, 0
    %3302 = vmatprep.subr.bf16.mxu0 0
    %3303 = vmatpush1.bf16.xpose.msra.mxu0 0
    %3304 = vmatprep.subr.bf16.mxu0 0
    %3305 = vmatpush1.bf16.xpose.msra.mxu0 0
    %3306 = vmatprep.subr.bf16.mxu0 0
    %3307 = vmatpush1.bf16.xpose.msra.mxu0 0
    %3308 = vmatprep.subr.bf16.mxu0 0
    %3309 = vmatpush1.bf16.xpose.msra.mxu0 0
    %3310 = vmatprep.subr.bf16.mxu0 0
    %3311 = vmatpush1.bf16.xpose.msra.mxu0 %v3300
    %3312 = vmatprep.subr.bf16.mxu0 0
    %3313 = vmatpush1.bf16.xpose.msra.mxu0 %v3297
    %3314 = vmatprep.subr.bf16.mxu0 0
    %3315 = vmatpush1.bf16.xpose.msra.mxu0 %v3294
    %3316 = vmatprep.subr.bf16.mxu0 0
    %3317 = vmatpush1.bf16.xpose.msra.mxu0 %v3291
    %3318 = vmatprep.subr.bf16.mxu0 0
    %3319 = vmatpush2.bf16.xpose.msra.mxu0 0
    %3320 = vmatprep.subr.bf16.mxu0 0
    %3321 = vmatpush2.bf16.xpose.msra.mxu0 0
    %3322 = vmatprep.subr.bf16.mxu0 0
    %3323 = vmatpush2.bf16.xpose.msra.mxu0 0
    %3324 = vmatprep.subr.bf16.mxu0 0
    %3325 = vmatpush2.bf16.xpose.msra.mxu0 0
    %3326 = vmatprep.subr.bf16.mxu0 0
    %3327 = vmatpush2.bf16.xpose.msra.mxu0 0
    %3328 = vmatprep.subr.bf16.mxu0 0
    %3329 = vmatpush2.bf16.xpose.msra.mxu0 0
    %3330 = vmatprep.subr.bf16.mxu0 0
    %3331 = vmatpush2.bf16.xpose.msra.mxu0 0
    %3332 = vmatprep.subr.bf16.mxu0 0
    %3333 = vmatpush2.bf16.xpose.msra.mxu0 0
    %3334 = vmatprep.mubr.bf16.mxu0 0
    %3335 = vmatmul.mubr.bf16.gmra.mxu0 %v3279
    %v3336 = vpop.f32.mrf.mxu0
    %v3337 = vadd.f32 0.0, %v3336
    %v3338 = vpop.f32.mrf.mxu0
    %v3339 = vpop.f32.mrf.mxu0
    %v3340 = vadd.f32 0.0, %v3339
    %v3341 = vpop.f32.mrf.mxu0
    %3342 = vmatprep.mubr.bf16.mxu0 0
    %3343 = vmatmul.mubr.bf16.gmra.mxu0 %v3282
    %v3344 = vpop.f32.mrf.mxu0
    %v3345 = vadd.f32 0.0, %v3344
    %v3346 = vpop.f32.mrf.mxu0
    %v3347 = vpop.f32.mrf.mxu0
    %v3348 = vadd.f32 0.0, %v3347
    %v3349 = vpop.f32.mrf.mxu0
    %3350 = vmatprep.mubr.bf16.mxu0 0
    %3351 = vmatmul.mubr.bf16.gmra.mxu0 %v3285
    %v3352 = vpop.f32.mrf.mxu0
    %v3353 = vadd.f32 0.0, %v3352
    %v3354 = vpop.f32.mrf.mxu0
    %v3355 = vpop.f32.mrf.mxu0
    %v3356 = vadd.f32 0.0, %v3355
    %v3357 = vpop.f32.mrf.mxu0
    %3358 = vmatprep.mubr.bf16.mxu0 0
    %3359 = vmatmul.mubr.bf16.gmra.mxu0 %v3288
    %v3360 = vpop.f32.mrf.mxu0
    %v3361 = vadd.f32 0.0, %v3360
    %v3362 = vpop.f32.mrf.mxu0
    %v3363 = vpop.f32.mrf.mxu0
    %v3364 = vadd.f32 0.0, %v3363
    %v3365 = vpop.f32.mrf.mxu0
    %3366 = vdwg.mxu0
    %v3367 = vmul.f32 %v3337, 0.35355338
    %v3368 = vmul.f32 %v3340, 0.35355338
    %v3369 = vmul.f32 %v3345, 0.35355338
    %v3370 = vmul.f32 %v3348, 0.35355338
    %v3371 = vmul.f32 %v3353, 0.35355338
    %v3372 = vmul.f32 %v3356, 0.35355338
    %v3373 = vmul.f32 %v3361, 0.35355338
    %v3374 = vmul.f32 %v3364, 0.35355338
    %v3375 = vadd.f32 %v3367, %v2347
    %v3376 = vadd.f32 %v3368, %v2348
    %v3377 = vadd.f32 %v3369, %v2349
    %v3378 = vadd.f32 %v3370, %v2350
    %v3379 = vadd.f32 %v3371, %v2351
    %v3380 = vadd.f32 %v3372, %v2352
    %v3381 = vadd.f32 %v3373, %v2353
    %v3382 = vadd.f32 %v3374, %v2354
    %v3383 = vsel %vm2476, %v3375, -inf
    %3384 = vmax.xlane.f32.xlu0 %v3383
    %v3385 = vpop.xlane.xlu0 %3384
    %v3386 = vsel %vm2476, %v3376, -inf
    %3387 = vmax.xlane.f32.xlu0 %v3386
    %v3388 = vpop.xlane.xlu0 %3387
    %v3389 = vsel %vm2476, %v3377, -inf
    %3390 = vmax.xlane.f32.xlu0 %v3389
    %v3391 = vpop.xlane.xlu0 %3390
    %v3392 = vsel %vm2476, %v3378, -inf
    %3393 = vmax.xlane.f32.xlu0 %v3392
    %v3394 = vpop.xlane.xlu0 %3393
    %v3395 = vsel %vm2476, %v3379, -inf
    %3396 = vmax.xlane.f32.xlu0 %v3395
    %v3397 = vpop.xlane.xlu0 %3396
    %v3398 = vsel %vm2476, %v3380, -inf
    %3399 = vmax.xlane.f32.xlu0 %v3398
    %v3400 = vpop.xlane.xlu0 %3399
    %v3401 = vsel %vm2476, %v3381, -inf
    %3402 = vmax.xlane.f32.xlu0 %v3401
    %v3403 = vpop.xlane.xlu0 %3402
    %v3404 = vsel %vm2476, %v3382, -inf
    %3405 = vmax.xlane.f32.xlu0 %v3404
    %v3406 = vpop.xlane.xlu0 %3405
    %v3407 = vsub.f32 %v3375, %v3385
    %v3408 = vsub.f32 %v3376, %v3388
    %v3409 = vsub.f32 %v3377, %v3391
    %v3410 = vsub.f32 %v3378, %v3394
    %v3411 = vsub.f32 %v3379, %v3397
    %v3412 = vsub.f32 %v3380, %v3400
    %v3413 = vsub.f32 %v3381, %v3403
    %v3414 = vsub.f32 %v3382, %v3406
    %v3415 = vmul.f32 %v3407, 1.442695
    %v3416 = vpow.pop %v3415
    %v3417 = vmul.f32 %v3408, 1.442695
    %v3418 = vpow.pop %v3417
    %v3419 = vmul.f32 %v3409, 1.442695
    %v3420 = vpow.pop %v3419
    %v3421 = vmul.f32 %v3410, 1.442695
    %v3422 = vpow.pop %v3421
    %v3423 = vmul.f32 %v3411, 1.442695
    %v3424 = vpow.pop %v3423
    %v3425 = vmul.f32 %v3412, 1.442695
    %v3426 = vpow.pop %v3425
    %v3427 = vmul.f32 %v3413, 1.442695
    %v3428 = vpow.pop %v3427
    %v3429 = vmul.f32 %v3414, 1.442695
    %v3430 = vpow.pop %v3429
    %v3431 = vsel %vm2476, %v3416, 0.0
    %3432 = vadd.xlane.f32.xlu0 %v3431
    %v3433 = vpop.xlane.xlu0 %3432
    %v3434 = vsel %vm2476, %v3418, 0.0
    %3435 = vadd.xlane.f32.xlu0 %v3434
    %v3436 = vpop.xlane.xlu0 %3435
    %v3437 = vsel %vm2476, %v3420, 0.0
    %3438 = vadd.xlane.f32.xlu0 %v3437
    %v3439 = vpop.xlane.xlu0 %3438
    %v3440 = vsel %vm2476, %v3422, 0.0
    %3441 = vadd.xlane.f32.xlu0 %v3440
    %v3442 = vpop.xlane.xlu0 %3441
    %v3443 = vsel %vm2476, %v3424, 0.0
    %3444 = vadd.xlane.f32.xlu0 %v3443
    %v3445 = vpop.xlane.xlu0 %3444
    %v3446 = vsel %vm2476, %v3426, 0.0
    %3447 = vadd.xlane.f32.xlu0 %v3446
    %v3448 = vpop.xlane.xlu0 %3447
    %v3449 = vsel %vm2476, %v3428, 0.0
    %3450 = vadd.xlane.f32.xlu0 %v3449
    %v3451 = vpop.xlane.xlu0 %3450
    %v3452 = vsel %vm2476, %v3430, 0.0
    %3453 = vadd.xlane.f32.xlu0 %v3452
    %v3454 = vpop.xlane.xlu0 %3453
    %v3455 = vrcp.pop %v3433
    %v3456 = vrcp.pop %v3436
    %v3457 = vrcp.pop %v3439
    %v3458 = vrcp.pop %v3442
    %v3459 = vrcp.pop %v3445
    %v3460 = vrcp.pop %v3448
    %v3461 = vrcp.pop %v3451
    %v3462 = vrcp.pop %v3454
    %v3463 = vmul.f32 %v3416, %v3455
    %v3464 = vmul.f32 %v3418, %v3456
    %v3465 = vmul.f32 %v3420, %v3457
    %v3466 = vmul.f32 %v3422, %v3458
    %v3467 = vmul.f32 %v3424, %v3459
    %v3468 = vmul.f32 %v3426, %v3460
    %v3469 = vmul.f32 %v3428, %v3461
    %v3470 = vmul.f32 %v3430, %v3462
    %v3471 = vpack.c.bf16 %v3464, %v3463
    %v3472 = vpack.c.bf16 %v3466, %v3465
    %v3473 = vpack.c.bf16 %v3468, %v3467
    %v3474 = vpack.c.bf16 %v3470, %v3469
    %3475 = vrot.lane.b32.xlu0 %v2355, 40
    %v3476 = vpop.permute.xlu0 %3475
    %3477 = vrot.lane.b32.xlu0 %v2356, 40
    %v3478 = vpop.permute.xlu0 %3477
    %3479 = vrot.lane.b32.xlu0 %v2357, 40
    %v3480 = vpop.permute.xlu0 %3479
    %3481 = vrot.lane.b32.xlu0 %v2358, 40
    %v3482 = vpop.permute.xlu0 %3481
    %v3488 = vsel %vm2476, %v3471, 0
    %v3491 = vsel %vm2476, %v3472, 0
    %v3494 = vsel %vm2476, %v3473, 0
    %v3497 = vsel %vm2476, %v3474, 0
    %3499 = vmatprep.subr.bf16.mxu0 0
    %3500 = vmatpush1.bf16.msra.mxu0 0
    %3501 = vmatprep.subr.bf16.mxu0 0
    %3502 = vmatpush1.bf16.msra.mxu0 0
    %3503 = vmatprep.subr.bf16.mxu0 0
    %3504 = vmatpush1.bf16.msra.mxu0 0
    %3505 = vmatprep.subr.bf16.mxu0 0
    %3506 = vmatpush1.bf16.msra.mxu0 0
    %3507 = vmatprep.subr.bf16.mxu0 0
    %3508 = vmatpush1.bf16.msra.mxu0 %v3482
    %3509 = vmatprep.subr.bf16.mxu0 0
    %3510 = vmatpush1.bf16.msra.mxu0 %v3480
    %3511 = vmatprep.subr.bf16.mxu0 0
    %3512 = vmatpush1.bf16.msra.mxu0 %v3478
    %3513 = vmatprep.subr.bf16.mxu0 0
    %3514 = vmatpush1.bf16.msra.mxu0 %v3476
    %3515 = vmatprep.subr.bf16.mxu0 0
    %3516 = vmatpush2.bf16.msra.mxu0 0
    %3517 = vmatprep.subr.bf16.mxu0 0
    %3518 = vmatpush2.bf16.msra.mxu0 0
    %3519 = vmatprep.subr.bf16.mxu0 0
    %3520 = vmatpush2.bf16.msra.mxu0 0
    %3521 = vmatprep.subr.bf16.mxu0 0
    %3522 = vmatpush2.bf16.msra.mxu0 0
    %3523 = vmatprep.subr.bf16.mxu0 0
    %3524 = vmatpush2.bf16.msra.mxu0 0
    %3525 = vmatprep.subr.bf16.mxu0 0
    %3526 = vmatpush2.bf16.msra.mxu0 0
    %3527 = vmatprep.subr.bf16.mxu0 0
    %3528 = vmatpush2.bf16.msra.mxu0 0
    %3529 = vmatprep.subr.bf16.mxu0 0
    %3530 = vmatpush2.bf16.msra.mxu0 0
    %3531 = vmatprep.mubr.bf16.mxu0 0
    %3532 = vmatmul.mubr.bf16.gmra.mxu0 %v3488
    %v3533 = vpop.f32.mrf.mxu0
    %v3534 = vadd.f32 0.0, %v3533
    %v3535 = vpop.f32.mrf.mxu0
    %v3536 = vpop.f32.mrf.mxu0
    %v3537 = vadd.f32 0.0, %v3536
    %v3538 = vpop.f32.mrf.mxu0
    %3539 = vmatprep.mubr.bf16.mxu0 0
    %3540 = vmatmul.mubr.bf16.gmra.mxu0 %v3491
    %v3541 = vpop.f32.mrf.mxu0
    %v3542 = vadd.f32 0.0, %v3541
    %v3543 = vpop.f32.mrf.mxu0
    %v3544 = vpop.f32.mrf.mxu0
    %v3545 = vadd.f32 0.0, %v3544
    %v3546 = vpop.f32.mrf.mxu0
    %3547 = vmatprep.mubr.bf16.mxu0 0
    %3548 = vmatmul.mubr.bf16.gmra.mxu0 %v3494
    %v3549 = vpop.f32.mrf.mxu0
    %v3550 = vadd.f32 0.0, %v3549
    %v3551 = vpop.f32.mrf.mxu0
    %v3552 = vpop.f32.mrf.mxu0
    %v3553 = vadd.f32 0.0, %v3552
    %v3554 = vpop.f32.mrf.mxu0
    %3555 = vmatprep.mubr.bf16.mxu0 0
    %3556 = vmatmul.mubr.bf16.gmra.mxu0 %v3497
    %v3557 = vpop.f32.mrf.mxu0
    %v3558 = vadd.f32 0.0, %v3557
    %v3559 = vpop.f32.mrf.mxu0
    %v3560 = vpop.f32.mrf.mxu0
    %v3561 = vadd.f32 0.0, %v3560
    %v3562 = vpop.f32.mrf.mxu0
    %3563 = vdwg.mxu0
    %3572 = vrot.lane.b32.xlu0 %v2930, 8
    %v3573 = vpop.permute.xlu0 %3572
    %3574 = vrot.lane.b32.xlu0 %v2933, 8
    %v3575 = vpop.permute.xlu0 %3574
    %3576 = vrot.lane.b32.xlu0 %v2938, 8
    %v3577 = vpop.permute.xlu0 %3576
    %3578 = vrot.lane.b32.xlu0 %v2941, 8
    %v3579 = vpop.permute.xlu0 %3578
    %3580 = vrot.lane.b32.xlu0 %v2946, 8
    %v3581 = vpop.permute.xlu0 %3580
    %3582 = vrot.lane.b32.xlu0 %v2949, 8
    %v3583 = vpop.permute.xlu0 %3582
    %3584 = vrot.lane.b32.xlu0 %v2954, 8
    %v3585 = vpop.permute.xlu0 %3584
    %3586 = vrot.lane.b32.xlu0 %v2957, 8
    %v3587 = vpop.permute.xlu0 %3586
    %3604 = vrot.lane.b32.xlu0 %v3232, 16
    %v3605 = vpop.permute.xlu0 %3604
    %3606 = vrot.lane.b32.xlu0 %v3235, 16
    %v3607 = vpop.permute.xlu0 %3606
    %3608 = vrot.lane.b32.xlu0 %v3240, 16
    %v3609 = vpop.permute.xlu0 %3608
    %3610 = vrot.lane.b32.xlu0 %v3243, 16
    %v3611 = vpop.permute.xlu0 %3610
    %3612 = vrot.lane.b32.xlu0 %v3248, 16
    %v3613 = vpop.permute.xlu0 %3612
    %3614 = vrot.lane.b32.xlu0 %v3251, 16
    %v3615 = vpop.permute.xlu0 %3614
    %3616 = vrot.lane.b32.xlu0 %v3256, 16
    %v3617 = vpop.permute.xlu0 %3616
    %3618 = vrot.lane.b32.xlu0 %v3259, 16
    %v3619 = vpop.permute.xlu0 %3618
    %3636 = vrot.lane.b32.xlu0 %v3534, 24
    %v3637 = vpop.permute.xlu0 %3636
    %3638 = vrot.lane.b32.xlu0 %v3537, 24
    %v3639 = vpop.permute.xlu0 %3638
    %3640 = vrot.lane.b32.xlu0 %v3542, 24
    %v3641 = vpop.permute.xlu0 %3640
    %3642 = vrot.lane.b32.xlu0 %v3545, 24
    %v3643 = vpop.permute.xlu0 %3642
    %3644 = vrot.lane.b32.xlu0 %v3550, 24
    %v3645 = vpop.permute.xlu0 %3644
    %3646 = vrot.lane.b32.xlu0 %v3553, 24
    %v3647 = vpop.permute.xlu0 %3646
    %3648 = vrot.lane.b32.xlu0 %v3558, 24
    %v3649 = vpop.permute.xlu0 %3648
    %3650 = vrot.lane.b32.xlu0 %v3561, 24
    %v3651 = vpop.permute.xlu0 %3650
    %v3660 = vsel %vm362, %v2628, %v3573
    %v3661 = vsel %vm362, %v2631, %v3575
    %v3662 = vsel %vm362, %v2636, %v3577
    %v3663 = vsel %vm362, %v2639, %v3579
    %v3664 = vsel %vm362, %v2644, %v3581
    %v3665 = vsel %vm362, %v2647, %v3583
    %v3666 = vsel %vm362, %v2652, %v3585
    %v3667 = vsel %vm362, %v2655, %v3587
    %v3668 = vsel %vm661, %v3660, %v3605
    %v3669 = vsel %vm661, %v3661, %v3607
    %v3670 = vsel %vm661, %v3662, %v3609
    %v3671 = vsel %vm661, %v3663, %v3611
    %v3672 = vsel %vm661, %v3664, %v3613
    %v3673 = vsel %vm661, %v3665, %v3615
    %v3674 = vsel %vm661, %v3666, %v3617
    %v3675 = vsel %vm661, %v3667, %v3619
    %vm3676 = vcmask 195584
    %v3677 = vsel %vm3676, %v3668, %v3637
    %v3678 = vsel %vm3676, %v3669, %v3639
    %v3679 = vsel %vm3676, %v3670, %v3641
    %v3680 = vsel %vm3676, %v3671, %v3643
    %v3681 = vsel %vm3676, %v3672, %v3645
    %v3682 = vsel %vm3676, %v3673, %v3647
    %v3683 = vsel %vm3676, %v3674, %v3649
    %v3684 = vsel %vm3676, %v3675, %v3651
    %v3685 = vld [vmem:[%s7 + $0x98] sm:$0xf]
    %v3686 = vld [vmem:[%s7 + $0x9c] sm:$0xf]
    %v3687 = vld [vmem:[%s7 + $0xa0] sm:$0xf]
    %v3688 = vld [vmem:[%s7 + $0xa4] sm:$0xf]
    %v3689 = vpack.c.bf16 %v3678, %v3677
    %v3690 = vpack.c.bf16 %v3680, %v3679
    %v3691 = vpack.c.bf16 %v3682, %v3681
    %v3692 = vpack.c.bf16 %v3684, %v3683
    %v3693 = vld [vmem:[%s8 + $0x70] sm:$0x1]
    %v3694 = vlaneseq
    %v3695 = vshrl.u32 %v3694, 7
    %v3696 = vsub.s32 0, %v3695
    %v3697 = vrot.slane %v3693, %v3696
    %v3702 = vunpack.c.l.b16 %v3685
    %v3703 = vunpack.c.l.b16 %v3686
    %v3704 = vunpack.c.l.b16 %v3687
    %v3705 = vunpack.c.l.b16 %v3688
    %v3706 = vpack.c.b16 %v3703, %v3702
    %v3707 = vpack.c.b16 %v3705, %v3704
    %v3711 = vsel %vm575, %v3689, 0
    %v3714 = vsel %vm575, %v3690, 0
    %v3717 = vsel %vm575, %v3691, 0
    %v3720 = vsel %vm575, %v3692, 0
    %3722 = vmatprep.subr.bf16.mxu0 0
    %3723 = vmatpush1.bf16.msra.mxu0 0
    %3724 = vmatprep.subr.bf16.mxu0 0
    %3725 = vmatpush1.bf16.msra.mxu0 0
    %3726 = vmatprep.subr.bf16.mxu0 0
    %3727 = vmatpush1.bf16.msra.mxu0 0
    %3728 = vmatprep.subr.bf16.mxu0 0
    %3729 = vmatpush1.bf16.msra.mxu0 0
    %3730 = vmatprep.subr.bf16.mxu0 0
    %3731 = vmatpush1.bf16.msra.mxu0 0
    %3732 = vmatprep.subr.bf16.mxu0 0
    %3733 = vmatpush1.bf16.msra.mxu0 0
    %3734 = vmatprep.subr.bf16.mxu0 0
    %3735 = vmatpush1.bf16.msra.mxu0 %v3707
    %3736 = vmatprep.subr.bf16.mxu0 0
    %3737 = vmatpush1.bf16.msra.mxu0 %v3706
    %3738 = vmatprep.subr.bf16.mxu0 0
    %3739 = vmatpush2.bf16.msra.mxu0 0
    %3740 = vmatprep.subr.bf16.mxu0 0
    %3741 = vmatpush2.bf16.msra.mxu0 0
    %3742 = vmatprep.subr.bf16.mxu0 0
    %3743 = vmatpush2.bf16.msra.mxu0 0
    %3744 = vmatprep.subr.bf16.mxu0 0
    %3745 = vmatpush2.bf16.msra.mxu0 0
    %3746 = vmatprep.subr.bf16.mxu0 0
    %3747 = vmatpush2.bf16.msra.mxu0 0
    %3748 = vmatprep.subr.bf16.mxu0 0
    %3749 = vmatpush2.bf16.msra.mxu0 0
    %3750 = vmatprep.subr.bf16.mxu0 0
    %3751 = vmatpush2.bf16.msra.mxu0 0
    %3752 = vmatprep.subr.bf16.mxu0 0
    %3753 = vmatpush2.bf16.msra.mxu0 0
    %3754 = vmatprep.mubr.bf16.mxu0 0
    %3755 = vmatmul.mubr.bf16.gmra.mxu0 %v3711
    %v3756 = vpop.f32.mrf.mxu0
    %v3757 = vadd.f32 %v3697, %v3756
    %v3758 = vpop.f32.mrf.mxu0
    %v3759 = vpop.f32.mrf.mxu0
    %v3760 = vadd.f32 %v3697, %v3759
    %v3761 = vpop.f32.mrf.mxu0
    %3762 = vmatprep.mubr.bf16.mxu0 0
    %3763 = vmatmul.mubr.bf16.gmra.mxu0 %v3714
    %v3764 = vpop.f32.mrf.mxu0
    %v3765 = vadd.f32 %v3697, %v3764
    %v3766 = vpop.f32.mrf.mxu0
    %v3767 = vpop.f32.mrf.mxu0
    %v3768 = vadd.f32 %v3697, %v3767
    %v3769 = vpop.f32.mrf.mxu0
    %3770 = vmatprep.mubr.bf16.mxu0 0
    %3771 = vmatmul.mubr.bf16.gmra.mxu0 %v3717
    %v3772 = vpop.f32.mrf.mxu0
    %v3773 = vadd.f32 %v3697, %v3772
    %v3774 = vpop.f32.mrf.mxu0
    %v3775 = vpop.f32.mrf.mxu0
    %v3776 = vadd.f32 %v3697, %v3775
    %v3777 = vpop.f32.mrf.mxu0
    %3778 = vmatprep.mubr.bf16.mxu0 0
    %3779 = vmatmul.mubr.bf16.gmra.mxu0 %v3720
    %v3780 = vpop.f32.mrf.mxu0
    %v3781 = vadd.f32 %v3697, %v3780
    %v3782 = vpop.f32.mrf.mxu0
    %v3783 = vpop.f32.mrf.mxu0
    %v3784 = vadd.f32 %v3697, %v3783
    %v3785 = vpop.f32.mrf.mxu0
    %3786 = vdwg.mxu0
    %v3787 = vadd.f32 %v3757, %v1856
    %v3788 = vadd.f32 %v3760, %v1857
    %v3789 = vadd.f32 %v3765, %v1858
    %v3790 = vadd.f32 %v3768, %v1859
    %v3791 = vadd.f32 %v3773, %v1860
    %v3792 = vadd.f32 %v3776, %v1861
    %v3793 = vadd.f32 %v3781, %v1862
    %v3794 = vadd.f32 %v3784, %v1863
    %v3795 = vsel %vm575, %v3787, 0.0
    %3796 = vadd.xlane.f32.xlu0 %v3795
    %v3797 = vpop.xlane.xlu0 %3796
    %v3798 = vsel %vm575, %v3788, 0.0
    %3799 = vadd.xlane.f32.xlu0 %v3798
    %v3800 = vpop.xlane.xlu0 %3799
    %v3801 = vsel %vm575, %v3789, 0.0
    %3802 = vadd.xlane.f32.xlu0 %v3801
    %v3803 = vpop.xlane.xlu0 %3802
    %v3804 = vsel %vm575, %v3790, 0.0
    %3805 = vadd.xlane.f32.xlu0 %v3804
    %v3806 = vpop.xlane.xlu0 %3805
    %v3807 = vsel %vm575, %v3791, 0.0
    %3808 = vadd.xlane.f32.xlu0 %v3807
    %v3809 = vpop.xlane.xlu0 %3808
    %v3810 = vsel %vm575, %v3792, 0.0
    %3811 = vadd.xlane.f32.xlu0 %v3810
    %v3812 = vpop.xlane.xlu0 %3811
    %v3813 = vsel %vm575, %v3793, 0.0
    %3814 = vadd.xlane.f32.xlu0 %v3813
    %v3815 = vpop.xlane.xlu0 %3814
    %v3816 = vsel %vm575, %v3794, 0.0
    %3817 = vadd.xlane.f32.xlu0 %v3816
    %v3818 = vpop.xlane.xlu0 %3817
    %v3819 = vrcp.pop 32.0
    %v3820 = vmul.f32 %v3797, %v3819
    %v3821 = vmul.f32 %v3800, %v3819
    %v3822 = vmul.f32 %v3803, %v3819
    %v3823 = vmul.f32 %v3806, %v3819
    %v3824 = vmul.f32 %v3809, %v3819
    %v3825 = vmul.f32 %v3812, %v3819
    %v3826 = vmul.f32 %v3815, %v3819
    %v3827 = vmul.f32 %v3818, %v3819
    %v3828 = vsub.f32 %v3787, %v3820
    %v3829 = vsub.f32 %v3788, %v3821
    %v3830 = vsub.f32 %v3789, %v3822
    %v3831 = vsub.f32 %v3790, %v3823
    %v3832 = vsub.f32 %v3791, %v3824
    %v3833 = vsub.f32 %v3792, %v3825
    %v3834 = vsub.f32 %v3793, %v3826
    %v3835 = vsub.f32 %v3794, %v3827
    %v3836 = vmul.f32 %v3828, %v3828
    %v3837 = vmul.f32 %v3829, %v3829
    %v3838 = vmul.f32 %v3830, %v3830
    %v3839 = vmul.f32 %v3831, %v3831
    %v3840 = vmul.f32 %v3832, %v3832
    %v3841 = vmul.f32 %v3833, %v3833
    %v3842 = vmul.f32 %v3834, %v3834
    %v3843 = vmul.f32 %v3835, %v3835
    %v3844 = vsel %vm575, %v3836, 0.0
    %3845 = vadd.xlane.f32.xlu0 %v3844
    %v3846 = vpop.xlane.xlu0 %3845
    %v3847 = vsel %vm575, %v3837, 0.0
    %3848 = vadd.xlane.f32.xlu0 %v3847
    %v3849 = vpop.xlane.xlu0 %3848
    %v3850 = vsel %vm575, %v3838, 0.0
    %3851 = vadd.xlane.f32.xlu0 %v3850
    %v3852 = vpop.xlane.xlu0 %3851
    %v3853 = vsel %vm575, %v3839, 0.0
    %3854 = vadd.xlane.f32.xlu0 %v3853
    %v3855 = vpop.xlane.xlu0 %3854
    %v3856 = vsel %vm575, %v3840, 0.0
    %3857 = vadd.xlane.f32.xlu0 %v3856
    %v3858 = vpop.xlane.xlu0 %3857
    %v3859 = vsel %vm575, %v3841, 0.0
    %3860 = vadd.xlane.f32.xlu0 %v3859
    %v3861 = vpop.xlane.xlu0 %3860
    %v3862 = vsel %vm575, %v3842, 0.0
    %3863 = vadd.xlane.f32.xlu0 %v3862
    %v3864 = vpop.xlane.xlu0 %3863
    %v3865 = vsel %vm575, %v3843, 0.0
    %3866 = vadd.xlane.f32.xlu0 %v3865
    %v3867 = vpop.xlane.xlu0 %3866
    %v3868 = vmul.f32 %v3846, %v3819
    %v3869 = vmul.f32 %v3849, %v3819
    %v3870 = vmul.f32 %v3852, %v3819
    %v3871 = vmul.f32 %v3855, %v3819
    %v3872 = vmul.f32 %v3858, %v3819
    %v3873 = vmul.f32 %v3861, %v3819
    %v3874 = vmul.f32 %v3864, %v3819
    %v3875 = vmul.f32 %v3867, %v3819
    %v3876 = vadd.f32 %v3868, 1e-05
    %v3877 = vadd.f32 %v3869, 1e-05
    %v3878 = vadd.f32 %v3870, 1e-05
    %v3879 = vadd.f32 %v3871, 1e-05
    %v3880 = vadd.f32 %v3872, 1e-05
    %v3881 = vadd.f32 %v3873, 1e-05
    %v3882 = vadd.f32 %v3874, 1e-05
    %v3883 = vadd.f32 %v3875, 1e-05
    %v3884 = vrsqrt.pop %v3876
    %v3885 = vrsqrt.pop %v3877
    %v3886 = vrsqrt.pop %v3878
    %v3887 = vrsqrt.pop %v3879
    %v3888 = vrsqrt.pop %v3880
    %v3889 = vrsqrt.pop %v3881
    %v3890 = vrsqrt.pop %v3882
    %v3891 = vrsqrt.pop %v3883
    %v3892 = vmul.f32 %v3828, %v3884
    %v3893 = vmul.f32 %v3829, %v3885
    %v3894 = vmul.f32 %v3830, %v3886
    %v3895 = vmul.f32 %v3831, %v3887
    %v3896 = vmul.f32 %v3832, %v3888
    %v3897 = vmul.f32 %v3833, %v3889
    %v3898 = vmul.f32 %v3834, %v3890
    %v3899 = vmul.f32 %v3835, %v3891
    %v3900 = vld [vmem:[%s8 + $0x78] sm:$0x1]
    %v3901 = vlaneseq
    %v3902 = vshrl.u32 %v3901, 7
    %v3903 = vsub.s32 0, %v3902
    %v3904 = vrot.slane %v3900, %v3903
    %v3905 = vmul.f32 %v3892, %v3904
    %v3906 = vmul.f32 %v3893, %v3904
    %v3907 = vmul.f32 %v3894, %v3904
    %v3908 = vmul.f32 %v3895, %v3904
    %v3909 = vmul.f32 %v3896, %v3904
    %v3910 = vmul.f32 %v3897, %v3904
    %v3911 = vmul.f32 %v3898, %v3904
    %v3912 = vmul.f32 %v3899, %v3904
    %v3913 = vld [vmem:[%s8 + $0x80] sm:$0x1]
    %v3914 = vlaneseq
    %v3915 = vshrl.u32 %v3914, 7
    %v3916 = vsub.s32 0, %v3915
    %v3917 = vrot.slane %v3913, %v3916
    %v3918 = vadd.f32 %v3905, %v3917
    %v3919 = vadd.f32 %v3906, %v3917
    %v3920 = vadd.f32 %v3907, %v3917
    %v3921 = vadd.f32 %v3908, %v3917
    %v3922 = vadd.f32 %v3909, %v3917
    %v3923 = vadd.f32 %v3910, %v3917
    %v3924 = vadd.f32 %v3911, %v3917
    %v3925 = vadd.f32 %v3912, %v3917
    %v3926 = vld [vmem:[%s7 + $0xa8] sm:$0xf]
    %v3927 = vld [vmem:[%s7 + $0xac] sm:$0xf]
    %v3928 = vld [vmem:[%s7 + $0xb0] sm:$0xf]
    %v3929 = vld [vmem:[%s7 + $0xb4] sm:$0xf]
    %v3930 = vpack.c.bf16 %v3919, %v3918
    %v3931 = vpack.c.bf16 %v3921, %v3920
    %v3932 = vpack.c.bf16 %v3923, %v3922
    %v3933 = vpack.c.bf16 %v3925, %v3924
    %v3934 = vld [vmem:[%s8 + $0x88] sm:$0x1]
    %v3935 = vlaneseq
    %v3936 = vshrl.u32 %v3935, 7
    %v3937 = vsub.s32 0, %v3936
    %v3938 = vrot.slane %v3934, %v3937
    %v3943 = vunpack.c.l.b16 %v3926
    %v3944 = vunpack.c.l.b16 %v3927
    %v3945 = vunpack.c.l.b16 %v3928
    %v3946 = vunpack.c.l.b16 %v3929
    %v3947 = vpack.c.b16 %v3944, %v3943
    %v3948 = vpack.c.b16 %v3946, %v3945
    %v3952 = vsel %vm575, %v3930, 0
    %v3955 = vsel %vm575, %v3931, 0
    %v3958 = vsel %vm575, %v3932, 0
    %v3961 = vsel %vm575, %v3933, 0
    %3963 = vmatprep.subr.bf16.mxu0 0
    %3964 = vmatpush1.bf16.msra.mxu0 0
    %3965 = vmatprep.subr.bf16.mxu0 0
    %3966 = vmatpush1.bf16.msra.mxu0 0
    %3967 = vmatprep.subr.bf16.mxu0 0
    %3968 = vmatpush1.bf16.msra.mxu0 0
    %3969 = vmatprep.subr.bf16.mxu0 0
    %3970 = vmatpush1.bf16.msra.mxu0 0
    %3971 = vmatprep.subr.bf16.mxu0 0
    %3972 = vmatpush1.bf16.msra.mxu0 0
    %3973 = vmatprep.subr.bf16.mxu0 0
    %3974 = vmatpush1.bf16.msra.mxu0 0
    %3975 = vmatprep.subr.bf16.mxu0 0
    %3976 = vmatpush1.bf16.msra.mxu0 %v3948
    %3977 = vmatprep.subr.bf16.mxu0 0
    %3978 = vmatpush1.bf16.msra.mxu0 %v3947
    %3979 = vmatprep.subr.bf16.mxu0 0
    %3980 = vmatpush2.bf16.msra.mxu0 0
    %3981 = vmatprep.subr.bf16.mxu0 0
    %3982 = vmatpush2.bf16.msra.mxu0 0
    %3983 = vmatprep.subr.bf16.mxu0 0
    %3984 = vmatpush2.bf16.msra.mxu0 0
    %3985 = vmatprep.subr.bf16.mxu0 0
    %3986 = vmatpush2.bf16.msra.mxu0 0
    %3987 = vmatprep.subr.bf16.mxu0 0
    %3988 = vmatpush2.bf16.msra.mxu0 0
    %3989 = vmatprep.subr.bf16.mxu0 0
    %3990 = vmatpush2.bf16.msra.mxu0 0
    %3991 = vmatprep.subr.bf16.mxu0 0
    %3992 = vmatpush2.bf16.msra.mxu0 0
    %3993 = vmatprep.subr.bf16.mxu0 0
    %3994 = vmatpush2.bf16.msra.mxu0 0
    %3995 = vmatprep.mubr.bf16.mxu0 0
    %3996 = vmatmul.mubr.bf16.gmra.mxu0 %v3952
    %v3997 = vpop.f32.mrf.mxu0
    %v3998 = vadd.f32 %v3938, %v3997
    %v3999 = vpop.f32.mrf.mxu0
    %v4000 = vpop.f32.mrf.mxu0
    %v4001 = vadd.f32 %v3938, %v4000
    %v4002 = vpop.f32.mrf.mxu0
    %4003 = vmatprep.mubr.bf16.mxu0 0
    %4004 = vmatmul.mubr.bf16.gmra.mxu0 %v3955
    %v4005 = vpop.f32.mrf.mxu0
    %v4006 = vadd.f32 %v3938, %v4005
    %v4007 = vpop.f32.mrf.mxu0
    %v4008 = vpop.f32.mrf.mxu0
    %v4009 = vadd.f32 %v3938, %v4008
    %v4010 = vpop.f32.mrf.mxu0
    %4011 = vmatprep.mubr.bf16.mxu0 0
    %4012 = vmatmul.mubr.bf16.gmra.mxu0 %v3958
    %v4013 = vpop.f32.mrf.mxu0
    %v4014 = vadd.f32 %v3938, %v4013
    %v4015 = vpop.f32.mrf.mxu0
    %v4016 = vpop.f32.mrf.mxu0
    %v4017 = vadd.f32 %v3938, %v4016
    %v4018 = vpop.f32.mrf.mxu0
    %4019 = vmatprep.mubr.bf16.mxu0 0
    %4020 = vmatmul.mubr.bf16.gmra.mxu0 %v3961
    %v4021 = vpop.f32.mrf.mxu0
    %v4022 = vadd.f32 %v3938, %v4021
    %v4023 = vpop.f32.mrf.mxu0
    %v4024 = vpop.f32.mrf.mxu0
    %v4025 = vadd.f32 %v3938, %v4024
    %v4026 = vpop.f32.mrf.mxu0
    %4027 = vdwg.mxu0
    %v4028 = vmax.f32 %v3998, 0.0
    %v4029 = vmax.f32 %v4001, 0.0
    %v4030 = vmax.f32 %v4006, 0.0
    %v4031 = vmax.f32 %v4009, 0.0
    %v4032 = vmax.f32 %v4014, 0.0
    %v4033 = vmax.f32 %v4017, 0.0
    %v4034 = vmax.f32 %v4022, 0.0
    %v4035 = vmax.f32 %v4025, 0.0
    %v4036 = vld [vmem:[%s7 + $0xb8] sm:$0xf]
    %v4037 = vld [vmem:[%s7 + $0xbc] sm:$0xf]
    %v4038 = vld [vmem:[%s7 + $0xc0] sm:$0xf]
    %v4039 = vld [vmem:[%s7 + $0xc4] sm:$0xf]
    %v4040 = vpack.c.bf16 %v4029, %v4028
    %v4041 = vpack.c.bf16 %v4031, %v4030
    %v4042 = vpack.c.bf16 %v4033, %v4032
    %v4043 = vpack.c.bf16 %v4035, %v4034
    %v4044 = vld [vmem:[%s8 + $0x90] sm:$0x1]
    %v4045 = vlaneseq
    %v4046 = vshrl.u32 %v4045, 7
    %v4047 = vsub.s32 0, %v4046
    %v4048 = vrot.slane %v4044, %v4047
    %v4053 = vunpack.c.l.b16 %v4036
    %v4054 = vunpack.c.l.b16 %v4037
    %v4055 = vunpack.c.l.b16 %v4038
    %v4056 = vunpack.c.l.b16 %v4039
    %v4057 = vpack.c.b16 %v4054, %v4053
    %v4058 = vpack.c.b16 %v4056, %v4055
    %v4062 = vsel %vm575, %v4040, 0
    %v4065 = vsel %vm575, %v4041, 0
    %v4068 = vsel %vm575, %v4042, 0
    %v4071 = vsel %vm575, %v4043, 0
    %4073 = vmatprep.subr.bf16.mxu0 0
    %4074 = vmatpush1.bf16.msra.mxu0 0
    %4075 = vmatprep.subr.bf16.mxu0 0
    %4076 = vmatpush1.bf16.msra.mxu0 0
    %4077 = vmatprep.subr.bf16.mxu0 0
    %4078 = vmatpush1.bf16.msra.mxu0 0
    %4079 = vmatprep.subr.bf16.mxu0 0
    %4080 = vmatpush1.bf16.msra.mxu0 0
    %4081 = vmatprep.subr.bf16.mxu0 0
    %4082 = vmatpush1.bf16.msra.mxu0 0
    %4083 = vmatprep.subr.bf16.mxu0 0
    %4084 = vmatpush1.bf16.msra.mxu0 0
    %4085 = vmatprep.subr.bf16.mxu0 0
    %4086 = vmatpush1.bf16.msra.mxu0 %v4058
    %4087 = vmatprep.subr.bf16.mxu0 0
    %4088 = vmatpush1.bf16.msra.mxu0 %v4057
    %4089 = vmatprep.subr.bf16.mxu0 0
    %4090 = vmatpush2.bf16.msra.mxu0 0
    %4091 = vmatprep.subr.bf16.mxu0 0
    %4092 = vmatpush2.bf16.msra.mxu0 0
    %4093 = vmatprep.subr.bf16.mxu0 0
    %4094 = vmatpush2.bf16.msra.mxu0 0
    %4095 = vmatprep.subr.bf16.mxu0 0
    %4096 = vmatpush2.bf16.msra.mxu0 0
    %4097 = vmatprep.subr.bf16.mxu0 0
    %4098 = vmatpush2.bf16.msra.mxu0 0
    %4099 = vmatprep.subr.bf16.mxu0 0
    %4100 = vmatpush2.bf16.msra.mxu0 0
    %4101 = vmatprep.subr.bf16.mxu0 0
    %4102 = vmatpush2.bf16.msra.mxu0 0
    %4103 = vmatprep.subr.bf16.mxu0 0
    %4104 = vmatpush2.bf16.msra.mxu0 0
    %4105 = vmatprep.mubr.bf16.mxu0 0
    %4106 = vmatmul.mubr.bf16.gmra.mxu0 %v4062
    %v4107 = vpop.f32.mrf.mxu0
    %v4108 = vadd.f32 %v4048, %v4107
    %v4109 = vpop.f32.mrf.mxu0
    %v4110 = vpop.f32.mrf.mxu0
    %v4111 = vadd.f32 %v4048, %v4110
    %v4112 = vpop.f32.mrf.mxu0
    %4113 = vmatprep.mubr.bf16.mxu0 0
    %4114 = vmatmul.mubr.bf16.gmra.mxu0 %v4065
    %v4115 = vpop.f32.mrf.mxu0
    %v4116 = vadd.f32 %v4048, %v4115
    %v4117 = vpop.f32.mrf.mxu0
    %v4118 = vpop.f32.mrf.mxu0
    %v4119 = vadd.f32 %v4048, %v4118
    %v4120 = vpop.f32.mrf.mxu0
    %4121 = vmatprep.mubr.bf16.mxu0 0
    %4122 = vmatmul.mubr.bf16.gmra.mxu0 %v4068
    %v4123 = vpop.f32.mrf.mxu0
    %v4124 = vadd.f32 %v4048, %v4123
    %v4125 = vpop.f32.mrf.mxu0
    %v4126 = vpop.f32.mrf.mxu0
    %v4127 = vadd.f32 %v4048, %v4126
    %v4128 = vpop.f32.mrf.mxu0
    %4129 = vmatprep.mubr.bf16.mxu0 0
    %4130 = vmatmul.mubr.bf16.gmra.mxu0 %v4071
    %v4131 = vpop.f32.mrf.mxu0
    %v4132 = vadd.f32 %v4048, %v4131
    %v4133 = vpop.f32.mrf.mxu0
    %v4134 = vpop.f32.mrf.mxu0
    %v4135 = vadd.f32 %v4048, %v4134
    %v4136 = vpop.f32.mrf.mxu0
    %4137 = vdwg.mxu0
    %v4138 = vadd.f32 %v4108, %v3918
    %v4139 = vadd.f32 %v4111, %v3919
    %v4140 = vadd.f32 %v4116, %v3920
    %v4141 = vadd.f32 %v4119, %v3921
    %v4142 = vadd.f32 %v4124, %v3922
    %v4143 = vadd.f32 %v4127, %v3923
    %v4144 = vadd.f32 %v4132, %v3924
    %v4145 = vadd.f32 %v4135, %v3925
    %v4146 = vsel %vm575, %v4138, 0.0
    %4147 = vadd.xlane.f32.xlu0 %v4146
    %v4148 = vpop.xlane.xlu0 %4147
    %v4149 = vsel %vm575, %v4139, 0.0
    %4150 = vadd.xlane.f32.xlu0 %v4149
    %v4151 = vpop.xlane.xlu0 %4150
    %v4152 = vsel %vm575, %v4140, 0.0
    %4153 = vadd.xlane.f32.xlu0 %v4152
    %v4154 = vpop.xlane.xlu0 %4153
    %v4155 = vsel %vm575, %v4141, 0.0
    %4156 = vadd.xlane.f32.xlu0 %v4155
    %v4157 = vpop.xlane.xlu0 %4156
    %v4158 = vsel %vm575, %v4142, 0.0
    %4159 = vadd.xlane.f32.xlu0 %v4158
    %v4160 = vpop.xlane.xlu0 %4159
    %v4161 = vsel %vm575, %v4143, 0.0
    %4162 = vadd.xlane.f32.xlu0 %v4161
    %v4163 = vpop.xlane.xlu0 %4162
    %v4164 = vsel %vm575, %v4144, 0.0
    %4165 = vadd.xlane.f32.xlu0 %v4164
    %v4166 = vpop.xlane.xlu0 %4165
    %v4167 = vsel %vm575, %v4145, 0.0
    %4168 = vadd.xlane.f32.xlu0 %v4167
    %v4169 = vpop.xlane.xlu0 %4168
    %v4170 = vmul.f32 %v4148, %v3819
    %v4171 = vmul.f32 %v4151, %v3819
    %v4172 = vmul.f32 %v4154, %v3819
    %v4173 = vmul.f32 %v4157, %v3819
    %v4174 = vmul.f32 %v4160, %v3819
    %v4175 = vmul.f32 %v4163, %v3819
    %v4176 = vmul.f32 %v4166, %v3819
    %v4177 = vmul.f32 %v4169, %v3819
    %v4178 = vsub.f32 %v4138, %v4170
    %v4179 = vsub.f32 %v4139, %v4171
    %v4180 = vsub.f32 %v4140, %v4172
    %v4181 = vsub.f32 %v4141, %v4173
    %v4182 = vsub.f32 %v4142, %v4174
    %v4183 = vsub.f32 %v4143, %v4175
    %v4184 = vsub.f32 %v4144, %v4176
    %v4185 = vsub.f32 %v4145, %v4177
    %v4186 = vmul.f32 %v4178, %v4178
    %v4187 = vmul.f32 %v4179, %v4179
    %v4188 = vmul.f32 %v4180, %v4180
    %v4189 = vmul.f32 %v4181, %v4181
    %v4190 = vmul.f32 %v4182, %v4182
    %v4191 = vmul.f32 %v4183, %v4183
    %v4192 = vmul.f32 %v4184, %v4184
    %v4193 = vmul.f32 %v4185, %v4185
    %v4194 = vsel %vm575, %v4186, 0.0
    %4195 = vadd.xlane.f32.xlu0 %v4194
    %v4196 = vpop.xlane.xlu0 %4195
    %v4197 = vsel %vm575, %v4187, 0.0
    %4198 = vadd.xlane.f32.xlu0 %v4197
    %v4199 = vpop.xlane.xlu0 %4198
    %v4200 = vsel %vm575, %v4188, 0.0
    %4201 = vadd.xlane.f32.xlu0 %v4200
    %v4202 = vpop.xlane.xlu0 %4201
    %v4203 = vsel %vm575, %v4189, 0.0
    %4204 = vadd.xlane.f32.xlu0 %v4203
    %v4205 = vpop.xlane.xlu0 %4204
    %v4206 = vsel %vm575, %v4190, 0.0
    %4207 = vadd.xlane.f32.xlu0 %v4206
    %v4208 = vpop.xlane.xlu0 %4207
    %v4209 = vsel %vm575, %v4191, 0.0
    %4210 = vadd.xlane.f32.xlu0 %v4209
    %v4211 = vpop.xlane.xlu0 %4210
    %v4212 = vsel %vm575, %v4192, 0.0
    %4213 = vadd.xlane.f32.xlu0 %v4212
    %v4214 = vpop.xlane.xlu0 %4213
    %v4215 = vsel %vm575, %v4193, 0.0
    %4216 = vadd.xlane.f32.xlu0 %v4215
    %v4217 = vpop.xlane.xlu0 %4216
    %v4218 = vmul.f32 %v4196, %v3819
    %v4219 = vmul.f32 %v4199, %v3819
    %v4220 = vmul.f32 %v4202, %v3819
    %v4221 = vmul.f32 %v4205, %v3819
    %v4222 = vmul.f32 %v4208, %v3819
    %v4223 = vmul.f32 %v4211, %v3819
    %v4224 = vmul.f32 %v4214, %v3819
    %v4225 = vmul.f32 %v4217, %v3819
    %v4226 = vadd.f32 %v4218, 1e-05
    %v4227 = vadd.f32 %v4219, 1e-05
    %v4228 = vadd.f32 %v4220, 1e-05
    %v4229 = vadd.f32 %v4221, 1e-05
    %v4230 = vadd.f32 %v4222, 1e-05
    %v4231 = vadd.f32 %v4223, 1e-05
    %v4232 = vadd.f32 %v4224, 1e-05
    %v4233 = vadd.f32 %v4225, 1e-05
    %v4234 = vrsqrt.pop %v4226
    %v4235 = vrsqrt.pop %v4227
    %v4236 = vrsqrt.pop %v4228
    %v4237 = vrsqrt.pop %v4229
    %v4238 = vrsqrt.pop %v4230
    %v4239 = vrsqrt.pop %v4231
    %v4240 = vrsqrt.pop %v4232
    %v4241 = vrsqrt.pop %v4233
    %v4242 = vmul.f32 %v4178, %v4234
    %v4243 = vmul.f32 %v4179, %v4235
    %v4244 = vmul.f32 %v4180, %v4236
    %v4245 = vmul.f32 %v4181, %v4237
    %v4246 = vmul.f32 %v4182, %v4238
    %v4247 = vmul.f32 %v4183, %v4239
    %v4248 = vmul.f32 %v4184, %v4240
    %v4249 = vmul.f32 %v4185, %v4241
    %v4250 = vld [vmem:[%s8 + $0x98] sm:$0x1]
    %v4251 = vlaneseq
    %v4252 = vshrl.u32 %v4251, 7
    %v4253 = vsub.s32 0, %v4252
    %v4254 = vrot.slane %v4250, %v4253
    %v4255 = vmul.f32 %v4242, %v4254
    %v4256 = vmul.f32 %v4243, %v4254
    %v4257 = vmul.f32 %v4244, %v4254
    %v4258 = vmul.f32 %v4245, %v4254
    %v4259 = vmul.f32 %v4246, %v4254
    %v4260 = vmul.f32 %v4247, %v4254
    %v4261 = vmul.f32 %v4248, %v4254
    %v4262 = vmul.f32 %v4249, %v4254
    %v4263 = vld [vmem:[%s8 + $0xa0] sm:$0x1]
    %v4264 = vlaneseq
    %v4265 = vshrl.u32 %v4264, 7
    %v4266 = vsub.s32 0, %v4265
    %v4267 = vrot.slane %v4263, %v4266
    %v4268 = vadd.f32 %v4255, %v4267
    %v4269 = vadd.f32 %v4256, %v4267
    %v4270 = vadd.f32 %v4257, %v4267
    %v4271 = vadd.f32 %v4258, %v4267
    %v4272 = vadd.f32 %v4259, %v4267
    %v4273 = vadd.f32 %v4260, %v4267
    %v4274 = vadd.f32 %v4261, %v4267
    %v4275 = vadd.f32 %v4262, %v4267
    %v4276 = vpack.c.bf16 %v4269, %v4268
    %v4277 = vpack.c.bf16 %v4271, %v4270
    %v4278 = vpack.c.bf16 %v4273, %v4272
    %v4279 = vpack.c.bf16 %v4275, %v4274
    %v4281 = vsel %vm575, %v4276, 0
    %v4284 = vsel %vm575, %v4277, 0
    %v4287 = vsel %vm575, %v4278, 0
    %v4290 = vsel %vm575, %v4279, 0
    %4292 = vmatprep.subr.bf16.mxu0 0
    %4293 = vmatpush1.bf16.msra.mxu0 0
    %4294 = vmatprep.subr.bf16.mxu0 0
    %4295 = vmatpush1.bf16.msra.mxu0 0
    %4296 = vmatprep.subr.bf16.mxu0 0
    %4297 = vmatpush1.bf16.msra.mxu0 0
    %4298 = vmatprep.subr.bf16.mxu0 0
    %4299 = vmatpush1.bf16.msra.mxu0 0
    %4300 = vmatprep.subr.bf16.mxu0 0
    %4301 = vmatpush1.bf16.msra.mxu0 0
    %4302 = vmatprep.subr.bf16.mxu0 0
    %4303 = vmatpush1.bf16.msra.mxu0 0
    %4304 = vmatprep.subr.bf16.mxu0 0
    %4305 = vmatpush1.bf16.msra.mxu0 %v2181
    %4306 = vmatprep.subr.bf16.mxu0 0
    %4307 = vmatpush1.bf16.msra.mxu0 %v2180
    %4308 = vmatprep.subr.bf16.mxu0 0
    %4309 = vmatpush2.bf16.msra.mxu0 0
    %4310 = vmatprep.subr.bf16.mxu0 0
    %4311 = vmatpush2.bf16.msra.mxu0 0
    %4312 = vmatprep.subr.bf16.mxu0 0
    %4313 = vmatpush2.bf16.msra.mxu0 0
    %4314 = vmatprep.subr.bf16.mxu0 0
    %4315 = vmatpush2.bf16.msra.mxu0 0
    %4316 = vmatprep.subr.bf16.mxu0 0
    %4317 = vmatpush2.bf16.msra.mxu0 0
    %4318 = vmatprep.subr.bf16.mxu0 0
    %4319 = vmatpush2.bf16.msra.mxu0 0
    %4320 = vmatprep.subr.bf16.mxu0 0
    %4321 = vmatpush2.bf16.msra.mxu0 0
    %4322 = vmatprep.subr.bf16.mxu0 0
    %4323 = vmatpush2.bf16.msra.mxu0 0
    %4324 = vmatprep.mubr.bf16.mxu0 0
    %4325 = vmatmul.mubr.bf16.gmra.mxu0 %v4281
    %v4326 = vpop.f32.mrf.mxu0
    %v4327 = vadd.f32 %v2171, %v4326
    %v4328 = vpop.f32.mrf.mxu0
    %v4329 = vpop.f32.mrf.mxu0
    %v4330 = vadd.f32 %v2171, %v4329
    %v4331 = vpop.f32.mrf.mxu0
    %4332 = vmatprep.mubr.bf16.mxu0 0
    %4333 = vmatmul.mubr.bf16.gmra.mxu0 %v4284
    %v4334 = vpop.f32.mrf.mxu0
    %v4335 = vadd.f32 %v2171, %v4334
    %v4336 = vpop.f32.mrf.mxu0
    %v4337 = vpop.f32.mrf.mxu0
    %v4338 = vadd.f32 %v2171, %v4337
    %v4339 = vpop.f32.mrf.mxu0
    %4340 = vmatprep.mubr.bf16.mxu0 0
    %4341 = vmatmul.mubr.bf16.gmra.mxu0 %v4287
    %v4342 = vpop.f32.mrf.mxu0
    %v4343 = vadd.f32 %v2171, %v4342
    %v4344 = vpop.f32.mrf.mxu0
    %v4345 = vpop.f32.mrf.mxu0
    %v4346 = vadd.f32 %v2171, %v4345
    %v4347 = vpop.f32.mrf.mxu0
    %4348 = vmatprep.mubr.bf16.mxu0 0
    %4349 = vmatmul.mubr.bf16.gmra.mxu0 %v4290
    %v4350 = vpop.f32.mrf.mxu0
    %v4351 = vadd.f32 %v2171, %v4350
    %v4352 = vpop.f32.mrf.mxu0
    %v4353 = vpop.f32.mrf.mxu0
    %v4354 = vadd.f32 %v2171, %v4353
    %v4355 = vpop.f32.mrf.mxu0
    %4356 = vdwg.mxu0
    %v4357 = vmax.f32 %v4327, 0.0
    %v4358 = vmax.f32 %v4330, 0.0
    %v4359 = vmax.f32 %v4335, 0.0
    %v4360 = vmax.f32 %v4338, 0.0
    %v4361 = vmax.f32 %v4343, 0.0
    %v4362 = vmax.f32 %v4346, 0.0
    %v4363 = vmax.f32 %v4351, 0.0
    %v4364 = vmax.f32 %v4354, 0.0
    %v4365 = vld [vmem:[%s3] sm:$0xff]
    %v4366 = vld [vmem:[%s3 + $0x8] sm:$0xff]
    %v4367 = vld [vmem:[%s3 + $0x10] sm:$0xff]
    %v4368 = vld [vmem:[%s3 + $0x18] sm:$0xff]
    %v4369 = vld [vmem:[%s3 + $0x20] sm:$0xff]
    %v4370 = vld [vmem:[%s3 + $0x28] sm:$0xff]
    %v4371 = vld [vmem:[%s3 + $0x30] sm:$0xff]
    %v4372 = vld [vmem:[%s3 + $0x38] sm:$0xff]
    %v4373 = vld [vmem:[%s7 + $0xc8] sm:$0xf]
    %v4374 = vld [vmem:[%s7 + $0xcc] sm:$0x1]
    %v4375 = vpack.c.bf16 %v4358, %v4357
    %v4376 = vpack.c.bf16 %v4360, %v4359
    %v4377 = vpack.c.bf16 %v4362, %v4361
    %v4378 = vpack.c.bf16 %v4364, %v4363
    %v4379 = vld [vmem:[%s7 + $0xd0] sm:$0xf]
    %v4380 = vld [vmem:[%s7 + $0xd4] sm:$0x1]
    %v4381 = vpack.c.bf16 %v4366, %v4365
    %v4382 = vpack.c.bf16 %v4368, %v4367
    %v4383 = vpack.c.bf16 %v4370, %v4369
    %v4384 = vpack.c.bf16 %v4372, %v4371
    %v4387 = vunpack.c.l.b16 %v4379
    %v4388 = vunpack.c.l.b16 %v4380
    %v4389 = vpack.c.b16 %v4388, %v4387
    %vm4390 = vcmask 72704
    %v4392 = vsel %vm4390, %v4381, 0
    %v4395 = vsel %vm4390, %v4382, 0
    %v4398 = vsel %vm4390, %v4383, 0
    %v4401 = vsel %vm4390, %v4384, 0
    %vm4403 = vcmask 1044480
    %v4404 = vsel %vm375, 4294967295, 65535
    %v4405 = vsel %vm4403, %v4404, 0
    %v4407 = vand.u32 %v4389, %v4405
    %4409 = vmatprep.subr.bf16.mxu0 0
    %4410 = vmatpush1.bf16.msra.mxu0 0
    %4411 = vmatprep.subr.bf16.mxu0 0
    %4412 = vmatpush1.bf16.msra.mxu0 0
    %4413 = vmatprep.subr.bf16.mxu0 0
    %4414 = vmatpush1.bf16.msra.mxu0 0
    %4415 = vmatprep.subr.bf16.mxu0 0
    %4416 = vmatpush1.bf16.msra.mxu0 0
    %4417 = vmatprep.subr.bf16.mxu0 0
    %4418 = vmatpush1.bf16.msra.mxu0 0
    %4419 = vmatprep.subr.bf16.mxu0 0
    %4420 = vmatpush1.bf16.msra.mxu0 0
    %4421 = vmatprep.subr.bf16.mxu0 0
    %4422 = vmatpush1.bf16.msra.mxu0 0
    %4423 = vmatprep.subr.bf16.mxu0 0
    %4424 = vmatpush1.bf16.msra.mxu0 %v4407
    %4425 = vmatprep.subr.bf16.mxu0 0
    %4426 = vmatpush2.bf16.msra.mxu0 0
    %4427 = vmatprep.subr.bf16.mxu0 0
    %4428 = vmatpush2.bf16.msra.mxu0 0
    %4429 = vmatprep.subr.bf16.mxu0 0
    %4430 = vmatpush2.bf16.msra.mxu0 0
    %4431 = vmatprep.subr.bf16.mxu0 0
    %4432 = vmatpush2.bf16.msra.mxu0 0
    %4433 = vmatprep.subr.bf16.mxu0 0
    %4434 = vmatpush2.bf16.msra.mxu0 0
    %4435 = vmatprep.subr.bf16.mxu0 0
    %4436 = vmatpush2.bf16.msra.mxu0 0
    %4437 = vmatprep.subr.bf16.mxu0 0
    %4438 = vmatpush2.bf16.msra.mxu0 0
    %4439 = vmatprep.subr.bf16.mxu0 0
    %4440 = vmatpush2.bf16.msra.mxu0 0
    %4441 = vmatprep.mubr.bf16.mxu0 0
    %4442 = vmatmul.mubr.bf16.gmra.mxu0 %v4392
    %v4443 = vpop.f32.mrf.mxu0
    %v4444 = vadd.f32 0.0, %v4443
    %v4445 = vpop.f32.mrf.mxu0
    %v4446 = vpop.f32.mrf.mxu0
    %v4447 = vadd.f32 0.0, %v4446
    %v4448 = vpop.f32.mrf.mxu0
    %4449 = vmatprep.mubr.bf16.mxu0 0
    %4450 = vmatmul.mubr.bf16.gmra.mxu0 %v4395
    %v4451 = vpop.f32.mrf.mxu0
    %v4452 = vadd.f32 0.0, %v4451
    %v4453 = vpop.f32.mrf.mxu0
    %v4454 = vpop.f32.mrf.mxu0
    %v4455 = vadd.f32 0.0, %v4454
    %v4456 = vpop.f32.mrf.mxu0
    %4457 = vmatprep.mubr.bf16.mxu0 0
    %4458 = vmatmul.mubr.bf16.gmra.mxu0 %v4398
    %v4459 = vpop.f32.mrf.mxu0
    %v4460 = vadd.f32 0.0, %v4459
    %v4461 = vpop.f32.mrf.mxu0
    %v4462 = vpop.f32.mrf.mxu0
    %v4463 = vadd.f32 0.0, %v4462
    %v4464 = vpop.f32.mrf.mxu0
    %4465 = vmatprep.mubr.bf16.mxu0 0
    %4466 = vmatmul.mubr.bf16.gmra.mxu0 %v4401
    %v4467 = vpop.f32.mrf.mxu0
    %v4468 = vadd.f32 0.0, %v4467
    %v4469 = vpop.f32.mrf.mxu0
    %v4470 = vpop.f32.mrf.mxu0
    %v4471 = vadd.f32 0.0, %v4470
    %v4472 = vpop.f32.mrf.mxu0
    %4473 = vdwg.mxu0
    %v4476 = vunpack.c.l.b16 %v4373
    %v4477 = vunpack.c.l.b16 %v4374
    %v4478 = vpack.c.b16 %v4477, %v4476
    %v4480 = vsel %vm4390, %v4375, 0
    %v4483 = vsel %vm4390, %v4376, 0
    %v4486 = vsel %vm4390, %v4377, 0
    %v4489 = vsel %vm4390, %v4378, 0
    %v4492 = vand.u32 %v4478, %v4405
    %4494 = vmatprep.subr.bf16.mxu0 0
    %4495 = vmatpush1.bf16.msra.mxu0 0
    %4496 = vmatprep.subr.bf16.mxu0 0
    %4497 = vmatpush1.bf16.msra.mxu0 0
    %4498 = vmatprep.subr.bf16.mxu0 0
    %4499 = vmatpush1.bf16.msra.mxu0 0
    %4500 = vmatprep.subr.bf16.mxu0 0
    %4501 = vmatpush1.bf16.msra.mxu0 0
    %4502 = vmatprep.subr.bf16.mxu0 0
    %4503 = vmatpush1.bf16.msra.mxu0 0
    %4504 = vmatprep.subr.bf16.mxu0 0
    %4505 = vmatpush1.bf16.msra.mxu0 0
    %4506 = vmatprep.subr.bf16.mxu0 0
    %4507 = vmatpush1.bf16.msra.mxu0 0
    %4508 = vmatprep.subr.bf16.mxu0 0
    %4509 = vmatpush1.bf16.msra.mxu0 %v4492
    %4510 = vmatprep.subr.bf16.mxu0 0
    %4511 = vmatpush2.bf16.msra.mxu0 0
    %4512 = vmatprep.subr.bf16.mxu0 0
    %4513 = vmatpush2.bf16.msra.mxu0 0
    %4514 = vmatprep.subr.bf16.mxu0 0
    %4515 = vmatpush2.bf16.msra.mxu0 0
    %4516 = vmatprep.subr.bf16.mxu0 0
    %4517 = vmatpush2.bf16.msra.mxu0 0
    %4518 = vmatprep.subr.bf16.mxu0 0
    %4519 = vmatpush2.bf16.msra.mxu0 0
    %4520 = vmatprep.subr.bf16.mxu0 0
    %4521 = vmatpush2.bf16.msra.mxu0 0
    %4522 = vmatprep.subr.bf16.mxu0 0
    %4523 = vmatpush2.bf16.msra.mxu0 0
    %4524 = vmatprep.subr.bf16.mxu0 0
    %4525 = vmatpush2.bf16.msra.mxu0 0
    %4526 = vmatprep.mubr.bf16.mxu0 0
    %4527 = vmatmul.mubr.bf16.gmra.mxu0 %v4480
    %v4528 = vpop.f32.mrf.mxu0
    %v4529 = vadd.f32 %v4444, %v4528
    %v4530 = vpop.f32.mrf.mxu0
    %v4531 = vpop.f32.mrf.mxu0
    %v4532 = vadd.f32 %v4447, %v4531
    %v4533 = vpop.f32.mrf.mxu0
    %4534 = vmatprep.mubr.bf16.mxu0 0
    %4535 = vmatmul.mubr.bf16.gmra.mxu0 %v4483
    %v4536 = vpop.f32.mrf.mxu0
    %v4537 = vadd.f32 %v4452, %v4536
    %v4538 = vpop.f32.mrf.mxu0
    %v4539 = vpop.f32.mrf.mxu0
    %v4540 = vadd.f32 %v4455, %v4539
    %v4541 = vpop.f32.mrf.mxu0
    %4542 = vmatprep.mubr.bf16.mxu0 0
    %4543 = vmatmul.mubr.bf16.gmra.mxu0 %v4486
    %v4544 = vpop.f32.mrf.mxu0
    %v4545 = vadd.f32 %v4460, %v4544
    %v4546 = vpop.f32.mrf.mxu0
    %v4547 = vpop.f32.mrf.mxu0
    %v4548 = vadd.f32 %v4463, %v4547
    %v4549 = vpop.f32.mrf.mxu0
    %4550 = vmatprep.mubr.bf16.mxu0 0
    %4551 = vmatmul.mubr.bf16.gmra.mxu0 %v4489
    %v4552 = vpop.f32.mrf.mxu0
    %v4553 = vadd.f32 %v4468, %v4552
    %v4554 = vpop.f32.mrf.mxu0
    %v4555 = vpop.f32.mrf.mxu0
    %v4556 = vadd.f32 %v4471, %v4555
    %v4557 = vpop.f32.mrf.mxu0
    %4558 = vdwg.mxu0
    %v4559 = vxor.u32 %v4529, 2147483648
    %v4560 = vxor.u32 %v4532, 2147483648
    %v4561 = vxor.u32 %v4537, 2147483648
    %v4562 = vxor.u32 %v4540, 2147483648
    %v4563 = vxor.u32 %v4545, 2147483648
    %v4564 = vxor.u32 %v4548, 2147483648
    %v4565 = vxor.u32 %v4553, 2147483648
    %v4566 = vxor.u32 %v4556, 2147483648
    %v4567 = vmul.f32 %v4559, 1.442695
    %v4568 = vpow.pop %v4567
    %v4569 = vmul.f32 %v4560, 1.442695
    %v4570 = vpow.pop %v4569
    %v4571 = vmul.f32 %v4561, 1.442695
    %v4572 = vpow.pop %v4571
    %v4573 = vmul.f32 %v4562, 1.442695
    %v4574 = vpow.pop %v4573
    %v4575 = vmul.f32 %v4563, 1.442695
    %v4576 = vpow.pop %v4575
    %v4577 = vmul.f32 %v4564, 1.442695
    %v4578 = vpow.pop %v4577
    %v4579 = vmul.f32 %v4565, 1.442695
    %v4580 = vpow.pop %v4579
    %v4581 = vmul.f32 %v4566, 1.442695
    %v4582 = vpow.pop %v4581
    %v4583 = vadd.f32 %v4568, 1.0
    %v4584 = vadd.f32 %v4570, 1.0
    %v4585 = vadd.f32 %v4572, 1.0
    %v4586 = vadd.f32 %v4574, 1.0
    %v4587 = vadd.f32 %v4576, 1.0
    %v4588 = vadd.f32 %v4578, 1.0
    %v4589 = vadd.f32 %v4580, 1.0
    %v4590 = vadd.f32 %v4582, 1.0
    %v4591 = vrcp.pop %v4583
    %v4592 = vmul.f32 1.0, %v4591
    %v4593 = vrcp.pop %v4584
    %v4594 = vmul.f32 1.0, %v4593
    %v4595 = vrcp.pop %v4585
    %v4596 = vmul.f32 1.0, %v4595
    %v4597 = vrcp.pop %v4586
    %v4598 = vmul.f32 1.0, %v4597
    %v4599 = vrcp.pop %v4587
    %v4600 = vmul.f32 1.0, %v4599
    %v4601 = vrcp.pop %v4588
    %v4602 = vmul.f32 1.0, %v4601
    %v4603 = vrcp.pop %v4589
    %v4604 = vmul.f32 1.0, %v4603
    %v4605 = vrcp.pop %v4590
    %v4606 = vmul.f32 1.0, %v4605
    %v4607 = vmul.f32 %v4592, %v4357
    %v4608 = vmul.f32 %v4594, %v4358
    %v4609 = vmul.f32 %v4596, %v4359
    %v4610 = vmul.f32 %v4598, %v4360
    %v4611 = vmul.f32 %v4600, %v4361
    %v4612 = vmul.f32 %v4602, %v4362
    %v4613 = vmul.f32 %v4604, %v4363
    %v4614 = vmul.f32 %v4606, %v4364
    %v4615 = vsub.f32 1.0, %v4592
    %v4616 = vsub.f32 1.0, %v4594
    %v4617 = vsub.f32 1.0, %v4596
    %v4618 = vsub.f32 1.0, %v4598
    %v4619 = vsub.f32 1.0, %v4600
    %v4620 = vsub.f32 1.0, %v4602
    %v4621 = vsub.f32 1.0, %v4604
    %v4622 = vsub.f32 1.0, %v4606
    %v4623 = vmul.f32 %v4615, %v4365
    %v4624 = vmul.f32 %v4616, %v4366
    %v4625 = vmul.f32 %v4617, %v4367
    %v4626 = vmul.f32 %v4618, %v4368
    %v4627 = vmul.f32 %v4619, %v4369
    %v4628 = vmul.f32 %v4620, %v4370
    %v4629 = vmul.f32 %v4621, %v4371
    %v4630 = vmul.f32 %v4622, %v4372
    %v4631 = vadd.f32 %v4607, %v4623
    %v4632 = vadd.f32 %v4608, %v4624
    %v4633 = vadd.f32 %v4609, %v4625
    %v4634 = vadd.f32 %v4610, %v4626
    %v4635 = vadd.f32 %v4611, %v4627
    %v4636 = vadd.f32 %v4612, %v4628
    %v4637 = vadd.f32 %v4613, %v4629
    %v4638 = vadd.f32 %v4614, %v4630
    %v4639 = vld [vmem:[%s7 + $0xd8] sm:$0xf]
    %v4640 = vld [vmem:[%s7 + $0xdc] sm:$0x1]
    %v4641 = vpack.c.bf16 %v4632, %v4631
    %v4642 = vpack.c.bf16 %v4634, %v4633
    %v4643 = vpack.c.bf16 %v4636, %v4635
    %v4644 = vpack.c.bf16 %v4638, %v4637
    %v4645 = vld [vmem:[%s8 + $0xa8] sm:$0x1]
    %v4646 = vlaneseq
    %v4647 = vshrl.u32 %v4646, 7
    %v4648 = vsub.s32 0, %v4647
    %v4649 = vrot.slane %v4645, %v4648
    %v4652 = vunpack.c.l.b16 %v4639
    %v4653 = vunpack.c.l.b16 %v4640
    %v4654 = vpack.c.b16 %v4653, %v4652
    %v4656 = vsel %vm4390, %v4641, 0
    %v4659 = vsel %vm4390, %v4642, 0
    %v4662 = vsel %vm4390, %v4643, 0
    %v4665 = vsel %vm4390, %v4644, 0
    %v4668 = vand.u32 %v4654, %v4405
    %4670 = vmatprep.subr.bf16.mxu0 0
    %4671 = vmatpush1.bf16.msra.mxu0 0
    %4672 = vmatprep.subr.bf16.mxu0 0
    %4673 = vmatpush1.bf16.msra.mxu0 0
    %4674 = vmatprep.subr.bf16.mxu0 0
    %4675 = vmatpush1.bf16.msra.mxu0 0
    %4676 = vmatprep.subr.bf16.mxu0 0
    %4677 = vmatpush1.bf16.msra.mxu0 0
    %4678 = vmatprep.subr.bf16.mxu0 0
    %4679 = vmatpush1.bf16.msra.mxu0 0
    %4680 = vmatprep.subr.bf16.mxu0 0
    %4681 = vmatpush1.bf16.msra.mxu0 0
    %4682 = vmatprep.subr.bf16.mxu0 0
    %4683 = vmatpush1.bf16.msra.mxu0 0
    %4684 = vmatprep.subr.bf16.mxu0 0
    %4685 = vmatpush1.bf16.msra.mxu0 %v4668
    %4686 = vmatprep.subr.bf16.mxu0 0
    %4687 = vmatpush2.bf16.msra.mxu0 0
    %4688 = vmatprep.subr.bf16.mxu0 0
    %4689 = vmatpush2.bf16.msra.mxu0 0
    %4690 = vmatprep.subr.bf16.mxu0 0
    %4691 = vmatpush2.bf16.msra.mxu0 0
    %4692 = vmatprep.subr.bf16.mxu0 0
    %4693 = vmatpush2.bf16.msra.mxu0 0
    %4694 = vmatprep.subr.bf16.mxu0 0
    %4695 = vmatpush2.bf16.msra.mxu0 0
    %4696 = vmatprep.subr.bf16.mxu0 0
    %4697 = vmatpush2.bf16.msra.mxu0 0
    %4698 = vmatprep.subr.bf16.mxu0 0
    %4699 = vmatpush2.bf16.msra.mxu0 0
    %4700 = vmatprep.subr.bf16.mxu0 0
    %4701 = vmatpush2.bf16.msra.mxu0 0
    %4702 = vmatprep.mubr.bf16.mxu0 0
    %4703 = vmatmul.mubr.bf16.gmra.mxu0 %v4656
    %v4704 = vpop.f32.mrf.mxu0
    %v4705 = vadd.f32 %v4649, %v4704
    %v4706 = vpop.f32.mrf.mxu0
    %v4707 = vpop.f32.mrf.mxu0
    %v4708 = vadd.f32 %v4649, %v4707
    %v4709 = vpop.f32.mrf.mxu0
    %4710 = vmatprep.mubr.bf16.mxu0 0
    %4711 = vmatmul.mubr.bf16.gmra.mxu0 %v4659
    %v4712 = vpop.f32.mrf.mxu0
    %v4713 = vadd.f32 %v4649, %v4712
    %v4714 = vpop.f32.mrf.mxu0
    %v4715 = vpop.f32.mrf.mxu0
    %v4716 = vadd.f32 %v4649, %v4715
    %v4717 = vpop.f32.mrf.mxu0
    %4718 = vmatprep.mubr.bf16.mxu0 0
    %4719 = vmatmul.mubr.bf16.gmra.mxu0 %v4662
    %v4720 = vpop.f32.mrf.mxu0
    %v4721 = vadd.f32 %v4649, %v4720
    %v4722 = vpop.f32.mrf.mxu0
    %v4723 = vpop.f32.mrf.mxu0
    %v4724 = vadd.f32 %v4649, %v4723
    %v4725 = vpop.f32.mrf.mxu0
    %4726 = vmatprep.mubr.bf16.mxu0 0
    %4727 = vmatmul.mubr.bf16.gmra.mxu0 %v4665
    %v4728 = vpop.f32.mrf.mxu0
    %v4729 = vadd.f32 %v4649, %v4728
    %v4730 = vpop.f32.mrf.mxu0
    %v4731 = vpop.f32.mrf.mxu0
    %v4732 = vadd.f32 %v4649, %v4731
    %v4733 = vpop.f32.mrf.mxu0
    %4734 = vdwg.mxu0
    %v4735 = vadd.f32 %v4705, %v2231
    %v4736 = vadd.f32 %v4708, %v2234
    %v4737 = vadd.f32 %v4713, %v2239
    %v4738 = vadd.f32 %v4716, %v2242
    %v4739 = vadd.f32 %v4721, %v2247
    %v4740 = vadd.f32 %v4724, %v2250
    %v4741 = vadd.f32 %v4729, %v2255
    %v4742 = vadd.f32 %v4732, %v2258
    %v4743 = vld [vmem:[%s5] sm:$0xff]
    %v4744 = vld [vmem:[%s5 + $0x8] sm:$0xff]
    %v4745 = vld [vmem:[%s5 + $0x10] sm:$0xff]
    %v4746 = vld [vmem:[%s5 + $0x18] sm:$0xff]
    %v4747 = vld [vmem:[%s5 + $0x20] sm:$0xff]
    %v4748 = vld [vmem:[%s5 + $0x28] sm:$0xff]
    %v4749 = vld [vmem:[%s5 + $0x30] sm:$0xff]
    %v4750 = vld [vmem:[%s5 + $0x38] sm:$0xff]
    %v4751 = vsel %vm4390, %v4735, -inf
    %4752 = vmax.xlane.f32.xlu0 %v4751
    %v4753 = vpop.xlane.xlu0 %4752
    %v4754 = vsel %vm4390, %v4736, -inf
    %4755 = vmax.xlane.f32.xlu0 %v4754
    %v4756 = vpop.xlane.xlu0 %4755
    %v4757 = vsel %vm4390, %v4737, -inf
    %4758 = vmax.xlane.f32.xlu0 %v4757
    %v4759 = vpop.xlane.xlu0 %4758
    %v4760 = vsel %vm4390, %v4738, -inf
    %4761 = vmax.xlane.f32.xlu0 %v4760
    %v4762 = vpop.xlane.xlu0 %4761
    %v4763 = vsel %vm4390, %v4739, -inf
    %4764 = vmax.xlane.f32.xlu0 %v4763
    %v4765 = vpop.xlane.xlu0 %4764
    %v4766 = vsel %vm4390, %v4740, -inf
    %4767 = vmax.xlane.f32.xlu0 %v4766
    %v4768 = vpop.xlane.xlu0 %4767
    %v4769 = vsel %vm4390, %v4741, -inf
    %4770 = vmax.xlane.f32.xlu0 %v4769
    %v4771 = vpop.xlane.xlu0 %4770
    %v4772 = vsel %vm4390, %v4742, -inf
    %4773 = vmax.xlane.f32.xlu0 %v4772
    %v4774 = vpop.xlane.xlu0 %4773
    %v4775 = vsub.f32 %v4735, %v4753
    %v4776 = vsub.f32 %v4736, %v4756
    %v4777 = vsub.f32 %v4737, %v4759
    %v4778 = vsub.f32 %v4738, %v4762
    %v4779 = vsub.f32 %v4739, %v4765
    %v4780 = vsub.f32 %v4740, %v4768
    %v4781 = vsub.f32 %v4741, %v4771
    %v4782 = vsub.f32 %v4742, %v4774
    %v4783 = vmul.f32 %v4775, 1.442695
    %v4784 = vpow.pop %v4783
    %v4785 = vmul.f32 %v4776, 1.442695
    %v4786 = vpow.pop %v4785
    %v4787 = vmul.f32 %v4777, 1.442695
    %v4788 = vpow.pop %v4787
    %v4789 = vmul.f32 %v4778, 1.442695
    %v4790 = vpow.pop %v4789
    %v4791 = vmul.f32 %v4779, 1.442695
    %v4792 = vpow.pop %v4791
    %v4793 = vmul.f32 %v4780, 1.442695
    %v4794 = vpow.pop %v4793
    %v4795 = vmul.f32 %v4781, 1.442695
    %v4796 = vpow.pop %v4795
    %v4797 = vmul.f32 %v4782, 1.442695
    %v4798 = vpow.pop %v4797
    %v4799 = vsel %vm4390, %v4784, 0.0
    %4800 = vadd.xlane.f32.xlu0 %v4799
    %v4801 = vpop.xlane.xlu0 %4800
    %v4802 = vsel %vm4390, %v4786, 0.0
    %4803 = vadd.xlane.f32.xlu0 %v4802
    %v4804 = vpop.xlane.xlu0 %4803
    %v4805 = vsel %vm4390, %v4788, 0.0
    %4806 = vadd.xlane.f32.xlu0 %v4805
    %v4807 = vpop.xlane.xlu0 %4806
    %v4808 = vsel %vm4390, %v4790, 0.0
    %4809 = vadd.xlane.f32.xlu0 %v4808
    %v4810 = vpop.xlane.xlu0 %4809
    %v4811 = vsel %vm4390, %v4792, 0.0
    %4812 = vadd.xlane.f32.xlu0 %v4811
    %v4813 = vpop.xlane.xlu0 %4812
    %v4814 = vsel %vm4390, %v4794, 0.0
    %4815 = vadd.xlane.f32.xlu0 %v4814
    %v4816 = vpop.xlane.xlu0 %4815
    %v4817 = vsel %vm4390, %v4796, 0.0
    %4818 = vadd.xlane.f32.xlu0 %v4817
    %v4819 = vpop.xlane.xlu0 %4818
    %v4820 = vsel %vm4390, %v4798, 0.0
    %4821 = vadd.xlane.f32.xlu0 %v4820
    %v4822 = vpop.xlane.xlu0 %4821
    %v4823 = vlog2.pop %v4801
    %v4824 = vmul.f32 %v4823, 0.6931472
    %v4825 = vlog2.pop %v4804
    %v4826 = vmul.f32 %v4825, 0.6931472
    %v4827 = vlog2.pop %v4807
    %v4828 = vmul.f32 %v4827, 0.6931472
    %v4829 = vlog2.pop %v4810
    %v4830 = vmul.f32 %v4829, 0.6931472
    %v4831 = vlog2.pop %v4813
    %v4832 = vmul.f32 %v4831, 0.6931472
    %v4833 = vlog2.pop %v4816
    %v4834 = vmul.f32 %v4833, 0.6931472
    %v4835 = vlog2.pop %v4819
    %v4836 = vmul.f32 %v4835, 0.6931472
    %v4837 = vlog2.pop %v4822
    %v4838 = vmul.f32 %v4837, 0.6931472
    %v4839 = vadd.f32 %v4824, %v4753
    %v4840 = vadd.f32 %v4826, %v4756
    %v4841 = vadd.f32 %v4828, %v4759
    %v4842 = vadd.f32 %v4830, %v4762
    %v4843 = vadd.f32 %v4832, %v4765
    %v4844 = vadd.f32 %v4834, %v4768
    %v4845 = vadd.f32 %v4836, %v4771
    %v4846 = vadd.f32 %v4838, %v4774
    %v4847 = vlaneseq
    %v4848 = vand.u32 %v4847, 127
    %4849 = vset.pattern.permute.xlu0 0
    %4850 = vperm.xlu0 %4849, %v4743
    %v4851 = vpop.permute.xlu0 %4850
    %4852 = vset.pattern.permute.xlu0 0
    %4853 = vperm.xlu0 %4852, %v4744
    %v4854 = vpop.permute.xlu0 %4853
    %4855 = vset.pattern.permute.xlu0 0
    %4856 = vperm.xlu0 %4855, %v4745
    %v4857 = vpop.permute.xlu0 %4856
    %4858 = vset.pattern.permute.xlu0 0
    %4859 = vperm.xlu0 %4858, %v4746
    %v4860 = vpop.permute.xlu0 %4859
    %4861 = vset.pattern.permute.xlu0 0
    %4862 = vperm.xlu0 %4861, %v4747
    %v4863 = vpop.permute.xlu0 %4862
    %4864 = vset.pattern.permute.xlu0 0
    %4865 = vperm.xlu0 %4864, %v4748
    %v4866 = vpop.permute.xlu0 %4865
    %4867 = vset.pattern.permute.xlu0 0
    %4868 = vperm.xlu0 %4867, %v4749
    %v4869 = vpop.permute.xlu0 %4868
    %4870 = vset.pattern.permute.xlu0 0
    %4871 = vperm.xlu0 %4870, %v4750
    %v4872 = vpop.permute.xlu0 %4871
    %vm4873 = vcmp.eq.s32.totalorder %v4848, %v4851
    %vm4874 = vcmp.eq.s32.totalorder %v4848, %v4854
    %vm4875 = vcmp.eq.s32.totalorder %v4848, %v4857
    %vm4876 = vcmp.eq.s32.totalorder %v4848, %v4860
    %vm4877 = vcmp.eq.s32.totalorder %v4848, %v4863
    %vm4878 = vcmp.eq.s32.totalorder %v4848, %v4866
    %vm4879 = vcmp.eq.s32.totalorder %v4848, %v4869
    %vm4880 = vcmp.eq.s32.totalorder %v4848, %v4872
    %v4881 = vsel %vm4873, 1, 0
    %v4882 = vsel %vm4874, 1, 0
    %v4883 = vsel %vm4875, 1, 0
    %v4884 = vsel %vm4876, 1, 0
    %v4885 = vsel %vm4877, 1, 0
    %v4886 = vsel %vm4878, 1, 0
    %v4887 = vsel %vm4879, 1, 0
    %v4888 = vsel %vm4880, 1, 0
    %v4889 = vcvt.s32.f32 %v4881
    %v4890 = vcvt.s32.f32 %v4882
    %v4891 = vcvt.s32.f32 %v4883
    %v4892 = vcvt.s32.f32 %v4884
    %v4893 = vcvt.s32.f32 %v4885
    %v4894 = vcvt.s32.f32 %v4886
    %v4895 = vcvt.s32.f32 %v4887
    %v4896 = vcvt.s32.f32 %v4888
    %v4897 = vmul.f32 %v4735, %v4889
    %v4898 = vmul.f32 %v4736, %v4890
    %v4899 = vmul.f32 %v4737, %v4891
    %v4900 = vmul.f32 %v4738, %v4892
    %v4901 = vmul.f32 %v4739, %v4893
    %v4902 = vmul.f32 %v4740, %v4894
    %v4903 = vmul.f32 %v4741, %v4895
    %v4904 = vmul.f32 %v4742, %v4896
    %v4905 = vsel %vm4390, %v4897, 0.0
    %4906 = vadd.xlane.f32.xlu0 %v4905
    %v4907 = vpop.xlane.xlu0 %4906
    %v4908 = vsel %vm4390, %v4898, 0.0
    %4909 = vadd.xlane.f32.xlu0 %v4908
    %v4910 = vpop.xlane.xlu0 %4909
    %v4911 = vsel %vm4390, %v4899, 0.0
    %4912 = vadd.xlane.f32.xlu0 %v4911
    %v4913 = vpop.xlane.xlu0 %4912
    %v4914 = vsel %vm4390, %v4900, 0.0
    %4915 = vadd.xlane.f32.xlu0 %v4914
    %v4916 = vpop.xlane.xlu0 %4915
    %v4917 = vsel %vm4390, %v4901, 0.0
    %4918 = vadd.xlane.f32.xlu0 %v4917
    %v4919 = vpop.xlane.xlu0 %4918
    %v4920 = vsel %vm4390, %v4902, 0.0
    %4921 = vadd.xlane.f32.xlu0 %v4920
    %v4922 = vpop.xlane.xlu0 %4921
    %v4923 = vsel %vm4390, %v4903, 0.0
    %4924 = vadd.xlane.f32.xlu0 %v4923
    %v4925 = vpop.xlane.xlu0 %4924
    %v4926 = vsel %vm4390, %v4904, 0.0
    %4927 = vadd.xlane.f32.xlu0 %v4926
    %v4928 = vpop.xlane.xlu0 %4927
    %v4929 = vsub.f32 %v4907, %v4839
    %v4930 = vsub.f32 %v4910, %v4840
    %v4931 = vsub.f32 %v4913, %v4841
    %v4932 = vsub.f32 %v4916, %v4842
    %v4933 = vsub.f32 %v4919, %v4843
    %v4934 = vsub.f32 %v4922, %v4844
    %v4935 = vsub.f32 %v4925, %v4845
    %v4936 = vsub.f32 %v4928, %v4846
    %vm4937 = vcmp.ne.s32.totalorder %v4743, 0
    %vm4938 = vcmp.ne.s32.totalorder %v4744, 0
    %vm4939 = vcmp.ne.s32.totalorder %v4745, 0
    %vm4940 = vcmp.ne.s32.totalorder %v4746, 0
    %vm4941 = vcmp.ne.s32.totalorder %v4747, 0
    %vm4942 = vcmp.ne.s32.totalorder %v4748, 0
    %vm4943 = vcmp.ne.s32.totalorder %v4749, 0
    %vm4944 = vcmp.ne.s32.totalorder %v4750, 0
    %v4945 = vsel %vm4937, 1, 0
    %v4946 = vsel %vm4938, 1, 0
    %v4947 = vsel %vm4939, 1, 0
    %v4948 = vsel %vm4940, 1, 0
    %v4949 = vsel %vm4941, 1, 0
    %v4950 = vsel %vm4942, 1, 0
    %v4951 = vsel %vm4943, 1, 0
    %v4952 = vsel %vm4944, 1, 0
    %v4953 = vcvt.s32.f32 %v4945
    %v4954 = vcvt.s32.f32 %v4946
    %v4955 = vcvt.s32.f32 %v4947
    %v4956 = vcvt.s32.f32 %v4948
    %v4957 = vcvt.s32.f32 %v4949
    %v4958 = vcvt.s32.f32 %v4950
    %v4959 = vcvt.s32.f32 %v4951
    %v4960 = vcvt.s32.f32 %v4952
    %v4961 = vmul.f32 %v4929, %v4953
    %v4962 = vmul.f32 %v4930, %v4954
    %v4963 = vmul.f32 %v4931, %v4955
    %v4964 = vmul.f32 %v4932, %v4956
    %v4965 = vmul.f32 %v4933, %v4957
    %v4966 = vmul.f32 %v4934, %v4958
    %v4967 = vmul.f32 %v4935, %v4959
    %v4968 = vmul.f32 %v4936, %v4960
    %vm4969 = vcmask 7168
    %v4970 = vsel %vm4969, %v4961, 0.0
    %v4971 = vsel %vm4969, %v4962, 0.0
    %v4972 = vadd.f32 %v4970, %v4971
    %v4973 = vsel %vm4969, %v4963, 0.0
    %v4974 = vadd.f32 %v4972, %v4973
    %v4975 = vsel %vm4969, %v4964, 0.0
    %v4976 = vadd.f32 %v4974, %v4975
    %v4977 = vsel %vm4969, %v4965, 0.0
    %v4978 = vadd.f32 %v4976, %v4977
    %v4979 = vsel %vm4969, %v4966, 0.0
    %v4980 = vadd.f32 %v4978, %v4979
    %v4981 = vsel %vm4969, %v4967, 0.0
    %v4982 = vadd.f32 %v4980, %v4981
    %v4983 = vsel %vm4969, %v4968, 0.0
    %v4984 = vadd.f32 %v4982, %v4983
    %4985 = vadd.xlane.f32.xlu0 %v4984
    %v4986 = vpop.xlane.xlu0 %4985
    %v4987 = vrot.slane %v4986, 4
    %v4988 = vadd.f32 %v4986, %v4987
    %v4989 = vrot.slane %v4988, 2
    %v4990 = vadd.f32 %v4988, %v4989
    %v4991 = vrot.slane %v4990, 1
    %v4992 = vadd.f32 %v4990, %v4991
    %s4993 = vtos %v4992
    %s4994 = ssub.f32 0.0, %s4993
    %v4995 = vsel %vm4969, %v4953, 0.0
    %v4996 = vsel %vm4969, %v4954, 0.0
    %v4997 = vadd.f32 %v4995, %v4996
    %v4998 = vsel %vm4969, %v4955, 0.0
    %v4999 = vadd.f32 %v4997, %v4998
    %v5000 = vsel %vm4969, %v4956, 0.0
    %v5001 = vadd.f32 %v4999, %v5000
    %v5002 = vsel %vm4969, %v4957, 0.0
    %v5003 = vadd.f32 %v5001, %v5002
    %v5004 = vsel %vm4969, %v4958, 0.0
    %v5005 = vadd.f32 %v5003, %v5004
    %v5006 = vsel %vm4969, %v4959, 0.0
    %v5007 = vadd.f32 %v5005, %v5006
    %v5008 = vsel %vm4969, %v4960, 0.0
    %v5009 = vadd.f32 %v5007, %v5008
    %5010 = vadd.xlane.f32.xlu0 %v5009
    %v5011 = vpop.xlane.xlu0 %5010
    %v5012 = vrot.slane %v5011, 4
    %v5013 = vadd.f32 %v5011, %v5012
    %v5014 = vrot.slane %v5013, 2
    %v5015 = vadd.f32 %v5013, %v5014
    %v5016 = vrot.slane %v5015, 1
    %v5017 = vadd.f32 %v5015, %v5016
    %s5018 = vtos %v5017
    %s5019 = smax.f32 %s5018, 1.0
    %v5020 = vstv %s5019
    %v5021 = vrcp.pop %v5020
    %s5022 = vtos %v5021
    %s5023 = smul.f32 %s4994, %s5022
    %s5024 = scalar_lea.smem [#allocation5], 0
    %5025 = sst [smem:[%s5024]] %s5023
    // Predicated region
    $region38: #{forward_train.1} parent=1 // pred_check
      _
    $region39: #{forward_train.1} parent=1 // pred_check_branch
      %5027 = sbr.rel (0) target = $region41
    $region40: #{forward_train.1} parent=1 // pred_region
      %s5029 = ssub.s32 16, 16
      %5030 = vsyncadd [#allocation6], %s5029
      %5033 = dma.smem_to_hbm [#allocation5], 16, %s9, [#allocation6]
    $region41: #{forward_train.1} parent=1 // pred_fallthru
      _
    // Predicated region
    $region42: #{forward_train.1} parent=1 // pred_check
      _
    $region43: #{forward_train.1} parent=1 // pred_check_branch
      %5035 = sbr.rel (0) target = $region45
    $region44: #{forward_train.1} parent=1 // pred_region
      %5036 = dma.done [#allocation6], 16
    $region45: #{forward_train.1} parent=1 // pred_fallthru
      _
    %5037 = sfence
    %5038 = vsyncpa [#allocation6], 1

</llo_original>
